<compile_context>
chip_gen: v6e
topology: v6e:2x2x1
jax: 0.10.0
libtpu: 0.0.40
codegen_flags: <defaults>
</compile_context>

<pallas_src>
import math

import jax
import jax.numpy as jnp
from jax.experimental import pallas as pl
from jax.experimental.pallas import tpu as pltpu

Z_DIM = 32
NC = 3

ENC_CONVS = [  # (cin, cout, kernel, stride, pad)
    (NC, 32, 4, 2, 1),
    (32, 32, 4, 2, 1),
    (32, 32, 4, 2, 1),
    (32, 32, 4, 2, 1),
]
DEC_DECONVS = [  # (cin, cout, kernel, stride, pad)  -- ConvTranspose2d
    (32, 32, 4, 2, 1),
    (32, 32, 4, 2, 1),
    (32, 32, 4, 2, 1),
    (32, NC, 4, 2, 1),
]


def _round_up(x, m):
    return (x + m - 1) // m * m


# ----------------------------------------------------------------------------
# Pallas kernels
# ----------------------------------------------------------------------------
def _matmul_bias_kernel(a_ref, w_ref, b_ref, o_ref):
    """One (tm, K) x (K, N) tile, full K and N (no reduction grid axis).

    LeakyReLU(True) == negative_slope 1.0 == identity, so no activation math.
    """
    o_ref[...] = (
        jnp.dot(a_ref[...], w_ref[...], preferred_element_type=jnp.float32)
        + b_ref[...]
    ).astype(o_ref.dtype)


def _mlp_head_kernel(flat_ref, eps_ref,
                     w1_ref, b1_ref, w2_ref, b2_ref, w3_ref, b3_ref,
                     dw1_ref, db1_ref, dw2_ref, db2_ref, dw3_ref, db3_ref,
                     dist_ref, dec_ref):
    """Fused: encoder Linears -> reparametrize -> decoder Linears (all rows at once)."""
    def lin(x, w_ref, b_ref):
        return jnp.dot(x, w_ref[...], preferred_element_type=jnp.float32) + b_ref[...]

    h = lin(flat_ref[...], w1_ref, b1_ref)          # Linear(512, 256)  (identity act)
    h = lin(h, w2_ref, b2_ref)                      # Linear(256, 256)
    dist = lin(h, w3_ref, b3_ref)                   # Linear(256, 2*z_dim)
    dist_ref[...] = dist

    mu = dist[:, :Z_DIM]
    logvar = dist[:, Z_DIM:]
    z = mu + jnp.exp(logvar * 0.5) * eps_ref[...]   # reparametrize(mu, logvar)

    d = lin(z, dw1_ref, db1_ref)                    # Linear(z_dim, 256)
    d = lin(d, dw2_ref, db2_ref)                    # Linear(256, 256)
    dec_ref[...] = lin(d, dw3_ref, db3_ref)         # Linear(256, 32*4*4)


# ----------------------------------------------------------------------------
# Pallas wrappers
# ----------------------------------------------------------------------------
def matmul_bias(a, w, bias, *, tm_max=1024):
    """a: [M, K] f32, w: [K, N] f32, bias: [N] f32 -> a @ w + bias  ([M, N] f32)."""
    M, K = a.shape
    Kw, N = w.shape
    assert K == Kw
    tm = min(_round_up(M, 8), tm_max)      # M=2 -> 8, M=32 -> 32, ..., large M -> 1024
    Mp = _round_up(M, tm)
    if Mp != M:
        a = jnp.zeros((Mp, K), a.dtype).at[:M, :].set(a)

    out = pl.pallas_call(
        _matmul_bias_kernel,
        out_shape=jax.ShapeDtypeStruct((Mp, N), jnp.float32),
        grid_spec=pltpu.PrefetchScalarGridSpec(
            num_scalar_prefetch=0,
            grid=(Mp // tm,),
            in_specs=[
                pl.BlockSpec((tm, K), lambda i: (i, 0)),   # patch rows (full true K)
                pl.BlockSpec((K, N), lambda i: (0, 0)),    # full weight, VMEM-resident
                pl.BlockSpec((1, N), lambda i: (0, 0)),    # bias row, VMEM-resident
            ],
            out_specs=pl.BlockSpec((tm, N), lambda i: (i, 0)),
        ),
        compiler_params=pltpu.CompilerParams(
            dimension_semantics=("parallel",),
        ),
    )(a, w, bias.reshape(1, N))
    return out[:M] if Mp != M else out


def mlp_head(flat, eps, enc_lin, dec_lin):
    """One fused Pallas call for the whole MLP head.  flat: [N, 512], eps: [N, 32]."""
    M = flat.shape[0]
    Mp = _round_up(M, 8)
    if Mp != M:
        flat = jnp.zeros((Mp, flat.shape[1]), jnp.float32).at[:M].set(flat)
        eps = jnp.zeros((Mp, eps.shape[1]), jnp.float32).at[:M].set(eps)
    (w1, b1), (w2, b2), (w3, b3) = enc_lin
    (dw1, db1), (dw2, db2), (dw3, db3) = dec_lin
    dist, dec = pl.pallas_call(
        _mlp_head_kernel,
        out_shape=(jax.ShapeDtypeStruct((Mp, 2 * Z_DIM), jnp.float32),
                   jax.ShapeDtypeStruct((Mp, 32 * 4 * 4), jnp.float32)),
    )(flat, eps,
      w1.T, b1.reshape(1, -1), w2.T, b2.reshape(1, -1), w3.T, b3.reshape(1, -1),
      dw1.T, db1.reshape(1, -1), dw2.T, db2.reshape(1, -1), dw3.T, db3.reshape(1, -1))
    return dist[:M], dec[:M]


# ----------------------------------------------------------------------------
# Glue: NHWC im2col / dilation (data movement only; all MACs are in Pallas)
# ----------------------------------------------------------------------------
def im2col_nhwc(x, k, stride, pad):
    """x: [N, H, W, C] -> patches [N*Ho*Wo, k*k*C] ordered (kh, kw, C)."""
    if pad > 0:
        x = jnp.pad(x, ((0, 0), (pad, pad), (pad, pad), (0, 0)))
    N, H, W, C = x.shape
    Ho = (H - k) // stride + 1
    Wo = (W - k) // stride + 1
    cols = []
    for i in range(k):
        for j in range(k):
            cols.append(x[:, i: i + stride * (Ho - 1) + 1: stride,
                             j: j + stride * (Wo - 1) + 1: stride, :])  # [N, Ho, Wo, C]
    stacked = jnp.stack(cols, axis=3)                # [N, Ho, Wo, k*k, C]
    return stacked.reshape(N * Ho * Wo, k * k * C), Ho, Wo


def dilate_and_pad(x, stride, pad_amount):
    """Insert (stride-1) zeros between pixels, then zero-pad. x: [N, H, W, C] (NHWC)."""
    N, H, W, C = x.shape
    Hd = (H - 1) * stride + 1
    Wd = (W - 1) * stride + 1
    x_dil = jnp.zeros((N, Hd, Wd, C), x.dtype).at[:, ::stride, ::stride, :].set(x)
    if pad_amount > 0:
        x_dil = jnp.pad(x_dil, ((0, 0), (pad_amount, pad_amount),
                                (pad_amount, pad_amount), (0, 0)))
    return x_dil


# ----------------------------------------------------------------------------
# Parameter init (mirrors kaiming_init(): Conv2d/Linear -> kaiming_normal, bias=0;
# ConvTranspose2d is NOT touched by kaiming_init, so it keeps PyTorch defaults)
# ----------------------------------------------------------------------------
def init_params(key):
    ks = jax.random.split(key, 16)
    ki = iter(ks)

    def conv_kaiming(k, cin, cout, ksz):
        fan_in = cin * ksz * ksz
        std = math.sqrt(2.0 / fan_in)
        w = std * jax.random.normal(k, (cout, cin, ksz, ksz), jnp.float32)
        return w, jnp.zeros((cout,), jnp.float32)

    def linear_kaiming(k, fin, fout):
        std = math.sqrt(2.0 / fin)
        w = std * jax.random.normal(k, (fout, fin), jnp.float32)   # torch layout [out, in]
        return w, jnp.zeros((fout,), jnp.float32)

    def deconv_default(k, cin, cout, ksz):
        # PyTorch default reset_parameters: U(-1/sqrt(fan_in), 1/sqrt(fan_in)),
        # fan_in = cout*k*k for weight layout [cin, cout, k, k].
        kw, kb = jax.random.split(k)
        fan_in = cout * ksz * ksz
        bound = 1.0 / math.sqrt(fan_in)
        w = jax.random.uniform(kw, (cin, cout, ksz, ksz), jnp.float32, -bound, bound)
        b = jax.random.uniform(kb, (cout,), jnp.float32, -bound, bound)
        return w, b

    enc_convs = [conv_kaiming(next(ki), cin, cout, k) for cin, cout, k, _s, _p in ENC_CONVS]
    enc_lin = [linear_kaiming(next(ki), 32 * 4 * 4, 256),
               linear_kaiming(next(ki), 256, 256),
               linear_kaiming(next(ki), 256, 2 * Z_DIM)]
    dec_lin = [linear_kaiming(next(ki), Z_DIM, 256),
               linear_kaiming(next(ki), 256, 256),
               linear_kaiming(next(ki), 256, 32 * 4 * 4)]
    dec_deconvs = [deconv_default(next(ki), cin, cout, k) for cin, cout, k, _s, _p in DEC_DECONVS]
    return {"enc_convs": enc_convs, "enc_lin": enc_lin,
            "dec_lin": dec_lin, "dec_deconvs": dec_deconvs}


# ----------------------------------------------------------------------------
# Forward pass (BetaVAE_B.forward -> (x_recon, mu, logvar))
# ----------------------------------------------------------------------------
def betavae_b_forward(x, params, eps):
    N = x.shape[0]

    # --- encoder convs (NHWC activations, one fused Pallas matmul+bias per conv) ---
    h = jnp.transpose(x, (0, 2, 3, 1))                       # NCHW -> NHWC once
    for (w, b), (cin, cout, k, s, p) in zip(params["enc_convs"], ENC_CONVS):
        patches, Ho, Wo = im2col_nhwc(h, k, s, p)
        wmat = jnp.transpose(w, (2, 3, 1, 0)).reshape(k * k * cin, cout)
        y = matmul_bias(patches, wmat, b)                    # conv + bias (+ identity act)
        h = y.reshape(N, Ho, Wo, cout)

    # View((-1, 32*4*4)): torch flattens NCHW channel-major; tiny [N,4,4,32] reorder.
    flat = jnp.transpose(h, (0, 3, 1, 2)).reshape(N, 32 * 4 * 4)

    # --- fused MLP head: enc Linears -> reparametrize -> dec Linears ---
    dist, dec0 = mlp_head(flat, eps, params["enc_lin"], params["dec_lin"])
    mu = dist[:, :Z_DIM]
    logvar = dist[:, Z_DIM:]

    # View((-1, 32, 4, 4)) then back to NHWC for the deconv pipeline.
    h = jnp.transpose(dec0.reshape(N, 32, 4, 4), (0, 2, 3, 1))
    for (w, b), (cin, cout, k, s, p) in zip(params["dec_deconvs"], DEC_DECONVS):
        h_dp = dilate_and_pad(h, s, k - 1 - p)               # ConvTranspose == dilate+pad+conv
        wmat = jnp.transpose(w[:, :, ::-1, ::-1], (2, 3, 0, 1)).reshape(k * k * cin, cout)
        patches, Ho, Wo = im2col_nhwc(h_dp, k, 1, 0)
        y = matmul_bias(patches, wmat, b)
        h = y.reshape(N, Ho, Wo, cout)

    x_recon = jnp.transpose(h, (0, 3, 1, 2))                 # .view(x.size()) -> NCHW
    return x_recon, mu, logvar


if __name__ == "__main__":
    key = jax.random.PRNGKey(0)
    kx, kp, ke = jax.random.split(key, 3)
    # 64x64 spatial size is implied by 4 stride-2 convs + View((-1, 32*4*4)).
    x = jax.random.normal(kx, (2, NC, 64, 64), jnp.float32)
    params = init_params(kp)
    # reparametrize() noise (std.data.new(std.size()).normal_()), sampled with jax.random.
    eps = jax.random.normal(ke, (2, Z_DIM), jnp.float32)

    fwd = jax.jit(lambda xx, ee: betavae_b_forward(xx, params, ee))
    x_recon, mu, logvar = fwd(x, eps)
    jax.block_until_ready((x_recon, mu, logvar))

    assert x_recon.shape == x.shape, x_recon.shape
    assert mu.shape == (2, Z_DIM) and logvar.shape == (2, Z_DIM)
    assert all(bool(jnp.all(jnp.isfinite(t))) for t in (x_recon, mu, logvar))
    print("KERNEL_OK")
</pallas_src>

<mosaic_0001>
module attributes {stable_mosaic.version = 11 : i64} {
  func.func @_matmul_bias_kernel(%arg0: i32, %arg1: memref<1024x48xf32, #tpu.memory_space<vmem>>, %arg2: memref<48x32xf32, #tpu.memory_space<vmem>>, %arg3: memref<1x32xf32, #tpu.memory_space<vmem>>, %arg4: memref<1024x32xf32, #tpu.memory_space<vmem>>) attributes {dimension_semantics = [#tpu.dimension_semantics<parallel>], iteration_bounds = array<i64: 2>, scalar_prefetch = 0 : i64, scratch_operands = 0 : i64, tpu.core_type = #tpu.core_type<tc>, window_params = [{transform_indices = @transform_0, window_bounds = array<i64: 1024, 48>}, {pipeline_mode = #tpu.pipeline_mode<synchronous>, transform_indices = @transform_1, window_bounds = array<i64: 48, 32>}, {pipeline_mode = #tpu.pipeline_mode<synchronous>, transform_indices = @transform_2, window_bounds = array<i64: 1, 32>}, {transform_indices = @transform_3, window_bounds = array<i64: 1024, 32>}]} {
    %c0 = arith.constant 0 : index
    %c0_0 = arith.constant 0 : index
    %0 = vector.load %arg1[%c0, %c0_0] : memref<1024x48xf32, #tpu.memory_space<vmem>>, vector<1024x48xf32>
    %c0_1 = arith.constant 0 : index
    %c0_2 = arith.constant 0 : index
    %1 = vector.load %arg2[%c0_1, %c0_2] : memref<48x32xf32, #tpu.memory_space<vmem>>, vector<48x32xf32>
    %cst = arith.constant dense<0.000000e+00> : vector<1024x32xf32>
    %2 = tpu.matmul %0, %1, %cst {dimension_numbers = #tpu.dot_dimension_numbers<[1], [0], [0], [1], [0, 0, 1, 1], [], []>} : vector<1024x48xf32>, vector<48x32xf32>, vector<1024x32xf32> -> vector<1024x32xf32>
    %c0_3 = arith.constant 0 : index
    %c0_4 = arith.constant 0 : index
    %3 = vector.load %arg3[%c0_3, %c0_4] : memref<1x32xf32, #tpu.memory_space<vmem>>, vector<1x32xf32>
    %4 = vector.broadcast %3 : vector<1x32xf32> to vector<1024x32xf32>
    %5 = arith.addf %2, %4 : vector<1024x32xf32>
    %c0_5 = arith.constant 0 : index
    %c0_6 = arith.constant 0 : index
    %6 = vector.load %arg4[%c0_5, %c0_6] : memref<1024x32xf32, #tpu.memory_space<vmem>>, vector<1024x32xf32>
    tpu.vector_store %arg4[%c0_5, %c0_6], %5 {strides = array<i32>} : memref<1024x32xf32, #tpu.memory_space<vmem>>, vector<1024x32xf32>,
    return
  }
  func.func @transform_0(%arg0: i32) -> (i32, i32) {
    %c0_i32 = arith.constant 0 : i32
    %c0_i32_0 = arith.constant 0 : i32
    return %arg0, %c0_i32 : i32, i32
  }
  func.func @transform_1(%arg0: i32) -> (i32, i32) {
    %c0_i32 = arith.constant 0 : i32
    %c0_i32_0 = arith.constant 0 : i32
    %c0_i32_1 = arith.constant 0 : i32
    return %c0_i32, %c0_i32_0 : i32, i32
  }
  func.func @transform_2(%arg0: i32) -> (i32, i32) {
    %c0_i32 = arith.constant 0 : i32
    %c0_i32_0 = arith.constant 0 : i32
    %c0_i32_1 = arith.constant 0 : i32
    return %c0_i32, %c0_i32_0 : i32, i32
  }
  func.func @transform_3(%arg0: i32) -> (i32, i32) {
    %c0_i32 = arith.constant 0 : i32
    %c0_i32_0 = arith.constant 0 : i32
    return %arg0, %c0_i32 : i32, i32
  }
}

module attributes {stable_mosaic.version = 11 : i64} {
  func.func @_matmul_bias_kernel(%arg0: i32, %arg1: memref<512x512xf32, #tpu.memory_space<vmem>>, %arg2: memref<512x32xf32, #tpu.memory_space<vmem>>, %arg3: memref<1x32xf32, #tpu.memory_space<vmem>>, %arg4: memref<512x32xf32, #tpu.memory_space<vmem>>) attributes {dimension_semantics = [#tpu.dimension_semantics<parallel>], iteration_bounds = array<i64: 1>, scalar_prefetch = 0 : i64, scratch_operands = 0 : i64, tpu.core_type = #tpu.core_type<tc>, window_params = [{transform_indices = @transform_0, window_bounds = array<i64: 512, 512>}, {pipeline_mode = #tpu.pipeline_mode<synchronous>, transform_indices = @transform_1, window_bounds = array<i64: 512, 32>}, {pipeline_mode = #tpu.pipeline_mode<synchronous>, transform_indices = @transform_2, window_bounds = array<i64: 1, 32>}, {transform_indices = @transform_3, window_bounds = array<i64: 512, 32>}]} {
    %c0 = arith.constant 0 : index
    %c0_0 = arith.constant 0 : index
    %0 = vector.load %arg1[%c0, %c0_0] : memref<512x512xf32, #tpu.memory_space<vmem>>, vector<512x512xf32>
    %c0_1 = arith.constant 0 : index
    %c0_2 = arith.constant 0 : index
    %1 = vector.load %arg2[%c0_1, %c0_2] : memref<512x32xf32, #tpu.memory_space<vmem>>, vector<512x32xf32>
    %cst = arith.constant dense<0.000000e+00> : vector<512x32xf32>
    %2 = tpu.matmul %0, %1, %cst {dimension_numbers = #tpu.dot_dimension_numbers<[1], [0], [0], [1], [0, 0, 1, 1], [], []>} : vector<512x512xf32>, vector<512x32xf32>, vector<512x32xf32> -> vector<512x32xf32>
    %c0_3 = arith.constant 0 : index
    %c0_4 = arith.constant 0 : index
    %3 = vector.load %arg3[%c0_3, %c0_4] : memref<1x32xf32, #tpu.memory_space<vmem>>, vector<1x32xf32>
    %4 = vector.broadcast %3 : vector<1x32xf32> to vector<512x32xf32>
    %5 = arith.addf %2, %4 : vector<512x32xf32>
    %c0_5 = arith.constant 0 : index
    %c0_6 = arith.constant 0 : index
    %6 = vector.load %arg4[%c0_5, %c0_6] : memref<512x32xf32, #tpu.memory_space<vmem>>, vector<512x32xf32>
    tpu.vector_store %arg4[%c0_5, %c0_6], %5 {strides = array<i32>} : memref<512x32xf32, #tpu.memory_space<vmem>>, vector<512x32xf32>,
    return
  }
  func.func @transform_0(%arg0: i32) -> (i32, i32) {
    %c0_i32 = arith.constant 0 : i32
    %c0_i32_0 = arith.constant 0 : i32
    return %arg0, %c0_i32 : i32, i32
  }
  func.func @transform_1(%arg0: i32) -> (i32, i32) {
    %c0_i32 = arith.constant 0 : i32
    %c0_i32_0 = arith.constant 0 : i32
    %c0_i32_1 = arith.constant 0 : i32
    return %c0_i32, %c0_i32_0 : i32, i32
  }
  func.func @transform_2(%arg0: i32) -> (i32, i32) {
    %c0_i32 = arith.constant 0 : i32
    %c0_i32_0 = arith.constant 0 : i32
    %c0_i32_1 = arith.constant 0 : i32
    return %c0_i32, %c0_i32_0 : i32, i32
  }
  func.func @transform_3(%arg0: i32) -> (i32, i32) {
    %c0_i32 = arith.constant 0 : i32
    %c0_i32_0 = arith.constant 0 : i32
    return %arg0, %c0_i32 : i32, i32
  }
}

module attributes {stable_mosaic.version = 11 : i64} {
  func.func @_matmul_bias_kernel(%arg0: i32, %arg1: memref<128x512xf32, #tpu.memory_space<vmem>>, %arg2: memref<512x32xf32, #tpu.memory_space<vmem>>, %arg3: memref<1x32xf32, #tpu.memory_space<vmem>>, %arg4: memref<128x32xf32, #tpu.memory_space<vmem>>) attributes {dimension_semantics = [#tpu.dimension_semantics<parallel>], iteration_bounds = array<i64: 1>, scalar_prefetch = 0 : i64, scratch_operands = 0 : i64, tpu.core_type = #tpu.core_type<tc>, window_params = [{transform_indices = @transform_0, window_bounds = array<i64: 128, 512>}, {pipeline_mode = #tpu.pipeline_mode<synchronous>, transform_indices = @transform_1, window_bounds = array<i64: 512, 32>}, {pipeline_mode = #tpu.pipeline_mode<synchronous>, transform_indices = @transform_2, window_bounds = array<i64: 1, 32>}, {transform_indices = @transform_3, window_bounds = array<i64: 128, 32>}]} {
    %c0 = arith.constant 0 : index
    %c0_0 = arith.constant 0 : index
    %0 = vector.load %arg1[%c0, %c0_0] : memref<128x512xf32, #tpu.memory_space<vmem>>, vector<128x512xf32>
    %c0_1 = arith.constant 0 : index
    %c0_2 = arith.constant 0 : index
    %1 = vector.load %arg2[%c0_1, %c0_2] : memref<512x32xf32, #tpu.memory_space<vmem>>, vector<512x32xf32>
    %cst = arith.constant dense<0.000000e+00> : vector<128x32xf32>
    %2 = tpu.matmul %0, %1, %cst {dimension_numbers = #tpu.dot_dimension_numbers<[1], [0], [0], [1], [0, 0, 1, 1], [], []>} : vector<128x512xf32>, vector<512x32xf32>, vector<128x32xf32> -> vector<128x32xf32>
    %c0_3 = arith.constant 0 : index
    %c0_4 = arith.constant 0 : index
    %3 = vector.load %arg3[%c0_3, %c0_4] : memref<1x32xf32, #tpu.memory_space<vmem>>, vector<1x32xf32>
    %4 = vector.broadcast %3 : vector<1x32xf32> to vector<128x32xf32>
    %5 = arith.addf %2, %4 : vector<128x32xf32>
    %c0_5 = arith.constant 0 : index
    %c0_6 = arith.constant 0 : index
    %6 = vector.load %arg4[%c0_5, %c0_6] : memref<128x32xf32, #tpu.memory_space<vmem>>, vector<128x32xf32>
    tpu.vector_store %arg4[%c0_5, %c0_6], %5 {strides = array<i32>} : memref<128x32xf32, #tpu.memory_space<vmem>>, vector<128x32xf32>,
    return
  }
  func.func @transform_0(%arg0: i32) -> (i32, i32) {
    %c0_i32 = arith.constant 0 : i32
    %c0_i32_0 = arith.constant 0 : i32
    return %arg0, %c0_i32 : i32, i32
  }
  func.func @transform_1(%arg0: i32) -> (i32, i32) {
    %c0_i32 = arith.constant 0 : i32
    %c0_i32_0 = arith.constant 0 : i32
    %c0_i32_1 = arith.constant 0 : i32
    return %c0_i32, %c0_i32_0 : i32, i32
  }
  func.func @transform_2(%arg0: i32) -> (i32, i32) {
    %c0_i32 = arith.constant 0 : i32
    %c0_i32_0 = arith.constant 0 : i32
    %c0_i32_1 = arith.constant 0 : i32
    return %c0_i32, %c0_i32_0 : i32, i32
  }
  func.func @transform_3(%arg0: i32) -> (i32, i32) {
    %c0_i32 = arith.constant 0 : i32
    %c0_i32_0 = arith.constant 0 : i32
    return %arg0, %c0_i32 : i32, i32
  }
}

module attributes {stable_mosaic.version = 11 : i64} {
  func.func @_matmul_bias_kernel(%arg0: i32, %arg1: memref<32x512xf32, #tpu.memory_space<vmem>>, %arg2: memref<512x32xf32, #tpu.memory_space<vmem>>, %arg3: memref<1x32xf32, #tpu.memory_space<vmem>>, %arg4: memref<32x32xf32, #tpu.memory_space<vmem>>) attributes {dimension_semantics = [#tpu.dimension_semantics<parallel>], iteration_bounds = array<i64: 1>, scalar_prefetch = 0 : i64, scratch_operands = 0 : i64, tpu.core_type = #tpu.core_type<tc>, window_params = [{transform_indices = @transform_0, window_bounds = array<i64: 32, 512>}, {pipeline_mode = #tpu.pipeline_mode<synchronous>, transform_indices = @transform_1, window_bounds = array<i64: 512, 32>}, {pipeline_mode = #tpu.pipeline_mode<synchronous>, transform_indices = @transform_2, window_bounds = array<i64: 1, 32>}, {transform_indices = @transform_3, window_bounds = array<i64: 32, 32>}]} {
    %c0 = arith.constant 0 : index
    %c0_0 = arith.constant 0 : index
    %0 = vector.load %arg1[%c0, %c0_0] : memref<32x512xf32, #tpu.memory_space<vmem>>, vector<32x512xf32>
    %c0_1 = arith.constant 0 : index
    %c0_2 = arith.constant 0 : index
    %1 = vector.load %arg2[%c0_1, %c0_2] : memref<512x32xf32, #tpu.memory_space<vmem>>, vector<512x32xf32>
    %cst = arith.constant dense<0.000000e+00> : vector<32x32xf32>
    %2 = tpu.matmul %0, %1, %cst {dimension_numbers = #tpu.dot_dimension_numbers<[1], [0], [0], [1], [0, 0, 1, 1], [], []>} : vector<32x512xf32>, vector<512x32xf32>, vector<32x32xf32> -> vector<32x32xf32>
    %c0_3 = arith.constant 0 : index
    %c0_4 = arith.constant 0 : index
    %3 = vector.load %arg3[%c0_3, %c0_4] : memref<1x32xf32, #tpu.memory_space<vmem>>, vector<1x32xf32>
    %4 = vector.broadcast %3 : vector<1x32xf32> to vector<32x32xf32>
    %5 = arith.addf %2, %4 : vector<32x32xf32>
    %c0_5 = arith.constant 0 : index
    %c0_6 = arith.constant 0 : index
    %6 = vector.load %arg4[%c0_5, %c0_6] : memref<32x32xf32, #tpu.memory_space<vmem>>, vector<32x32xf32>
    tpu.vector_store %arg4[%c0_5, %c0_6], %5 {strides = array<i32>} : memref<32x32xf32, #tpu.memory_space<vmem>>, vector<32x32xf32>,
    return
  }
  func.func @transform_0(%arg0: i32) -> (i32, i32) {
    %c0_i32 = arith.constant 0 : i32
    %c0_i32_0 = arith.constant 0 : i32
    return %arg0, %c0_i32 : i32, i32
  }
  func.func @transform_1(%arg0: i32) -> (i32, i32) {
    %c0_i32 = arith.constant 0 : i32
    %c0_i32_0 = arith.constant 0 : i32
    %c0_i32_1 = arith.constant 0 : i32
    return %c0_i32, %c0_i32_0 : i32, i32
  }
  func.func @transform_2(%arg0: i32) -> (i32, i32) {
    %c0_i32 = arith.constant 0 : i32
    %c0_i32_0 = arith.constant 0 : i32
    %c0_i32_1 = arith.constant 0 : i32
    return %c0_i32, %c0_i32_0 : i32, i32
  }
  func.func @transform_3(%arg0: i32) -> (i32, i32) {
    %c0_i32 = arith.constant 0 : i32
    %c0_i32_0 = arith.constant 0 : i32
    return %arg0, %c0_i32 : i32, i32
  }
}

module attributes {stable_mosaic.version = 11 : i64} {
  func.func @_mlp_head_kernel(%arg0: memref<8x512xf32, #tpu.memory_space<vmem>>, %arg1: memref<8x32xf32, #tpu.memory_space<vmem>>, %arg2: memref<512x256xf32, #tpu.memory_space<vmem>>, %arg3: memref<1x256xf32, #tpu.memory_space<vmem>>, %arg4: memref<256x256xf32, #tpu.memory_space<vmem>>, %arg5: memref<1x256xf32, #tpu.memory_space<vmem>>, %arg6: memref<256x64xf32, #tpu.memory_space<vmem>>, %arg7: memref<1x64xf32, #tpu.memory_space<vmem>>, %arg8: memref<32x256xf32, #tpu.memory_space<vmem>>, %arg9: memref<1x256xf32, #tpu.memory_space<vmem>>, %arg10: memref<256x256xf32, #tpu.memory_space<vmem>>, %arg11: memref<1x256xf32, #tpu.memory_space<vmem>>, %arg12: memref<256x512xf32, #tpu.memory_space<vmem>>, %arg13: memref<1x512xf32, #tpu.memory_space<vmem>>, %arg14: memref<8x64xf32, #tpu.memory_space<vmem>>, %arg15: memref<8x512xf32, #tpu.memory_space<vmem>>) attributes {dimension_semantics = [], scalar_prefetch = 0 : i64, scratch_operands = 0 : i64, tpu.core_type = #tpu.core_type<tc>} {
    %c0 = arith.constant 0 : index
    %c0_0 = arith.constant 0 : index
    %0 = vector.load %arg0[%c0, %c0_0] : memref<8x512xf32, #tpu.memory_space<vmem>>, vector<8x512xf32>
    %c0_1 = arith.constant 0 : index
    %c0_2 = arith.constant 0 : index
    %1 = vector.load %arg2[%c0_1, %c0_2] : memref<512x256xf32, #tpu.memory_space<vmem>>, vector<512x256xf32>
    %cst = arith.constant dense<0.000000e+00> : vector<8x256xf32>
    %2 = tpu.matmul %0, %1, %cst {dimension_numbers = #tpu.dot_dimension_numbers<[1], [0], [0], [1], [0, 0, 1, 1], [], []>} : vector<8x512xf32>, vector<512x256xf32>, vector<8x256xf32> -> vector<8x256xf32>
    %c0_3 = arith.constant 0 : index
    %c0_4 = arith.constant 0 : index
    %3 = vector.load %arg3[%c0_3, %c0_4] : memref<1x256xf32, #tpu.memory_space<vmem>>, vector<1x256xf32>
    %4 = vector.broadcast %3 : vector<1x256xf32> to vector<8x256xf32>
    %5 = arith.addf %2, %4 : vector<8x256xf32>
    %c0_5 = arith.constant 0 : index
    %c0_6 = arith.constant 0 : index
    %6 = vector.load %arg4[%c0_5, %c0_6] : memref<256x256xf32, #tpu.memory_space<vmem>>, vector<256x256xf32>
    %cst_7 = arith.constant dense<0.000000e+00> : vector<8x256xf32>
    %7 = tpu.matmul %5, %6, %cst_7 {dimension_numbers = #tpu.dot_dimension_numbers<[1], [0], [0], [1], [0, 0, 1, 1], [], []>} : vector<8x256xf32>, vector<256x256xf32>, vector<8x256xf32> -> vector<8x256xf32>
    %c0_8 = arith.constant 0 : index
    %c0_9 = arith.constant 0 : index
    %8 = vector.load %arg5[%c0_8, %c0_9] : memref<1x256xf32, #tpu.memory_space<vmem>>, vector<1x256xf32>
    %9 = vector.broadcast %8 : vector<1x256xf32> to vector<8x256xf32>
    %10 = arith.addf %7, %9 : vector<8x256xf32>
    %c0_10 = arith.constant 0 : index
    %c0_11 = arith.constant 0 : index
    %11 = vector.load %arg6[%c0_10, %c0_11] : memref<256x64xf32, #tpu.memory_space<vmem>>, vector<256x64xf32>
    %cst_12 = arith.constant dense<0.000000e+00> : vector<8x64xf32>
    %12 = tpu.matmul %10, %11, %cst_12 {dimension_numbers = #tpu.dot_dimension_numbers<[1], [0], [0], [1], [0, 0, 1, 1], [], []>} : vector<8x256xf32>, vector<256x64xf32>, vector<8x64xf32> -> vector<8x64xf32>
    %c0_13 = arith.constant 0 : index
    %c0_14 = arith.constant 0 : index
    %13 = vector.load %arg7[%c0_13, %c0_14] : memref<1x64xf32, #tpu.memory_space<vmem>>, vector<1x64xf32>
    %14 = vector.broadcast %13 : vector<1x64xf32> to vector<8x64xf32>
    %15 = arith.addf %12, %14 : vector<8x64xf32>
    %c0_15 = arith.constant 0 : index
    %c0_16 = arith.constant 0 : index
    %16 = vector.load %arg14[%c0_15, %c0_16] : memref<8x64xf32, #tpu.memory_space<vmem>>, vector<8x64xf32>
    tpu.vector_store %arg14[%c0_15, %c0_16], %15 {strides = array<i32>} : memref<8x64xf32, #tpu.memory_space<vmem>>, vector<8x64xf32>,
    %17 = vector.extract_strided_slice %15 {offsets = [0, 0], sizes = [8, 32], strides = [1, 1]} : vector<8x64xf32> to vector<8x32xf32>
    %18 = vector.extract_strided_slice %15 {offsets = [0, 32], sizes = [8, 32], strides = [1, 1]} : vector<8x64xf32> to vector<8x32xf32>
    %cst_17 = arith.constant 5.000000e-01 : f32
    %19 = vector.broadcast %cst_17 : f32 to vector<8x32xf32>
    %20 = arith.mulf %18, %19 : vector<8x32xf32>
    %21 = math.exp %20 : vector<8x32xf32>
    %c0_18 = arith.constant 0 : index
    %c0_19 = arith.constant 0 : index
    %22 = vector.load %arg1[%c0_18, %c0_19] : memref<8x32xf32, #tpu.memory_space<vmem>>, vector<8x32xf32>
    %23 = arith.mulf %21, %22 : vector<8x32xf32>
    %24 = arith.addf %17, %23 : vector<8x32xf32>
    %c0_20 = arith.constant 0 : index
    %c0_21 = arith.constant 0 : index
    %25 = vector.load %arg8[%c0_20, %c0_21] : memref<32x256xf32, #tpu.memory_space<vmem>>, vector<32x256xf32>
    %cst_22 = arith.constant dense<0.000000e+00> : vector<8x256xf32>
    %26 = tpu.matmul %24, %25, %cst_22 {dimension_numbers = #tpu.dot_dimension_numbers<[1], [0], [0], [1], [0, 0, 1, 1], [], []>} : vector<8x32xf32>, vector<32x256xf32>, vector<8x256xf32> -> vector<8x256xf32>
    %c0_23 = arith.constant 0 : index
    %c0_24 = arith.constant 0 : index
    %27 = vector.load %arg9[%c0_23, %c0_24] : memref<1x256xf32, #tpu.memory_space<vmem>>, vector<1x256xf32>
    %28 = vector.broadcast %27 : vector<1x256xf32> to vector<8x256xf32>
    %29 = arith.addf %26, %28 : vector<8x256xf32>
    %c0_25 = arith.constant 0 : index
    %c0_26 = arith.constant 0 : index
    %30 = vector.load %arg10[%c0_25, %c0_26] : memref<256x256xf32, #tpu.memory_space<vmem>>, vector<256x256xf32>
    %cst_27 = arith.constant dense<0.000000e+00> : vector<8x256xf32>
    %31 = tpu.matmul %29, %30, %cst_27 {dimension_numbers = #tpu.dot_dimension_numbers<[1], [0], [0], [1], [0, 0, 1, 1], [], []>} : vector<8x256xf32>, vector<256x256xf32>, vector<8x256xf32> -> vector<8x256xf32>
    %c0_28 = arith.constant 0 : index
    %c0_29 = arith.constant 0 : index
    %32 = vector.load %arg11[%c0_28, %c0_29] : memref<1x256xf32, #tpu.memory_space<vmem>>, vector<1x256xf32>
    %33 = vector.broadcast %32 : vector<1x256xf32> to vector<8x256xf32>
    %34 = arith.addf %31, %33 : vector<8x256xf32>
    %c0_30 = arith.constant 0 : index
    %c0_31 = arith.constant 0 : index
    %35 = vector.load %arg12[%c0_30, %c0_31] : memref<256x512xf32, #tpu.memory_space<vmem>>, vector<256x512xf32>
    %cst_32 = arith.constant dense<0.000000e+00> : vector<8x512xf32>
    %36 = tpu.matmul %34, %35, %cst_32 {dimension_numbers = #tpu.dot_dimension_numbers<[1], [0], [0], [1], [0, 0, 1, 1], [], []>} : vector<8x256xf32>, vector<256x512xf32>, vector<8x512xf32> -> vector<8x512xf32>
    %c0_33 = arith.constant 0 : index
    %c0_34 = arith.constant 0 : index
    %37 = vector.load %arg13[%c0_33, %c0_34] : memref<1x512xf32, #tpu.memory_space<vmem>>, vector<1x512xf32>
    %38 = vector.broadcast %37 : vector<1x512xf32> to vector<8x512xf32>
    %39 = arith.addf %36, %38 : vector<8x512xf32>
    %c0_35 = arith.constant 0 : index
    %c0_36 = arith.constant 0 : index
    %40 = vector.load %arg15[%c0_35, %c0_36] : memref<8x512xf32, #tpu.memory_space<vmem>>, vector<8x512xf32>
    tpu.vector_store %arg15[%c0_35, %c0_36], %39 {strides = array<i32>} : memref<8x512xf32, #tpu.memory_space<vmem>>, vector<8x512xf32>,
    return
  }
}

module attributes {stable_mosaic.version = 11 : i64} {
  func.func @_matmul_bias_kernel(%arg0: i32, %arg1: memref<1024x512xf32, #tpu.memory_space<vmem>>, %arg2: memref<512x32xf32, #tpu.memory_space<vmem>>, %arg3: memref<1x32xf32, #tpu.memory_space<vmem>>, %arg4: memref<1024x32xf32, #tpu.memory_space<vmem>>) attributes {dimension_semantics = [#tpu.dimension_semantics<parallel>], iteration_bounds = array<i64: 2>, scalar_prefetch = 0 : i64, scratch_operands = 0 : i64, tpu.core_type = #tpu.core_type<tc>, window_params = [{transform_indices = @transform_0, window_bounds = array<i64: 1024, 512>}, {pipeline_mode = #tpu.pipeline_mode<synchronous>, transform_indices = @transform_1, window_bounds = array<i64: 512, 32>}, {pipeline_mode = #tpu.pipeline_mode<synchronous>, transform_indices = @transform_2, window_bounds = array<i64: 1, 32>}, {transform_indices = @transform_3, window_bounds = array<i64: 1024, 32>}]} {
    %c0 = arith.constant 0 : index
    %c0_0 = arith.constant 0 : index
    %0 = vector.load %arg1[%c0, %c0_0] : memref<1024x512xf32, #tpu.memory_space<vmem>>, vector<1024x512xf32>
    %c0_1 = arith.constant 0 : index
    %c0_2 = arith.constant 0 : index
    %1 = vector.load %arg2[%c0_1, %c0_2] : memref<512x32xf32, #tpu.memory_space<vmem>>, vector<512x32xf32>
    %cst = arith.constant dense<0.000000e+00> : vector<1024x32xf32>
    %2 = tpu.matmul %0, %1, %cst {dimension_numbers = #tpu.dot_dimension_numbers<[1], [0], [0], [1], [0, 0, 1, 1], [], []>} : vector<1024x512xf32>, vector<512x32xf32>, vector<1024x32xf32> -> vector<1024x32xf32>
    %c0_3 = arith.constant 0 : index
    %c0_4 = arith.constant 0 : index
    %3 = vector.load %arg3[%c0_3, %c0_4] : memref<1x32xf32, #tpu.memory_space<vmem>>, vector<1x32xf32>
    %4 = vector.broadcast %3 : vector<1x32xf32> to vector<1024x32xf32>
    %5 = arith.addf %2, %4 : vector<1024x32xf32>
    %c0_5 = arith.constant 0 : index
    %c0_6 = arith.constant 0 : index
    %6 = vector.load %arg4[%c0_5, %c0_6] : memref<1024x32xf32, #tpu.memory_space<vmem>>, vector<1024x32xf32>
    tpu.vector_store %arg4[%c0_5, %c0_6], %5 {strides = array<i32>} : memref<1024x32xf32, #tpu.memory_space<vmem>>, vector<1024x32xf32>,
    return
  }
  func.func @transform_0(%arg0: i32) -> (i32, i32) {
    %c0_i32 = arith.constant 0 : i32
    %c0_i32_0 = arith.constant 0 : i32
    return %arg0, %c0_i32 : i32, i32
  }
  func.func @transform_1(%arg0: i32) -> (i32, i32) {
    %c0_i32 = arith.constant 0 : i32
    %c0_i32_0 = arith.constant 0 : i32
    %c0_i32_1 = arith.constant 0 : i32
    return %c0_i32, %c0_i32_0 : i32, i32
  }
  func.func @transform_2(%arg0: i32) -> (i32, i32) {
    %c0_i32 = arith.constant 0 : i32
    %c0_i32_0 = arith.constant 0 : i32
    %c0_i32_1 = arith.constant 0 : i32
    return %c0_i32, %c0_i32_0 : i32, i32
  }
  func.func @transform_3(%arg0: i32) -> (i32, i32) {
    %c0_i32 = arith.constant 0 : i32
    %c0_i32_0 = arith.constant 0 : i32
    return %arg0, %c0_i32 : i32, i32
  }
}

module attributes {stable_mosaic.version = 11 : i64} {
  func.func @_matmul_bias_kernel(%arg0: i32, %arg1: memref<1024x512xf32, #tpu.memory_space<vmem>>, %arg2: memref<512x3xf32, #tpu.memory_space<vmem>>, %arg3: memref<1x3xf32, #tpu.memory_space<vmem>>, %arg4: memref<1024x3xf32, #tpu.memory_space<vmem>>) attributes {dimension_semantics = [#tpu.dimension_semantics<parallel>], iteration_bounds = array<i64: 8>, scalar_prefetch = 0 : i64, scratch_operands = 0 : i64, tpu.core_type = #tpu.core_type<tc>, window_params = [{transform_indices = @transform_0, window_bounds = array<i64: 1024, 512>}, {pipeline_mode = #tpu.pipeline_mode<synchronous>, transform_indices = @transform_1, window_bounds = array<i64: 512, 3>}, {pipeline_mode = #tpu.pipeline_mode<synchronous>, transform_indices = @transform_2, window_bounds = array<i64: 1, 3>}, {transform_indices = @transform_3, window_bounds = array<i64: 1024, 3>}]} {
    %c0 = arith.constant 0 : index
    %c0_0 = arith.constant 0 : index
    %0 = vector.load %arg1[%c0, %c0_0] : memref<1024x512xf32, #tpu.memory_space<vmem>>, vector<1024x512xf32>
    %c0_1 = arith.constant 0 : index
    %c0_2 = arith.constant 0 : index
    %1 = vector.load %arg2[%c0_1, %c0_2] : memref<512x3xf32, #tpu.memory_space<vmem>>, vector<512x3xf32>
    %cst = arith.constant dense<0.000000e+00> : vector<1024x3xf32>
    %2 = tpu.matmul %0, %1, %cst {dimension_numbers = #tpu.dot_dimension_numbers<[1], [0], [0], [1], [0, 0, 1, 1], [], []>} : vector<1024x512xf32>, vector<512x3xf32>, vector<1024x3xf32> -> vector<1024x3xf32>
    %c0_3 = arith.constant 0 : index
    %c0_4 = arith.constant 0 : index
    %3 = vector.load %arg3[%c0_3, %c0_4] : memref<1x3xf32, #tpu.memory_space<vmem>>, vector<1x3xf32>
    %4 = vector.broadcast %3 : vector<1x3xf32> to vector<1024x3xf32>
    %5 = arith.addf %2, %4 : vector<1024x3xf32>
    %c0_5 = arith.constant 0 : index
    %c0_6 = arith.constant 0 : index
    %6 = vector.load %arg4[%c0_5, %c0_6] : memref<1024x3xf32, #tpu.memory_space<vmem>>, vector<1024x3xf32>
    tpu.vector_store %arg4[%c0_5, %c0_6], %5 {strides = array<i32>} : memref<1024x3xf32, #tpu.memory_space<vmem>>, vector<1024x3xf32>,
    return
  }
  func.func @transform_0(%arg0: i32) -> (i32, i32) {
    %c0_i32 = arith.constant 0 : i32
    %c0_i32_0 = arith.constant 0 : i32
    return %arg0, %c0_i32 : i32, i32
  }
  func.func @transform_1(%arg0: i32) -> (i32, i32) {
    %c0_i32 = arith.constant 0 : i32
    %c0_i32_0 = arith.constant 0 : i32
    %c0_i32_1 = arith.constant 0 : i32
    return %c0_i32, %c0_i32_0 : i32, i32
  }
  func.func @transform_2(%arg0: i32) -> (i32, i32) {
    %c0_i32 = arith.constant 0 : i32
    %c0_i32_0 = arith.constant 0 : i32
    %c0_i32_1 = arith.constant 0 : i32
    return %c0_i32, %c0_i32_0 : i32, i32
  }
  func.func @transform_3(%arg0: i32) -> (i32, i32) {
    %c0_i32 = arith.constant 0 : i32
    %c0_i32_0 = arith.constant 0 : i32
    return %arg0, %c0_i32 : i32, i32
  }
}

</mosaic_0001>

<llo_original>
// kernel: _lambda_.9
$region0: #{_lambda_.9}
  #allocation0 [shape = 'u32[]', space=smem, size = 0x4, offset = 0x4, fixed_abs, tag = 'smem constant byte address 0x4 - core index']
  #allocation1 [shape = 'u32[144,128]{1,0:T(1,128)}', space=vmem, size = 0x12000, scoped, tag = 'internal scratch']
  %s0 = inlined_call_operand.vmem [shape: f32[2048,48], index: 0, kind: input, shape index: {}]
  %s1 = inlined_call_operand.vmem [shape: f32[48,32], index: 1, kind: input, shape index: {}]
  %s2 = inlined_call_operand.vmem [shape: f32[1,32], index: 2, kind: input, shape index: {}]
  %s3 = inlined_call_operand.vmem [shape: f32[2048,32], index: 3, kind: output, shape index: {}]
  %s4 = sld [smem:[#allocation0]]
  $region45: #{_lambda_.9} parent=0
    _
  %s6 = ssub.s32 1, %s4
  %s7 = scalar_select 0, %s6, %s4
  loop: start=0, step=1, limit=4
  $region2: #{_lambda_.9} parent=0 // loop_pre_header
    _
  $region3: #{_lambda_.9} parent=0 // loop_header
    %s9 = sphi 0, %s13
    %p10 = scmp.ge.s32.totalorder %s9, 4
    %s19 = sphi 0, %s21
    %s22 = sphi 0, %s19
    %s23 = sphi 0, %s22
    %s39 = sphi 0, %s23
    %s43 = sphi 0, %s43
    %s45 = sphi 0, %s43
    %s46 = sphi 0, %s45
    %s60 = sphi 0, %s46
    %s64 = sphi 0, %s64
    %s66 = sphi 0, %s64
    %s67 = sphi 0, %s66
    %s81 = sphi 0, %s67
    %s87 = sphi 0, %s89
    %s90 = sphi 0, %s87
    %s91 = sphi 0, %s90
    %s107 = sphi 0, %s91
  $region4: #{_lambda_.9} parent=0 // loop_header_branch
    %12 = sbr.rel (%p10) target = $region8
  $region5: #{_lambda_.9} parent=0 // loop_body
    %s14 = ssub.s32 %s9, 1
    %s15 = ssub.s32 %s9, 2
    %s16 = sadd.s32 %s9, 1
    %s17 = ssub.s32 %s9, %s16
    %p18 = scmp.eq.s32.totalorder %s17, 0
    %s20 = sadd.s32 %s19, 1
    %s21 = scalar_select %p18, %s19, %s20
    %p24 = pneg %p18
    %p25 = scmp.eq.s32.totalorder %s9, 1
    %p26 = por %p24, %p25
    %p27 = scmp.ne.s32.totalorder %s19, %s22
    %p28 = scmp.eq.s32.totalorder %s9, 0
    %p29 = por %p27, %p28
    %p30 = scmp.ne.s32.totalorder %s19, %s22
    %p31 = scmp.eq.s32.totalorder %s14, 1
    %p32 = por %p30, %p31
    %p33 = scmp.ne.s32.totalorder %s22, %s23
    %p34 = scmp.eq.s32.totalorder %s14, 0
    %p35 = por %p33, %p34
    %p36 = scmp.ne.s32.totalorder %s22, %s23
    %p37 = scmp.eq.s32.totalorder %s15, 1
    %p38 = por %p36, %p37
    %p40 = scmp.ne.s32.totalorder %s23, %s39
    %p41 = scmp.eq.s32.totalorder %s15, 0
    %p42 = por %p40, %p41
    %s44 = sadd.s32 %s43, 1
    %p47 = scmp.eq.s32.totalorder %s9, 1
    %p48 = scmp.ne.s32.totalorder %s43, %s45
    %p49 = scmp.eq.s32.totalorder %s9, 0
    %p50 = por %p48, %p49
    %p51 = scmp.ne.s32.totalorder %s43, %s45
    %p52 = scmp.eq.s32.totalorder %s14, 1
    %p53 = por %p51, %p52
    %p54 = scmp.ne.s32.totalorder %s45, %s46
    %p55 = scmp.eq.s32.totalorder %s14, 0
    %p56 = por %p54, %p55
    %p57 = scmp.ne.s32.totalorder %s45, %s46
    %p58 = scmp.eq.s32.totalorder %s15, 1
    %p59 = por %p57, %p58
    %p61 = scmp.ne.s32.totalorder %s46, %s60
    %p62 = scmp.eq.s32.totalorder %s15, 0
    %p63 = por %p61, %p62
    %s65 = sadd.s32 %s64, 1
    %p68 = scmp.eq.s32.totalorder %s9, 1
    %p69 = scmp.ne.s32.totalorder %s64, %s66
    %p70 = scmp.eq.s32.totalorder %s9, 0
    %p71 = por %p69, %p70
    %p72 = scmp.ne.s32.totalorder %s64, %s66
    %p73 = scmp.eq.s32.totalorder %s14, 1
    %p74 = por %p72, %p73
    %p75 = scmp.ne.s32.totalorder %s66, %s67
    %p76 = scmp.eq.s32.totalorder %s14, 0
    %p77 = por %p75, %p76
    %p78 = scmp.ne.s32.totalorder %s66, %s67
    %p79 = scmp.eq.s32.totalorder %s15, 1
    %p80 = por %p78, %p79
    %p82 = scmp.ne.s32.totalorder %s67, %s81
    %p83 = scmp.eq.s32.totalorder %s15, 0
    %p84 = por %p82, %p83
    %s85 = ssub.s32 %s9, %s16
    %p86 = scmp.eq.s32.totalorder %s85, 0
    %s88 = sadd.s32 %s87, 1
    %s89 = scalar_select %p86, %s87, %s88
    %p92 = pneg %p86
    %p93 = scmp.eq.s32.totalorder %s9, 1
    %p94 = por %p92, %p93
    %p95 = scmp.ne.s32.totalorder %s87, %s90
    %p96 = scmp.eq.s32.totalorder %s9, 0
    %p97 = por %p95, %p96
    %p98 = scmp.ne.s32.totalorder %s87, %s90
    %p99 = scmp.eq.s32.totalorder %s14, 1
    %p100 = por %p98, %p99
    %p101 = scmp.ne.s32.totalorder %s90, %s91
    %p102 = scmp.eq.s32.totalorder %s14, 0
    %p103 = por %p101, %p102
    %p104 = scmp.ne.s32.totalorder %s90, %s91
    %p105 = scmp.eq.s32.totalorder %s15, 1
    %p106 = por %p104, %p105
    %p108 = scmp.ne.s32.totalorder %s91, %s107
    %p109 = scmp.eq.s32.totalorder %s15, 0
    %p110 = por %p108, %p109
    %p111 = scmp.le.s32.totalorder 1, %s9
    %p112 = scmp.lt.s32.totalorder %s9, 3
    %p113 = pnand %p111, %p112
    %p114 = pneg %p113
    // Predicated region
    $region9: #{_lambda_.9} parent=5 // pred_check
      _
    $region10: #{_lambda_.9} parent=5 // pred_check_branch
      %116 = sbr.rel (%p113) target = $region12
    $region11: #{_lambda_.9} parent=5 // pred_region
      %s117 = ssub.s32 %s9, 1
      // Predicated region
      $region13: #{_lambda_.9} parent=11 // pred_check
        %p118 = pneg %p56
      $region14: #{_lambda_.9} parent=11 // pred_check_branch
        %120 = sbr.rel (%p118) target = $region16
      $region15: #{_lambda_.9} parent=11 // pred_region
        _
      $region16: #{_lambda_.9} parent=11 // pred_fallthru
        _
      // Predicated region
      $region17: #{_lambda_.9} parent=11 // pred_check
        %p121 = pneg %p77
      $region18: #{_lambda_.9} parent=11 // pred_check_branch
        %123 = sbr.rel (%p121) target = $region20
      $region19: #{_lambda_.9} parent=11 // pred_region
        _
      $region20: #{_lambda_.9} parent=11 // pred_fallthru
        _
    $region12: #{_lambda_.9} parent=5 // pred_fallthru
      _
    %p124 = scmp.lt.s32.totalorder %s9, 2
    // Predicated region
    $region21: #{_lambda_.9} parent=5 // pred_check
      %p125 = pneg %p124
    $region22: #{_lambda_.9} parent=5 // pred_check_branch
      %127 = sbr.rel (%p125) target = $region24
    $region23: #{_lambda_.9} parent=5 // pred_region
      // Predicated region
      $region25: #{_lambda_.9} parent=23 // pred_check
        %p128 = pneg %p29
      $region26: #{_lambda_.9} parent=23 // pred_check_branch
        %130 = sbr.rel (%p128) target = $region28
      $region27: #{_lambda_.9} parent=23 // pred_region
        %s131 = smul.u32 128, %s9
        %p132 = scmp.lt.s32.totalorder %s131, 255
        %s133 = scalar_select %p132, %s131, 255
        %s134 = smul.addr %s133, 8
        %s135 = scalar_lea.vmem %s0, %s134
        %s136 = smul.u32 128, %s9
      $region28: #{_lambda_.9} parent=23 // pred_fallthru
        _
    $region24: #{_lambda_.9} parent=5 // pred_fallthru
      _
    %p137 = scmp.le.s32.totalorder 1, %s9
    %p138 = scmp.lt.s32.totalorder %s9, 3
    %p139 = pnand %p137, %p138
    %p140 = pneg %p139
    // Predicated region
    $region29: #{_lambda_.9} parent=5 // pred_check
      _
    $region30: #{_lambda_.9} parent=5 // pred_check_branch
      %142 = sbr.rel (%p139) target = $region32
    $region31: #{_lambda_.9} parent=5 // pred_region
      %s143 = ssub.s32 %s9, 1
      %s144 = smul.u32 128, %s14
      %p145 = scmp.lt.s32.totalorder %s144, 255
      %s146 = scalar_select %p145, %s144, 255
      %s147 = smul.addr %s146, 8
      %s148 = scalar_lea.vmem %s0, %s147
      %p149 = pneg %p35
      %p150 = pneg %p32
      %p151 = pneg %p56
      %p152 = pneg %p53
      %p153 = pneg %p77
      %p154 = pneg %p74
      %p155 = pneg %p103
      %p156 = pneg %p100
      %s157 = smul.u32 128, %s14
      %p158 = scmp.lt.s32.totalorder %s157, 255
      %s159 = scalar_select %p158, %s157, 255
      %s160 = smul.addr %s159, 8
      %s161 = scalar_lea.vmem %s3, %s160
      %s162 = smul.u32 128, %s14
      %p163 = scmp.lt.s32.totalorder %s162, 255
      %s164 = scalar_select %p163, %s162, 255
      %s165 = smul.addr %s164, 8
      %s166 = scalar_lea.vmem %s0, %s165
      %s167 = smul.u32 128, %s14
      %s168 = smul.u32 128, %s14
      %p169 = scmp.lt.s32.totalorder %s168, 255
      %s170 = scalar_select %p169, %s168, 255
      %s171 = smul.addr %s170, 8
      %s172 = scalar_lea.vmem %s3, %s171
      %s173 = smul.u32 128, %s14
      %v174 = vld [vmem:[%s166] sm:$0xff]
      %v175 = vld [vmem:[%s166 + $0x8] sm:$0xff]
      %v176 = vld [vmem:[%s166 + $0x10] sm:$0xff]
      %v177 = vld [vmem:[%s166 + $0x18] sm:$0xff]
      %v178 = vld [vmem:[%s166 + $0x20] sm:$0xff]
      %v179 = vld [vmem:[%s166 + $0x28] sm:$0xff]
      %v180 = vld [vmem:[%s166 + $0x30] sm:$0xff]
      %v181 = vld [vmem:[%s166 + $0x38] sm:$0xff]
      %v182 = vld [vmem:[%s166 + $0x40] sm:$0xff]
      %v183 = vld [vmem:[%s166 + $0x48] sm:$0xff]
      %v184 = vld [vmem:[%s166 + $0x50] sm:$0xff]
      %v185 = vld [vmem:[%s166 + $0x58] sm:$0xff]
      %v186 = vld [vmem:[%s166 + $0x60] sm:$0xff]
      %v187 = vld [vmem:[%s166 + $0x68] sm:$0xff]
      %v188 = vld [vmem:[%s166 + $0x70] sm:$0xff]
      %v189 = vld [vmem:[%s166 + $0x78] sm:$0xff]
      %v190 = vld [vmem:[%s166 + $0x80] sm:$0xff]
      %v191 = vld [vmem:[%s166 + $0x88] sm:$0xff]
      %v192 = vld [vmem:[%s166 + $0x90] sm:$0xff]
      %v193 = vld [vmem:[%s166 + $0x98] sm:$0xff]
      %v194 = vld [vmem:[%s166 + $0xa0] sm:$0xff]
      %v195 = vld [vmem:[%s166 + $0xa8] sm:$0xff]
      %v196 = vld [vmem:[%s166 + $0xb0] sm:$0xff]
      %v197 = vld [vmem:[%s166 + $0xb8] sm:$0xff]
      %v198 = vld [vmem:[%s166 + $0xc0] sm:$0xff]
      %v199 = vld [vmem:[%s166 + $0xc8] sm:$0xff]
      %v200 = vld [vmem:[%s166 + $0xd0] sm:$0xff]
      %v201 = vld [vmem:[%s166 + $0xd8] sm:$0xff]
      %v202 = vld [vmem:[%s166 + $0xe0] sm:$0xff]
      %v203 = vld [vmem:[%s166 + $0xe8] sm:$0xff]
      %v204 = vld [vmem:[%s166 + $0xf0] sm:$0xff]
      %v205 = vld [vmem:[%s166 + $0xf8] sm:$0xff]
      %v206 = vld [vmem:[%s166 + $0x100] sm:$0xff]
      %v207 = vld [vmem:[%s166 + $0x108] sm:$0xff]
      %v208 = vld [vmem:[%s166 + $0x110] sm:$0xff]
      %v209 = vld [vmem:[%s166 + $0x118] sm:$0xff]
      %v210 = vld [vmem:[%s166 + $0x120] sm:$0xff]
      %v211 = vld [vmem:[%s166 + $0x128] sm:$0xff]
      %v212 = vld [vmem:[%s166 + $0x130] sm:$0xff]
      %v213 = vld [vmem:[%s166 + $0x138] sm:$0xff]
      %v214 = vld [vmem:[%s166 + $0x140] sm:$0xff]
      %v215 = vld [vmem:[%s166 + $0x148] sm:$0xff]
      %v216 = vld [vmem:[%s166 + $0x150] sm:$0xff]
      %v217 = vld [vmem:[%s166 + $0x158] sm:$0xff]
      %v218 = vld [vmem:[%s166 + $0x160] sm:$0xff]
      %v219 = vld [vmem:[%s166 + $0x168] sm:$0xff]
      %v220 = vld [vmem:[%s166 + $0x170] sm:$0xff]
      %v221 = vld [vmem:[%s166 + $0x178] sm:$0xff]
      %v222 = vld [vmem:[%s166 + $0x180] sm:$0xff]
      %v223 = vld [vmem:[%s166 + $0x188] sm:$0xff]
      %v224 = vld [vmem:[%s166 + $0x190] sm:$0xff]
      %v225 = vld [vmem:[%s166 + $0x198] sm:$0xff]
      %v226 = vld [vmem:[%s166 + $0x1a0] sm:$0xff]
      %v227 = vld [vmem:[%s166 + $0x1a8] sm:$0xff]
      %v228 = vld [vmem:[%s166 + $0x1b0] sm:$0xff]
      %v229 = vld [vmem:[%s166 + $0x1b8] sm:$0xff]
      %v230 = vld [vmem:[%s166 + $0x1c0] sm:$0xff]
      %v231 = vld [vmem:[%s166 + $0x1c8] sm:$0xff]
      %v232 = vld [vmem:[%s166 + $0x1d0] sm:$0xff]
      %v233 = vld [vmem:[%s166 + $0x1d8] sm:$0xff]
      %v234 = vld [vmem:[%s166 + $0x1e0] sm:$0xff]
      %v235 = vld [vmem:[%s166 + $0x1e8] sm:$0xff]
      %v236 = vld [vmem:[%s166 + $0x1f0] sm:$0xff]
      %v237 = vld [vmem:[%s166 + $0x1f8] sm:$0xff]
      %v238 = vld [vmem:[%s166 + $0x200] sm:$0xff]
      %v239 = vld [vmem:[%s166 + $0x208] sm:$0xff]
      %v240 = vld [vmem:[%s166 + $0x210] sm:$0xff]
      %v241 = vld [vmem:[%s166 + $0x218] sm:$0xff]
      %v242 = vld [vmem:[%s166 + $0x220] sm:$0xff]
      %v243 = vld [vmem:[%s166 + $0x228] sm:$0xff]
      %v244 = vld [vmem:[%s166 + $0x230] sm:$0xff]
      %v245 = vld [vmem:[%s166 + $0x238] sm:$0xff]
      %v246 = vld [vmem:[%s166 + $0x240] sm:$0xff]
      %v247 = vld [vmem:[%s166 + $0x248] sm:$0xff]
      %v248 = vld [vmem:[%s166 + $0x250] sm:$0xff]
      %v249 = vld [vmem:[%s166 + $0x258] sm:$0xff]
      %v250 = vld [vmem:[%s166 + $0x260] sm:$0xff]
      %v251 = vld [vmem:[%s166 + $0x268] sm:$0xff]
      %v252 = vld [vmem:[%s166 + $0x270] sm:$0xff]
      %v253 = vld [vmem:[%s166 + $0x278] sm:$0xff]
      %v254 = vld [vmem:[%s166 + $0x280] sm:$0xff]
      %v255 = vld [vmem:[%s166 + $0x288] sm:$0xff]
      %v256 = vld [vmem:[%s166 + $0x290] sm:$0xff]
      %v257 = vld [vmem:[%s166 + $0x298] sm:$0xff]
      %v258 = vld [vmem:[%s166 + $0x2a0] sm:$0xff]
      %v259 = vld [vmem:[%s166 + $0x2a8] sm:$0xff]
      %v260 = vld [vmem:[%s166 + $0x2b0] sm:$0xff]
      %v261 = vld [vmem:[%s166 + $0x2b8] sm:$0xff]
      %v262 = vld [vmem:[%s166 + $0x2c0] sm:$0xff]
      %v263 = vld [vmem:[%s166 + $0x2c8] sm:$0xff]
      %v264 = vld [vmem:[%s166 + $0x2d0] sm:$0xff]
      %v265 = vld [vmem:[%s166 + $0x2d8] sm:$0xff]
      %v266 = vld [vmem:[%s166 + $0x2e0] sm:$0xff]
      %v267 = vld [vmem:[%s166 + $0x2e8] sm:$0xff]
      %v268 = vld [vmem:[%s166 + $0x2f0] sm:$0xff]
      %v269 = vld [vmem:[%s166 + $0x2f8] sm:$0xff]
      %v270 = vld [vmem:[%s166 + $0x300] sm:$0xff]
      %v271 = vld [vmem:[%s166 + $0x308] sm:$0xff]
      %v272 = vld [vmem:[%s166 + $0x310] sm:$0xff]
      %v273 = vld [vmem:[%s166 + $0x318] sm:$0xff]
      %v274 = vld [vmem:[%s166 + $0x320] sm:$0xff]
      %v275 = vld [vmem:[%s166 + $0x328] sm:$0xff]
      %v276 = vld [vmem:[%s166 + $0x330] sm:$0xff]
      %v277 = vld [vmem:[%s166 + $0x338] sm:$0xff]
      %v278 = vld [vmem:[%s166 + $0x340] sm:$0xff]
      %v279 = vld [vmem:[%s166 + $0x348] sm:$0xff]
      %v280 = vld [vmem:[%s166 + $0x350] sm:$0xff]
      %v281 = vld [vmem:[%s166 + $0x358] sm:$0xff]
      %v282 = vld [vmem:[%s166 + $0x360] sm:$0xff]
      %v283 = vld [vmem:[%s166 + $0x368] sm:$0xff]
      %v284 = vld [vmem:[%s166 + $0x370] sm:$0xff]
      %v285 = vld [vmem:[%s166 + $0x378] sm:$0xff]
      %v286 = vld [vmem:[%s166 + $0x380] sm:$0xff]
      %v287 = vld [vmem:[%s166 + $0x388] sm:$0xff]
      %v288 = vld [vmem:[%s166 + $0x390] sm:$0xff]
      %v289 = vld [vmem:[%s166 + $0x398] sm:$0xff]
      %v290 = vld [vmem:[%s166 + $0x3a0] sm:$0xff]
      %v291 = vld [vmem:[%s166 + $0x3a8] sm:$0xff]
      %v292 = vld [vmem:[%s166 + $0x3b0] sm:$0xff]
      %v293 = vld [vmem:[%s166 + $0x3b8] sm:$0xff]
      %v294 = vld [vmem:[%s166 + $0x3c0] sm:$0xff]
      %v295 = vld [vmem:[%s166 + $0x3c8] sm:$0xff]
      %v296 = vld [vmem:[%s166 + $0x3d0] sm:$0xff]
      %v297 = vld [vmem:[%s166 + $0x3d8] sm:$0xff]
      %v298 = vld [vmem:[%s166 + $0x3e0] sm:$0xff]
      %v299 = vld [vmem:[%s166 + $0x3e8] sm:$0xff]
      %v300 = vld [vmem:[%s166 + $0x3f0] sm:$0xff]
      %v301 = vld [vmem:[%s166 + $0x3f8] sm:$0xff]
      %v302 = vld [vmem:[%s1] sm:$0xff]
      %v303 = vld [vmem:[%s1 + $0x8] sm:$0xff]
      %v304 = vld [vmem:[%s1 + $0x10] sm:$0xff]
      %v305 = vld [vmem:[%s1 + $0x18] sm:$0xff]
      %v306 = vld [vmem:[%s1 + $0x20] sm:$0xff]
      %v307 = vld [vmem:[%s1 + $0x28] sm:$0xff]
      %v308 = vld [vmem:[%s2] sm:$0x1]
      %v310 = vlaneseq
      %v311 = vshrl.u32 %v310, 7
      %v312 = vsub.s32 0, %v311
      %v313 = vrot.slane %v308, %v312
      %vm315 = vcmask 392192
      %v317 = vsel %vm315, %v174, 0
      %v320 = vsel %vm315, %v175, 0
      %v323 = vsel %vm315, %v176, 0
      %v326 = vsel %vm315, %v177, 0
      %v329 = vsel %vm315, %v178, 0
      %v332 = vsel %vm315, %v179, 0
      %v335 = vsel %vm315, %v180, 0
      %v338 = vsel %vm315, %v181, 0
      %v341 = vsel %vm315, %v182, 0
      %v344 = vsel %vm315, %v183, 0
      %v347 = vsel %vm315, %v184, 0
      %v350 = vsel %vm315, %v185, 0
      %v353 = vsel %vm315, %v186, 0
      %v356 = vsel %vm315, %v187, 0
      %v359 = vsel %vm315, %v188, 0
      %v362 = vsel %vm315, %v189, 0
      %v365 = vsel %vm315, %v190, 0
      %v368 = vsel %vm315, %v191, 0
      %v371 = vsel %vm315, %v192, 0
      %v374 = vsel %vm315, %v193, 0
      %v377 = vsel %vm315, %v194, 0
      %v380 = vsel %vm315, %v195, 0
      %v383 = vsel %vm315, %v196, 0
      %v386 = vsel %vm315, %v197, 0
      %v389 = vsel %vm315, %v198, 0
      %v392 = vsel %vm315, %v199, 0
      %v395 = vsel %vm315, %v200, 0
      %v398 = vsel %vm315, %v201, 0
      %v401 = vsel %vm315, %v202, 0
      %v404 = vsel %vm315, %v203, 0
      %v407 = vsel %vm315, %v204, 0
      %v410 = vsel %vm315, %v205, 0
      %v413 = vsel %vm315, %v206, 0
      %v416 = vsel %vm315, %v207, 0
      %v419 = vsel %vm315, %v208, 0
      %v422 = vsel %vm315, %v209, 0
      %v425 = vsel %vm315, %v210, 0
      %v428 = vsel %vm315, %v211, 0
      %v431 = vsel %vm315, %v212, 0
      %v434 = vsel %vm315, %v213, 0
      %v437 = vsel %vm315, %v214, 0
      %v440 = vsel %vm315, %v215, 0
      %v443 = vsel %vm315, %v216, 0
      %v446 = vsel %vm315, %v217, 0
      %v449 = vsel %vm315, %v218, 0
      %v452 = vsel %vm315, %v219, 0
      %v455 = vsel %vm315, %v220, 0
      %v458 = vsel %vm315, %v221, 0
      %v461 = vsel %vm315, %v222, 0
      %v464 = vsel %vm315, %v223, 0
      %v467 = vsel %vm315, %v224, 0
      %v470 = vsel %vm315, %v225, 0
      %v473 = vsel %vm315, %v226, 0
      %v476 = vsel %vm315, %v227, 0
      %v479 = vsel %vm315, %v228, 0
      %v482 = vsel %vm315, %v229, 0
      %v485 = vsel %vm315, %v230, 0
      %v488 = vsel %vm315, %v231, 0
      %v491 = vsel %vm315, %v232, 0
      %v494 = vsel %vm315, %v233, 0
      %v497 = vsel %vm315, %v234, 0
      %v500 = vsel %vm315, %v235, 0
      %v503 = vsel %vm315, %v236, 0
      %v506 = vsel %vm315, %v237, 0
      %v509 = vsel %vm315, %v238, 0
      %v512 = vsel %vm315, %v239, 0
      %v515 = vsel %vm315, %v240, 0
      %v518 = vsel %vm315, %v241, 0
      %v521 = vsel %vm315, %v242, 0
      %v524 = vsel %vm315, %v243, 0
      %v527 = vsel %vm315, %v244, 0
      %v530 = vsel %vm315, %v245, 0
      %v533 = vsel %vm315, %v246, 0
      %v536 = vsel %vm315, %v247, 0
      %v539 = vsel %vm315, %v248, 0
      %v542 = vsel %vm315, %v249, 0
      %v545 = vsel %vm315, %v250, 0
      %v548 = vsel %vm315, %v251, 0
      %v551 = vsel %vm315, %v252, 0
      %v554 = vsel %vm315, %v253, 0
      %v557 = vsel %vm315, %v254, 0
      %v560 = vsel %vm315, %v255, 0
      %v563 = vsel %vm315, %v256, 0
      %v566 = vsel %vm315, %v257, 0
      %v569 = vsel %vm315, %v258, 0
      %v572 = vsel %vm315, %v259, 0
      %v575 = vsel %vm315, %v260, 0
      %v578 = vsel %vm315, %v261, 0
      %v581 = vsel %vm315, %v262, 0
      %v584 = vsel %vm315, %v263, 0
      %v587 = vsel %vm315, %v264, 0
      %v590 = vsel %vm315, %v265, 0
      %v593 = vsel %vm315, %v266, 0
      %v596 = vsel %vm315, %v267, 0
      %v599 = vsel %vm315, %v268, 0
      %v602 = vsel %vm315, %v269, 0
      %v605 = vsel %vm315, %v270, 0
      %v608 = vsel %vm315, %v271, 0
      %v611 = vsel %vm315, %v272, 0
      %v614 = vsel %vm315, %v273, 0
      %v617 = vsel %vm315, %v274, 0
      %v620 = vsel %vm315, %v275, 0
      %v623 = vsel %vm315, %v276, 0
      %v626 = vsel %vm315, %v277, 0
      %v629 = vsel %vm315, %v278, 0
      %v632 = vsel %vm315, %v279, 0
      %v635 = vsel %vm315, %v280, 0
      %v638 = vsel %vm315, %v281, 0
      %v641 = vsel %vm315, %v282, 0
      %v644 = vsel %vm315, %v283, 0
      %v647 = vsel %vm315, %v284, 0
      %v650 = vsel %vm315, %v285, 0
      %v653 = vsel %vm315, %v286, 0
      %v656 = vsel %vm315, %v287, 0
      %v659 = vsel %vm315, %v288, 0
      %v662 = vsel %vm315, %v289, 0
      %v665 = vsel %vm315, %v290, 0
      %v668 = vsel %vm315, %v291, 0
      %v671 = vsel %vm315, %v292, 0
      %v674 = vsel %vm315, %v293, 0
      %v677 = vsel %vm315, %v294, 0
      %v680 = vsel %vm315, %v295, 0
      %v683 = vsel %vm315, %v296, 0
      %v686 = vsel %vm315, %v297, 0
      %v689 = vsel %vm315, %v298, 0
      %v692 = vsel %vm315, %v299, 0
      %v695 = vsel %vm315, %v300, 0
      %v698 = vsel %vm315, %v301, 0
      %700 = vmatprep.subr.mxu0 0.0
      %701 = vmatpush1.msra.mxu0 0.0
      %702 = vmatprep.subr.mxu0 0.0
      %703 = vmatpush1.msra.mxu0 0.0
      %704 = vmatprep.subr.mxu0 0.0
      %705 = vmatpush1.msra.mxu0 0.0
      %706 = vmatprep.subr.mxu0 0.0
      %707 = vmatpush1.msra.mxu0 0.0
      %708 = vmatprep.subr.mxu0 0.0
      %709 = vmatpush1.msra.mxu0 0.0
      %710 = vmatprep.subr.mxu0 0.0
      %711 = vmatpush1.msra.mxu0 0.0
      %712 = vmatprep.subr.mxu0 0.0
      %713 = vmatpush1.msra.mxu0 0.0
      %714 = vmatprep.subr.mxu0 0.0
      %715 = vmatpush1.msra.mxu0 0.0
      %716 = vmatprep.subr.mxu0 0.0
      %717 = vmatpush1.msra.mxu0 0.0
      %718 = vmatprep.subr.mxu0 0.0
      %719 = vmatpush1.msra.mxu0 0.0
      %720 = vmatprep.subr.mxu0 0.0
      %721 = vmatpush1.msra.mxu0 %v307
      %722 = vmatprep.subr.mxu0 0.0
      %723 = vmatpush1.msra.mxu0 %v306
      %724 = vmatprep.subr.mxu0 0.0
      %725 = vmatpush1.msra.mxu0 %v305
      %726 = vmatprep.subr.mxu0 0.0
      %727 = vmatpush1.msra.mxu0 %v304
      %728 = vmatprep.subr.mxu0 0.0
      %729 = vmatpush1.msra.mxu0 %v303
      %730 = vmatprep.subr.mxu0 0.0
      %731 = vmatpush1.msra.mxu0 %v302
      %732 = vmatprep.subr.mxu0 0.0
      %733 = vmatpush2.msra.mxu0 0.0
      %734 = vmatprep.subr.mxu0 0.0
      %735 = vmatpush2.msra.mxu0 0.0
      %736 = vmatprep.subr.mxu0 0.0
      %737 = vmatpush2.msra.mxu0 0.0
      %738 = vmatprep.subr.mxu0 0.0
      %739 = vmatpush2.msra.mxu0 0.0
      %740 = vmatprep.subr.mxu0 0.0
      %741 = vmatpush2.msra.mxu0 0.0
      %742 = vmatprep.subr.mxu0 0.0
      %743 = vmatpush2.msra.mxu0 0.0
      %744 = vmatprep.subr.mxu0 0.0
      %745 = vmatpush2.msra.mxu0 0.0
      %746 = vmatprep.subr.mxu0 0.0
      %747 = vmatpush2.msra.mxu0 0.0
      %748 = vmatprep.subr.mxu0 0.0
      %749 = vmatpush2.msra.mxu0 0.0
      %750 = vmatprep.subr.mxu0 0.0
      %751 = vmatpush2.msra.mxu0 0.0
      %752 = vmatprep.subr.mxu0 0.0
      %753 = vmatpush2.msra.mxu0 0.0
      %754 = vmatprep.subr.mxu0 0.0
      %755 = vmatpush2.msra.mxu0 0.0
      %756 = vmatprep.subr.mxu0 0.0
      %757 = vmatpush2.msra.mxu0 0.0
      %758 = vmatprep.subr.mxu0 0.0
      %759 = vmatpush2.msra.mxu0 0.0
      %760 = vmatprep.subr.mxu0 0.0
      %761 = vmatpush2.msra.mxu0 0.0
      %762 = vmatprep.subr.mxu0 0.0
      %763 = vmatpush2.msra.mxu0 0.0
      %764 = vmatprep.mubr.f32.mxu0 0.0
      %765 = vmatmul.mubr.f32.gmra.mxu0 %v317
      %v766 = vpop.f32.mrf.mxu0
      %v767 = vadd.f32 %v313, %v766
      %v768 = vpop.f32.mrf.mxu0
      %769 = vmatprep.mubr.f32.mxu0 0.0
      %770 = vmatmul.mubr.f32.gmra.mxu0 %v320
      %v771 = vpop.f32.mrf.mxu0
      %v772 = vadd.f32 %v313, %v771
      %v773 = vpop.f32.mrf.mxu0
      %774 = vmatprep.mubr.f32.mxu0 0.0
      %775 = vmatmul.mubr.f32.gmra.mxu0 %v323
      %v776 = vpop.f32.mrf.mxu0
      %v777 = vadd.f32 %v313, %v776
      %v778 = vpop.f32.mrf.mxu0
      %779 = vmatprep.mubr.f32.mxu0 0.0
      %780 = vmatmul.mubr.f32.gmra.mxu0 %v326
      %v781 = vpop.f32.mrf.mxu0
      %v782 = vadd.f32 %v313, %v781
      %v783 = vpop.f32.mrf.mxu0
      %784 = vmatprep.mubr.f32.mxu0 0.0
      %785 = vmatmul.mubr.f32.gmra.mxu0 %v329
      %v786 = vpop.f32.mrf.mxu0
      %v787 = vadd.f32 %v313, %v786
      %v788 = vpop.f32.mrf.mxu0
      %789 = vmatprep.mubr.f32.mxu0 0.0
      %790 = vmatmul.mubr.f32.gmra.mxu0 %v332
      %v791 = vpop.f32.mrf.mxu0
      %v792 = vadd.f32 %v313, %v791
      %v793 = vpop.f32.mrf.mxu0
      %794 = vmatprep.mubr.f32.mxu0 0.0
      %795 = vmatmul.mubr.f32.gmra.mxu0 %v335
      %v796 = vpop.f32.mrf.mxu0
      %v797 = vadd.f32 %v313, %v796
      %v798 = vpop.f32.mrf.mxu0
      %799 = vmatprep.mubr.f32.mxu0 0.0
      %800 = vmatmul.mubr.f32.gmra.mxu0 %v338
      %v801 = vpop.f32.mrf.mxu0
      %v802 = vadd.f32 %v313, %v801
      %v803 = vpop.f32.mrf.mxu0
      %804 = vmatprep.mubr.f32.mxu0 0.0
      %805 = vmatmul.mubr.f32.gmra.mxu0 %v341
      %v806 = vpop.f32.mrf.mxu0
      %v807 = vadd.f32 %v313, %v806
      %v808 = vpop.f32.mrf.mxu0
      %809 = vmatprep.mubr.f32.mxu0 0.0
      %810 = vmatmul.mubr.f32.gmra.mxu0 %v344
      %v811 = vpop.f32.mrf.mxu0
      %v812 = vadd.f32 %v313, %v811
      %v813 = vpop.f32.mrf.mxu0
      %814 = vmatprep.mubr.f32.mxu0 0.0
      %815 = vmatmul.mubr.f32.gmra.mxu0 %v347
      %v816 = vpop.f32.mrf.mxu0
      %v817 = vadd.f32 %v313, %v816
      %v818 = vpop.f32.mrf.mxu0
      %819 = vmatprep.mubr.f32.mxu0 0.0
      %820 = vmatmul.mubr.f32.gmra.mxu0 %v350
      %v821 = vpop.f32.mrf.mxu0
      %v822 = vadd.f32 %v313, %v821
      %v823 = vpop.f32.mrf.mxu0
      %824 = vmatprep.mubr.f32.mxu0 0.0
      %825 = vmatmul.mubr.f32.gmra.mxu0 %v353
      %v826 = vpop.f32.mrf.mxu0
      %v827 = vadd.f32 %v313, %v826
      %v828 = vpop.f32.mrf.mxu0
      %829 = vmatprep.mubr.f32.mxu0 0.0
      %830 = vmatmul.mubr.f32.gmra.mxu0 %v356
      %v831 = vpop.f32.mrf.mxu0
      %v832 = vadd.f32 %v313, %v831
      %v833 = vpop.f32.mrf.mxu0
      %834 = vmatprep.mubr.f32.mxu0 0.0
      %835 = vmatmul.mubr.f32.gmra.mxu0 %v359
      %v836 = vpop.f32.mrf.mxu0
      %v837 = vadd.f32 %v313, %v836
      %v838 = vpop.f32.mrf.mxu0
      %839 = vmatprep.mubr.f32.mxu0 0.0
      %840 = vmatmul.mubr.f32.gmra.mxu0 %v362
      %v841 = vpop.f32.mrf.mxu0
      %v842 = vadd.f32 %v313, %v841
      %v843 = vpop.f32.mrf.mxu0
      %844 = vmatprep.mubr.f32.mxu0 0.0
      %845 = vmatmul.mubr.f32.gmra.mxu0 %v365
      %v846 = vpop.f32.mrf.mxu0
      %v847 = vadd.f32 %v313, %v846
      %v848 = vpop.f32.mrf.mxu0
      %849 = vmatprep.mubr.f32.mxu0 0.0
      %850 = vmatmul.mubr.f32.gmra.mxu0 %v368
      %v851 = vpop.f32.mrf.mxu0
      %v852 = vadd.f32 %v313, %v851
      %v853 = vpop.f32.mrf.mxu0
      %854 = vmatprep.mubr.f32.mxu0 0.0
      %855 = vmatmul.mubr.f32.gmra.mxu0 %v371
      %v856 = vpop.f32.mrf.mxu0
      %v857 = vadd.f32 %v313, %v856
      %v858 = vpop.f32.mrf.mxu0
      %859 = vmatprep.mubr.f32.mxu0 0.0
      %860 = vmatmul.mubr.f32.gmra.mxu0 %v374
      %v861 = vpop.f32.mrf.mxu0
      %v862 = vadd.f32 %v313, %v861
      %v863 = vpop.f32.mrf.mxu0
      %864 = vmatprep.mubr.f32.mxu0 0.0
      %865 = vmatmul.mubr.f32.gmra.mxu0 %v377
      %v866 = vpop.f32.mrf.mxu0
      %v867 = vadd.f32 %v313, %v866
      %v868 = vpop.f32.mrf.mxu0
      %869 = vmatprep.mubr.f32.mxu0 0.0
      %870 = vmatmul.mubr.f32.gmra.mxu0 %v380
      %v871 = vpop.f32.mrf.mxu0
      %v872 = vadd.f32 %v313, %v871
      %v873 = vpop.f32.mrf.mxu0
      %874 = vmatprep.mubr.f32.mxu0 0.0
      %875 = vmatmul.mubr.f32.gmra.mxu0 %v383
      %v876 = vpop.f32.mrf.mxu0
      %v877 = vadd.f32 %v313, %v876
      %v878 = vpop.f32.mrf.mxu0
      %879 = vmatprep.mubr.f32.mxu0 0.0
      %880 = vmatmul.mubr.f32.gmra.mxu0 %v386
      %v881 = vpop.f32.mrf.mxu0
      %v882 = vadd.f32 %v313, %v881
      %v883 = vpop.f32.mrf.mxu0
      %884 = vmatprep.mubr.f32.mxu0 0.0
      %885 = vmatmul.mubr.f32.gmra.mxu0 %v389
      %v886 = vpop.f32.mrf.mxu0
      %v887 = vadd.f32 %v313, %v886
      %v888 = vpop.f32.mrf.mxu0
      %889 = vmatprep.mubr.f32.mxu0 0.0
      %890 = vmatmul.mubr.f32.gmra.mxu0 %v392
      %v891 = vpop.f32.mrf.mxu0
      %v892 = vadd.f32 %v313, %v891
      %v893 = vpop.f32.mrf.mxu0
      %894 = vmatprep.mubr.f32.mxu0 0.0
      %895 = vmatmul.mubr.f32.gmra.mxu0 %v395
      %v896 = vpop.f32.mrf.mxu0
      %v897 = vadd.f32 %v313, %v896
      %v898 = vpop.f32.mrf.mxu0
      %899 = vmatprep.mubr.f32.mxu0 0.0
      %900 = vmatmul.mubr.f32.gmra.mxu0 %v398
      %v901 = vpop.f32.mrf.mxu0
      %v902 = vadd.f32 %v313, %v901
      %v903 = vpop.f32.mrf.mxu0
      %904 = vmatprep.mubr.f32.mxu0 0.0
      %905 = vmatmul.mubr.f32.gmra.mxu0 %v401
      %v906 = vpop.f32.mrf.mxu0
      %v907 = vadd.f32 %v313, %v906
      %v908 = vpop.f32.mrf.mxu0
      %909 = vmatprep.mubr.f32.mxu0 0.0
      %910 = vmatmul.mubr.f32.gmra.mxu0 %v404
      %v911 = vpop.f32.mrf.mxu0
      %v912 = vadd.f32 %v313, %v911
      %v913 = vpop.f32.mrf.mxu0
      %914 = vmatprep.mubr.f32.mxu0 0.0
      %915 = vmatmul.mubr.f32.gmra.mxu0 %v407
      %v916 = vpop.f32.mrf.mxu0
      %v917 = vadd.f32 %v313, %v916
      %v918 = vpop.f32.mrf.mxu0
      %919 = vmatprep.mubr.f32.mxu0 0.0
      %920 = vmatmul.mubr.f32.gmra.mxu0 %v410
      %v921 = vpop.f32.mrf.mxu0
      %v922 = vadd.f32 %v313, %v921
      %v923 = vpop.f32.mrf.mxu0
      %924 = vmatprep.mubr.f32.mxu0 0.0
      %925 = vmatmul.mubr.f32.gmra.mxu0 %v413
      %v926 = vpop.f32.mrf.mxu0
      %v927 = vadd.f32 %v313, %v926
      %v928 = vpop.f32.mrf.mxu0
      %929 = vmatprep.mubr.f32.mxu0 0.0
      %930 = vmatmul.mubr.f32.gmra.mxu0 %v416
      %v931 = vpop.f32.mrf.mxu0
      %v932 = vadd.f32 %v313, %v931
      %v933 = vpop.f32.mrf.mxu0
      %934 = vmatprep.mubr.f32.mxu0 0.0
      %935 = vmatmul.mubr.f32.gmra.mxu0 %v419
      %v936 = vpop.f32.mrf.mxu0
      %v937 = vadd.f32 %v313, %v936
      %v938 = vpop.f32.mrf.mxu0
      %939 = vmatprep.mubr.f32.mxu0 0.0
      %940 = vmatmul.mubr.f32.gmra.mxu0 %v422
      %v941 = vpop.f32.mrf.mxu0
      %v942 = vadd.f32 %v313, %v941
      %v943 = vpop.f32.mrf.mxu0
      %944 = vmatprep.mubr.f32.mxu0 0.0
      %945 = vmatmul.mubr.f32.gmra.mxu0 %v425
      %v946 = vpop.f32.mrf.mxu0
      %v947 = vadd.f32 %v313, %v946
      %v948 = vpop.f32.mrf.mxu0
      %949 = vmatprep.mubr.f32.mxu0 0.0
      %950 = vmatmul.mubr.f32.gmra.mxu0 %v428
      %v951 = vpop.f32.mrf.mxu0
      %v952 = vadd.f32 %v313, %v951
      %v953 = vpop.f32.mrf.mxu0
      %954 = vmatprep.mubr.f32.mxu0 0.0
      %955 = vmatmul.mubr.f32.gmra.mxu0 %v431
      %v956 = vpop.f32.mrf.mxu0
      %v957 = vadd.f32 %v313, %v956
      %v958 = vpop.f32.mrf.mxu0
      %959 = vmatprep.mubr.f32.mxu0 0.0
      %960 = vmatmul.mubr.f32.gmra.mxu0 %v434
      %v961 = vpop.f32.mrf.mxu0
      %v962 = vadd.f32 %v313, %v961
      %v963 = vpop.f32.mrf.mxu0
      %964 = vmatprep.mubr.f32.mxu0 0.0
      %965 = vmatmul.mubr.f32.gmra.mxu0 %v437
      %v966 = vpop.f32.mrf.mxu0
      %v967 = vadd.f32 %v313, %v966
      %v968 = vpop.f32.mrf.mxu0
      %969 = vmatprep.mubr.f32.mxu0 0.0
      %970 = vmatmul.mubr.f32.gmra.mxu0 %v440
      %v971 = vpop.f32.mrf.mxu0
      %v972 = vadd.f32 %v313, %v971
      %v973 = vpop.f32.mrf.mxu0
      %974 = vmatprep.mubr.f32.mxu0 0.0
      %975 = vmatmul.mubr.f32.gmra.mxu0 %v443
      %v976 = vpop.f32.mrf.mxu0
      %v977 = vadd.f32 %v313, %v976
      %v978 = vpop.f32.mrf.mxu0
      %979 = vmatprep.mubr.f32.mxu0 0.0
      %980 = vmatmul.mubr.f32.gmra.mxu0 %v446
      %v981 = vpop.f32.mrf.mxu0
      %v982 = vadd.f32 %v313, %v981
      %v983 = vpop.f32.mrf.mxu0
      %984 = vmatprep.mubr.f32.mxu0 0.0
      %985 = vmatmul.mubr.f32.gmra.mxu0 %v449
      %v986 = vpop.f32.mrf.mxu0
      %v987 = vadd.f32 %v313, %v986
      %v988 = vpop.f32.mrf.mxu0
      %989 = vmatprep.mubr.f32.mxu0 0.0
      %990 = vmatmul.mubr.f32.gmra.mxu0 %v452
      %v991 = vpop.f32.mrf.mxu0
      %v992 = vadd.f32 %v313, %v991
      %v993 = vpop.f32.mrf.mxu0
      %994 = vmatprep.mubr.f32.mxu0 0.0
      %995 = vmatmul.mubr.f32.gmra.mxu0 %v455
      %v996 = vpop.f32.mrf.mxu0
      %v997 = vadd.f32 %v313, %v996
      %v998 = vpop.f32.mrf.mxu0
      %999 = vmatprep.mubr.f32.mxu0 0.0
      %1000 = vmatmul.mubr.f32.gmra.mxu0 %v458
      %v1001 = vpop.f32.mrf.mxu0
      %v1002 = vadd.f32 %v313, %v1001
      %v1003 = vpop.f32.mrf.mxu0
      %1004 = vmatprep.mubr.f32.mxu0 0.0
      %1005 = vmatmul.mubr.f32.gmra.mxu0 %v461
      %v1006 = vpop.f32.mrf.mxu0
      %v1007 = vadd.f32 %v313, %v1006
      %v1008 = vpop.f32.mrf.mxu0
      %1009 = vmatprep.mubr.f32.mxu0 0.0
      %1010 = vmatmul.mubr.f32.gmra.mxu0 %v464
      %v1011 = vpop.f32.mrf.mxu0
      %v1012 = vadd.f32 %v313, %v1011
      %v1013 = vpop.f32.mrf.mxu0
      %1014 = vmatprep.mubr.f32.mxu0 0.0
      %1015 = vmatmul.mubr.f32.gmra.mxu0 %v467
      %v1016 = vpop.f32.mrf.mxu0
      %v1017 = vadd.f32 %v313, %v1016
      %v1018 = vpop.f32.mrf.mxu0
      %1019 = vmatprep.mubr.f32.mxu0 0.0
      %1020 = vmatmul.mubr.f32.gmra.mxu0 %v470
      %v1021 = vpop.f32.mrf.mxu0
      %v1022 = vadd.f32 %v313, %v1021
      %v1023 = vpop.f32.mrf.mxu0
      %1024 = vmatprep.mubr.f32.mxu0 0.0
      %1025 = vmatmul.mubr.f32.gmra.mxu0 %v473
      %v1026 = vpop.f32.mrf.mxu0
      %v1027 = vadd.f32 %v313, %v1026
      %v1028 = vpop.f32.mrf.mxu0
      %1029 = vmatprep.mubr.f32.mxu0 0.0
      %1030 = vmatmul.mubr.f32.gmra.mxu0 %v476
      %v1031 = vpop.f32.mrf.mxu0
      %v1032 = vadd.f32 %v313, %v1031
      %v1033 = vpop.f32.mrf.mxu0
      %1034 = vmatprep.mubr.f32.mxu0 0.0
      %1035 = vmatmul.mubr.f32.gmra.mxu0 %v479
      %v1036 = vpop.f32.mrf.mxu0
      %v1037 = vadd.f32 %v313, %v1036
      %v1038 = vpop.f32.mrf.mxu0
      %1039 = vmatprep.mubr.f32.mxu0 0.0
      %1040 = vmatmul.mubr.f32.gmra.mxu0 %v482
      %v1041 = vpop.f32.mrf.mxu0
      %v1042 = vadd.f32 %v313, %v1041
      %v1043 = vpop.f32.mrf.mxu0
      %1044 = vmatprep.mubr.f32.mxu0 0.0
      %1045 = vmatmul.mubr.f32.gmra.mxu0 %v485
      %v1046 = vpop.f32.mrf.mxu0
      %v1047 = vadd.f32 %v313, %v1046
      %v1048 = vpop.f32.mrf.mxu0
      %1049 = vmatprep.mubr.f32.mxu0 0.0
      %1050 = vmatmul.mubr.f32.gmra.mxu0 %v488
      %v1051 = vpop.f32.mrf.mxu0
      %v1052 = vadd.f32 %v313, %v1051
      %v1053 = vpop.f32.mrf.mxu0
      %1054 = vmatprep.mubr.f32.mxu0 0.0
      %1055 = vmatmul.mubr.f32.gmra.mxu0 %v491
      %v1056 = vpop.f32.mrf.mxu0
      %v1057 = vadd.f32 %v313, %v1056
      %v1058 = vpop.f32.mrf.mxu0
      %1059 = vmatprep.mubr.f32.mxu0 0.0
      %1060 = vmatmul.mubr.f32.gmra.mxu0 %v494
      %v1061 = vpop.f32.mrf.mxu0
      %v1062 = vadd.f32 %v313, %v1061
      %v1063 = vpop.f32.mrf.mxu0
      %1064 = vmatprep.mubr.f32.mxu0 0.0
      %1065 = vmatmul.mubr.f32.gmra.mxu0 %v497
      %v1066 = vpop.f32.mrf.mxu0
      %v1067 = vadd.f32 %v313, %v1066
      %v1068 = vpop.f32.mrf.mxu0
      %1069 = vmatprep.mubr.f32.mxu0 0.0
      %1070 = vmatmul.mubr.f32.gmra.mxu0 %v500
      %v1071 = vpop.f32.mrf.mxu0
      %v1072 = vadd.f32 %v313, %v1071
      %v1073 = vpop.f32.mrf.mxu0
      %1074 = vmatprep.mubr.f32.mxu0 0.0
      %1075 = vmatmul.mubr.f32.gmra.mxu0 %v503
      %v1076 = vpop.f32.mrf.mxu0
      %v1077 = vadd.f32 %v313, %v1076
      %v1078 = vpop.f32.mrf.mxu0
      %1079 = vmatprep.mubr.f32.mxu0 0.0
      %1080 = vmatmul.mubr.f32.gmra.mxu0 %v506
      %v1081 = vpop.f32.mrf.mxu0
      %v1082 = vadd.f32 %v313, %v1081
      %v1083 = vpop.f32.mrf.mxu0
      %1084 = vmatprep.mubr.f32.mxu0 0.0
      %1085 = vmatmul.mubr.f32.gmra.mxu0 %v509
      %v1086 = vpop.f32.mrf.mxu0
      %v1087 = vadd.f32 %v313, %v1086
      %v1088 = vpop.f32.mrf.mxu0
      %1089 = vmatprep.mubr.f32.mxu0 0.0
      %1090 = vmatmul.mubr.f32.gmra.mxu0 %v512
      %v1091 = vpop.f32.mrf.mxu0
      %v1092 = vadd.f32 %v313, %v1091
      %v1093 = vpop.f32.mrf.mxu0
      %1094 = vmatprep.mubr.f32.mxu0 0.0
      %1095 = vmatmul.mubr.f32.gmra.mxu0 %v515
      %v1096 = vpop.f32.mrf.mxu0
      %v1097 = vadd.f32 %v313, %v1096
      %v1098 = vpop.f32.mrf.mxu0
      %1099 = vmatprep.mubr.f32.mxu0 0.0
      %1100 = vmatmul.mubr.f32.gmra.mxu0 %v518
      %v1101 = vpop.f32.mrf.mxu0
      %v1102 = vadd.f32 %v313, %v1101
      %v1103 = vpop.f32.mrf.mxu0
      %1104 = vmatprep.mubr.f32.mxu0 0.0
      %1105 = vmatmul.mubr.f32.gmra.mxu0 %v521
      %v1106 = vpop.f32.mrf.mxu0
      %v1107 = vadd.f32 %v313, %v1106
      %v1108 = vpop.f32.mrf.mxu0
      %1109 = vmatprep.mubr.f32.mxu0 0.0
      %1110 = vmatmul.mubr.f32.gmra.mxu0 %v524
      %v1111 = vpop.f32.mrf.mxu0
      %v1112 = vadd.f32 %v313, %v1111
      %v1113 = vpop.f32.mrf.mxu0
      %1114 = vmatprep.mubr.f32.mxu0 0.0
      %1115 = vmatmul.mubr.f32.gmra.mxu0 %v527
      %v1116 = vpop.f32.mrf.mxu0
      %v1117 = vadd.f32 %v313, %v1116
      %v1118 = vpop.f32.mrf.mxu0
      %1119 = vmatprep.mubr.f32.mxu0 0.0
      %1120 = vmatmul.mubr.f32.gmra.mxu0 %v530
      %v1121 = vpop.f32.mrf.mxu0
      %v1122 = vadd.f32 %v313, %v1121
      %v1123 = vpop.f32.mrf.mxu0
      %1124 = vmatprep.mubr.f32.mxu0 0.0
      %1125 = vmatmul.mubr.f32.gmra.mxu0 %v533
      %v1126 = vpop.f32.mrf.mxu0
      %v1127 = vadd.f32 %v313, %v1126
      %v1128 = vpop.f32.mrf.mxu0
      %1129 = vmatprep.mubr.f32.mxu0 0.0
      %1130 = vmatmul.mubr.f32.gmra.mxu0 %v536
      %v1131 = vpop.f32.mrf.mxu0
      %v1132 = vadd.f32 %v313, %v1131
      %v1133 = vpop.f32.mrf.mxu0
      %1134 = vmatprep.mubr.f32.mxu0 0.0
      %1135 = vmatmul.mubr.f32.gmra.mxu0 %v539
      %v1136 = vpop.f32.mrf.mxu0
      %v1137 = vadd.f32 %v313, %v1136
      %v1138 = vpop.f32.mrf.mxu0
      %1139 = vmatprep.mubr.f32.mxu0 0.0
      %1140 = vmatmul.mubr.f32.gmra.mxu0 %v542
      %v1141 = vpop.f32.mrf.mxu0
      %v1142 = vadd.f32 %v313, %v1141
      %v1143 = vpop.f32.mrf.mxu0
      %1144 = vmatprep.mubr.f32.mxu0 0.0
      %1145 = vmatmul.mubr.f32.gmra.mxu0 %v545
      %v1146 = vpop.f32.mrf.mxu0
      %v1147 = vadd.f32 %v313, %v1146
      %v1148 = vpop.f32.mrf.mxu0
      %1149 = vmatprep.mubr.f32.mxu0 0.0
      %1150 = vmatmul.mubr.f32.gmra.mxu0 %v548
      %v1151 = vpop.f32.mrf.mxu0
      %v1152 = vadd.f32 %v313, %v1151
      %v1153 = vpop.f32.mrf.mxu0
      %1154 = vmatprep.mubr.f32.mxu0 0.0
      %1155 = vmatmul.mubr.f32.gmra.mxu0 %v551
      %v1156 = vpop.f32.mrf.mxu0
      %v1157 = vadd.f32 %v313, %v1156
      %v1158 = vpop.f32.mrf.mxu0
      %1159 = vmatprep.mubr.f32.mxu0 0.0
      %1160 = vmatmul.mubr.f32.gmra.mxu0 %v554
      %v1161 = vpop.f32.mrf.mxu0
      %v1162 = vadd.f32 %v313, %v1161
      %v1163 = vpop.f32.mrf.mxu0
      %1164 = vmatprep.mubr.f32.mxu0 0.0
      %1165 = vmatmul.mubr.f32.gmra.mxu0 %v557
      %v1166 = vpop.f32.mrf.mxu0
      %v1167 = vadd.f32 %v313, %v1166
      %v1168 = vpop.f32.mrf.mxu0
      %1169 = vmatprep.mubr.f32.mxu0 0.0
      %1170 = vmatmul.mubr.f32.gmra.mxu0 %v560
      %v1171 = vpop.f32.mrf.mxu0
      %v1172 = vadd.f32 %v313, %v1171
      %v1173 = vpop.f32.mrf.mxu0
      %1174 = vmatprep.mubr.f32.mxu0 0.0
      %1175 = vmatmul.mubr.f32.gmra.mxu0 %v563
      %v1176 = vpop.f32.mrf.mxu0
      %v1177 = vadd.f32 %v313, %v1176
      %v1178 = vpop.f32.mrf.mxu0
      %1179 = vmatprep.mubr.f32.mxu0 0.0
      %1180 = vmatmul.mubr.f32.gmra.mxu0 %v566
      %v1181 = vpop.f32.mrf.mxu0
      %v1182 = vadd.f32 %v313, %v1181
      %v1183 = vpop.f32.mrf.mxu0
      %1184 = vmatprep.mubr.f32.mxu0 0.0
      %1185 = vmatmul.mubr.f32.gmra.mxu0 %v569
      %v1186 = vpop.f32.mrf.mxu0
      %v1187 = vadd.f32 %v313, %v1186
      %v1188 = vpop.f32.mrf.mxu0
      %1189 = vmatprep.mubr.f32.mxu0 0.0
      %1190 = vmatmul.mubr.f32.gmra.mxu0 %v572
      %v1191 = vpop.f32.mrf.mxu0
      %v1192 = vadd.f32 %v313, %v1191
      %v1193 = vpop.f32.mrf.mxu0
      %1194 = vmatprep.mubr.f32.mxu0 0.0
      %1195 = vmatmul.mubr.f32.gmra.mxu0 %v575
      %v1196 = vpop.f32.mrf.mxu0
      %v1197 = vadd.f32 %v313, %v1196
      %v1198 = vpop.f32.mrf.mxu0
      %1199 = vmatprep.mubr.f32.mxu0 0.0
      %1200 = vmatmul.mubr.f32.gmra.mxu0 %v578
      %v1201 = vpop.f32.mrf.mxu0
      %v1202 = vadd.f32 %v313, %v1201
      %v1203 = vpop.f32.mrf.mxu0
      %1204 = vmatprep.mubr.f32.mxu0 0.0
      %1205 = vmatmul.mubr.f32.gmra.mxu0 %v581
      %v1206 = vpop.f32.mrf.mxu0
      %v1207 = vadd.f32 %v313, %v1206
      %v1208 = vpop.f32.mrf.mxu0
      %1209 = vmatprep.mubr.f32.mxu0 0.0
      %1210 = vmatmul.mubr.f32.gmra.mxu0 %v584
      %v1211 = vpop.f32.mrf.mxu0
      %v1212 = vadd.f32 %v313, %v1211
      %v1213 = vpop.f32.mrf.mxu0
      %1214 = vmatprep.mubr.f32.mxu0 0.0
      %1215 = vmatmul.mubr.f32.gmra.mxu0 %v587
      %v1216 = vpop.f32.mrf.mxu0
      %v1217 = vadd.f32 %v313, %v1216
      %v1218 = vpop.f32.mrf.mxu0
      %1219 = vmatprep.mubr.f32.mxu0 0.0
      %1220 = vmatmul.mubr.f32.gmra.mxu0 %v590
      %v1221 = vpop.f32.mrf.mxu0
      %v1222 = vadd.f32 %v313, %v1221
      %v1223 = vpop.f32.mrf.mxu0
      %1224 = vmatprep.mubr.f32.mxu0 0.0
      %1225 = vmatmul.mubr.f32.gmra.mxu0 %v593
      %v1226 = vpop.f32.mrf.mxu0
      %v1227 = vadd.f32 %v313, %v1226
      %v1228 = vpop.f32.mrf.mxu0
      %1229 = vmatprep.mubr.f32.mxu0 0.0
      %1230 = vmatmul.mubr.f32.gmra.mxu0 %v596
      %v1231 = vpop.f32.mrf.mxu0
      %v1232 = vadd.f32 %v313, %v1231
      %v1233 = vpop.f32.mrf.mxu0
      %1234 = vmatprep.mubr.f32.mxu0 0.0
      %1235 = vmatmul.mubr.f32.gmra.mxu0 %v599
      %v1236 = vpop.f32.mrf.mxu0
      %v1237 = vadd.f32 %v313, %v1236
      %v1238 = vpop.f32.mrf.mxu0
      %1239 = vmatprep.mubr.f32.mxu0 0.0
      %1240 = vmatmul.mubr.f32.gmra.mxu0 %v602
      %v1241 = vpop.f32.mrf.mxu0
      %v1242 = vadd.f32 %v313, %v1241
      %v1243 = vpop.f32.mrf.mxu0
      %1244 = vmatprep.mubr.f32.mxu0 0.0
      %1245 = vmatmul.mubr.f32.gmra.mxu0 %v605
      %v1246 = vpop.f32.mrf.mxu0
      %v1247 = vadd.f32 %v313, %v1246
      %v1248 = vpop.f32.mrf.mxu0
      %1249 = vmatprep.mubr.f32.mxu0 0.0
      %1250 = vmatmul.mubr.f32.gmra.mxu0 %v608
      %v1251 = vpop.f32.mrf.mxu0
      %v1252 = vadd.f32 %v313, %v1251
      %v1253 = vpop.f32.mrf.mxu0
      %1254 = vmatprep.mubr.f32.mxu0 0.0
      %1255 = vmatmul.mubr.f32.gmra.mxu0 %v611
      %v1256 = vpop.f32.mrf.mxu0
      %v1257 = vadd.f32 %v313, %v1256
      %v1258 = vpop.f32.mrf.mxu0
      %1259 = vmatprep.mubr.f32.mxu0 0.0
      %1260 = vmatmul.mubr.f32.gmra.mxu0 %v614
      %v1261 = vpop.f32.mrf.mxu0
      %v1262 = vadd.f32 %v313, %v1261
      %v1263 = vpop.f32.mrf.mxu0
      %1264 = vmatprep.mubr.f32.mxu0 0.0
      %1265 = vmatmul.mubr.f32.gmra.mxu0 %v617
      %v1266 = vpop.f32.mrf.mxu0
      %v1267 = vadd.f32 %v313, %v1266
      %v1268 = vpop.f32.mrf.mxu0
      %1269 = vmatprep.mubr.f32.mxu0 0.0
      %1270 = vmatmul.mubr.f32.gmra.mxu0 %v620
      %v1271 = vpop.f32.mrf.mxu0
      %v1272 = vadd.f32 %v313, %v1271
      %v1273 = vpop.f32.mrf.mxu0
      %1274 = vmatprep.mubr.f32.mxu0 0.0
      %1275 = vmatmul.mubr.f32.gmra.mxu0 %v623
      %v1276 = vpop.f32.mrf.mxu0
      %v1277 = vadd.f32 %v313, %v1276
      %v1278 = vpop.f32.mrf.mxu0
      %1279 = vmatprep.mubr.f32.mxu0 0.0
      %1280 = vmatmul.mubr.f32.gmra.mxu0 %v626
      %v1281 = vpop.f32.mrf.mxu0
      %v1282 = vadd.f32 %v313, %v1281
      %v1283 = vpop.f32.mrf.mxu0
      %1284 = vmatprep.mubr.f32.mxu0 0.0
      %1285 = vmatmul.mubr.f32.gmra.mxu0 %v629
      %v1286 = vpop.f32.mrf.mxu0
      %v1287 = vadd.f32 %v313, %v1286
      %v1288 = vpop.f32.mrf.mxu0
      %1289 = vmatprep.mubr.f32.mxu0 0.0
      %1290 = vmatmul.mubr.f32.gmra.mxu0 %v632
      %v1291 = vpop.f32.mrf.mxu0
      %v1292 = vadd.f32 %v313, %v1291
      %v1293 = vpop.f32.mrf.mxu0
      %1294 = vmatprep.mubr.f32.mxu0 0.0
      %1295 = vmatmul.mubr.f32.gmra.mxu0 %v635
      %v1296 = vpop.f32.mrf.mxu0
      %v1297 = vadd.f32 %v313, %v1296
      %v1298 = vpop.f32.mrf.mxu0
      %1299 = vmatprep.mubr.f32.mxu0 0.0
      %1300 = vmatmul.mubr.f32.gmra.mxu0 %v638
      %v1301 = vpop.f32.mrf.mxu0
      %v1302 = vadd.f32 %v313, %v1301
      %v1303 = vpop.f32.mrf.mxu0
      %1304 = vmatprep.mubr.f32.mxu0 0.0
      %1305 = vmatmul.mubr.f32.gmra.mxu0 %v641
      %v1306 = vpop.f32.mrf.mxu0
      %v1307 = vadd.f32 %v313, %v1306
      %v1308 = vpop.f32.mrf.mxu0
      %1309 = vmatprep.mubr.f32.mxu0 0.0
      %1310 = vmatmul.mubr.f32.gmra.mxu0 %v644
      %v1311 = vpop.f32.mrf.mxu0
      %v1312 = vadd.f32 %v313, %v1311
      %v1313 = vpop.f32.mrf.mxu0
      %1314 = vmatprep.mubr.f32.mxu0 0.0
      %1315 = vmatmul.mubr.f32.gmra.mxu0 %v647
      %v1316 = vpop.f32.mrf.mxu0
      %v1317 = vadd.f32 %v313, %v1316
      %v1318 = vpop.f32.mrf.mxu0
      %1319 = vmatprep.mubr.f32.mxu0 0.0
      %1320 = vmatmul.mubr.f32.gmra.mxu0 %v650
      %v1321 = vpop.f32.mrf.mxu0
      %v1322 = vadd.f32 %v313, %v1321
      %v1323 = vpop.f32.mrf.mxu0
      %1324 = vmatprep.mubr.f32.mxu0 0.0
      %1325 = vmatmul.mubr.f32.gmra.mxu0 %v653
      %v1326 = vpop.f32.mrf.mxu0
      %v1327 = vadd.f32 %v313, %v1326
      %v1328 = vpop.f32.mrf.mxu0
      %1329 = vmatprep.mubr.f32.mxu0 0.0
      %1330 = vmatmul.mubr.f32.gmra.mxu0 %v656
      %v1331 = vpop.f32.mrf.mxu0
      %v1332 = vadd.f32 %v313, %v1331
      %v1333 = vpop.f32.mrf.mxu0
      %1334 = vmatprep.mubr.f32.mxu0 0.0
      %1335 = vmatmul.mubr.f32.gmra.mxu0 %v659
      %v1336 = vpop.f32.mrf.mxu0
      %v1337 = vadd.f32 %v313, %v1336
      %v1338 = vpop.f32.mrf.mxu0
      %1339 = vmatprep.mubr.f32.mxu0 0.0
      %1340 = vmatmul.mubr.f32.gmra.mxu0 %v662
      %v1341 = vpop.f32.mrf.mxu0
      %v1342 = vadd.f32 %v313, %v1341
      %v1343 = vpop.f32.mrf.mxu0
      %1344 = vmatprep.mubr.f32.mxu0 0.0
      %1345 = vmatmul.mubr.f32.gmra.mxu0 %v665
      %v1346 = vpop.f32.mrf.mxu0
      %v1347 = vadd.f32 %v313, %v1346
      %v1348 = vpop.f32.mrf.mxu0
      %1349 = vmatprep.mubr.f32.mxu0 0.0
      %1350 = vmatmul.mubr.f32.gmra.mxu0 %v668
      %v1351 = vpop.f32.mrf.mxu0
      %v1352 = vadd.f32 %v313, %v1351
      %v1353 = vpop.f32.mrf.mxu0
      %1354 = vmatprep.mubr.f32.mxu0 0.0
      %1355 = vmatmul.mubr.f32.gmra.mxu0 %v671
      %v1356 = vpop.f32.mrf.mxu0
      %v1357 = vadd.f32 %v313, %v1356
      %v1358 = vpop.f32.mrf.mxu0
      %1359 = vmatprep.mubr.f32.mxu0 0.0
      %1360 = vmatmul.mubr.f32.gmra.mxu0 %v674
      %v1361 = vpop.f32.mrf.mxu0
      %v1362 = vadd.f32 %v313, %v1361
      %v1363 = vpop.f32.mrf.mxu0
      %1364 = vmatprep.mubr.f32.mxu0 0.0
      %1365 = vmatmul.mubr.f32.gmra.mxu0 %v677
      %v1366 = vpop.f32.mrf.mxu0
      %v1367 = vadd.f32 %v313, %v1366
      %v1368 = vpop.f32.mrf.mxu0
      %1369 = vmatprep.mubr.f32.mxu0 0.0
      %1370 = vmatmul.mubr.f32.gmra.mxu0 %v680
      %v1371 = vpop.f32.mrf.mxu0
      %v1372 = vadd.f32 %v313, %v1371
      %v1373 = vpop.f32.mrf.mxu0
      %1374 = vmatprep.mubr.f32.mxu0 0.0
      %1375 = vmatmul.mubr.f32.gmra.mxu0 %v683
      %v1376 = vpop.f32.mrf.mxu0
      %v1377 = vadd.f32 %v313, %v1376
      %v1378 = vpop.f32.mrf.mxu0
      %1379 = vmatprep.mubr.f32.mxu0 0.0
      %1380 = vmatmul.mubr.f32.gmra.mxu0 %v686
      %v1381 = vpop.f32.mrf.mxu0
      %v1382 = vadd.f32 %v313, %v1381
      %v1383 = vpop.f32.mrf.mxu0
      %1384 = vmatprep.mubr.f32.mxu0 0.0
      %1385 = vmatmul.mubr.f32.gmra.mxu0 %v689
      %v1386 = vpop.f32.mrf.mxu0
      %v1387 = vadd.f32 %v313, %v1386
      %v1388 = vpop.f32.mrf.mxu0
      %1389 = vmatprep.mubr.f32.mxu0 0.0
      %1390 = vmatmul.mubr.f32.gmra.mxu0 %v692
      %v1391 = vpop.f32.mrf.mxu0
      %v1392 = vadd.f32 %v313, %v1391
      %v1393 = vpop.f32.mrf.mxu0
      %1394 = vmatprep.mubr.f32.mxu0 0.0
      %1395 = vmatmul.mubr.f32.gmra.mxu0 %v695
      %v1396 = vpop.f32.mrf.mxu0
      %v1397 = vadd.f32 %v313, %v1396
      %v1398 = vpop.f32.mrf.mxu0
      %1399 = vmatprep.mubr.f32.mxu0 0.0
      %1400 = vmatmul.mubr.f32.gmra.mxu0 %v698
      %v1401 = vpop.f32.mrf.mxu0
      %v1402 = vadd.f32 %v313, %v1401
      %v1403 = vpop.f32.mrf.mxu0
      %1404 = vdwg.mxu0
      %vm1405 = vcmask 261120
      %1406 = vst.msk [vmem:[%s172] sm:$0xff] %vm1405, %v767
      %1407 = vst.msk [vmem:[%s172 + $0x8] sm:$0xff] %vm1405, %v772
      %1408 = vst.msk [vmem:[%s172 + $0x10] sm:$0xff] %vm1405, %v777
      %1409 = vst.msk [vmem:[%s172 + $0x18] sm:$0xff] %vm1405, %v782
      %1410 = vst.msk [vmem:[%s172 + $0x20] sm:$0xff] %vm1405, %v787
      %1411 = vst.msk [vmem:[%s172 + $0x28] sm:$0xff] %vm1405, %v792
      %1412 = vst.msk [vmem:[%s172 + $0x30] sm:$0xff] %vm1405, %v797
      %1413 = vst.msk [vmem:[%s172 + $0x38] sm:$0xff] %vm1405, %v802
      %1414 = vst.msk [vmem:[%s172 + $0x40] sm:$0xff] %vm1405, %v807
      %1415 = vst.msk [vmem:[%s172 + $0x48] sm:$0xff] %vm1405, %v812
      %1416 = vst.msk [vmem:[%s172 + $0x50] sm:$0xff] %vm1405, %v817
      %1417 = vst.msk [vmem:[%s172 + $0x58] sm:$0xff] %vm1405, %v822
      %1418 = vst.msk [vmem:[%s172 + $0x60] sm:$0xff] %vm1405, %v827
      %1419 = vst.msk [vmem:[%s172 + $0x68] sm:$0xff] %vm1405, %v832
      %1420 = vst.msk [vmem:[%s172 + $0x70] sm:$0xff] %vm1405, %v837
      %1421 = vst.msk [vmem:[%s172 + $0x78] sm:$0xff] %vm1405, %v842
      %1422 = vst.msk [vmem:[%s172 + $0x80] sm:$0xff] %vm1405, %v847
      %1423 = vst.msk [vmem:[%s172 + $0x88] sm:$0xff] %vm1405, %v852
      %1424 = vst.msk [vmem:[%s172 + $0x90] sm:$0xff] %vm1405, %v857
      %1425 = vst.msk [vmem:[%s172 + $0x98] sm:$0xff] %vm1405, %v862
      %1426 = vst.msk [vmem:[%s172 + $0xa0] sm:$0xff] %vm1405, %v867
      %1427 = vst.msk [vmem:[%s172 + $0xa8] sm:$0xff] %vm1405, %v872
      %1428 = vst.msk [vmem:[%s172 + $0xb0] sm:$0xff] %vm1405, %v877
      %1429 = vst.msk [vmem:[%s172 + $0xb8] sm:$0xff] %vm1405, %v882
      %1430 = vst.msk [vmem:[%s172 + $0xc0] sm:$0xff] %vm1405, %v887
      %1431 = vst.msk [vmem:[%s172 + $0xc8] sm:$0xff] %vm1405, %v892
      %1432 = vst.msk [vmem:[%s172 + $0xd0] sm:$0xff] %vm1405, %v897
      %1433 = vst.msk [vmem:[%s172 + $0xd8] sm:$0xff] %vm1405, %v902
      %1434 = vst.msk [vmem:[%s172 + $0xe0] sm:$0xff] %vm1405, %v907
      %1435 = vst.msk [vmem:[%s172 + $0xe8] sm:$0xff] %vm1405, %v912
      %1436 = vst.msk [vmem:[%s172 + $0xf0] sm:$0xff] %vm1405, %v917
      %1437 = vst.msk [vmem:[%s172 + $0xf8] sm:$0xff] %vm1405, %v922
      %1438 = vst.msk [vmem:[%s172 + $0x100] sm:$0xff] %vm1405, %v927
      %1439 = vst.msk [vmem:[%s172 + $0x108] sm:$0xff] %vm1405, %v932
      %1440 = vst.msk [vmem:[%s172 + $0x110] sm:$0xff] %vm1405, %v937
      %1441 = vst.msk [vmem:[%s172 + $0x118] sm:$0xff] %vm1405, %v942
      %1442 = vst.msk [vmem:[%s172 + $0x120] sm:$0xff] %vm1405, %v947
      %1443 = vst.msk [vmem:[%s172 + $0x128] sm:$0xff] %vm1405, %v952
      %1444 = vst.msk [vmem:[%s172 + $0x130] sm:$0xff] %vm1405, %v957
      %1445 = vst.msk [vmem:[%s172 + $0x138] sm:$0xff] %vm1405, %v962
      %1446 = vst.msk [vmem:[%s172 + $0x140] sm:$0xff] %vm1405, %v967
      %1447 = vst.msk [vmem:[%s172 + $0x148] sm:$0xff] %vm1405, %v972
      %1448 = vst.msk [vmem:[%s172 + $0x150] sm:$0xff] %vm1405, %v977
      %1449 = vst.msk [vmem:[%s172 + $0x158] sm:$0xff] %vm1405, %v982
      %1450 = vst.msk [vmem:[%s172 + $0x160] sm:$0xff] %vm1405, %v987
      %1451 = vst.msk [vmem:[%s172 + $0x168] sm:$0xff] %vm1405, %v992
      %1452 = vst.msk [vmem:[%s172 + $0x170] sm:$0xff] %vm1405, %v997
      %1453 = vst.msk [vmem:[%s172 + $0x178] sm:$0xff] %vm1405, %v1002
      %1454 = vst.msk [vmem:[%s172 + $0x180] sm:$0xff] %vm1405, %v1007
      %1455 = vst.msk [vmem:[%s172 + $0x188] sm:$0xff] %vm1405, %v1012
      %1456 = vst.msk [vmem:[%s172 + $0x190] sm:$0xff] %vm1405, %v1017
      %1457 = vst.msk [vmem:[%s172 + $0x198] sm:$0xff] %vm1405, %v1022
      %1458 = vst.msk [vmem:[%s172 + $0x1a0] sm:$0xff] %vm1405, %v1027
      %1459 = vst.msk [vmem:[%s172 + $0x1a8] sm:$0xff] %vm1405, %v1032
      %1460 = vst.msk [vmem:[%s172 + $0x1b0] sm:$0xff] %vm1405, %v1037
      %1461 = vst.msk [vmem:[%s172 + $0x1b8] sm:$0xff] %vm1405, %v1042
      %1462 = vst.msk [vmem:[%s172 + $0x1c0] sm:$0xff] %vm1405, %v1047
      %1463 = vst.msk [vmem:[%s172 + $0x1c8] sm:$0xff] %vm1405, %v1052
      %1464 = vst.msk [vmem:[%s172 + $0x1d0] sm:$0xff] %vm1405, %v1057
      %1465 = vst.msk [vmem:[%s172 + $0x1d8] sm:$0xff] %vm1405, %v1062
      %1466 = vst.msk [vmem:[%s172 + $0x1e0] sm:$0xff] %vm1405, %v1067
      %1467 = vst.msk [vmem:[%s172 + $0x1e8] sm:$0xff] %vm1405, %v1072
      %1468 = vst.msk [vmem:[%s172 + $0x1f0] sm:$0xff] %vm1405, %v1077
      %1469 = vst.msk [vmem:[%s172 + $0x1f8] sm:$0xff] %vm1405, %v1082
      %1470 = vst.msk [vmem:[%s172 + $0x200] sm:$0xff] %vm1405, %v1087
      %1471 = vst.msk [vmem:[%s172 + $0x208] sm:$0xff] %vm1405, %v1092
      %1472 = vst.msk [vmem:[%s172 + $0x210] sm:$0xff] %vm1405, %v1097
      %1473 = vst.msk [vmem:[%s172 + $0x218] sm:$0xff] %vm1405, %v1102
      %1474 = vst.msk [vmem:[%s172 + $0x220] sm:$0xff] %vm1405, %v1107
      %1475 = vst.msk [vmem:[%s172 + $0x228] sm:$0xff] %vm1405, %v1112
      %1476 = vst.msk [vmem:[%s172 + $0x230] sm:$0xff] %vm1405, %v1117
      %1477 = vst.msk [vmem:[%s172 + $0x238] sm:$0xff] %vm1405, %v1122
      %1478 = vst.msk [vmem:[%s172 + $0x240] sm:$0xff] %vm1405, %v1127
      %1479 = vst.msk [vmem:[%s172 + $0x248] sm:$0xff] %vm1405, %v1132
      %1480 = vst.msk [vmem:[%s172 + $0x250] sm:$0xff] %vm1405, %v1137
      %1481 = vst.msk [vmem:[%s172 + $0x258] sm:$0xff] %vm1405, %v1142
      %1482 = vst.msk [vmem:[%s172 + $0x260] sm:$0xff] %vm1405, %v1147
      %1483 = vst.msk [vmem:[%s172 + $0x268] sm:$0xff] %vm1405, %v1152
      %1484 = vst.msk [vmem:[%s172 + $0x270] sm:$0xff] %vm1405, %v1157
      %1485 = vst.msk [vmem:[%s172 + $0x278] sm:$0xff] %vm1405, %v1162
      %1486 = vst.msk [vmem:[%s172 + $0x280] sm:$0xff] %vm1405, %v1167
      %1487 = vst.msk [vmem:[%s172 + $0x288] sm:$0xff] %vm1405, %v1172
      %1488 = vst.msk [vmem:[%s172 + $0x290] sm:$0xff] %vm1405, %v1177
      %1489 = vst.msk [vmem:[%s172 + $0x298] sm:$0xff] %vm1405, %v1182
      %1490 = vst.msk [vmem:[%s172 + $0x2a0] sm:$0xff] %vm1405, %v1187
      %1491 = vst.msk [vmem:[%s172 + $0x2a8] sm:$0xff] %vm1405, %v1192
      %1492 = vst.msk [vmem:[%s172 + $0x2b0] sm:$0xff] %vm1405, %v1197
      %1493 = vst.msk [vmem:[%s172 + $0x2b8] sm:$0xff] %vm1405, %v1202
      %1494 = vst.msk [vmem:[%s172 + $0x2c0] sm:$0xff] %vm1405, %v1207
      %1495 = vst.msk [vmem:[%s172 + $0x2c8] sm:$0xff] %vm1405, %v1212
      %1496 = vst.msk [vmem:[%s172 + $0x2d0] sm:$0xff] %vm1405, %v1217
      %1497 = vst.msk [vmem:[%s172 + $0x2d8] sm:$0xff] %vm1405, %v1222
      %1498 = vst.msk [vmem:[%s172 + $0x2e0] sm:$0xff] %vm1405, %v1227
      %1499 = vst.msk [vmem:[%s172 + $0x2e8] sm:$0xff] %vm1405, %v1232
      %1500 = vst.msk [vmem:[%s172 + $0x2f0] sm:$0xff] %vm1405, %v1237
      %1501 = vst.msk [vmem:[%s172 + $0x2f8] sm:$0xff] %vm1405, %v1242
      %1502 = vst.msk [vmem:[%s172 + $0x300] sm:$0xff] %vm1405, %v1247
      %1503 = vst.msk [vmem:[%s172 + $0x308] sm:$0xff] %vm1405, %v1252
      %1504 = vst.msk [vmem:[%s172 + $0x310] sm:$0xff] %vm1405, %v1257
      %1505 = vst.msk [vmem:[%s172 + $0x318] sm:$0xff] %vm1405, %v1262
      %1506 = vst.msk [vmem:[%s172 + $0x320] sm:$0xff] %vm1405, %v1267
      %1507 = vst.msk [vmem:[%s172 + $0x328] sm:$0xff] %vm1405, %v1272
      %1508 = vst.msk [vmem:[%s172 + $0x330] sm:$0xff] %vm1405, %v1277
      %1509 = vst.msk [vmem:[%s172 + $0x338] sm:$0xff] %vm1405, %v1282
      %1510 = vst.msk [vmem:[%s172 + $0x340] sm:$0xff] %vm1405, %v1287
      %1511 = vst.msk [vmem:[%s172 + $0x348] sm:$0xff] %vm1405, %v1292
      %1512 = vst.msk [vmem:[%s172 + $0x350] sm:$0xff] %vm1405, %v1297
      %1513 = vst.msk [vmem:[%s172 + $0x358] sm:$0xff] %vm1405, %v1302
      %1514 = vst.msk [vmem:[%s172 + $0x360] sm:$0xff] %vm1405, %v1307
      %1515 = vst.msk [vmem:[%s172 + $0x368] sm:$0xff] %vm1405, %v1312
      %1516 = vst.msk [vmem:[%s172 + $0x370] sm:$0xff] %vm1405, %v1317
      %1517 = vst.msk [vmem:[%s172 + $0x378] sm:$0xff] %vm1405, %v1322
      %1518 = vst.msk [vmem:[%s172 + $0x380] sm:$0xff] %vm1405, %v1327
      %1519 = vst.msk [vmem:[%s172 + $0x388] sm:$0xff] %vm1405, %v1332
      %1520 = vst.msk [vmem:[%s172 + $0x390] sm:$0xff] %vm1405, %v1337
      %1521 = vst.msk [vmem:[%s172 + $0x398] sm:$0xff] %vm1405, %v1342
      %1522 = vst.msk [vmem:[%s172 + $0x3a0] sm:$0xff] %vm1405, %v1347
      %1523 = vst.msk [vmem:[%s172 + $0x3a8] sm:$0xff] %vm1405, %v1352
      %1524 = vst.msk [vmem:[%s172 + $0x3b0] sm:$0xff] %vm1405, %v1357
      %1525 = vst.msk [vmem:[%s172 + $0x3b8] sm:$0xff] %vm1405, %v1362
      %1526 = vst.msk [vmem:[%s172 + $0x3c0] sm:$0xff] %vm1405, %v1367
      %1527 = vst.msk [vmem:[%s172 + $0x3c8] sm:$0xff] %vm1405, %v1372
      %1528 = vst.msk [vmem:[%s172 + $0x3d0] sm:$0xff] %vm1405, %v1377
      %1529 = vst.msk [vmem:[%s172 + $0x3d8] sm:$0xff] %vm1405, %v1382
      %1530 = vst.msk [vmem:[%s172 + $0x3e0] sm:$0xff] %vm1405, %v1387
      %1531 = vst.msk [vmem:[%s172 + $0x3e8] sm:$0xff] %vm1405, %v1392
      %1532 = vst.msk [vmem:[%s172 + $0x3f0] sm:$0xff] %vm1405, %v1397
      %1533 = vst.msk [vmem:[%s172 + $0x3f8] sm:$0xff] %vm1405, %v1402
      %s1534 = smul.u32 128, %s14
      %p1535 = scmp.lt.s32.totalorder %s1534, 255
      %s1536 = scalar_select %p1535, %s1534, 255
      %s1537 = smul.addr %s1536, 8
      %s1538 = scalar_lea.vmem %s3, %s1537
      // Predicated region
      $region33: #{_lambda_.9} parent=31 // pred_check
        %p1539 = pneg %p100
      $region34: #{_lambda_.9} parent=31 // pred_check_branch
        %1541 = sbr.rel (%p1539) target = $region36
      $region35: #{_lambda_.9} parent=31 // pred_region
        %s1542 = smul.u32 128, %s14
      $region36: #{_lambda_.9} parent=31 // pred_fallthru
        _
    $region32: #{_lambda_.9} parent=5 // pred_fallthru
      _
    %p1543 = scmp.le.s32.totalorder 2, %s9
    // Predicated region
    $region37: #{_lambda_.9} parent=5 // pred_check
      %p1544 = pneg %p1543
    $region38: #{_lambda_.9} parent=5 // pred_check_branch
      %1546 = sbr.rel (%p1544) target = $region40
    $region39: #{_lambda_.9} parent=5 // pred_region
      %s1547 = ssub.s32 %s9, 2
      // Predicated region
      $region41: #{_lambda_.9} parent=39 // pred_check
        %p1548 = pneg %p106
      $region42: #{_lambda_.9} parent=39 // pred_check_branch
        %1550 = sbr.rel (%p1548) target = $region44
      $region43: #{_lambda_.9} parent=39 // pred_region
        %s1551 = smul.u32 128, %s15
        %p1552 = scmp.lt.s32.totalorder %s1551, 255
        %s1553 = scalar_select %p1552, %s1551, 255
        %s1554 = smul.addr %s1553, 8
        %s1555 = scalar_lea.vmem %s3, %s1554
      $region44: #{_lambda_.9} parent=39 // pred_fallthru
        _
    $region40: #{_lambda_.9} parent=5 // pred_fallthru
      _
  $region6: #{_lambda_.9} parent=0 // loop_footer
    %s13 = sadd.s32 1, %s9
  $region7: #{_lambda_.9} parent=0 // loop_footer_branch
    %8 = sbr.rel target = $region3
  $region8: #{_lambda_.9} parent=0 // loop_exit
    _

// kernel: _lambda_.10
$region0: #{_lambda_.10}
  #allocation0 [shape = 'u32[]', space=smem, size = 0x4, offset = 0x4, fixed_abs, tag = 'smem constant byte address 0x4 - core index']
  #allocation1 [shape = 'u32[144,128]{1,0:T(1,128)}', space=vmem, size = 0x12000, scoped, tag = 'internal scratch']
  %s0 = inlined_call_operand.vmem [shape: f32[512,512], index: 0, kind: input, shape index: {}]
  %s1 = inlined_call_operand.vmem [shape: f32[512,32], index: 1, kind: input, shape index: {}]
  %s2 = inlined_call_operand.vmem [shape: f32[1,32], index: 2, kind: input, shape index: {}]
  %s3 = inlined_call_operand.vmem [shape: f32[512,32], index: 3, kind: output, shape index: {}]
  %s4 = sld [smem:[#allocation0]]
  $region22: #{_lambda_.10} parent=0
    _
  %s6 = ssub.s32 1, %s4
  %s7 = scalar_select 0, %s6, %s4
  // Predicated region
  $region2: #{_lambda_.10} parent=0 // pred_check
    _
  $region3: #{_lambda_.10} parent=0 // pred_check_branch
    %9 = sbr.rel (0) target = $region5
  $region4: #{_lambda_.10} parent=0 // pred_region
    _
  $region5: #{_lambda_.10} parent=0 // pred_fallthru
    _
  // Predicated region
  $region6: #{_lambda_.10} parent=0 // pred_check
    _
  $region7: #{_lambda_.10} parent=0 // pred_check_branch
    %11 = sbr.rel (0) target = $region9
  $region8: #{_lambda_.10} parent=0 // pred_region
    _
  $region9: #{_lambda_.10} parent=0 // pred_fallthru
    _
  // Predicated region
  $region10: #{_lambda_.10} parent=0 // pred_check
    _
  $region11: #{_lambda_.10} parent=0 // pred_check_branch
    %13 = sbr.rel (0) target = $region13
  $region12: #{_lambda_.10} parent=0 // pred_region
    _
  $region13: #{_lambda_.10} parent=0 // pred_fallthru
    _
  %v14 = vld [vmem:[%s0] sm:$0xff]
  %v15 = vld [vmem:[%s0 + $0x8] sm:$0xff]
  %v16 = vld [vmem:[%s0 + $0x10] sm:$0xff]
  %v17 = vld [vmem:[%s0 + $0x18] sm:$0xff]
  %v18 = vld [vmem:[%s0 + $0x20] sm:$0xff]
  %v19 = vld [vmem:[%s0 + $0x28] sm:$0xff]
  %v20 = vld [vmem:[%s0 + $0x30] sm:$0xff]
  %v21 = vld [vmem:[%s0 + $0x38] sm:$0xff]
  %v22 = vld [vmem:[%s0 + $0x40] sm:$0xff]
  %v23 = vld [vmem:[%s0 + $0x48] sm:$0xff]
  %v24 = vld [vmem:[%s0 + $0x50] sm:$0xff]
  %v25 = vld [vmem:[%s0 + $0x58] sm:$0xff]
  %v26 = vld [vmem:[%s0 + $0x60] sm:$0xff]
  %v27 = vld [vmem:[%s0 + $0x68] sm:$0xff]
  %v28 = vld [vmem:[%s0 + $0x70] sm:$0xff]
  %v29 = vld [vmem:[%s0 + $0x78] sm:$0xff]
  %v30 = vld [vmem:[%s0 + $0x80] sm:$0xff]
  %v31 = vld [vmem:[%s0 + $0x88] sm:$0xff]
  %v32 = vld [vmem:[%s0 + $0x90] sm:$0xff]
  %v33 = vld [vmem:[%s0 + $0x98] sm:$0xff]
  %v34 = vld [vmem:[%s0 + $0xa0] sm:$0xff]
  %v35 = vld [vmem:[%s0 + $0xa8] sm:$0xff]
  %v36 = vld [vmem:[%s0 + $0xb0] sm:$0xff]
  %v37 = vld [vmem:[%s0 + $0xb8] sm:$0xff]
  %v38 = vld [vmem:[%s0 + $0xc0] sm:$0xff]
  %v39 = vld [vmem:[%s0 + $0xc8] sm:$0xff]
  %v40 = vld [vmem:[%s0 + $0xd0] sm:$0xff]
  %v41 = vld [vmem:[%s0 + $0xd8] sm:$0xff]
  %v42 = vld [vmem:[%s0 + $0xe0] sm:$0xff]
  %v43 = vld [vmem:[%s0 + $0xe8] sm:$0xff]
  %v44 = vld [vmem:[%s0 + $0xf0] sm:$0xff]
  %v45 = vld [vmem:[%s0 + $0xf8] sm:$0xff]
  %v46 = vld [vmem:[%s0 + $0x100] sm:$0xff]
  %v47 = vld [vmem:[%s0 + $0x108] sm:$0xff]
  %v48 = vld [vmem:[%s0 + $0x110] sm:$0xff]
  %v49 = vld [vmem:[%s0 + $0x118] sm:$0xff]
  %v50 = vld [vmem:[%s0 + $0x120] sm:$0xff]
  %v51 = vld [vmem:[%s0 + $0x128] sm:$0xff]
  %v52 = vld [vmem:[%s0 + $0x130] sm:$0xff]
  %v53 = vld [vmem:[%s0 + $0x138] sm:$0xff]
  %v54 = vld [vmem:[%s0 + $0x140] sm:$0xff]
  %v55 = vld [vmem:[%s0 + $0x148] sm:$0xff]
  %v56 = vld [vmem:[%s0 + $0x150] sm:$0xff]
  %v57 = vld [vmem:[%s0 + $0x158] sm:$0xff]
  %v58 = vld [vmem:[%s0 + $0x160] sm:$0xff]
  %v59 = vld [vmem:[%s0 + $0x168] sm:$0xff]
  %v60 = vld [vmem:[%s0 + $0x170] sm:$0xff]
  %v61 = vld [vmem:[%s0 + $0x178] sm:$0xff]
  %v62 = vld [vmem:[%s0 + $0x180] sm:$0xff]
  %v63 = vld [vmem:[%s0 + $0x188] sm:$0xff]
  %v64 = vld [vmem:[%s0 + $0x190] sm:$0xff]
  %v65 = vld [vmem:[%s0 + $0x198] sm:$0xff]
  %v66 = vld [vmem:[%s0 + $0x1a0] sm:$0xff]
  %v67 = vld [vmem:[%s0 + $0x1a8] sm:$0xff]
  %v68 = vld [vmem:[%s0 + $0x1b0] sm:$0xff]
  %v69 = vld [vmem:[%s0 + $0x1b8] sm:$0xff]
  %v70 = vld [vmem:[%s0 + $0x1c0] sm:$0xff]
  %v71 = vld [vmem:[%s0 + $0x1c8] sm:$0xff]
  %v72 = vld [vmem:[%s0 + $0x1d0] sm:$0xff]
  %v73 = vld [vmem:[%s0 + $0x1d8] sm:$0xff]
  %v74 = vld [vmem:[%s0 + $0x1e0] sm:$0xff]
  %v75 = vld [vmem:[%s0 + $0x1e8] sm:$0xff]
  %v76 = vld [vmem:[%s0 + $0x1f0] sm:$0xff]
  %v77 = vld [vmem:[%s0 + $0x1f8] sm:$0xff]
  %v78 = vld [vmem:[%s0 + $0x200] sm:$0xff]
  %v79 = vld [vmem:[%s0 + $0x208] sm:$0xff]
  %v80 = vld [vmem:[%s0 + $0x210] sm:$0xff]
  %v81 = vld [vmem:[%s0 + $0x218] sm:$0xff]
  %v82 = vld [vmem:[%s0 + $0x220] sm:$0xff]
  %v83 = vld [vmem:[%s0 + $0x228] sm:$0xff]
  %v84 = vld [vmem:[%s0 + $0x230] sm:$0xff]
  %v85 = vld [vmem:[%s0 + $0x238] sm:$0xff]
  %v86 = vld [vmem:[%s0 + $0x240] sm:$0xff]
  %v87 = vld [vmem:[%s0 + $0x248] sm:$0xff]
  %v88 = vld [vmem:[%s0 + $0x250] sm:$0xff]
  %v89 = vld [vmem:[%s0 + $0x258] sm:$0xff]
  %v90 = vld [vmem:[%s0 + $0x260] sm:$0xff]
  %v91 = vld [vmem:[%s0 + $0x268] sm:$0xff]
  %v92 = vld [vmem:[%s0 + $0x270] sm:$0xff]
  %v93 = vld [vmem:[%s0 + $0x278] sm:$0xff]
  %v94 = vld [vmem:[%s0 + $0x280] sm:$0xff]
  %v95 = vld [vmem:[%s0 + $0x288] sm:$0xff]
  %v96 = vld [vmem:[%s0 + $0x290] sm:$0xff]
  %v97 = vld [vmem:[%s0 + $0x298] sm:$0xff]
  %v98 = vld [vmem:[%s0 + $0x2a0] sm:$0xff]
  %v99 = vld [vmem:[%s0 + $0x2a8] sm:$0xff]
  %v100 = vld [vmem:[%s0 + $0x2b0] sm:$0xff]
  %v101 = vld [vmem:[%s0 + $0x2b8] sm:$0xff]
  %v102 = vld [vmem:[%s0 + $0x2c0] sm:$0xff]
  %v103 = vld [vmem:[%s0 + $0x2c8] sm:$0xff]
  %v104 = vld [vmem:[%s0 + $0x2d0] sm:$0xff]
  %v105 = vld [vmem:[%s0 + $0x2d8] sm:$0xff]
  %v106 = vld [vmem:[%s0 + $0x2e0] sm:$0xff]
  %v107 = vld [vmem:[%s0 + $0x2e8] sm:$0xff]
  %v108 = vld [vmem:[%s0 + $0x2f0] sm:$0xff]
  %v109 = vld [vmem:[%s0 + $0x2f8] sm:$0xff]
  %v110 = vld [vmem:[%s0 + $0x300] sm:$0xff]
  %v111 = vld [vmem:[%s0 + $0x308] sm:$0xff]
  %v112 = vld [vmem:[%s0 + $0x310] sm:$0xff]
  %v113 = vld [vmem:[%s0 + $0x318] sm:$0xff]
  %v114 = vld [vmem:[%s0 + $0x320] sm:$0xff]
  %v115 = vld [vmem:[%s0 + $0x328] sm:$0xff]
  %v116 = vld [vmem:[%s0 + $0x330] sm:$0xff]
  %v117 = vld [vmem:[%s0 + $0x338] sm:$0xff]
  %v118 = vld [vmem:[%s0 + $0x340] sm:$0xff]
  %v119 = vld [vmem:[%s0 + $0x348] sm:$0xff]
  %v120 = vld [vmem:[%s0 + $0x350] sm:$0xff]
  %v121 = vld [vmem:[%s0 + $0x358] sm:$0xff]
  %v122 = vld [vmem:[%s0 + $0x360] sm:$0xff]
  %v123 = vld [vmem:[%s0 + $0x368] sm:$0xff]
  %v124 = vld [vmem:[%s0 + $0x370] sm:$0xff]
  %v125 = vld [vmem:[%s0 + $0x378] sm:$0xff]
  %v126 = vld [vmem:[%s0 + $0x380] sm:$0xff]
  %v127 = vld [vmem:[%s0 + $0x388] sm:$0xff]
  %v128 = vld [vmem:[%s0 + $0x390] sm:$0xff]
  %v129 = vld [vmem:[%s0 + $0x398] sm:$0xff]
  %v130 = vld [vmem:[%s0 + $0x3a0] sm:$0xff]
  %v131 = vld [vmem:[%s0 + $0x3a8] sm:$0xff]
  %v132 = vld [vmem:[%s0 + $0x3b0] sm:$0xff]
  %v133 = vld [vmem:[%s0 + $0x3b8] sm:$0xff]
  %v134 = vld [vmem:[%s0 + $0x3c0] sm:$0xff]
  %v135 = vld [vmem:[%s0 + $0x3c8] sm:$0xff]
  %v136 = vld [vmem:[%s0 + $0x3d0] sm:$0xff]
  %v137 = vld [vmem:[%s0 + $0x3d8] sm:$0xff]
  %v138 = vld [vmem:[%s0 + $0x3e0] sm:$0xff]
  %v139 = vld [vmem:[%s0 + $0x3e8] sm:$0xff]
  %v140 = vld [vmem:[%s0 + $0x3f0] sm:$0xff]
  %v141 = vld [vmem:[%s0 + $0x3f8] sm:$0xff]
  %v142 = vld [vmem:[%s0 + $0x400] sm:$0xff]
  %v143 = vld [vmem:[%s0 + $0x408] sm:$0xff]
  %v144 = vld [vmem:[%s0 + $0x410] sm:$0xff]
  %v145 = vld [vmem:[%s0 + $0x418] sm:$0xff]
  %v146 = vld [vmem:[%s0 + $0x420] sm:$0xff]
  %v147 = vld [vmem:[%s0 + $0x428] sm:$0xff]
  %v148 = vld [vmem:[%s0 + $0x430] sm:$0xff]
  %v149 = vld [vmem:[%s0 + $0x438] sm:$0xff]
  %v150 = vld [vmem:[%s0 + $0x440] sm:$0xff]
  %v151 = vld [vmem:[%s0 + $0x448] sm:$0xff]
  %v152 = vld [vmem:[%s0 + $0x450] sm:$0xff]
  %v153 = vld [vmem:[%s0 + $0x458] sm:$0xff]
  %v154 = vld [vmem:[%s0 + $0x460] sm:$0xff]
  %v155 = vld [vmem:[%s0 + $0x468] sm:$0xff]
  %v156 = vld [vmem:[%s0 + $0x470] sm:$0xff]
  %v157 = vld [vmem:[%s0 + $0x478] sm:$0xff]
  %v158 = vld [vmem:[%s0 + $0x480] sm:$0xff]
  %v159 = vld [vmem:[%s0 + $0x488] sm:$0xff]
  %v160 = vld [vmem:[%s0 + $0x490] sm:$0xff]
  %v161 = vld [vmem:[%s0 + $0x498] sm:$0xff]
  %v162 = vld [vmem:[%s0 + $0x4a0] sm:$0xff]
  %v163 = vld [vmem:[%s0 + $0x4a8] sm:$0xff]
  %v164 = vld [vmem:[%s0 + $0x4b0] sm:$0xff]
  %v165 = vld [vmem:[%s0 + $0x4b8] sm:$0xff]
  %v166 = vld [vmem:[%s0 + $0x4c0] sm:$0xff]
  %v167 = vld [vmem:[%s0 + $0x4c8] sm:$0xff]
  %v168 = vld [vmem:[%s0 + $0x4d0] sm:$0xff]
  %v169 = vld [vmem:[%s0 + $0x4d8] sm:$0xff]
  %v170 = vld [vmem:[%s0 + $0x4e0] sm:$0xff]
  %v171 = vld [vmem:[%s0 + $0x4e8] sm:$0xff]
  %v172 = vld [vmem:[%s0 + $0x4f0] sm:$0xff]
  %v173 = vld [vmem:[%s0 + $0x4f8] sm:$0xff]
  %v174 = vld [vmem:[%s0 + $0x500] sm:$0xff]
  %v175 = vld [vmem:[%s0 + $0x508] sm:$0xff]
  %v176 = vld [vmem:[%s0 + $0x510] sm:$0xff]
  %v177 = vld [vmem:[%s0 + $0x518] sm:$0xff]
  %v178 = vld [vmem:[%s0 + $0x520] sm:$0xff]
  %v179 = vld [vmem:[%s0 + $0x528] sm:$0xff]
  %v180 = vld [vmem:[%s0 + $0x530] sm:$0xff]
  %v181 = vld [vmem:[%s0 + $0x538] sm:$0xff]
  %v182 = vld [vmem:[%s0 + $0x540] sm:$0xff]
  %v183 = vld [vmem:[%s0 + $0x548] sm:$0xff]
  %v184 = vld [vmem:[%s0 + $0x550] sm:$0xff]
  %v185 = vld [vmem:[%s0 + $0x558] sm:$0xff]
  %v186 = vld [vmem:[%s0 + $0x560] sm:$0xff]
  %v187 = vld [vmem:[%s0 + $0x568] sm:$0xff]
  %v188 = vld [vmem:[%s0 + $0x570] sm:$0xff]
  %v189 = vld [vmem:[%s0 + $0x578] sm:$0xff]
  %v190 = vld [vmem:[%s0 + $0x580] sm:$0xff]
  %v191 = vld [vmem:[%s0 + $0x588] sm:$0xff]
  %v192 = vld [vmem:[%s0 + $0x590] sm:$0xff]
  %v193 = vld [vmem:[%s0 + $0x598] sm:$0xff]
  %v194 = vld [vmem:[%s0 + $0x5a0] sm:$0xff]
  %v195 = vld [vmem:[%s0 + $0x5a8] sm:$0xff]
  %v196 = vld [vmem:[%s0 + $0x5b0] sm:$0xff]
  %v197 = vld [vmem:[%s0 + $0x5b8] sm:$0xff]
  %v198 = vld [vmem:[%s0 + $0x5c0] sm:$0xff]
  %v199 = vld [vmem:[%s0 + $0x5c8] sm:$0xff]
  %v200 = vld [vmem:[%s0 + $0x5d0] sm:$0xff]
  %v201 = vld [vmem:[%s0 + $0x5d8] sm:$0xff]
  %v202 = vld [vmem:[%s0 + $0x5e0] sm:$0xff]
  %v203 = vld [vmem:[%s0 + $0x5e8] sm:$0xff]
  %v204 = vld [vmem:[%s0 + $0x5f0] sm:$0xff]
  %v205 = vld [vmem:[%s0 + $0x5f8] sm:$0xff]
  %v206 = vld [vmem:[%s0 + $0x600] sm:$0xff]
  %v207 = vld [vmem:[%s0 + $0x608] sm:$0xff]
  %v208 = vld [vmem:[%s0 + $0x610] sm:$0xff]
  %v209 = vld [vmem:[%s0 + $0x618] sm:$0xff]
  %v210 = vld [vmem:[%s0 + $0x620] sm:$0xff]
  %v211 = vld [vmem:[%s0 + $0x628] sm:$0xff]
  %v212 = vld [vmem:[%s0 + $0x630] sm:$0xff]
  %v213 = vld [vmem:[%s0 + $0x638] sm:$0xff]
  %v214 = vld [vmem:[%s0 + $0x640] sm:$0xff]
  %v215 = vld [vmem:[%s0 + $0x648] sm:$0xff]
  %v216 = vld [vmem:[%s0 + $0x650] sm:$0xff]
  %v217 = vld [vmem:[%s0 + $0x658] sm:$0xff]
  %v218 = vld [vmem:[%s0 + $0x660] sm:$0xff]
  %v219 = vld [vmem:[%s0 + $0x668] sm:$0xff]
  %v220 = vld [vmem:[%s0 + $0x670] sm:$0xff]
  %v221 = vld [vmem:[%s0 + $0x678] sm:$0xff]
  %v222 = vld [vmem:[%s0 + $0x680] sm:$0xff]
  %v223 = vld [vmem:[%s0 + $0x688] sm:$0xff]
  %v224 = vld [vmem:[%s0 + $0x690] sm:$0xff]
  %v225 = vld [vmem:[%s0 + $0x698] sm:$0xff]
  %v226 = vld [vmem:[%s0 + $0x6a0] sm:$0xff]
  %v227 = vld [vmem:[%s0 + $0x6a8] sm:$0xff]
  %v228 = vld [vmem:[%s0 + $0x6b0] sm:$0xff]
  %v229 = vld [vmem:[%s0 + $0x6b8] sm:$0xff]
  %v230 = vld [vmem:[%s0 + $0x6c0] sm:$0xff]
  %v231 = vld [vmem:[%s0 + $0x6c8] sm:$0xff]
  %v232 = vld [vmem:[%s0 + $0x6d0] sm:$0xff]
  %v233 = vld [vmem:[%s0 + $0x6d8] sm:$0xff]
  %v234 = vld [vmem:[%s0 + $0x6e0] sm:$0xff]
  %v235 = vld [vmem:[%s0 + $0x6e8] sm:$0xff]
  %v236 = vld [vmem:[%s0 + $0x6f0] sm:$0xff]
  %v237 = vld [vmem:[%s0 + $0x6f8] sm:$0xff]
  %v238 = vld [vmem:[%s0 + $0x700] sm:$0xff]
  %v239 = vld [vmem:[%s0 + $0x708] sm:$0xff]
  %v240 = vld [vmem:[%s0 + $0x710] sm:$0xff]
  %v241 = vld [vmem:[%s0 + $0x718] sm:$0xff]
  %v242 = vld [vmem:[%s0 + $0x720] sm:$0xff]
  %v243 = vld [vmem:[%s0 + $0x728] sm:$0xff]
  %v244 = vld [vmem:[%s0 + $0x730] sm:$0xff]
  %v245 = vld [vmem:[%s0 + $0x738] sm:$0xff]
  %v246 = vld [vmem:[%s0 + $0x740] sm:$0xff]
  %v247 = vld [vmem:[%s0 + $0x748] sm:$0xff]
  %v248 = vld [vmem:[%s0 + $0x750] sm:$0xff]
  %v249 = vld [vmem:[%s0 + $0x758] sm:$0xff]
  %v250 = vld [vmem:[%s0 + $0x760] sm:$0xff]
  %v251 = vld [vmem:[%s0 + $0x768] sm:$0xff]
  %v252 = vld [vmem:[%s0 + $0x770] sm:$0xff]
  %v253 = vld [vmem:[%s0 + $0x778] sm:$0xff]
  %v254 = vld [vmem:[%s0 + $0x780] sm:$0xff]
  %v255 = vld [vmem:[%s0 + $0x788] sm:$0xff]
  %v256 = vld [vmem:[%s0 + $0x790] sm:$0xff]
  %v257 = vld [vmem:[%s0 + $0x798] sm:$0xff]
  %v258 = vld [vmem:[%s0 + $0x7a0] sm:$0xff]
  %v259 = vld [vmem:[%s0 + $0x7a8] sm:$0xff]
  %v260 = vld [vmem:[%s0 + $0x7b0] sm:$0xff]
  %v261 = vld [vmem:[%s0 + $0x7b8] sm:$0xff]
  %v262 = vld [vmem:[%s0 + $0x7c0] sm:$0xff]
  %v263 = vld [vmem:[%s0 + $0x7c8] sm:$0xff]
  %v264 = vld [vmem:[%s0 + $0x7d0] sm:$0xff]
  %v265 = vld [vmem:[%s0 + $0x7d8] sm:$0xff]
  %v266 = vld [vmem:[%s0 + $0x7e0] sm:$0xff]
  %v267 = vld [vmem:[%s0 + $0x7e8] sm:$0xff]
  %v268 = vld [vmem:[%s0 + $0x7f0] sm:$0xff]
  %v269 = vld [vmem:[%s0 + $0x7f8] sm:$0xff]
  %v270 = vld [vmem:[%s1] sm:$0xff]
  %v271 = vld [vmem:[%s1 + $0x8] sm:$0xff]
  %v272 = vld [vmem:[%s1 + $0x10] sm:$0xff]
  %v273 = vld [vmem:[%s1 + $0x18] sm:$0xff]
  %v274 = vld [vmem:[%s1 + $0x20] sm:$0xff]
  %v275 = vld [vmem:[%s1 + $0x28] sm:$0xff]
  %v276 = vld [vmem:[%s1 + $0x30] sm:$0xff]
  %v277 = vld [vmem:[%s1 + $0x38] sm:$0xff]
  %v278 = vld [vmem:[%s1 + $0x40] sm:$0xff]
  %v279 = vld [vmem:[%s1 + $0x48] sm:$0xff]
  %v280 = vld [vmem:[%s1 + $0x50] sm:$0xff]
  %v281 = vld [vmem:[%s1 + $0x58] sm:$0xff]
  %v282 = vld [vmem:[%s1 + $0x60] sm:$0xff]
  %v283 = vld [vmem:[%s1 + $0x68] sm:$0xff]
  %v284 = vld [vmem:[%s1 + $0x70] sm:$0xff]
  %v285 = vld [vmem:[%s1 + $0x78] sm:$0xff]
  %v286 = vld [vmem:[%s1 + $0x80] sm:$0xff]
  %v287 = vld [vmem:[%s1 + $0x88] sm:$0xff]
  %v288 = vld [vmem:[%s1 + $0x90] sm:$0xff]
  %v289 = vld [vmem:[%s1 + $0x98] sm:$0xff]
  %v290 = vld [vmem:[%s1 + $0xa0] sm:$0xff]
  %v291 = vld [vmem:[%s1 + $0xa8] sm:$0xff]
  %v292 = vld [vmem:[%s1 + $0xb0] sm:$0xff]
  %v293 = vld [vmem:[%s1 + $0xb8] sm:$0xff]
  %v294 = vld [vmem:[%s1 + $0xc0] sm:$0xff]
  %v295 = vld [vmem:[%s1 + $0xc8] sm:$0xff]
  %v296 = vld [vmem:[%s1 + $0xd0] sm:$0xff]
  %v297 = vld [vmem:[%s1 + $0xd8] sm:$0xff]
  %v298 = vld [vmem:[%s1 + $0xe0] sm:$0xff]
  %v299 = vld [vmem:[%s1 + $0xe8] sm:$0xff]
  %v300 = vld [vmem:[%s1 + $0xf0] sm:$0xff]
  %v301 = vld [vmem:[%s1 + $0xf8] sm:$0xff]
  %v302 = vld [vmem:[%s1 + $0x100] sm:$0xff]
  %v303 = vld [vmem:[%s1 + $0x108] sm:$0xff]
  %v304 = vld [vmem:[%s1 + $0x110] sm:$0xff]
  %v305 = vld [vmem:[%s1 + $0x118] sm:$0xff]
  %v306 = vld [vmem:[%s1 + $0x120] sm:$0xff]
  %v307 = vld [vmem:[%s1 + $0x128] sm:$0xff]
  %v308 = vld [vmem:[%s1 + $0x130] sm:$0xff]
  %v309 = vld [vmem:[%s1 + $0x138] sm:$0xff]
  %v310 = vld [vmem:[%s1 + $0x140] sm:$0xff]
  %v311 = vld [vmem:[%s1 + $0x148] sm:$0xff]
  %v312 = vld [vmem:[%s1 + $0x150] sm:$0xff]
  %v313 = vld [vmem:[%s1 + $0x158] sm:$0xff]
  %v314 = vld [vmem:[%s1 + $0x160] sm:$0xff]
  %v315 = vld [vmem:[%s1 + $0x168] sm:$0xff]
  %v316 = vld [vmem:[%s1 + $0x170] sm:$0xff]
  %v317 = vld [vmem:[%s1 + $0x178] sm:$0xff]
  %v318 = vld [vmem:[%s1 + $0x180] sm:$0xff]
  %v319 = vld [vmem:[%s1 + $0x188] sm:$0xff]
  %v320 = vld [vmem:[%s1 + $0x190] sm:$0xff]
  %v321 = vld [vmem:[%s1 + $0x198] sm:$0xff]
  %v322 = vld [vmem:[%s1 + $0x1a0] sm:$0xff]
  %v323 = vld [vmem:[%s1 + $0x1a8] sm:$0xff]
  %v324 = vld [vmem:[%s1 + $0x1b0] sm:$0xff]
  %v325 = vld [vmem:[%s1 + $0x1b8] sm:$0xff]
  %v326 = vld [vmem:[%s1 + $0x1c0] sm:$0xff]
  %v327 = vld [vmem:[%s1 + $0x1c8] sm:$0xff]
  %v328 = vld [vmem:[%s1 + $0x1d0] sm:$0xff]
  %v329 = vld [vmem:[%s1 + $0x1d8] sm:$0xff]
  %v330 = vld [vmem:[%s1 + $0x1e0] sm:$0xff]
  %v331 = vld [vmem:[%s1 + $0x1e8] sm:$0xff]
  %v332 = vld [vmem:[%s1 + $0x1f0] sm:$0xff]
  %v333 = vld [vmem:[%s1 + $0x1f8] sm:$0xff]
  %v334 = vld [vmem:[%s2] sm:$0x1]
  %v336 = vlaneseq
  %v337 = vshrl.u32 %v336, 7
  %v338 = vsub.s32 0, %v337
  %v339 = vrot.slane %v334, %v338
  %341 = vmatprep.subr.mxu0 0.0
  %342 = vmatpush1.msra.mxu0 %v285
  %343 = vmatprep.subr.mxu0 0.0
  %344 = vmatpush1.msra.mxu0 %v284
  %345 = vmatprep.subr.mxu0 0.0
  %346 = vmatpush1.msra.mxu0 %v283
  %347 = vmatprep.subr.mxu0 0.0
  %348 = vmatpush1.msra.mxu0 %v282
  %349 = vmatprep.subr.mxu0 0.0
  %350 = vmatpush1.msra.mxu0 %v281
  %351 = vmatprep.subr.mxu0 0.0
  %352 = vmatpush1.msra.mxu0 %v280
  %353 = vmatprep.subr.mxu0 0.0
  %354 = vmatpush1.msra.mxu0 %v279
  %355 = vmatprep.subr.mxu0 0.0
  %356 = vmatpush1.msra.mxu0 %v278
  %357 = vmatprep.subr.mxu0 0.0
  %358 = vmatpush1.msra.mxu0 %v277
  %359 = vmatprep.subr.mxu0 0.0
  %360 = vmatpush1.msra.mxu0 %v276
  %361 = vmatprep.subr.mxu0 0.0
  %362 = vmatpush1.msra.mxu0 %v275
  %363 = vmatprep.subr.mxu0 0.0
  %364 = vmatpush1.msra.mxu0 %v274
  %365 = vmatprep.subr.mxu0 0.0
  %366 = vmatpush1.msra.mxu0 %v273
  %367 = vmatprep.subr.mxu0 0.0
  %368 = vmatpush1.msra.mxu0 %v272
  %369 = vmatprep.subr.mxu0 0.0
  %370 = vmatpush1.msra.mxu0 %v271
  %371 = vmatprep.subr.mxu0 0.0
  %372 = vmatpush1.msra.mxu0 %v270
  %373 = vmatprep.subr.mxu0 0.0
  %374 = vmatpush2.msra.mxu0 %v301
  %375 = vmatprep.subr.mxu0 0.0
  %376 = vmatpush2.msra.mxu0 %v300
  %377 = vmatprep.subr.mxu0 0.0
  %378 = vmatpush2.msra.mxu0 %v299
  %379 = vmatprep.subr.mxu0 0.0
  %380 = vmatpush2.msra.mxu0 %v298
  %381 = vmatprep.subr.mxu0 0.0
  %382 = vmatpush2.msra.mxu0 %v297
  %383 = vmatprep.subr.mxu0 0.0
  %384 = vmatpush2.msra.mxu0 %v296
  %385 = vmatprep.subr.mxu0 0.0
  %386 = vmatpush2.msra.mxu0 %v295
  %387 = vmatprep.subr.mxu0 0.0
  %388 = vmatpush2.msra.mxu0 %v294
  %389 = vmatprep.subr.mxu0 0.0
  %390 = vmatpush2.msra.mxu0 %v293
  %391 = vmatprep.subr.mxu0 0.0
  %392 = vmatpush2.msra.mxu0 %v292
  %393 = vmatprep.subr.mxu0 0.0
  %394 = vmatpush2.msra.mxu0 %v291
  %395 = vmatprep.subr.mxu0 0.0
  %396 = vmatpush2.msra.mxu0 %v290
  %397 = vmatprep.subr.mxu0 0.0
  %398 = vmatpush2.msra.mxu0 %v289
  %399 = vmatprep.subr.mxu0 0.0
  %400 = vmatpush2.msra.mxu0 %v288
  %401 = vmatprep.subr.mxu0 0.0
  %402 = vmatpush2.msra.mxu0 %v287
  %403 = vmatprep.subr.mxu0 0.0
  %404 = vmatpush2.msra.mxu0 %v286
  %405 = vmatprep.mubr.f32.mxu0 %v15
  %406 = vmatmul.mubr.f32.gmra.mxu0 %v14
  %v407 = vpop.f32.mrf.mxu0
  %v408 = vadd.f32 %v339, %v407
  %v409 = vpop.f32.mrf.mxu0
  %410 = vmatprep.mubr.f32.mxu0 %v19
  %411 = vmatmul.mubr.f32.gmra.mxu0 %v18
  %v412 = vpop.f32.mrf.mxu0
  %v413 = vadd.f32 %v339, %v412
  %v414 = vpop.f32.mrf.mxu0
  %415 = vmatprep.mubr.f32.mxu0 %v23
  %416 = vmatmul.mubr.f32.gmra.mxu0 %v22
  %v417 = vpop.f32.mrf.mxu0
  %v418 = vadd.f32 %v339, %v417
  %v419 = vpop.f32.mrf.mxu0
  %420 = vmatprep.mubr.f32.mxu0 %v27
  %421 = vmatmul.mubr.f32.gmra.mxu0 %v26
  %v422 = vpop.f32.mrf.mxu0
  %v423 = vadd.f32 %v339, %v422
  %v424 = vpop.f32.mrf.mxu0
  %425 = vmatprep.mubr.f32.mxu0 %v31
  %426 = vmatmul.mubr.f32.gmra.mxu0 %v30
  %v427 = vpop.f32.mrf.mxu0
  %v428 = vadd.f32 %v339, %v427
  %v429 = vpop.f32.mrf.mxu0
  %430 = vmatprep.mubr.f32.mxu0 %v35
  %431 = vmatmul.mubr.f32.gmra.mxu0 %v34
  %v432 = vpop.f32.mrf.mxu0
  %v433 = vadd.f32 %v339, %v432
  %v434 = vpop.f32.mrf.mxu0
  %435 = vmatprep.mubr.f32.mxu0 %v39
  %436 = vmatmul.mubr.f32.gmra.mxu0 %v38
  %v437 = vpop.f32.mrf.mxu0
  %v438 = vadd.f32 %v339, %v437
  %v439 = vpop.f32.mrf.mxu0
  %440 = vmatprep.mubr.f32.mxu0 %v43
  %441 = vmatmul.mubr.f32.gmra.mxu0 %v42
  %v442 = vpop.f32.mrf.mxu0
  %v443 = vadd.f32 %v339, %v442
  %v444 = vpop.f32.mrf.mxu0
  %445 = vmatprep.mubr.f32.mxu0 %v47
  %446 = vmatmul.mubr.f32.gmra.mxu0 %v46
  %v447 = vpop.f32.mrf.mxu0
  %v448 = vadd.f32 %v339, %v447
  %v449 = vpop.f32.mrf.mxu0
  %450 = vmatprep.mubr.f32.mxu0 %v51
  %451 = vmatmul.mubr.f32.gmra.mxu0 %v50
  %v452 = vpop.f32.mrf.mxu0
  %v453 = vadd.f32 %v339, %v452
  %v454 = vpop.f32.mrf.mxu0
  %455 = vmatprep.mubr.f32.mxu0 %v55
  %456 = vmatmul.mubr.f32.gmra.mxu0 %v54
  %v457 = vpop.f32.mrf.mxu0
  %v458 = vadd.f32 %v339, %v457
  %v459 = vpop.f32.mrf.mxu0
  %460 = vmatprep.mubr.f32.mxu0 %v59
  %461 = vmatmul.mubr.f32.gmra.mxu0 %v58
  %v462 = vpop.f32.mrf.mxu0
  %v463 = vadd.f32 %v339, %v462
  %v464 = vpop.f32.mrf.mxu0
  %465 = vmatprep.mubr.f32.mxu0 %v63
  %466 = vmatmul.mubr.f32.gmra.mxu0 %v62
  %v467 = vpop.f32.mrf.mxu0
  %v468 = vadd.f32 %v339, %v467
  %v469 = vpop.f32.mrf.mxu0
  %470 = vmatprep.mubr.f32.mxu0 %v67
  %471 = vmatmul.mubr.f32.gmra.mxu0 %v66
  %v472 = vpop.f32.mrf.mxu0
  %v473 = vadd.f32 %v339, %v472
  %v474 = vpop.f32.mrf.mxu0
  %475 = vmatprep.mubr.f32.mxu0 %v71
  %476 = vmatmul.mubr.f32.gmra.mxu0 %v70
  %v477 = vpop.f32.mrf.mxu0
  %v478 = vadd.f32 %v339, %v477
  %v479 = vpop.f32.mrf.mxu0
  %480 = vmatprep.mubr.f32.mxu0 %v75
  %481 = vmatmul.mubr.f32.gmra.mxu0 %v74
  %v482 = vpop.f32.mrf.mxu0
  %v483 = vadd.f32 %v339, %v482
  %v484 = vpop.f32.mrf.mxu0
  %485 = vmatprep.mubr.f32.mxu0 %v79
  %486 = vmatmul.mubr.f32.gmra.mxu0 %v78
  %v487 = vpop.f32.mrf.mxu0
  %v488 = vadd.f32 %v339, %v487
  %v489 = vpop.f32.mrf.mxu0
  %490 = vmatprep.mubr.f32.mxu0 %v83
  %491 = vmatmul.mubr.f32.gmra.mxu0 %v82
  %v492 = vpop.f32.mrf.mxu0
  %v493 = vadd.f32 %v339, %v492
  %v494 = vpop.f32.mrf.mxu0
  %495 = vmatprep.mubr.f32.mxu0 %v87
  %496 = vmatmul.mubr.f32.gmra.mxu0 %v86
  %v497 = vpop.f32.mrf.mxu0
  %v498 = vadd.f32 %v339, %v497
  %v499 = vpop.f32.mrf.mxu0
  %500 = vmatprep.mubr.f32.mxu0 %v91
  %501 = vmatmul.mubr.f32.gmra.mxu0 %v90
  %v502 = vpop.f32.mrf.mxu0
  %v503 = vadd.f32 %v339, %v502
  %v504 = vpop.f32.mrf.mxu0
  %505 = vmatprep.mubr.f32.mxu0 %v95
  %506 = vmatmul.mubr.f32.gmra.mxu0 %v94
  %v507 = vpop.f32.mrf.mxu0
  %v508 = vadd.f32 %v339, %v507
  %v509 = vpop.f32.mrf.mxu0
  %510 = vmatprep.mubr.f32.mxu0 %v99
  %511 = vmatmul.mubr.f32.gmra.mxu0 %v98
  %v512 = vpop.f32.mrf.mxu0
  %v513 = vadd.f32 %v339, %v512
  %v514 = vpop.f32.mrf.mxu0
  %515 = vmatprep.mubr.f32.mxu0 %v103
  %516 = vmatmul.mubr.f32.gmra.mxu0 %v102
  %v517 = vpop.f32.mrf.mxu0
  %v518 = vadd.f32 %v339, %v517
  %v519 = vpop.f32.mrf.mxu0
  %520 = vmatprep.mubr.f32.mxu0 %v107
  %521 = vmatmul.mubr.f32.gmra.mxu0 %v106
  %v522 = vpop.f32.mrf.mxu0
  %v523 = vadd.f32 %v339, %v522
  %v524 = vpop.f32.mrf.mxu0
  %525 = vmatprep.mubr.f32.mxu0 %v111
  %526 = vmatmul.mubr.f32.gmra.mxu0 %v110
  %v527 = vpop.f32.mrf.mxu0
  %v528 = vadd.f32 %v339, %v527
  %v529 = vpop.f32.mrf.mxu0
  %530 = vmatprep.mubr.f32.mxu0 %v115
  %531 = vmatmul.mubr.f32.gmra.mxu0 %v114
  %v532 = vpop.f32.mrf.mxu0
  %v533 = vadd.f32 %v339, %v532
  %v534 = vpop.f32.mrf.mxu0
  %535 = vmatprep.mubr.f32.mxu0 %v119
  %536 = vmatmul.mubr.f32.gmra.mxu0 %v118
  %v537 = vpop.f32.mrf.mxu0
  %v538 = vadd.f32 %v339, %v537
  %v539 = vpop.f32.mrf.mxu0
  %540 = vmatprep.mubr.f32.mxu0 %v123
  %541 = vmatmul.mubr.f32.gmra.mxu0 %v122
  %v542 = vpop.f32.mrf.mxu0
  %v543 = vadd.f32 %v339, %v542
  %v544 = vpop.f32.mrf.mxu0
  %545 = vmatprep.mubr.f32.mxu0 %v127
  %546 = vmatmul.mubr.f32.gmra.mxu0 %v126
  %v547 = vpop.f32.mrf.mxu0
  %v548 = vadd.f32 %v339, %v547
  %v549 = vpop.f32.mrf.mxu0
  %550 = vmatprep.mubr.f32.mxu0 %v131
  %551 = vmatmul.mubr.f32.gmra.mxu0 %v130
  %v552 = vpop.f32.mrf.mxu0
  %v553 = vadd.f32 %v339, %v552
  %v554 = vpop.f32.mrf.mxu0
  %555 = vmatprep.mubr.f32.mxu0 %v135
  %556 = vmatmul.mubr.f32.gmra.mxu0 %v134
  %v557 = vpop.f32.mrf.mxu0
  %v558 = vadd.f32 %v339, %v557
  %v559 = vpop.f32.mrf.mxu0
  %560 = vmatprep.mubr.f32.mxu0 %v139
  %561 = vmatmul.mubr.f32.gmra.mxu0 %v138
  %v562 = vpop.f32.mrf.mxu0
  %v563 = vadd.f32 %v339, %v562
  %v564 = vpop.f32.mrf.mxu0
  %565 = vmatprep.mubr.f32.mxu0 %v143
  %566 = vmatmul.mubr.f32.gmra.mxu0 %v142
  %v567 = vpop.f32.mrf.mxu0
  %v568 = vadd.f32 %v339, %v567
  %v569 = vpop.f32.mrf.mxu0
  %570 = vmatprep.mubr.f32.mxu0 %v147
  %571 = vmatmul.mubr.f32.gmra.mxu0 %v146
  %v572 = vpop.f32.mrf.mxu0
  %v573 = vadd.f32 %v339, %v572
  %v574 = vpop.f32.mrf.mxu0
  %575 = vmatprep.mubr.f32.mxu0 %v151
  %576 = vmatmul.mubr.f32.gmra.mxu0 %v150
  %v577 = vpop.f32.mrf.mxu0
  %v578 = vadd.f32 %v339, %v577
  %v579 = vpop.f32.mrf.mxu0
  %580 = vmatprep.mubr.f32.mxu0 %v155
  %581 = vmatmul.mubr.f32.gmra.mxu0 %v154
  %v582 = vpop.f32.mrf.mxu0
  %v583 = vadd.f32 %v339, %v582
  %v584 = vpop.f32.mrf.mxu0
  %585 = vmatprep.mubr.f32.mxu0 %v159
  %586 = vmatmul.mubr.f32.gmra.mxu0 %v158
  %v587 = vpop.f32.mrf.mxu0
  %v588 = vadd.f32 %v339, %v587
  %v589 = vpop.f32.mrf.mxu0
  %590 = vmatprep.mubr.f32.mxu0 %v163
  %591 = vmatmul.mubr.f32.gmra.mxu0 %v162
  %v592 = vpop.f32.mrf.mxu0
  %v593 = vadd.f32 %v339, %v592
  %v594 = vpop.f32.mrf.mxu0
  %595 = vmatprep.mubr.f32.mxu0 %v167
  %596 = vmatmul.mubr.f32.gmra.mxu0 %v166
  %v597 = vpop.f32.mrf.mxu0
  %v598 = vadd.f32 %v339, %v597
  %v599 = vpop.f32.mrf.mxu0
  %600 = vmatprep.mubr.f32.mxu0 %v171
  %601 = vmatmul.mubr.f32.gmra.mxu0 %v170
  %v602 = vpop.f32.mrf.mxu0
  %v603 = vadd.f32 %v339, %v602
  %v604 = vpop.f32.mrf.mxu0
  %605 = vmatprep.mubr.f32.mxu0 %v175
  %606 = vmatmul.mubr.f32.gmra.mxu0 %v174
  %v607 = vpop.f32.mrf.mxu0
  %v608 = vadd.f32 %v339, %v607
  %v609 = vpop.f32.mrf.mxu0
  %610 = vmatprep.mubr.f32.mxu0 %v179
  %611 = vmatmul.mubr.f32.gmra.mxu0 %v178
  %v612 = vpop.f32.mrf.mxu0
  %v613 = vadd.f32 %v339, %v612
  %v614 = vpop.f32.mrf.mxu0
  %615 = vmatprep.mubr.f32.mxu0 %v183
  %616 = vmatmul.mubr.f32.gmra.mxu0 %v182
  %v617 = vpop.f32.mrf.mxu0
  %v618 = vadd.f32 %v339, %v617
  %v619 = vpop.f32.mrf.mxu0
  %620 = vmatprep.mubr.f32.mxu0 %v187
  %621 = vmatmul.mubr.f32.gmra.mxu0 %v186
  %v622 = vpop.f32.mrf.mxu0
  %v623 = vadd.f32 %v339, %v622
  %v624 = vpop.f32.mrf.mxu0
  %625 = vmatprep.mubr.f32.mxu0 %v191
  %626 = vmatmul.mubr.f32.gmra.mxu0 %v190
  %v627 = vpop.f32.mrf.mxu0
  %v628 = vadd.f32 %v339, %v627
  %v629 = vpop.f32.mrf.mxu0
  %630 = vmatprep.mubr.f32.mxu0 %v195
  %631 = vmatmul.mubr.f32.gmra.mxu0 %v194
  %v632 = vpop.f32.mrf.mxu0
  %v633 = vadd.f32 %v339, %v632
  %v634 = vpop.f32.mrf.mxu0
  %635 = vmatprep.mubr.f32.mxu0 %v199
  %636 = vmatmul.mubr.f32.gmra.mxu0 %v198
  %v637 = vpop.f32.mrf.mxu0
  %v638 = vadd.f32 %v339, %v637
  %v639 = vpop.f32.mrf.mxu0
  %640 = vmatprep.mubr.f32.mxu0 %v203
  %641 = vmatmul.mubr.f32.gmra.mxu0 %v202
  %v642 = vpop.f32.mrf.mxu0
  %v643 = vadd.f32 %v339, %v642
  %v644 = vpop.f32.mrf.mxu0
  %645 = vmatprep.mubr.f32.mxu0 %v207
  %646 = vmatmul.mubr.f32.gmra.mxu0 %v206
  %v647 = vpop.f32.mrf.mxu0
  %v648 = vadd.f32 %v339, %v647
  %v649 = vpop.f32.mrf.mxu0
  %650 = vmatprep.mubr.f32.mxu0 %v211
  %651 = vmatmul.mubr.f32.gmra.mxu0 %v210
  %v652 = vpop.f32.mrf.mxu0
  %v653 = vadd.f32 %v339, %v652
  %v654 = vpop.f32.mrf.mxu0
  %655 = vmatprep.mubr.f32.mxu0 %v215
  %656 = vmatmul.mubr.f32.gmra.mxu0 %v214
  %v657 = vpop.f32.mrf.mxu0
  %v658 = vadd.f32 %v339, %v657
  %v659 = vpop.f32.mrf.mxu0
  %660 = vmatprep.mubr.f32.mxu0 %v219
  %661 = vmatmul.mubr.f32.gmra.mxu0 %v218
  %v662 = vpop.f32.mrf.mxu0
  %v663 = vadd.f32 %v339, %v662
  %v664 = vpop.f32.mrf.mxu0
  %665 = vmatprep.mubr.f32.mxu0 %v223
  %666 = vmatmul.mubr.f32.gmra.mxu0 %v222
  %v667 = vpop.f32.mrf.mxu0
  %v668 = vadd.f32 %v339, %v667
  %v669 = vpop.f32.mrf.mxu0
  %670 = vmatprep.mubr.f32.mxu0 %v227
  %671 = vmatmul.mubr.f32.gmra.mxu0 %v226
  %v672 = vpop.f32.mrf.mxu0
  %v673 = vadd.f32 %v339, %v672
  %v674 = vpop.f32.mrf.mxu0
  %675 = vmatprep.mubr.f32.mxu0 %v231
  %676 = vmatmul.mubr.f32.gmra.mxu0 %v230
  %v677 = vpop.f32.mrf.mxu0
  %v678 = vadd.f32 %v339, %v677
  %v679 = vpop.f32.mrf.mxu0
  %680 = vmatprep.mubr.f32.mxu0 %v235
  %681 = vmatmul.mubr.f32.gmra.mxu0 %v234
  %v682 = vpop.f32.mrf.mxu0
  %v683 = vadd.f32 %v339, %v682
  %v684 = vpop.f32.mrf.mxu0
  %685 = vmatprep.mubr.f32.mxu0 %v239
  %686 = vmatmul.mubr.f32.gmra.mxu0 %v238
  %v687 = vpop.f32.mrf.mxu0
  %v688 = vadd.f32 %v339, %v687
  %v689 = vpop.f32.mrf.mxu0
  %690 = vmatprep.mubr.f32.mxu0 %v243
  %691 = vmatmul.mubr.f32.gmra.mxu0 %v242
  %v692 = vpop.f32.mrf.mxu0
  %v693 = vadd.f32 %v339, %v692
  %v694 = vpop.f32.mrf.mxu0
  %695 = vmatprep.mubr.f32.mxu0 %v247
  %696 = vmatmul.mubr.f32.gmra.mxu0 %v246
  %v697 = vpop.f32.mrf.mxu0
  %v698 = vadd.f32 %v339, %v697
  %v699 = vpop.f32.mrf.mxu0
  %700 = vmatprep.mubr.f32.mxu0 %v251
  %701 = vmatmul.mubr.f32.gmra.mxu0 %v250
  %v702 = vpop.f32.mrf.mxu0
  %v703 = vadd.f32 %v339, %v702
  %v704 = vpop.f32.mrf.mxu0
  %705 = vmatprep.mubr.f32.mxu0 %v255
  %706 = vmatmul.mubr.f32.gmra.mxu0 %v254
  %v707 = vpop.f32.mrf.mxu0
  %v708 = vadd.f32 %v339, %v707
  %v709 = vpop.f32.mrf.mxu0
  %710 = vmatprep.mubr.f32.mxu0 %v259
  %711 = vmatmul.mubr.f32.gmra.mxu0 %v258
  %v712 = vpop.f32.mrf.mxu0
  %v713 = vadd.f32 %v339, %v712
  %v714 = vpop.f32.mrf.mxu0
  %715 = vmatprep.mubr.f32.mxu0 %v263
  %716 = vmatmul.mubr.f32.gmra.mxu0 %v262
  %v717 = vpop.f32.mrf.mxu0
  %v718 = vadd.f32 %v339, %v717
  %v719 = vpop.f32.mrf.mxu0
  %720 = vmatprep.mubr.f32.mxu0 %v267
  %721 = vmatmul.mubr.f32.gmra.mxu0 %v266
  %v722 = vpop.f32.mrf.mxu0
  %v723 = vadd.f32 %v339, %v722
  %v724 = vpop.f32.mrf.mxu0
  %725 = vdwg.mxu0
  %726 = vmatprep.subr.mxu0 0.0
  %727 = vmatpush1.msra.mxu0 %v317
  %728 = vmatprep.subr.mxu0 0.0
  %729 = vmatpush1.msra.mxu0 %v316
  %730 = vmatprep.subr.mxu0 0.0
  %731 = vmatpush1.msra.mxu0 %v315
  %732 = vmatprep.subr.mxu0 0.0
  %733 = vmatpush1.msra.mxu0 %v314
  %734 = vmatprep.subr.mxu0 0.0
  %735 = vmatpush1.msra.mxu0 %v313
  %736 = vmatprep.subr.mxu0 0.0
  %737 = vmatpush1.msra.mxu0 %v312
  %738 = vmatprep.subr.mxu0 0.0
  %739 = vmatpush1.msra.mxu0 %v311
  %740 = vmatprep.subr.mxu0 0.0
  %741 = vmatpush1.msra.mxu0 %v310
  %742 = vmatprep.subr.mxu0 0.0
  %743 = vmatpush1.msra.mxu0 %v309
  %744 = vmatprep.subr.mxu0 0.0
  %745 = vmatpush1.msra.mxu0 %v308
  %746 = vmatprep.subr.mxu0 0.0
  %747 = vmatpush1.msra.mxu0 %v307
  %748 = vmatprep.subr.mxu0 0.0
  %749 = vmatpush1.msra.mxu0 %v306
  %750 = vmatprep.subr.mxu0 0.0
  %751 = vmatpush1.msra.mxu0 %v305
  %752 = vmatprep.subr.mxu0 0.0
  %753 = vmatpush1.msra.mxu0 %v304
  %754 = vmatprep.subr.mxu0 0.0
  %755 = vmatpush1.msra.mxu0 %v303
  %756 = vmatprep.subr.mxu0 0.0
  %757 = vmatpush1.msra.mxu0 %v302
  %758 = vmatprep.subr.mxu0 0.0
  %759 = vmatpush2.msra.mxu0 %v333
  %760 = vmatprep.subr.mxu0 0.0
  %761 = vmatpush2.msra.mxu0 %v332
  %762 = vmatprep.subr.mxu0 0.0
  %763 = vmatpush2.msra.mxu0 %v331
  %764 = vmatprep.subr.mxu0 0.0
  %765 = vmatpush2.msra.mxu0 %v330
  %766 = vmatprep.subr.mxu0 0.0
  %767 = vmatpush2.msra.mxu0 %v329
  %768 = vmatprep.subr.mxu0 0.0
  %769 = vmatpush2.msra.mxu0 %v328
  %770 = vmatprep.subr.mxu0 0.0
  %771 = vmatpush2.msra.mxu0 %v327
  %772 = vmatprep.subr.mxu0 0.0
  %773 = vmatpush2.msra.mxu0 %v326
  %774 = vmatprep.subr.mxu0 0.0
  %775 = vmatpush2.msra.mxu0 %v325
  %776 = vmatprep.subr.mxu0 0.0
  %777 = vmatpush2.msra.mxu0 %v324
  %778 = vmatprep.subr.mxu0 0.0
  %779 = vmatpush2.msra.mxu0 %v323
  %780 = vmatprep.subr.mxu0 0.0
  %781 = vmatpush2.msra.mxu0 %v322
  %782 = vmatprep.subr.mxu0 0.0
  %783 = vmatpush2.msra.mxu0 %v321
  %784 = vmatprep.subr.mxu0 0.0
  %785 = vmatpush2.msra.mxu0 %v320
  %786 = vmatprep.subr.mxu0 0.0
  %787 = vmatpush2.msra.mxu0 %v319
  %788 = vmatprep.subr.mxu0 0.0
  %789 = vmatpush2.msra.mxu0 %v318
  %790 = vmatprep.mubr.f32.mxu0 %v17
  %791 = vmatmul.mubr.f32.gmra.mxu0 %v16
  %v792 = vpop.f32.mrf.mxu0
  %v793 = vadd.f32 %v408, %v792
  %v794 = vpop.f32.mrf.mxu0
  %795 = vmatprep.mubr.f32.mxu0 %v21
  %796 = vmatmul.mubr.f32.gmra.mxu0 %v20
  %v797 = vpop.f32.mrf.mxu0
  %v798 = vadd.f32 %v413, %v797
  %v799 = vpop.f32.mrf.mxu0
  %800 = vmatprep.mubr.f32.mxu0 %v25
  %801 = vmatmul.mubr.f32.gmra.mxu0 %v24
  %v802 = vpop.f32.mrf.mxu0
  %v803 = vadd.f32 %v418, %v802
  %v804 = vpop.f32.mrf.mxu0
  %805 = vmatprep.mubr.f32.mxu0 %v29
  %806 = vmatmul.mubr.f32.gmra.mxu0 %v28
  %v807 = vpop.f32.mrf.mxu0
  %v808 = vadd.f32 %v423, %v807
  %v809 = vpop.f32.mrf.mxu0
  %810 = vmatprep.mubr.f32.mxu0 %v33
  %811 = vmatmul.mubr.f32.gmra.mxu0 %v32
  %v812 = vpop.f32.mrf.mxu0
  %v813 = vadd.f32 %v428, %v812
  %v814 = vpop.f32.mrf.mxu0
  %815 = vmatprep.mubr.f32.mxu0 %v37
  %816 = vmatmul.mubr.f32.gmra.mxu0 %v36
  %v817 = vpop.f32.mrf.mxu0
  %v818 = vadd.f32 %v433, %v817
  %v819 = vpop.f32.mrf.mxu0
  %820 = vmatprep.mubr.f32.mxu0 %v41
  %821 = vmatmul.mubr.f32.gmra.mxu0 %v40
  %v822 = vpop.f32.mrf.mxu0
  %v823 = vadd.f32 %v438, %v822
  %v824 = vpop.f32.mrf.mxu0
  %825 = vmatprep.mubr.f32.mxu0 %v45
  %826 = vmatmul.mubr.f32.gmra.mxu0 %v44
  %v827 = vpop.f32.mrf.mxu0
  %v828 = vadd.f32 %v443, %v827
  %v829 = vpop.f32.mrf.mxu0
  %830 = vmatprep.mubr.f32.mxu0 %v49
  %831 = vmatmul.mubr.f32.gmra.mxu0 %v48
  %v832 = vpop.f32.mrf.mxu0
  %v833 = vadd.f32 %v448, %v832
  %v834 = vpop.f32.mrf.mxu0
  %835 = vmatprep.mubr.f32.mxu0 %v53
  %836 = vmatmul.mubr.f32.gmra.mxu0 %v52
  %v837 = vpop.f32.mrf.mxu0
  %v838 = vadd.f32 %v453, %v837
  %v839 = vpop.f32.mrf.mxu0
  %840 = vmatprep.mubr.f32.mxu0 %v57
  %841 = vmatmul.mubr.f32.gmra.mxu0 %v56
  %v842 = vpop.f32.mrf.mxu0
  %v843 = vadd.f32 %v458, %v842
  %v844 = vpop.f32.mrf.mxu0
  %845 = vmatprep.mubr.f32.mxu0 %v61
  %846 = vmatmul.mubr.f32.gmra.mxu0 %v60
  %v847 = vpop.f32.mrf.mxu0
  %v848 = vadd.f32 %v463, %v847
  %v849 = vpop.f32.mrf.mxu0
  %850 = vmatprep.mubr.f32.mxu0 %v65
  %851 = vmatmul.mubr.f32.gmra.mxu0 %v64
  %v852 = vpop.f32.mrf.mxu0
  %v853 = vadd.f32 %v468, %v852
  %v854 = vpop.f32.mrf.mxu0
  %855 = vmatprep.mubr.f32.mxu0 %v69
  %856 = vmatmul.mubr.f32.gmra.mxu0 %v68
  %v857 = vpop.f32.mrf.mxu0
  %v858 = vadd.f32 %v473, %v857
  %v859 = vpop.f32.mrf.mxu0
  %860 = vmatprep.mubr.f32.mxu0 %v73
  %861 = vmatmul.mubr.f32.gmra.mxu0 %v72
  %v862 = vpop.f32.mrf.mxu0
  %v863 = vadd.f32 %v478, %v862
  %v864 = vpop.f32.mrf.mxu0
  %865 = vmatprep.mubr.f32.mxu0 %v77
  %866 = vmatmul.mubr.f32.gmra.mxu0 %v76
  %v867 = vpop.f32.mrf.mxu0
  %v868 = vadd.f32 %v483, %v867
  %v869 = vpop.f32.mrf.mxu0
  %870 = vmatprep.mubr.f32.mxu0 %v81
  %871 = vmatmul.mubr.f32.gmra.mxu0 %v80
  %v872 = vpop.f32.mrf.mxu0
  %v873 = vadd.f32 %v488, %v872
  %v874 = vpop.f32.mrf.mxu0
  %875 = vmatprep.mubr.f32.mxu0 %v85
  %876 = vmatmul.mubr.f32.gmra.mxu0 %v84
  %v877 = vpop.f32.mrf.mxu0
  %v878 = vadd.f32 %v493, %v877
  %v879 = vpop.f32.mrf.mxu0
  %880 = vmatprep.mubr.f32.mxu0 %v89
  %881 = vmatmul.mubr.f32.gmra.mxu0 %v88
  %v882 = vpop.f32.mrf.mxu0
  %v883 = vadd.f32 %v498, %v882
  %v884 = vpop.f32.mrf.mxu0
  %885 = vmatprep.mubr.f32.mxu0 %v93
  %886 = vmatmul.mubr.f32.gmra.mxu0 %v92
  %v887 = vpop.f32.mrf.mxu0
  %v888 = vadd.f32 %v503, %v887
  %v889 = vpop.f32.mrf.mxu0
  %890 = vmatprep.mubr.f32.mxu0 %v97
  %891 = vmatmul.mubr.f32.gmra.mxu0 %v96
  %v892 = vpop.f32.mrf.mxu0
  %v893 = vadd.f32 %v508, %v892
  %v894 = vpop.f32.mrf.mxu0
  %895 = vmatprep.mubr.f32.mxu0 %v101
  %896 = vmatmul.mubr.f32.gmra.mxu0 %v100
  %v897 = vpop.f32.mrf.mxu0
  %v898 = vadd.f32 %v513, %v897
  %v899 = vpop.f32.mrf.mxu0
  %900 = vmatprep.mubr.f32.mxu0 %v105
  %901 = vmatmul.mubr.f32.gmra.mxu0 %v104
  %v902 = vpop.f32.mrf.mxu0
  %v903 = vadd.f32 %v518, %v902
  %v904 = vpop.f32.mrf.mxu0
  %905 = vmatprep.mubr.f32.mxu0 %v109
  %906 = vmatmul.mubr.f32.gmra.mxu0 %v108
  %v907 = vpop.f32.mrf.mxu0
  %v908 = vadd.f32 %v523, %v907
  %v909 = vpop.f32.mrf.mxu0
  %910 = vmatprep.mubr.f32.mxu0 %v113
  %911 = vmatmul.mubr.f32.gmra.mxu0 %v112
  %v912 = vpop.f32.mrf.mxu0
  %v913 = vadd.f32 %v528, %v912
  %v914 = vpop.f32.mrf.mxu0
  %915 = vmatprep.mubr.f32.mxu0 %v117
  %916 = vmatmul.mubr.f32.gmra.mxu0 %v116
  %v917 = vpop.f32.mrf.mxu0
  %v918 = vadd.f32 %v533, %v917
  %v919 = vpop.f32.mrf.mxu0
  %920 = vmatprep.mubr.f32.mxu0 %v121
  %921 = vmatmul.mubr.f32.gmra.mxu0 %v120
  %v922 = vpop.f32.mrf.mxu0
  %v923 = vadd.f32 %v538, %v922
  %v924 = vpop.f32.mrf.mxu0
  %925 = vmatprep.mubr.f32.mxu0 %v125
  %926 = vmatmul.mubr.f32.gmra.mxu0 %v124
  %v927 = vpop.f32.mrf.mxu0
  %v928 = vadd.f32 %v543, %v927
  %v929 = vpop.f32.mrf.mxu0
  %930 = vmatprep.mubr.f32.mxu0 %v129
  %931 = vmatmul.mubr.f32.gmra.mxu0 %v128
  %v932 = vpop.f32.mrf.mxu0
  %v933 = vadd.f32 %v548, %v932
  %v934 = vpop.f32.mrf.mxu0
  %935 = vmatprep.mubr.f32.mxu0 %v133
  %936 = vmatmul.mubr.f32.gmra.mxu0 %v132
  %v937 = vpop.f32.mrf.mxu0
  %v938 = vadd.f32 %v553, %v937
  %v939 = vpop.f32.mrf.mxu0
  %940 = vmatprep.mubr.f32.mxu0 %v137
  %941 = vmatmul.mubr.f32.gmra.mxu0 %v136
  %v942 = vpop.f32.mrf.mxu0
  %v943 = vadd.f32 %v558, %v942
  %v944 = vpop.f32.mrf.mxu0
  %945 = vmatprep.mubr.f32.mxu0 %v141
  %946 = vmatmul.mubr.f32.gmra.mxu0 %v140
  %v947 = vpop.f32.mrf.mxu0
  %v948 = vadd.f32 %v563, %v947
  %v949 = vpop.f32.mrf.mxu0
  %950 = vmatprep.mubr.f32.mxu0 %v145
  %951 = vmatmul.mubr.f32.gmra.mxu0 %v144
  %v952 = vpop.f32.mrf.mxu0
  %v953 = vadd.f32 %v568, %v952
  %v954 = vpop.f32.mrf.mxu0
  %955 = vmatprep.mubr.f32.mxu0 %v149
  %956 = vmatmul.mubr.f32.gmra.mxu0 %v148
  %v957 = vpop.f32.mrf.mxu0
  %v958 = vadd.f32 %v573, %v957
  %v959 = vpop.f32.mrf.mxu0
  %960 = vmatprep.mubr.f32.mxu0 %v153
  %961 = vmatmul.mubr.f32.gmra.mxu0 %v152
  %v962 = vpop.f32.mrf.mxu0
  %v963 = vadd.f32 %v578, %v962
  %v964 = vpop.f32.mrf.mxu0
  %965 = vmatprep.mubr.f32.mxu0 %v157
  %966 = vmatmul.mubr.f32.gmra.mxu0 %v156
  %v967 = vpop.f32.mrf.mxu0
  %v968 = vadd.f32 %v583, %v967
  %v969 = vpop.f32.mrf.mxu0
  %970 = vmatprep.mubr.f32.mxu0 %v161
  %971 = vmatmul.mubr.f32.gmra.mxu0 %v160
  %v972 = vpop.f32.mrf.mxu0
  %v973 = vadd.f32 %v588, %v972
  %v974 = vpop.f32.mrf.mxu0
  %975 = vmatprep.mubr.f32.mxu0 %v165
  %976 = vmatmul.mubr.f32.gmra.mxu0 %v164
  %v977 = vpop.f32.mrf.mxu0
  %v978 = vadd.f32 %v593, %v977
  %v979 = vpop.f32.mrf.mxu0
  %980 = vmatprep.mubr.f32.mxu0 %v169
  %981 = vmatmul.mubr.f32.gmra.mxu0 %v168
  %v982 = vpop.f32.mrf.mxu0
  %v983 = vadd.f32 %v598, %v982
  %v984 = vpop.f32.mrf.mxu0
  %985 = vmatprep.mubr.f32.mxu0 %v173
  %986 = vmatmul.mubr.f32.gmra.mxu0 %v172
  %v987 = vpop.f32.mrf.mxu0
  %v988 = vadd.f32 %v603, %v987
  %v989 = vpop.f32.mrf.mxu0
  %990 = vmatprep.mubr.f32.mxu0 %v177
  %991 = vmatmul.mubr.f32.gmra.mxu0 %v176
  %v992 = vpop.f32.mrf.mxu0
  %v993 = vadd.f32 %v608, %v992
  %v994 = vpop.f32.mrf.mxu0
  %995 = vmatprep.mubr.f32.mxu0 %v181
  %996 = vmatmul.mubr.f32.gmra.mxu0 %v180
  %v997 = vpop.f32.mrf.mxu0
  %v998 = vadd.f32 %v613, %v997
  %v999 = vpop.f32.mrf.mxu0
  %1000 = vmatprep.mubr.f32.mxu0 %v185
  %1001 = vmatmul.mubr.f32.gmra.mxu0 %v184
  %v1002 = vpop.f32.mrf.mxu0
  %v1003 = vadd.f32 %v618, %v1002
  %v1004 = vpop.f32.mrf.mxu0
  %1005 = vmatprep.mubr.f32.mxu0 %v189
  %1006 = vmatmul.mubr.f32.gmra.mxu0 %v188
  %v1007 = vpop.f32.mrf.mxu0
  %v1008 = vadd.f32 %v623, %v1007
  %v1009 = vpop.f32.mrf.mxu0
  %1010 = vmatprep.mubr.f32.mxu0 %v193
  %1011 = vmatmul.mubr.f32.gmra.mxu0 %v192
  %v1012 = vpop.f32.mrf.mxu0
  %v1013 = vadd.f32 %v628, %v1012
  %v1014 = vpop.f32.mrf.mxu0
  %1015 = vmatprep.mubr.f32.mxu0 %v197
  %1016 = vmatmul.mubr.f32.gmra.mxu0 %v196
  %v1017 = vpop.f32.mrf.mxu0
  %v1018 = vadd.f32 %v633, %v1017
  %v1019 = vpop.f32.mrf.mxu0
  %1020 = vmatprep.mubr.f32.mxu0 %v201
  %1021 = vmatmul.mubr.f32.gmra.mxu0 %v200
  %v1022 = vpop.f32.mrf.mxu0
  %v1023 = vadd.f32 %v638, %v1022
  %v1024 = vpop.f32.mrf.mxu0
  %1025 = vmatprep.mubr.f32.mxu0 %v205
  %1026 = vmatmul.mubr.f32.gmra.mxu0 %v204
  %v1027 = vpop.f32.mrf.mxu0
  %v1028 = vadd.f32 %v643, %v1027
  %v1029 = vpop.f32.mrf.mxu0
  %1030 = vmatprep.mubr.f32.mxu0 %v209
  %1031 = vmatmul.mubr.f32.gmra.mxu0 %v208
  %v1032 = vpop.f32.mrf.mxu0
  %v1033 = vadd.f32 %v648, %v1032
  %v1034 = vpop.f32.mrf.mxu0
  %1035 = vmatprep.mubr.f32.mxu0 %v213
  %1036 = vmatmul.mubr.f32.gmra.mxu0 %v212
  %v1037 = vpop.f32.mrf.mxu0
  %v1038 = vadd.f32 %v653, %v1037
  %v1039 = vpop.f32.mrf.mxu0
  %1040 = vmatprep.mubr.f32.mxu0 %v217
  %1041 = vmatmul.mubr.f32.gmra.mxu0 %v216
  %v1042 = vpop.f32.mrf.mxu0
  %v1043 = vadd.f32 %v658, %v1042
  %v1044 = vpop.f32.mrf.mxu0
  %1045 = vmatprep.mubr.f32.mxu0 %v221
  %1046 = vmatmul.mubr.f32.gmra.mxu0 %v220
  %v1047 = vpop.f32.mrf.mxu0
  %v1048 = vadd.f32 %v663, %v1047
  %v1049 = vpop.f32.mrf.mxu0
  %1050 = vmatprep.mubr.f32.mxu0 %v225
  %1051 = vmatmul.mubr.f32.gmra.mxu0 %v224
  %v1052 = vpop.f32.mrf.mxu0
  %v1053 = vadd.f32 %v668, %v1052
  %v1054 = vpop.f32.mrf.mxu0
  %1055 = vmatprep.mubr.f32.mxu0 %v229
  %1056 = vmatmul.mubr.f32.gmra.mxu0 %v228
  %v1057 = vpop.f32.mrf.mxu0
  %v1058 = vadd.f32 %v673, %v1057
  %v1059 = vpop.f32.mrf.mxu0
  %1060 = vmatprep.mubr.f32.mxu0 %v233
  %1061 = vmatmul.mubr.f32.gmra.mxu0 %v232
  %v1062 = vpop.f32.mrf.mxu0
  %v1063 = vadd.f32 %v678, %v1062
  %v1064 = vpop.f32.mrf.mxu0
  %1065 = vmatprep.mubr.f32.mxu0 %v237
  %1066 = vmatmul.mubr.f32.gmra.mxu0 %v236
  %v1067 = vpop.f32.mrf.mxu0
  %v1068 = vadd.f32 %v683, %v1067
  %v1069 = vpop.f32.mrf.mxu0
  %1070 = vmatprep.mubr.f32.mxu0 %v241
  %1071 = vmatmul.mubr.f32.gmra.mxu0 %v240
  %v1072 = vpop.f32.mrf.mxu0
  %v1073 = vadd.f32 %v688, %v1072
  %v1074 = vpop.f32.mrf.mxu0
  %1075 = vmatprep.mubr.f32.mxu0 %v245
  %1076 = vmatmul.mubr.f32.gmra.mxu0 %v244
  %v1077 = vpop.f32.mrf.mxu0
  %v1078 = vadd.f32 %v693, %v1077
  %v1079 = vpop.f32.mrf.mxu0
  %1080 = vmatprep.mubr.f32.mxu0 %v249
  %1081 = vmatmul.mubr.f32.gmra.mxu0 %v248
  %v1082 = vpop.f32.mrf.mxu0
  %v1083 = vadd.f32 %v698, %v1082
  %v1084 = vpop.f32.mrf.mxu0
  %1085 = vmatprep.mubr.f32.mxu0 %v253
  %1086 = vmatmul.mubr.f32.gmra.mxu0 %v252
  %v1087 = vpop.f32.mrf.mxu0
  %v1088 = vadd.f32 %v703, %v1087
  %v1089 = vpop.f32.mrf.mxu0
  %1090 = vmatprep.mubr.f32.mxu0 %v257
  %1091 = vmatmul.mubr.f32.gmra.mxu0 %v256
  %v1092 = vpop.f32.mrf.mxu0
  %v1093 = vadd.f32 %v708, %v1092
  %v1094 = vpop.f32.mrf.mxu0
  %1095 = vmatprep.mubr.f32.mxu0 %v261
  %1096 = vmatmul.mubr.f32.gmra.mxu0 %v260
  %v1097 = vpop.f32.mrf.mxu0
  %v1098 = vadd.f32 %v713, %v1097
  %v1099 = vpop.f32.mrf.mxu0
  %1100 = vmatprep.mubr.f32.mxu0 %v265
  %1101 = vmatmul.mubr.f32.gmra.mxu0 %v264
  %v1102 = vpop.f32.mrf.mxu0
  %v1103 = vadd.f32 %v718, %v1102
  %v1104 = vpop.f32.mrf.mxu0
  %1105 = vmatprep.mubr.f32.mxu0 %v269
  %1106 = vmatmul.mubr.f32.gmra.mxu0 %v268
  %v1107 = vpop.f32.mrf.mxu0
  %v1108 = vadd.f32 %v723, %v1107
  %v1109 = vpop.f32.mrf.mxu0
  %1110 = vdwg.mxu0
  %vm1111 = vcmask 261120
  %1112 = vst.msk [vmem:[%s3] sm:$0xff] %vm1111, %v793
  %1113 = vst.msk [vmem:[%s3 + $0x8] sm:$0xff] %vm1111, %v798
  %1114 = vst.msk [vmem:[%s3 + $0x10] sm:$0xff] %vm1111, %v803
  %1115 = vst.msk [vmem:[%s3 + $0x18] sm:$0xff] %vm1111, %v808
  %1116 = vst.msk [vmem:[%s3 + $0x20] sm:$0xff] %vm1111, %v813
  %1117 = vst.msk [vmem:[%s3 + $0x28] sm:$0xff] %vm1111, %v818
  %1118 = vst.msk [vmem:[%s3 + $0x30] sm:$0xff] %vm1111, %v823
  %1119 = vst.msk [vmem:[%s3 + $0x38] sm:$0xff] %vm1111, %v828
  %1120 = vst.msk [vmem:[%s3 + $0x40] sm:$0xff] %vm1111, %v833
  %1121 = vst.msk [vmem:[%s3 + $0x48] sm:$0xff] %vm1111, %v838
  %1122 = vst.msk [vmem:[%s3 + $0x50] sm:$0xff] %vm1111, %v843
  %1123 = vst.msk [vmem:[%s3 + $0x58] sm:$0xff] %vm1111, %v848
  %1124 = vst.msk [vmem:[%s3 + $0x60] sm:$0xff] %vm1111, %v853
  %1125 = vst.msk [vmem:[%s3 + $0x68] sm:$0xff] %vm1111, %v858
  %1126 = vst.msk [vmem:[%s3 + $0x70] sm:$0xff] %vm1111, %v863
  %1127 = vst.msk [vmem:[%s3 + $0x78] sm:$0xff] %vm1111, %v868
  %1128 = vst.msk [vmem:[%s3 + $0x80] sm:$0xff] %vm1111, %v873
  %1129 = vst.msk [vmem:[%s3 + $0x88] sm:$0xff] %vm1111, %v878
  %1130 = vst.msk [vmem:[%s3 + $0x90] sm:$0xff] %vm1111, %v883
  %1131 = vst.msk [vmem:[%s3 + $0x98] sm:$0xff] %vm1111, %v888
  %1132 = vst.msk [vmem:[%s3 + $0xa0] sm:$0xff] %vm1111, %v893
  %1133 = vst.msk [vmem:[%s3 + $0xa8] sm:$0xff] %vm1111, %v898
  %1134 = vst.msk [vmem:[%s3 + $0xb0] sm:$0xff] %vm1111, %v903
  %1135 = vst.msk [vmem:[%s3 + $0xb8] sm:$0xff] %vm1111, %v908
  %1136 = vst.msk [vmem:[%s3 + $0xc0] sm:$0xff] %vm1111, %v913
  %1137 = vst.msk [vmem:[%s3 + $0xc8] sm:$0xff] %vm1111, %v918
  %1138 = vst.msk [vmem:[%s3 + $0xd0] sm:$0xff] %vm1111, %v923
  %1139 = vst.msk [vmem:[%s3 + $0xd8] sm:$0xff] %vm1111, %v928
  %1140 = vst.msk [vmem:[%s3 + $0xe0] sm:$0xff] %vm1111, %v933
  %1141 = vst.msk [vmem:[%s3 + $0xe8] sm:$0xff] %vm1111, %v938
  %1142 = vst.msk [vmem:[%s3 + $0xf0] sm:$0xff] %vm1111, %v943
  %1143 = vst.msk [vmem:[%s3 + $0xf8] sm:$0xff] %vm1111, %v948
  %1144 = vst.msk [vmem:[%s3 + $0x100] sm:$0xff] %vm1111, %v953
  %1145 = vst.msk [vmem:[%s3 + $0x108] sm:$0xff] %vm1111, %v958
  %1146 = vst.msk [vmem:[%s3 + $0x110] sm:$0xff] %vm1111, %v963
  %1147 = vst.msk [vmem:[%s3 + $0x118] sm:$0xff] %vm1111, %v968
  %1148 = vst.msk [vmem:[%s3 + $0x120] sm:$0xff] %vm1111, %v973
  %1149 = vst.msk [vmem:[%s3 + $0x128] sm:$0xff] %vm1111, %v978
  %1150 = vst.msk [vmem:[%s3 + $0x130] sm:$0xff] %vm1111, %v983
  %1151 = vst.msk [vmem:[%s3 + $0x138] sm:$0xff] %vm1111, %v988
  %1152 = vst.msk [vmem:[%s3 + $0x140] sm:$0xff] %vm1111, %v993
  %1153 = vst.msk [vmem:[%s3 + $0x148] sm:$0xff] %vm1111, %v998
  %1154 = vst.msk [vmem:[%s3 + $0x150] sm:$0xff] %vm1111, %v1003
  %1155 = vst.msk [vmem:[%s3 + $0x158] sm:$0xff] %vm1111, %v1008
  %1156 = vst.msk [vmem:[%s3 + $0x160] sm:$0xff] %vm1111, %v1013
  %1157 = vst.msk [vmem:[%s3 + $0x168] sm:$0xff] %vm1111, %v1018
  %1158 = vst.msk [vmem:[%s3 + $0x170] sm:$0xff] %vm1111, %v1023
  %1159 = vst.msk [vmem:[%s3 + $0x178] sm:$0xff] %vm1111, %v1028
  %1160 = vst.msk [vmem:[%s3 + $0x180] sm:$0xff] %vm1111, %v1033
  %1161 = vst.msk [vmem:[%s3 + $0x188] sm:$0xff] %vm1111, %v1038
  %1162 = vst.msk [vmem:[%s3 + $0x190] sm:$0xff] %vm1111, %v1043
  %1163 = vst.msk [vmem:[%s3 + $0x198] sm:$0xff] %vm1111, %v1048
  %1164 = vst.msk [vmem:[%s3 + $0x1a0] sm:$0xff] %vm1111, %v1053
  %1165 = vst.msk [vmem:[%s3 + $0x1a8] sm:$0xff] %vm1111, %v1058
  %1166 = vst.msk [vmem:[%s3 + $0x1b0] sm:$0xff] %vm1111, %v1063
  %1167 = vst.msk [vmem:[%s3 + $0x1b8] sm:$0xff] %vm1111, %v1068
  %1168 = vst.msk [vmem:[%s3 + $0x1c0] sm:$0xff] %vm1111, %v1073
  %1169 = vst.msk [vmem:[%s3 + $0x1c8] sm:$0xff] %vm1111, %v1078
  %1170 = vst.msk [vmem:[%s3 + $0x1d0] sm:$0xff] %vm1111, %v1083
  %1171 = vst.msk [vmem:[%s3 + $0x1d8] sm:$0xff] %vm1111, %v1088
  %1172 = vst.msk [vmem:[%s3 + $0x1e0] sm:$0xff] %vm1111, %v1093
  %1173 = vst.msk [vmem:[%s3 + $0x1e8] sm:$0xff] %vm1111, %v1098
  %1174 = vst.msk [vmem:[%s3 + $0x1f0] sm:$0xff] %vm1111, %v1103
  %1175 = vst.msk [vmem:[%s3 + $0x1f8] sm:$0xff] %vm1111, %v1108
  // Predicated region
  $region14: #{_lambda_.10} parent=0 // pred_check
    _
  $region15: #{_lambda_.10} parent=0 // pred_check_branch
    %1177 = sbr.rel (0) target = $region17
  $region16: #{_lambda_.10} parent=0 // pred_region
    _
  $region17: #{_lambda_.10} parent=0 // pred_fallthru
    _
  // Predicated region
  $region18: #{_lambda_.10} parent=0 // pred_check
    _
  $region19: #{_lambda_.10} parent=0 // pred_check_branch
    %1179 = sbr.rel (0) target = $region21
  $region20: #{_lambda_.10} parent=0 // pred_region
    _
  $region21: #{_lambda_.10} parent=0 // pred_fallthru
    _

// kernel: _lambda_.11
$region0: #{_lambda_.11}
  #allocation0 [shape = 'u32[]', space=smem, size = 0x4, offset = 0x4, fixed_abs, tag = 'smem constant byte address 0x4 - core index']
  #allocation1 [shape = 'u32[144,128]{1,0:T(1,128)}', space=vmem, size = 0x12000, scoped, tag = 'internal scratch']
  %s0 = inlined_call_operand.vmem [shape: f32[128,512], index: 0, kind: input, shape index: {}]
  %s1 = inlined_call_operand.vmem [shape: f32[512,32], index: 1, kind: input, shape index: {}]
  %s2 = inlined_call_operand.vmem [shape: f32[1,32], index: 2, kind: input, shape index: {}]
  %s3 = inlined_call_operand.vmem [shape: f32[128,32], index: 3, kind: output, shape index: {}]
  %s4 = sld [smem:[#allocation0]]
  $region22: #{_lambda_.11} parent=0
    _
  %s6 = ssub.s32 1, %s4
  %s7 = scalar_select 0, %s6, %s4
  // Predicated region
  $region2: #{_lambda_.11} parent=0 // pred_check
    _
  $region3: #{_lambda_.11} parent=0 // pred_check_branch
    %9 = sbr.rel (0) target = $region5
  $region4: #{_lambda_.11} parent=0 // pred_region
    _
  $region5: #{_lambda_.11} parent=0 // pred_fallthru
    _
  // Predicated region
  $region6: #{_lambda_.11} parent=0 // pred_check
    _
  $region7: #{_lambda_.11} parent=0 // pred_check_branch
    %11 = sbr.rel (0) target = $region9
  $region8: #{_lambda_.11} parent=0 // pred_region
    _
  $region9: #{_lambda_.11} parent=0 // pred_fallthru
    _
  // Predicated region
  $region10: #{_lambda_.11} parent=0 // pred_check
    _
  $region11: #{_lambda_.11} parent=0 // pred_check_branch
    %13 = sbr.rel (0) target = $region13
  $region12: #{_lambda_.11} parent=0 // pred_region
    _
  $region13: #{_lambda_.11} parent=0 // pred_fallthru
    _
  %v14 = vld [vmem:[%s0] sm:$0xff]
  %v15 = vld [vmem:[%s0 + $0x8] sm:$0xff]
  %v16 = vld [vmem:[%s0 + $0x10] sm:$0xff]
  %v17 = vld [vmem:[%s0 + $0x18] sm:$0xff]
  %v18 = vld [vmem:[%s0 + $0x20] sm:$0xff]
  %v19 = vld [vmem:[%s0 + $0x28] sm:$0xff]
  %v20 = vld [vmem:[%s0 + $0x30] sm:$0xff]
  %v21 = vld [vmem:[%s0 + $0x38] sm:$0xff]
  %v22 = vld [vmem:[%s0 + $0x40] sm:$0xff]
  %v23 = vld [vmem:[%s0 + $0x48] sm:$0xff]
  %v24 = vld [vmem:[%s0 + $0x50] sm:$0xff]
  %v25 = vld [vmem:[%s0 + $0x58] sm:$0xff]
  %v26 = vld [vmem:[%s0 + $0x60] sm:$0xff]
  %v27 = vld [vmem:[%s0 + $0x68] sm:$0xff]
  %v28 = vld [vmem:[%s0 + $0x70] sm:$0xff]
  %v29 = vld [vmem:[%s0 + $0x78] sm:$0xff]
  %v30 = vld [vmem:[%s0 + $0x80] sm:$0xff]
  %v31 = vld [vmem:[%s0 + $0x88] sm:$0xff]
  %v32 = vld [vmem:[%s0 + $0x90] sm:$0xff]
  %v33 = vld [vmem:[%s0 + $0x98] sm:$0xff]
  %v34 = vld [vmem:[%s0 + $0xa0] sm:$0xff]
  %v35 = vld [vmem:[%s0 + $0xa8] sm:$0xff]
  %v36 = vld [vmem:[%s0 + $0xb0] sm:$0xff]
  %v37 = vld [vmem:[%s0 + $0xb8] sm:$0xff]
  %v38 = vld [vmem:[%s0 + $0xc0] sm:$0xff]
  %v39 = vld [vmem:[%s0 + $0xc8] sm:$0xff]
  %v40 = vld [vmem:[%s0 + $0xd0] sm:$0xff]
  %v41 = vld [vmem:[%s0 + $0xd8] sm:$0xff]
  %v42 = vld [vmem:[%s0 + $0xe0] sm:$0xff]
  %v43 = vld [vmem:[%s0 + $0xe8] sm:$0xff]
  %v44 = vld [vmem:[%s0 + $0xf0] sm:$0xff]
  %v45 = vld [vmem:[%s0 + $0xf8] sm:$0xff]
  %v46 = vld [vmem:[%s0 + $0x100] sm:$0xff]
  %v47 = vld [vmem:[%s0 + $0x108] sm:$0xff]
  %v48 = vld [vmem:[%s0 + $0x110] sm:$0xff]
  %v49 = vld [vmem:[%s0 + $0x118] sm:$0xff]
  %v50 = vld [vmem:[%s0 + $0x120] sm:$0xff]
  %v51 = vld [vmem:[%s0 + $0x128] sm:$0xff]
  %v52 = vld [vmem:[%s0 + $0x130] sm:$0xff]
  %v53 = vld [vmem:[%s0 + $0x138] sm:$0xff]
  %v54 = vld [vmem:[%s0 + $0x140] sm:$0xff]
  %v55 = vld [vmem:[%s0 + $0x148] sm:$0xff]
  %v56 = vld [vmem:[%s0 + $0x150] sm:$0xff]
  %v57 = vld [vmem:[%s0 + $0x158] sm:$0xff]
  %v58 = vld [vmem:[%s0 + $0x160] sm:$0xff]
  %v59 = vld [vmem:[%s0 + $0x168] sm:$0xff]
  %v60 = vld [vmem:[%s0 + $0x170] sm:$0xff]
  %v61 = vld [vmem:[%s0 + $0x178] sm:$0xff]
  %v62 = vld [vmem:[%s0 + $0x180] sm:$0xff]
  %v63 = vld [vmem:[%s0 + $0x188] sm:$0xff]
  %v64 = vld [vmem:[%s0 + $0x190] sm:$0xff]
  %v65 = vld [vmem:[%s0 + $0x198] sm:$0xff]
  %v66 = vld [vmem:[%s0 + $0x1a0] sm:$0xff]
  %v67 = vld [vmem:[%s0 + $0x1a8] sm:$0xff]
  %v68 = vld [vmem:[%s0 + $0x1b0] sm:$0xff]
  %v69 = vld [vmem:[%s0 + $0x1b8] sm:$0xff]
  %v70 = vld [vmem:[%s0 + $0x1c0] sm:$0xff]
  %v71 = vld [vmem:[%s0 + $0x1c8] sm:$0xff]
  %v72 = vld [vmem:[%s0 + $0x1d0] sm:$0xff]
  %v73 = vld [vmem:[%s0 + $0x1d8] sm:$0xff]
  %v74 = vld [vmem:[%s0 + $0x1e0] sm:$0xff]
  %v75 = vld [vmem:[%s0 + $0x1e8] sm:$0xff]
  %v76 = vld [vmem:[%s0 + $0x1f0] sm:$0xff]
  %v77 = vld [vmem:[%s0 + $0x1f8] sm:$0xff]
  %v78 = vld [vmem:[%s1] sm:$0xff]
  %v79 = vld [vmem:[%s1 + $0x8] sm:$0xff]
  %v80 = vld [vmem:[%s1 + $0x10] sm:$0xff]
  %v81 = vld [vmem:[%s1 + $0x18] sm:$0xff]
  %v82 = vld [vmem:[%s1 + $0x20] sm:$0xff]
  %v83 = vld [vmem:[%s1 + $0x28] sm:$0xff]
  %v84 = vld [vmem:[%s1 + $0x30] sm:$0xff]
  %v85 = vld [vmem:[%s1 + $0x38] sm:$0xff]
  %v86 = vld [vmem:[%s1 + $0x40] sm:$0xff]
  %v87 = vld [vmem:[%s1 + $0x48] sm:$0xff]
  %v88 = vld [vmem:[%s1 + $0x50] sm:$0xff]
  %v89 = vld [vmem:[%s1 + $0x58] sm:$0xff]
  %v90 = vld [vmem:[%s1 + $0x60] sm:$0xff]
  %v91 = vld [vmem:[%s1 + $0x68] sm:$0xff]
  %v92 = vld [vmem:[%s1 + $0x70] sm:$0xff]
  %v93 = vld [vmem:[%s1 + $0x78] sm:$0xff]
  %v94 = vld [vmem:[%s1 + $0x80] sm:$0xff]
  %v95 = vld [vmem:[%s1 + $0x88] sm:$0xff]
  %v96 = vld [vmem:[%s1 + $0x90] sm:$0xff]
  %v97 = vld [vmem:[%s1 + $0x98] sm:$0xff]
  %v98 = vld [vmem:[%s1 + $0xa0] sm:$0xff]
  %v99 = vld [vmem:[%s1 + $0xa8] sm:$0xff]
  %v100 = vld [vmem:[%s1 + $0xb0] sm:$0xff]
  %v101 = vld [vmem:[%s1 + $0xb8] sm:$0xff]
  %v102 = vld [vmem:[%s1 + $0xc0] sm:$0xff]
  %v103 = vld [vmem:[%s1 + $0xc8] sm:$0xff]
  %v104 = vld [vmem:[%s1 + $0xd0] sm:$0xff]
  %v105 = vld [vmem:[%s1 + $0xd8] sm:$0xff]
  %v106 = vld [vmem:[%s1 + $0xe0] sm:$0xff]
  %v107 = vld [vmem:[%s1 + $0xe8] sm:$0xff]
  %v108 = vld [vmem:[%s1 + $0xf0] sm:$0xff]
  %v109 = vld [vmem:[%s1 + $0xf8] sm:$0xff]
  %v110 = vld [vmem:[%s1 + $0x100] sm:$0xff]
  %v111 = vld [vmem:[%s1 + $0x108] sm:$0xff]
  %v112 = vld [vmem:[%s1 + $0x110] sm:$0xff]
  %v113 = vld [vmem:[%s1 + $0x118] sm:$0xff]
  %v114 = vld [vmem:[%s1 + $0x120] sm:$0xff]
  %v115 = vld [vmem:[%s1 + $0x128] sm:$0xff]
  %v116 = vld [vmem:[%s1 + $0x130] sm:$0xff]
  %v117 = vld [vmem:[%s1 + $0x138] sm:$0xff]
  %v118 = vld [vmem:[%s1 + $0x140] sm:$0xff]
  %v119 = vld [vmem:[%s1 + $0x148] sm:$0xff]
  %v120 = vld [vmem:[%s1 + $0x150] sm:$0xff]
  %v121 = vld [vmem:[%s1 + $0x158] sm:$0xff]
  %v122 = vld [vmem:[%s1 + $0x160] sm:$0xff]
  %v123 = vld [vmem:[%s1 + $0x168] sm:$0xff]
  %v124 = vld [vmem:[%s1 + $0x170] sm:$0xff]
  %v125 = vld [vmem:[%s1 + $0x178] sm:$0xff]
  %v126 = vld [vmem:[%s1 + $0x180] sm:$0xff]
  %v127 = vld [vmem:[%s1 + $0x188] sm:$0xff]
  %v128 = vld [vmem:[%s1 + $0x190] sm:$0xff]
  %v129 = vld [vmem:[%s1 + $0x198] sm:$0xff]
  %v130 = vld [vmem:[%s1 + $0x1a0] sm:$0xff]
  %v131 = vld [vmem:[%s1 + $0x1a8] sm:$0xff]
  %v132 = vld [vmem:[%s1 + $0x1b0] sm:$0xff]
  %v133 = vld [vmem:[%s1 + $0x1b8] sm:$0xff]
  %v134 = vld [vmem:[%s1 + $0x1c0] sm:$0xff]
  %v135 = vld [vmem:[%s1 + $0x1c8] sm:$0xff]
  %v136 = vld [vmem:[%s1 + $0x1d0] sm:$0xff]
  %v137 = vld [vmem:[%s1 + $0x1d8] sm:$0xff]
  %v138 = vld [vmem:[%s1 + $0x1e0] sm:$0xff]
  %v139 = vld [vmem:[%s1 + $0x1e8] sm:$0xff]
  %v140 = vld [vmem:[%s1 + $0x1f0] sm:$0xff]
  %v141 = vld [vmem:[%s1 + $0x1f8] sm:$0xff]
  %v142 = vld [vmem:[%s2] sm:$0x1]
  %v144 = vlaneseq
  %v145 = vshrl.u32 %v144, 7
  %v146 = vsub.s32 0, %v145
  %v147 = vrot.slane %v142, %v146
  %149 = vmatprep.subr.mxu0 0.0
  %150 = vmatpush1.msra.mxu0 %v93
  %151 = vmatprep.subr.mxu0 0.0
  %152 = vmatpush1.msra.mxu0 %v92
  %153 = vmatprep.subr.mxu0 0.0
  %154 = vmatpush1.msra.mxu0 %v91
  %155 = vmatprep.subr.mxu0 0.0
  %156 = vmatpush1.msra.mxu0 %v90
  %157 = vmatprep.subr.mxu0 0.0
  %158 = vmatpush1.msra.mxu0 %v89
  %159 = vmatprep.subr.mxu0 0.0
  %160 = vmatpush1.msra.mxu0 %v88
  %161 = vmatprep.subr.mxu0 0.0
  %162 = vmatpush1.msra.mxu0 %v87
  %163 = vmatprep.subr.mxu0 0.0
  %164 = vmatpush1.msra.mxu0 %v86
  %165 = vmatprep.subr.mxu0 0.0
  %166 = vmatpush1.msra.mxu0 %v85
  %167 = vmatprep.subr.mxu0 0.0
  %168 = vmatpush1.msra.mxu0 %v84
  %169 = vmatprep.subr.mxu0 0.0
  %170 = vmatpush1.msra.mxu0 %v83
  %171 = vmatprep.subr.mxu0 0.0
  %172 = vmatpush1.msra.mxu0 %v82
  %173 = vmatprep.subr.mxu0 0.0
  %174 = vmatpush1.msra.mxu0 %v81
  %175 = vmatprep.subr.mxu0 0.0
  %176 = vmatpush1.msra.mxu0 %v80
  %177 = vmatprep.subr.mxu0 0.0
  %178 = vmatpush1.msra.mxu0 %v79
  %179 = vmatprep.subr.mxu0 0.0
  %180 = vmatpush1.msra.mxu0 %v78
  %181 = vmatprep.subr.mxu0 0.0
  %182 = vmatpush2.msra.mxu0 %v109
  %183 = vmatprep.subr.mxu0 0.0
  %184 = vmatpush2.msra.mxu0 %v108
  %185 = vmatprep.subr.mxu0 0.0
  %186 = vmatpush2.msra.mxu0 %v107
  %187 = vmatprep.subr.mxu0 0.0
  %188 = vmatpush2.msra.mxu0 %v106
  %189 = vmatprep.subr.mxu0 0.0
  %190 = vmatpush2.msra.mxu0 %v105
  %191 = vmatprep.subr.mxu0 0.0
  %192 = vmatpush2.msra.mxu0 %v104
  %193 = vmatprep.subr.mxu0 0.0
  %194 = vmatpush2.msra.mxu0 %v103
  %195 = vmatprep.subr.mxu0 0.0
  %196 = vmatpush2.msra.mxu0 %v102
  %197 = vmatprep.subr.mxu0 0.0
  %198 = vmatpush2.msra.mxu0 %v101
  %199 = vmatprep.subr.mxu0 0.0
  %200 = vmatpush2.msra.mxu0 %v100
  %201 = vmatprep.subr.mxu0 0.0
  %202 = vmatpush2.msra.mxu0 %v99
  %203 = vmatprep.subr.mxu0 0.0
  %204 = vmatpush2.msra.mxu0 %v98
  %205 = vmatprep.subr.mxu0 0.0
  %206 = vmatpush2.msra.mxu0 %v97
  %207 = vmatprep.subr.mxu0 0.0
  %208 = vmatpush2.msra.mxu0 %v96
  %209 = vmatprep.subr.mxu0 0.0
  %210 = vmatpush2.msra.mxu0 %v95
  %211 = vmatprep.subr.mxu0 0.0
  %212 = vmatpush2.msra.mxu0 %v94
  %213 = vmatprep.mubr.f32.mxu0 %v15
  %214 = vmatmul.mubr.f32.gmra.mxu0 %v14
  %v215 = vpop.f32.mrf.mxu0
  %v216 = vadd.f32 %v147, %v215
  %v217 = vpop.f32.mrf.mxu0
  %218 = vmatprep.mubr.f32.mxu0 %v19
  %219 = vmatmul.mubr.f32.gmra.mxu0 %v18
  %v220 = vpop.f32.mrf.mxu0
  %v221 = vadd.f32 %v147, %v220
  %v222 = vpop.f32.mrf.mxu0
  %223 = vmatprep.mubr.f32.mxu0 %v23
  %224 = vmatmul.mubr.f32.gmra.mxu0 %v22
  %v225 = vpop.f32.mrf.mxu0
  %v226 = vadd.f32 %v147, %v225
  %v227 = vpop.f32.mrf.mxu0
  %228 = vmatprep.mubr.f32.mxu0 %v27
  %229 = vmatmul.mubr.f32.gmra.mxu0 %v26
  %v230 = vpop.f32.mrf.mxu0
  %v231 = vadd.f32 %v147, %v230
  %v232 = vpop.f32.mrf.mxu0
  %233 = vmatprep.mubr.f32.mxu0 %v31
  %234 = vmatmul.mubr.f32.gmra.mxu0 %v30
  %v235 = vpop.f32.mrf.mxu0
  %v236 = vadd.f32 %v147, %v235
  %v237 = vpop.f32.mrf.mxu0
  %238 = vmatprep.mubr.f32.mxu0 %v35
  %239 = vmatmul.mubr.f32.gmra.mxu0 %v34
  %v240 = vpop.f32.mrf.mxu0
  %v241 = vadd.f32 %v147, %v240
  %v242 = vpop.f32.mrf.mxu0
  %243 = vmatprep.mubr.f32.mxu0 %v39
  %244 = vmatmul.mubr.f32.gmra.mxu0 %v38
  %v245 = vpop.f32.mrf.mxu0
  %v246 = vadd.f32 %v147, %v245
  %v247 = vpop.f32.mrf.mxu0
  %248 = vmatprep.mubr.f32.mxu0 %v43
  %249 = vmatmul.mubr.f32.gmra.mxu0 %v42
  %v250 = vpop.f32.mrf.mxu0
  %v251 = vadd.f32 %v147, %v250
  %v252 = vpop.f32.mrf.mxu0
  %253 = vmatprep.mubr.f32.mxu0 %v47
  %254 = vmatmul.mubr.f32.gmra.mxu0 %v46
  %v255 = vpop.f32.mrf.mxu0
  %v256 = vadd.f32 %v147, %v255
  %v257 = vpop.f32.mrf.mxu0
  %258 = vmatprep.mubr.f32.mxu0 %v51
  %259 = vmatmul.mubr.f32.gmra.mxu0 %v50
  %v260 = vpop.f32.mrf.mxu0
  %v261 = vadd.f32 %v147, %v260
  %v262 = vpop.f32.mrf.mxu0
  %263 = vmatprep.mubr.f32.mxu0 %v55
  %264 = vmatmul.mubr.f32.gmra.mxu0 %v54
  %v265 = vpop.f32.mrf.mxu0
  %v266 = vadd.f32 %v147, %v265
  %v267 = vpop.f32.mrf.mxu0
  %268 = vmatprep.mubr.f32.mxu0 %v59
  %269 = vmatmul.mubr.f32.gmra.mxu0 %v58
  %v270 = vpop.f32.mrf.mxu0
  %v271 = vadd.f32 %v147, %v270
  %v272 = vpop.f32.mrf.mxu0
  %273 = vmatprep.mubr.f32.mxu0 %v63
  %274 = vmatmul.mubr.f32.gmra.mxu0 %v62
  %v275 = vpop.f32.mrf.mxu0
  %v276 = vadd.f32 %v147, %v275
  %v277 = vpop.f32.mrf.mxu0
  %278 = vmatprep.mubr.f32.mxu0 %v67
  %279 = vmatmul.mubr.f32.gmra.mxu0 %v66
  %v280 = vpop.f32.mrf.mxu0
  %v281 = vadd.f32 %v147, %v280
  %v282 = vpop.f32.mrf.mxu0
  %283 = vmatprep.mubr.f32.mxu0 %v71
  %284 = vmatmul.mubr.f32.gmra.mxu0 %v70
  %v285 = vpop.f32.mrf.mxu0
  %v286 = vadd.f32 %v147, %v285
  %v287 = vpop.f32.mrf.mxu0
  %288 = vmatprep.mubr.f32.mxu0 %v75
  %289 = vmatmul.mubr.f32.gmra.mxu0 %v74
  %v290 = vpop.f32.mrf.mxu0
  %v291 = vadd.f32 %v147, %v290
  %v292 = vpop.f32.mrf.mxu0
  %293 = vdwg.mxu0
  %294 = vmatprep.subr.mxu0 0.0
  %295 = vmatpush1.msra.mxu0 %v125
  %296 = vmatprep.subr.mxu0 0.0
  %297 = vmatpush1.msra.mxu0 %v124
  %298 = vmatprep.subr.mxu0 0.0
  %299 = vmatpush1.msra.mxu0 %v123
  %300 = vmatprep.subr.mxu0 0.0
  %301 = vmatpush1.msra.mxu0 %v122
  %302 = vmatprep.subr.mxu0 0.0
  %303 = vmatpush1.msra.mxu0 %v121
  %304 = vmatprep.subr.mxu0 0.0
  %305 = vmatpush1.msra.mxu0 %v120
  %306 = vmatprep.subr.mxu0 0.0
  %307 = vmatpush1.msra.mxu0 %v119
  %308 = vmatprep.subr.mxu0 0.0
  %309 = vmatpush1.msra.mxu0 %v118
  %310 = vmatprep.subr.mxu0 0.0
  %311 = vmatpush1.msra.mxu0 %v117
  %312 = vmatprep.subr.mxu0 0.0
  %313 = vmatpush1.msra.mxu0 %v116
  %314 = vmatprep.subr.mxu0 0.0
  %315 = vmatpush1.msra.mxu0 %v115
  %316 = vmatprep.subr.mxu0 0.0
  %317 = vmatpush1.msra.mxu0 %v114
  %318 = vmatprep.subr.mxu0 0.0
  %319 = vmatpush1.msra.mxu0 %v113
  %320 = vmatprep.subr.mxu0 0.0
  %321 = vmatpush1.msra.mxu0 %v112
  %322 = vmatprep.subr.mxu0 0.0
  %323 = vmatpush1.msra.mxu0 %v111
  %324 = vmatprep.subr.mxu0 0.0
  %325 = vmatpush1.msra.mxu0 %v110
  %326 = vmatprep.subr.mxu0 0.0
  %327 = vmatpush2.msra.mxu0 %v141
  %328 = vmatprep.subr.mxu0 0.0
  %329 = vmatpush2.msra.mxu0 %v140
  %330 = vmatprep.subr.mxu0 0.0
  %331 = vmatpush2.msra.mxu0 %v139
  %332 = vmatprep.subr.mxu0 0.0
  %333 = vmatpush2.msra.mxu0 %v138
  %334 = vmatprep.subr.mxu0 0.0
  %335 = vmatpush2.msra.mxu0 %v137
  %336 = vmatprep.subr.mxu0 0.0
  %337 = vmatpush2.msra.mxu0 %v136
  %338 = vmatprep.subr.mxu0 0.0
  %339 = vmatpush2.msra.mxu0 %v135
  %340 = vmatprep.subr.mxu0 0.0
  %341 = vmatpush2.msra.mxu0 %v134
  %342 = vmatprep.subr.mxu0 0.0
  %343 = vmatpush2.msra.mxu0 %v133
  %344 = vmatprep.subr.mxu0 0.0
  %345 = vmatpush2.msra.mxu0 %v132
  %346 = vmatprep.subr.mxu0 0.0
  %347 = vmatpush2.msra.mxu0 %v131
  %348 = vmatprep.subr.mxu0 0.0
  %349 = vmatpush2.msra.mxu0 %v130
  %350 = vmatprep.subr.mxu0 0.0
  %351 = vmatpush2.msra.mxu0 %v129
  %352 = vmatprep.subr.mxu0 0.0
  %353 = vmatpush2.msra.mxu0 %v128
  %354 = vmatprep.subr.mxu0 0.0
  %355 = vmatpush2.msra.mxu0 %v127
  %356 = vmatprep.subr.mxu0 0.0
  %357 = vmatpush2.msra.mxu0 %v126
  %358 = vmatprep.mubr.f32.mxu0 %v17
  %359 = vmatmul.mubr.f32.gmra.mxu0 %v16
  %v360 = vpop.f32.mrf.mxu0
  %v361 = vadd.f32 %v216, %v360
  %v362 = vpop.f32.mrf.mxu0
  %363 = vmatprep.mubr.f32.mxu0 %v21
  %364 = vmatmul.mubr.f32.gmra.mxu0 %v20
  %v365 = vpop.f32.mrf.mxu0
  %v366 = vadd.f32 %v221, %v365
  %v367 = vpop.f32.mrf.mxu0
  %368 = vmatprep.mubr.f32.mxu0 %v25
  %369 = vmatmul.mubr.f32.gmra.mxu0 %v24
  %v370 = vpop.f32.mrf.mxu0
  %v371 = vadd.f32 %v226, %v370
  %v372 = vpop.f32.mrf.mxu0
  %373 = vmatprep.mubr.f32.mxu0 %v29
  %374 = vmatmul.mubr.f32.gmra.mxu0 %v28
  %v375 = vpop.f32.mrf.mxu0
  %v376 = vadd.f32 %v231, %v375
  %v377 = vpop.f32.mrf.mxu0
  %378 = vmatprep.mubr.f32.mxu0 %v33
  %379 = vmatmul.mubr.f32.gmra.mxu0 %v32
  %v380 = vpop.f32.mrf.mxu0
  %v381 = vadd.f32 %v236, %v380
  %v382 = vpop.f32.mrf.mxu0
  %383 = vmatprep.mubr.f32.mxu0 %v37
  %384 = vmatmul.mubr.f32.gmra.mxu0 %v36
  %v385 = vpop.f32.mrf.mxu0
  %v386 = vadd.f32 %v241, %v385
  %v387 = vpop.f32.mrf.mxu0
  %388 = vmatprep.mubr.f32.mxu0 %v41
  %389 = vmatmul.mubr.f32.gmra.mxu0 %v40
  %v390 = vpop.f32.mrf.mxu0
  %v391 = vadd.f32 %v246, %v390
  %v392 = vpop.f32.mrf.mxu0
  %393 = vmatprep.mubr.f32.mxu0 %v45
  %394 = vmatmul.mubr.f32.gmra.mxu0 %v44
  %v395 = vpop.f32.mrf.mxu0
  %v396 = vadd.f32 %v251, %v395
  %v397 = vpop.f32.mrf.mxu0
  %398 = vmatprep.mubr.f32.mxu0 %v49
  %399 = vmatmul.mubr.f32.gmra.mxu0 %v48
  %v400 = vpop.f32.mrf.mxu0
  %v401 = vadd.f32 %v256, %v400
  %v402 = vpop.f32.mrf.mxu0
  %403 = vmatprep.mubr.f32.mxu0 %v53
  %404 = vmatmul.mubr.f32.gmra.mxu0 %v52
  %v405 = vpop.f32.mrf.mxu0
  %v406 = vadd.f32 %v261, %v405
  %v407 = vpop.f32.mrf.mxu0
  %408 = vmatprep.mubr.f32.mxu0 %v57
  %409 = vmatmul.mubr.f32.gmra.mxu0 %v56
  %v410 = vpop.f32.mrf.mxu0
  %v411 = vadd.f32 %v266, %v410
  %v412 = vpop.f32.mrf.mxu0
  %413 = vmatprep.mubr.f32.mxu0 %v61
  %414 = vmatmul.mubr.f32.gmra.mxu0 %v60
  %v415 = vpop.f32.mrf.mxu0
  %v416 = vadd.f32 %v271, %v415
  %v417 = vpop.f32.mrf.mxu0
  %418 = vmatprep.mubr.f32.mxu0 %v65
  %419 = vmatmul.mubr.f32.gmra.mxu0 %v64
  %v420 = vpop.f32.mrf.mxu0
  %v421 = vadd.f32 %v276, %v420
  %v422 = vpop.f32.mrf.mxu0
  %423 = vmatprep.mubr.f32.mxu0 %v69
  %424 = vmatmul.mubr.f32.gmra.mxu0 %v68
  %v425 = vpop.f32.mrf.mxu0
  %v426 = vadd.f32 %v281, %v425
  %v427 = vpop.f32.mrf.mxu0
  %428 = vmatprep.mubr.f32.mxu0 %v73
  %429 = vmatmul.mubr.f32.gmra.mxu0 %v72
  %v430 = vpop.f32.mrf.mxu0
  %v431 = vadd.f32 %v286, %v430
  %v432 = vpop.f32.mrf.mxu0
  %433 = vmatprep.mubr.f32.mxu0 %v77
  %434 = vmatmul.mubr.f32.gmra.mxu0 %v76
  %v435 = vpop.f32.mrf.mxu0
  %v436 = vadd.f32 %v291, %v435
  %v437 = vpop.f32.mrf.mxu0
  %438 = vdwg.mxu0
  %vm439 = vcmask 261120
  %440 = vst.msk [vmem:[%s3] sm:$0xff] %vm439, %v361
  %441 = vst.msk [vmem:[%s3 + $0x8] sm:$0xff] %vm439, %v366
  %442 = vst.msk [vmem:[%s3 + $0x10] sm:$0xff] %vm439, %v371
  %443 = vst.msk [vmem:[%s3 + $0x18] sm:$0xff] %vm439, %v376
  %444 = vst.msk [vmem:[%s3 + $0x20] sm:$0xff] %vm439, %v381
  %445 = vst.msk [vmem:[%s3 + $0x28] sm:$0xff] %vm439, %v386
  %446 = vst.msk [vmem:[%s3 + $0x30] sm:$0xff] %vm439, %v391
  %447 = vst.msk [vmem:[%s3 + $0x38] sm:$0xff] %vm439, %v396
  %448 = vst.msk [vmem:[%s3 + $0x40] sm:$0xff] %vm439, %v401
  %449 = vst.msk [vmem:[%s3 + $0x48] sm:$0xff] %vm439, %v406
  %450 = vst.msk [vmem:[%s3 + $0x50] sm:$0xff] %vm439, %v411
  %451 = vst.msk [vmem:[%s3 + $0x58] sm:$0xff] %vm439, %v416
  %452 = vst.msk [vmem:[%s3 + $0x60] sm:$0xff] %vm439, %v421
  %453 = vst.msk [vmem:[%s3 + $0x68] sm:$0xff] %vm439, %v426
  %454 = vst.msk [vmem:[%s3 + $0x70] sm:$0xff] %vm439, %v431
  %455 = vst.msk [vmem:[%s3 + $0x78] sm:$0xff] %vm439, %v436
  // Predicated region
  $region14: #{_lambda_.11} parent=0 // pred_check
    _
  $region15: #{_lambda_.11} parent=0 // pred_check_branch
    %457 = sbr.rel (0) target = $region17
  $region16: #{_lambda_.11} parent=0 // pred_region
    _
  $region17: #{_lambda_.11} parent=0 // pred_fallthru
    _
  // Predicated region
  $region18: #{_lambda_.11} parent=0 // pred_check
    _
  $region19: #{_lambda_.11} parent=0 // pred_check_branch
    %459 = sbr.rel (0) target = $region21
  $region20: #{_lambda_.11} parent=0 // pred_region
    _
  $region21: #{_lambda_.11} parent=0 // pred_fallthru
    _

// kernel: _lambda_.12
$region0: #{_lambda_.12}
  #allocation0 [shape = 'u32[]', space=smem, size = 0x4, offset = 0x4, fixed_abs, tag = 'smem constant byte address 0x4 - core index']
  #allocation1 [shape = 'u32[144,128]{1,0:T(1,128)}', space=vmem, size = 0x12000, scoped, tag = 'internal scratch']
  %s0 = inlined_call_operand.vmem [shape: f32[32,512], index: 0, kind: input, shape index: {}]
  %s1 = inlined_call_operand.vmem [shape: f32[512,32], index: 1, kind: input, shape index: {}]
  %s2 = inlined_call_operand.vmem [shape: f32[1,32], index: 2, kind: input, shape index: {}]
  %s3 = inlined_call_operand.vmem [shape: f32[32,32], index: 3, kind: output, shape index: {}]
  %s4 = sld [smem:[#allocation0]]
  $region22: #{_lambda_.12} parent=0
    _
  %s6 = ssub.s32 1, %s4
  %s7 = scalar_select 0, %s6, %s4
  // Predicated region
  $region2: #{_lambda_.12} parent=0 // pred_check
    _
  $region3: #{_lambda_.12} parent=0 // pred_check_branch
    %9 = sbr.rel (0) target = $region5
  $region4: #{_lambda_.12} parent=0 // pred_region
    _
  $region5: #{_lambda_.12} parent=0 // pred_fallthru
    _
  // Predicated region
  $region6: #{_lambda_.12} parent=0 // pred_check
    _
  $region7: #{_lambda_.12} parent=0 // pred_check_branch
    %11 = sbr.rel (0) target = $region9
  $region8: #{_lambda_.12} parent=0 // pred_region
    _
  $region9: #{_lambda_.12} parent=0 // pred_fallthru
    _
  // Predicated region
  $region10: #{_lambda_.12} parent=0 // pred_check
    _
  $region11: #{_lambda_.12} parent=0 // pred_check_branch
    %13 = sbr.rel (0) target = $region13
  $region12: #{_lambda_.12} parent=0 // pred_region
    _
  $region13: #{_lambda_.12} parent=0 // pred_fallthru
    _
  %v14 = vld [vmem:[%s0] sm:$0xff]
  %v15 = vld [vmem:[%s0 + $0x8] sm:$0xff]
  %v16 = vld [vmem:[%s0 + $0x10] sm:$0xff]
  %v17 = vld [vmem:[%s0 + $0x18] sm:$0xff]
  %v18 = vld [vmem:[%s0 + $0x20] sm:$0xff]
  %v19 = vld [vmem:[%s0 + $0x28] sm:$0xff]
  %v20 = vld [vmem:[%s0 + $0x30] sm:$0xff]
  %v21 = vld [vmem:[%s0 + $0x38] sm:$0xff]
  %v22 = vld [vmem:[%s0 + $0x40] sm:$0xff]
  %v23 = vld [vmem:[%s0 + $0x48] sm:$0xff]
  %v24 = vld [vmem:[%s0 + $0x50] sm:$0xff]
  %v25 = vld [vmem:[%s0 + $0x58] sm:$0xff]
  %v26 = vld [vmem:[%s0 + $0x60] sm:$0xff]
  %v27 = vld [vmem:[%s0 + $0x68] sm:$0xff]
  %v28 = vld [vmem:[%s0 + $0x70] sm:$0xff]
  %v29 = vld [vmem:[%s0 + $0x78] sm:$0xff]
  %v30 = vld [vmem:[%s1] sm:$0xff]
  %v31 = vld [vmem:[%s1 + $0x8] sm:$0xff]
  %v32 = vld [vmem:[%s1 + $0x10] sm:$0xff]
  %v33 = vld [vmem:[%s1 + $0x18] sm:$0xff]
  %v34 = vld [vmem:[%s1 + $0x20] sm:$0xff]
  %v35 = vld [vmem:[%s1 + $0x28] sm:$0xff]
  %v36 = vld [vmem:[%s1 + $0x30] sm:$0xff]
  %v37 = vld [vmem:[%s1 + $0x38] sm:$0xff]
  %v38 = vld [vmem:[%s1 + $0x40] sm:$0xff]
  %v39 = vld [vmem:[%s1 + $0x48] sm:$0xff]
  %v40 = vld [vmem:[%s1 + $0x50] sm:$0xff]
  %v41 = vld [vmem:[%s1 + $0x58] sm:$0xff]
  %v42 = vld [vmem:[%s1 + $0x60] sm:$0xff]
  %v43 = vld [vmem:[%s1 + $0x68] sm:$0xff]
  %v44 = vld [vmem:[%s1 + $0x70] sm:$0xff]
  %v45 = vld [vmem:[%s1 + $0x78] sm:$0xff]
  %v46 = vld [vmem:[%s1 + $0x80] sm:$0xff]
  %v47 = vld [vmem:[%s1 + $0x88] sm:$0xff]
  %v48 = vld [vmem:[%s1 + $0x90] sm:$0xff]
  %v49 = vld [vmem:[%s1 + $0x98] sm:$0xff]
  %v50 = vld [vmem:[%s1 + $0xa0] sm:$0xff]
  %v51 = vld [vmem:[%s1 + $0xa8] sm:$0xff]
  %v52 = vld [vmem:[%s1 + $0xb0] sm:$0xff]
  %v53 = vld [vmem:[%s1 + $0xb8] sm:$0xff]
  %v54 = vld [vmem:[%s1 + $0xc0] sm:$0xff]
  %v55 = vld [vmem:[%s1 + $0xc8] sm:$0xff]
  %v56 = vld [vmem:[%s1 + $0xd0] sm:$0xff]
  %v57 = vld [vmem:[%s1 + $0xd8] sm:$0xff]
  %v58 = vld [vmem:[%s1 + $0xe0] sm:$0xff]
  %v59 = vld [vmem:[%s1 + $0xe8] sm:$0xff]
  %v60 = vld [vmem:[%s1 + $0xf0] sm:$0xff]
  %v61 = vld [vmem:[%s1 + $0xf8] sm:$0xff]
  %v62 = vld [vmem:[%s1 + $0x100] sm:$0xff]
  %v63 = vld [vmem:[%s1 + $0x108] sm:$0xff]
  %v64 = vld [vmem:[%s1 + $0x110] sm:$0xff]
  %v65 = vld [vmem:[%s1 + $0x118] sm:$0xff]
  %v66 = vld [vmem:[%s1 + $0x120] sm:$0xff]
  %v67 = vld [vmem:[%s1 + $0x128] sm:$0xff]
  %v68 = vld [vmem:[%s1 + $0x130] sm:$0xff]
  %v69 = vld [vmem:[%s1 + $0x138] sm:$0xff]
  %v70 = vld [vmem:[%s1 + $0x140] sm:$0xff]
  %v71 = vld [vmem:[%s1 + $0x148] sm:$0xff]
  %v72 = vld [vmem:[%s1 + $0x150] sm:$0xff]
  %v73 = vld [vmem:[%s1 + $0x158] sm:$0xff]
  %v74 = vld [vmem:[%s1 + $0x160] sm:$0xff]
  %v75 = vld [vmem:[%s1 + $0x168] sm:$0xff]
  %v76 = vld [vmem:[%s1 + $0x170] sm:$0xff]
  %v77 = vld [vmem:[%s1 + $0x178] sm:$0xff]
  %v78 = vld [vmem:[%s1 + $0x180] sm:$0xff]
  %v79 = vld [vmem:[%s1 + $0x188] sm:$0xff]
  %v80 = vld [vmem:[%s1 + $0x190] sm:$0xff]
  %v81 = vld [vmem:[%s1 + $0x198] sm:$0xff]
  %v82 = vld [vmem:[%s1 + $0x1a0] sm:$0xff]
  %v83 = vld [vmem:[%s1 + $0x1a8] sm:$0xff]
  %v84 = vld [vmem:[%s1 + $0x1b0] sm:$0xff]
  %v85 = vld [vmem:[%s1 + $0x1b8] sm:$0xff]
  %v86 = vld [vmem:[%s1 + $0x1c0] sm:$0xff]
  %v87 = vld [vmem:[%s1 + $0x1c8] sm:$0xff]
  %v88 = vld [vmem:[%s1 + $0x1d0] sm:$0xff]
  %v89 = vld [vmem:[%s1 + $0x1d8] sm:$0xff]
  %v90 = vld [vmem:[%s1 + $0x1e0] sm:$0xff]
  %v91 = vld [vmem:[%s1 + $0x1e8] sm:$0xff]
  %v92 = vld [vmem:[%s1 + $0x1f0] sm:$0xff]
  %v93 = vld [vmem:[%s1 + $0x1f8] sm:$0xff]
  %v94 = vld [vmem:[%s2] sm:$0x1]
  %v96 = vlaneseq
  %v97 = vshrl.u32 %v96, 7
  %v98 = vsub.s32 0, %v97
  %v99 = vrot.slane %v94, %v98
  %101 = vmatprep.subr.mxu0 0.0
  %102 = vmatpush1.msra.mxu0 %v45
  %103 = vmatprep.subr.mxu0 0.0
  %104 = vmatpush1.msra.mxu0 %v44
  %105 = vmatprep.subr.mxu0 0.0
  %106 = vmatpush1.msra.mxu0 %v43
  %107 = vmatprep.subr.mxu0 0.0
  %108 = vmatpush1.msra.mxu0 %v42
  %109 = vmatprep.subr.mxu0 0.0
  %110 = vmatpush1.msra.mxu0 %v41
  %111 = vmatprep.subr.mxu0 0.0
  %112 = vmatpush1.msra.mxu0 %v40
  %113 = vmatprep.subr.mxu0 0.0
  %114 = vmatpush1.msra.mxu0 %v39
  %115 = vmatprep.subr.mxu0 0.0
  %116 = vmatpush1.msra.mxu0 %v38
  %117 = vmatprep.subr.mxu0 0.0
  %118 = vmatpush1.msra.mxu0 %v37
  %119 = vmatprep.subr.mxu0 0.0
  %120 = vmatpush1.msra.mxu0 %v36
  %121 = vmatprep.subr.mxu0 0.0
  %122 = vmatpush1.msra.mxu0 %v35
  %123 = vmatprep.subr.mxu0 0.0
  %124 = vmatpush1.msra.mxu0 %v34
  %125 = vmatprep.subr.mxu0 0.0
  %126 = vmatpush1.msra.mxu0 %v33
  %127 = vmatprep.subr.mxu0 0.0
  %128 = vmatpush1.msra.mxu0 %v32
  %129 = vmatprep.subr.mxu0 0.0
  %130 = vmatpush1.msra.mxu0 %v31
  %131 = vmatprep.subr.mxu0 0.0
  %132 = vmatpush1.msra.mxu0 %v30
  %133 = vmatprep.subr.mxu0 0.0
  %134 = vmatpush2.msra.mxu0 %v61
  %135 = vmatprep.subr.mxu0 0.0
  %136 = vmatpush2.msra.mxu0 %v60
  %137 = vmatprep.subr.mxu0 0.0
  %138 = vmatpush2.msra.mxu0 %v59
  %139 = vmatprep.subr.mxu0 0.0
  %140 = vmatpush2.msra.mxu0 %v58
  %141 = vmatprep.subr.mxu0 0.0
  %142 = vmatpush2.msra.mxu0 %v57
  %143 = vmatprep.subr.mxu0 0.0
  %144 = vmatpush2.msra.mxu0 %v56
  %145 = vmatprep.subr.mxu0 0.0
  %146 = vmatpush2.msra.mxu0 %v55
  %147 = vmatprep.subr.mxu0 0.0
  %148 = vmatpush2.msra.mxu0 %v54
  %149 = vmatprep.subr.mxu0 0.0
  %150 = vmatpush2.msra.mxu0 %v53
  %151 = vmatprep.subr.mxu0 0.0
  %152 = vmatpush2.msra.mxu0 %v52
  %153 = vmatprep.subr.mxu0 0.0
  %154 = vmatpush2.msra.mxu0 %v51
  %155 = vmatprep.subr.mxu0 0.0
  %156 = vmatpush2.msra.mxu0 %v50
  %157 = vmatprep.subr.mxu0 0.0
  %158 = vmatpush2.msra.mxu0 %v49
  %159 = vmatprep.subr.mxu0 0.0
  %160 = vmatpush2.msra.mxu0 %v48
  %161 = vmatprep.subr.mxu0 0.0
  %162 = vmatpush2.msra.mxu0 %v47
  %163 = vmatprep.subr.mxu0 0.0
  %164 = vmatpush2.msra.mxu0 %v46
  %165 = vmatprep.mubr.f32.mxu0 %v15
  %166 = vmatmul.mubr.f32.gmra.mxu0 %v14
  %v167 = vpop.f32.mrf.mxu0
  %v168 = vadd.f32 %v99, %v167
  %v169 = vpop.f32.mrf.mxu0
  %170 = vmatprep.mubr.f32.mxu0 %v19
  %171 = vmatmul.mubr.f32.gmra.mxu0 %v18
  %v172 = vpop.f32.mrf.mxu0
  %v173 = vadd.f32 %v99, %v172
  %v174 = vpop.f32.mrf.mxu0
  %175 = vmatprep.mubr.f32.mxu0 %v23
  %176 = vmatmul.mubr.f32.gmra.mxu0 %v22
  %v177 = vpop.f32.mrf.mxu0
  %v178 = vadd.f32 %v99, %v177
  %v179 = vpop.f32.mrf.mxu0
  %180 = vmatprep.mubr.f32.mxu0 %v27
  %181 = vmatmul.mubr.f32.gmra.mxu0 %v26
  %v182 = vpop.f32.mrf.mxu0
  %v183 = vadd.f32 %v99, %v182
  %v184 = vpop.f32.mrf.mxu0
  %185 = vdwg.mxu0
  %186 = vmatprep.subr.mxu0 0.0
  %187 = vmatpush1.msra.mxu0 %v77
  %188 = vmatprep.subr.mxu0 0.0
  %189 = vmatpush1.msra.mxu0 %v76
  %190 = vmatprep.subr.mxu0 0.0
  %191 = vmatpush1.msra.mxu0 %v75
  %192 = vmatprep.subr.mxu0 0.0
  %193 = vmatpush1.msra.mxu0 %v74
  %194 = vmatprep.subr.mxu0 0.0
  %195 = vmatpush1.msra.mxu0 %v73
  %196 = vmatprep.subr.mxu0 0.0
  %197 = vmatpush1.msra.mxu0 %v72
  %198 = vmatprep.subr.mxu0 0.0
  %199 = vmatpush1.msra.mxu0 %v71
  %200 = vmatprep.subr.mxu0 0.0
  %201 = vmatpush1.msra.mxu0 %v70
  %202 = vmatprep.subr.mxu0 0.0
  %203 = vmatpush1.msra.mxu0 %v69
  %204 = vmatprep.subr.mxu0 0.0
  %205 = vmatpush1.msra.mxu0 %v68
  %206 = vmatprep.subr.mxu0 0.0
  %207 = vmatpush1.msra.mxu0 %v67
  %208 = vmatprep.subr.mxu0 0.0
  %209 = vmatpush1.msra.mxu0 %v66
  %210 = vmatprep.subr.mxu0 0.0
  %211 = vmatpush1.msra.mxu0 %v65
  %212 = vmatprep.subr.mxu0 0.0
  %213 = vmatpush1.msra.mxu0 %v64
  %214 = vmatprep.subr.mxu0 0.0
  %215 = vmatpush1.msra.mxu0 %v63
  %216 = vmatprep.subr.mxu0 0.0
  %217 = vmatpush1.msra.mxu0 %v62
  %218 = vmatprep.subr.mxu0 0.0
  %219 = vmatpush2.msra.mxu0 %v93
  %220 = vmatprep.subr.mxu0 0.0
  %221 = vmatpush2.msra.mxu0 %v92
  %222 = vmatprep.subr.mxu0 0.0
  %223 = vmatpush2.msra.mxu0 %v91
  %224 = vmatprep.subr.mxu0 0.0
  %225 = vmatpush2.msra.mxu0 %v90
  %226 = vmatprep.subr.mxu0 0.0
  %227 = vmatpush2.msra.mxu0 %v89
  %228 = vmatprep.subr.mxu0 0.0
  %229 = vmatpush2.msra.mxu0 %v88
  %230 = vmatprep.subr.mxu0 0.0
  %231 = vmatpush2.msra.mxu0 %v87
  %232 = vmatprep.subr.mxu0 0.0
  %233 = vmatpush2.msra.mxu0 %v86
  %234 = vmatprep.subr.mxu0 0.0
  %235 = vmatpush2.msra.mxu0 %v85
  %236 = vmatprep.subr.mxu0 0.0
  %237 = vmatpush2.msra.mxu0 %v84
  %238 = vmatprep.subr.mxu0 0.0
  %239 = vmatpush2.msra.mxu0 %v83
  %240 = vmatprep.subr.mxu0 0.0
  %241 = vmatpush2.msra.mxu0 %v82
  %242 = vmatprep.subr.mxu0 0.0
  %243 = vmatpush2.msra.mxu0 %v81
  %244 = vmatprep.subr.mxu0 0.0
  %245 = vmatpush2.msra.mxu0 %v80
  %246 = vmatprep.subr.mxu0 0.0
  %247 = vmatpush2.msra.mxu0 %v79
  %248 = vmatprep.subr.mxu0 0.0
  %249 = vmatpush2.msra.mxu0 %v78
  %250 = vmatprep.mubr.f32.mxu0 %v17
  %251 = vmatmul.mubr.f32.gmra.mxu0 %v16
  %v252 = vpop.f32.mrf.mxu0
  %v253 = vadd.f32 %v168, %v252
  %v254 = vpop.f32.mrf.mxu0
  %255 = vmatprep.mubr.f32.mxu0 %v21
  %256 = vmatmul.mubr.f32.gmra.mxu0 %v20
  %v257 = vpop.f32.mrf.mxu0
  %v258 = vadd.f32 %v173, %v257
  %v259 = vpop.f32.mrf.mxu0
  %260 = vmatprep.mubr.f32.mxu0 %v25
  %261 = vmatmul.mubr.f32.gmra.mxu0 %v24
  %v262 = vpop.f32.mrf.mxu0
  %v263 = vadd.f32 %v178, %v262
  %v264 = vpop.f32.mrf.mxu0
  %265 = vmatprep.mubr.f32.mxu0 %v29
  %266 = vmatmul.mubr.f32.gmra.mxu0 %v28
  %v267 = vpop.f32.mrf.mxu0
  %v268 = vadd.f32 %v183, %v267
  %v269 = vpop.f32.mrf.mxu0
  %270 = vdwg.mxu0
  %vm271 = vcmask 261120
  %272 = vst.msk [vmem:[%s3] sm:$0xff] %vm271, %v253
  %273 = vst.msk [vmem:[%s3 + $0x8] sm:$0xff] %vm271, %v258
  %274 = vst.msk [vmem:[%s3 + $0x10] sm:$0xff] %vm271, %v263
  %275 = vst.msk [vmem:[%s3 + $0x18] sm:$0xff] %vm271, %v268
  // Predicated region
  $region14: #{_lambda_.12} parent=0 // pred_check
    _
  $region15: #{_lambda_.12} parent=0 // pred_check_branch
    %277 = sbr.rel (0) target = $region17
  $region16: #{_lambda_.12} parent=0 // pred_region
    _
  $region17: #{_lambda_.12} parent=0 // pred_fallthru
    _
  // Predicated region
  $region18: #{_lambda_.12} parent=0 // pred_check
    _
  $region19: #{_lambda_.12} parent=0 // pred_check_branch
    %279 = sbr.rel (0) target = $region21
  $region20: #{_lambda_.12} parent=0 // pred_region
    _
  $region21: #{_lambda_.12} parent=0 // pred_fallthru
    _

// kernel: _lambda_.13
$region0: #{_lambda_.13}
  #allocation0 [shape = 'u32[]', space=smem, size = 0x4, offset = 0x4, fixed_abs, tag = 'smem constant byte address 0x4 - core index']
  #allocation1 [shape = 'u32[144,128]{1,0:T(1,128)}', space=vmem, size = 0x12000, scoped, tag = 'internal scratch']
  %s0 = inlined_call_operand.vmem [shape: f32[8,512], index: 0, kind: input, shape index: {}]
  %s1 = inlined_call_operand.vmem [shape: f32[8,32], index: 1, kind: input, shape index: {}]
  %s2 = inlined_call_operand.vmem [shape: f32[512,256], index: 2, kind: input, shape index: {}]
  %s3 = inlined_call_operand.vmem [shape: f32[1,256], index: 3, kind: input, shape index: {}, may-alias: {3,5,9,11}]
  %s4 = inlined_call_operand.vmem [shape: f32[256,256], index: 4, kind: input, shape index: {}]
  %s5 = inlined_call_operand.vmem [shape: f32[1,256], index: 5, kind: input, shape index: {}, may-alias: {3,5,9,11}]
  %s6 = inlined_call_operand.vmem [shape: f32[256,64], index: 6, kind: input, shape index: {}]
  %s7 = inlined_call_operand.vmem [shape: f32[1,64], index: 7, kind: input, shape index: {}]
  %s8 = inlined_call_operand.vmem [shape: f32[32,256], index: 8, kind: input, shape index: {}]
  %s9 = inlined_call_operand.vmem [shape: f32[1,256], index: 9, kind: input, shape index: {}, may-alias: {3,5,9,11}]
  %s10 = inlined_call_operand.vmem [shape: f32[256,256], index: 10, kind: input, shape index: {}]
  %s11 = inlined_call_operand.vmem [shape: f32[1,256], index: 11, kind: input, shape index: {}, may-alias: {3,5,9,11}]
  %s12 = inlined_call_operand.vmem [shape: f32[256,512], index: 12, kind: input, shape index: {}]
  %s13 = inlined_call_operand.vmem [shape: f32[1,512], index: 13, kind: input, shape index: {}]
  %s14 = inlined_call_operand.vmem [shape: f32[8,64], index: 14, kind: output, shape index: {0}]
  %s15 = inlined_call_operand.vmem [shape: f32[8,512], index: 15, kind: output, shape index: {1}]
  %16 = xla_tuple %s14, %s15
  %s17 = sld [smem:[#allocation0]]
  $region74: #{_lambda_.13} parent=0
    _
  %s19 = ssub.s32 1, %s17
  %s20 = scalar_select 0, %s19, %s17
  // Predicated region
  $region2: #{_lambda_.13} parent=0 // pred_check
    _
  $region3: #{_lambda_.13} parent=0 // pred_check_branch
    %22 = sbr.rel (0) target = $region5
  $region4: #{_lambda_.13} parent=0 // pred_region
    _
  $region5: #{_lambda_.13} parent=0 // pred_fallthru
    _
  // Predicated region
  $region6: #{_lambda_.13} parent=0 // pred_check
    _
  $region7: #{_lambda_.13} parent=0 // pred_check_branch
    %24 = sbr.rel (0) target = $region9
  $region8: #{_lambda_.13} parent=0 // pred_region
    _
  $region9: #{_lambda_.13} parent=0 // pred_fallthru
    _
  // Predicated region
  $region10: #{_lambda_.13} parent=0 // pred_check
    _
  $region11: #{_lambda_.13} parent=0 // pred_check_branch
    %26 = sbr.rel (0) target = $region13
  $region12: #{_lambda_.13} parent=0 // pred_region
    _
  $region13: #{_lambda_.13} parent=0 // pred_fallthru
    _
  // Predicated region
  $region14: #{_lambda_.13} parent=0 // pred_check
    _
  $region15: #{_lambda_.13} parent=0 // pred_check_branch
    %28 = sbr.rel (0) target = $region17
  $region16: #{_lambda_.13} parent=0 // pred_region
    _
  $region17: #{_lambda_.13} parent=0 // pred_fallthru
    _
  // Predicated region
  $region18: #{_lambda_.13} parent=0 // pred_check
    _
  $region19: #{_lambda_.13} parent=0 // pred_check_branch
    %30 = sbr.rel (0) target = $region21
  $region20: #{_lambda_.13} parent=0 // pred_region
    _
  $region21: #{_lambda_.13} parent=0 // pred_fallthru
    _
  // Predicated region
  $region22: #{_lambda_.13} parent=0 // pred_check
    _
  $region23: #{_lambda_.13} parent=0 // pred_check_branch
    %32 = sbr.rel (0) target = $region25
  $region24: #{_lambda_.13} parent=0 // pred_region
    _
  $region25: #{_lambda_.13} parent=0 // pred_fallthru
    _
  // Predicated region
  $region26: #{_lambda_.13} parent=0 // pred_check
    _
  $region27: #{_lambda_.13} parent=0 // pred_check_branch
    %34 = sbr.rel (0) target = $region29
  $region28: #{_lambda_.13} parent=0 // pred_region
    _
  $region29: #{_lambda_.13} parent=0 // pred_fallthru
    _
  // Predicated region
  $region30: #{_lambda_.13} parent=0 // pred_check
    _
  $region31: #{_lambda_.13} parent=0 // pred_check_branch
    %36 = sbr.rel (0) target = $region33
  $region32: #{_lambda_.13} parent=0 // pred_region
    _
  $region33: #{_lambda_.13} parent=0 // pred_fallthru
    _
  // Predicated region
  $region34: #{_lambda_.13} parent=0 // pred_check
    _
  $region35: #{_lambda_.13} parent=0 // pred_check_branch
    %38 = sbr.rel (0) target = $region37
  $region36: #{_lambda_.13} parent=0 // pred_region
    _
  $region37: #{_lambda_.13} parent=0 // pred_fallthru
    _
  // Predicated region
  $region38: #{_lambda_.13} parent=0 // pred_check
    _
  $region39: #{_lambda_.13} parent=0 // pred_check_branch
    %40 = sbr.rel (0) target = $region41
  $region40: #{_lambda_.13} parent=0 // pred_region
    _
  $region41: #{_lambda_.13} parent=0 // pred_fallthru
    _
  // Predicated region
  $region42: #{_lambda_.13} parent=0 // pred_check
    _
  $region43: #{_lambda_.13} parent=0 // pred_check_branch
    %42 = sbr.rel (0) target = $region45
  $region44: #{_lambda_.13} parent=0 // pred_region
    _
  $region45: #{_lambda_.13} parent=0 // pred_fallthru
    _
  // Predicated region
  $region46: #{_lambda_.13} parent=0 // pred_check
    _
  $region47: #{_lambda_.13} parent=0 // pred_check_branch
    %44 = sbr.rel (0) target = $region49
  $region48: #{_lambda_.13} parent=0 // pred_region
    _
  $region49: #{_lambda_.13} parent=0 // pred_fallthru
    _
  // Predicated region
  $region50: #{_lambda_.13} parent=0 // pred_check
    _
  $region51: #{_lambda_.13} parent=0 // pred_check_branch
    %46 = sbr.rel (0) target = $region53
  $region52: #{_lambda_.13} parent=0 // pred_region
    _
  $region53: #{_lambda_.13} parent=0 // pred_fallthru
    _
  // Predicated region
  $region54: #{_lambda_.13} parent=0 // pred_check
    _
  $region55: #{_lambda_.13} parent=0 // pred_check_branch
    %48 = sbr.rel (0) target = $region57
  $region56: #{_lambda_.13} parent=0 // pred_region
    _
  $region57: #{_lambda_.13} parent=0 // pred_fallthru
    _
  %v49 = vld [vmem:[%s0] sm:$0xff]
  %v50 = vld [vmem:[%s0 + $0x8] sm:$0xff]
  %v51 = vld [vmem:[%s0 + $0x10] sm:$0xff]
  %v52 = vld [vmem:[%s0 + $0x18] sm:$0xff]
  %v53 = vld [vmem:[%s2] sm:$0xff]
  %v54 = vld [vmem:[%s2 + $0x8] sm:$0xff]
  %v55 = vld [vmem:[%s2 + $0x10] sm:$0xff]
  %v56 = vld [vmem:[%s2 + $0x18] sm:$0xff]
  %v57 = vld [vmem:[%s2 + $0x20] sm:$0xff]
  %v58 = vld [vmem:[%s2 + $0x28] sm:$0xff]
  %v59 = vld [vmem:[%s2 + $0x30] sm:$0xff]
  %v60 = vld [vmem:[%s2 + $0x38] sm:$0xff]
  %v61 = vld [vmem:[%s2 + $0x40] sm:$0xff]
  %v62 = vld [vmem:[%s2 + $0x48] sm:$0xff]
  %v63 = vld [vmem:[%s2 + $0x50] sm:$0xff]
  %v64 = vld [vmem:[%s2 + $0x58] sm:$0xff]
  %v65 = vld [vmem:[%s2 + $0x60] sm:$0xff]
  %v66 = vld [vmem:[%s2 + $0x68] sm:$0xff]
  %v67 = vld [vmem:[%s2 + $0x70] sm:$0xff]
  %v68 = vld [vmem:[%s2 + $0x78] sm:$0xff]
  %v69 = vld [vmem:[%s2 + $0x80] sm:$0xff]
  %v70 = vld [vmem:[%s2 + $0x88] sm:$0xff]
  %v71 = vld [vmem:[%s2 + $0x90] sm:$0xff]
  %v72 = vld [vmem:[%s2 + $0x98] sm:$0xff]
  %v73 = vld [vmem:[%s2 + $0xa0] sm:$0xff]
  %v74 = vld [vmem:[%s2 + $0xa8] sm:$0xff]
  %v75 = vld [vmem:[%s2 + $0xb0] sm:$0xff]
  %v76 = vld [vmem:[%s2 + $0xb8] sm:$0xff]
  %v77 = vld [vmem:[%s2 + $0xc0] sm:$0xff]
  %v78 = vld [vmem:[%s2 + $0xc8] sm:$0xff]
  %v79 = vld [vmem:[%s2 + $0xd0] sm:$0xff]
  %v80 = vld [vmem:[%s2 + $0xd8] sm:$0xff]
  %v81 = vld [vmem:[%s2 + $0xe0] sm:$0xff]
  %v82 = vld [vmem:[%s2 + $0xe8] sm:$0xff]
  %v83 = vld [vmem:[%s2 + $0xf0] sm:$0xff]
  %v84 = vld [vmem:[%s2 + $0xf8] sm:$0xff]
  %v85 = vld [vmem:[%s2 + $0x100] sm:$0xff]
  %v86 = vld [vmem:[%s2 + $0x108] sm:$0xff]
  %v87 = vld [vmem:[%s2 + $0x110] sm:$0xff]
  %v88 = vld [vmem:[%s2 + $0x118] sm:$0xff]
  %v89 = vld [vmem:[%s2 + $0x120] sm:$0xff]
  %v90 = vld [vmem:[%s2 + $0x128] sm:$0xff]
  %v91 = vld [vmem:[%s2 + $0x130] sm:$0xff]
  %v92 = vld [vmem:[%s2 + $0x138] sm:$0xff]
  %v93 = vld [vmem:[%s2 + $0x140] sm:$0xff]
  %v94 = vld [vmem:[%s2 + $0x148] sm:$0xff]
  %v95 = vld [vmem:[%s2 + $0x150] sm:$0xff]
  %v96 = vld [vmem:[%s2 + $0x158] sm:$0xff]
  %v97 = vld [vmem:[%s2 + $0x160] sm:$0xff]
  %v98 = vld [vmem:[%s2 + $0x168] sm:$0xff]
  %v99 = vld [vmem:[%s2 + $0x170] sm:$0xff]
  %v100 = vld [vmem:[%s2 + $0x178] sm:$0xff]
  %v101 = vld [vmem:[%s2 + $0x180] sm:$0xff]
  %v102 = vld [vmem:[%s2 + $0x188] sm:$0xff]
  %v103 = vld [vmem:[%s2 + $0x190] sm:$0xff]
  %v104 = vld [vmem:[%s2 + $0x198] sm:$0xff]
  %v105 = vld [vmem:[%s2 + $0x1a0] sm:$0xff]
  %v106 = vld [vmem:[%s2 + $0x1a8] sm:$0xff]
  %v107 = vld [vmem:[%s2 + $0x1b0] sm:$0xff]
  %v108 = vld [vmem:[%s2 + $0x1b8] sm:$0xff]
  %v109 = vld [vmem:[%s2 + $0x1c0] sm:$0xff]
  %v110 = vld [vmem:[%s2 + $0x1c8] sm:$0xff]
  %v111 = vld [vmem:[%s2 + $0x1d0] sm:$0xff]
  %v112 = vld [vmem:[%s2 + $0x1d8] sm:$0xff]
  %v113 = vld [vmem:[%s2 + $0x1e0] sm:$0xff]
  %v114 = vld [vmem:[%s2 + $0x1e8] sm:$0xff]
  %v115 = vld [vmem:[%s2 + $0x1f0] sm:$0xff]
  %v116 = vld [vmem:[%s2 + $0x1f8] sm:$0xff]
  %v117 = vld [vmem:[%s2 + $0x200] sm:$0xff]
  %v118 = vld [vmem:[%s2 + $0x208] sm:$0xff]
  %v119 = vld [vmem:[%s2 + $0x210] sm:$0xff]
  %v120 = vld [vmem:[%s2 + $0x218] sm:$0xff]
  %v121 = vld [vmem:[%s2 + $0x220] sm:$0xff]
  %v122 = vld [vmem:[%s2 + $0x228] sm:$0xff]
  %v123 = vld [vmem:[%s2 + $0x230] sm:$0xff]
  %v124 = vld [vmem:[%s2 + $0x238] sm:$0xff]
  %v125 = vld [vmem:[%s2 + $0x240] sm:$0xff]
  %v126 = vld [vmem:[%s2 + $0x248] sm:$0xff]
  %v127 = vld [vmem:[%s2 + $0x250] sm:$0xff]
  %v128 = vld [vmem:[%s2 + $0x258] sm:$0xff]
  %v129 = vld [vmem:[%s2 + $0x260] sm:$0xff]
  %v130 = vld [vmem:[%s2 + $0x268] sm:$0xff]
  %v131 = vld [vmem:[%s2 + $0x270] sm:$0xff]
  %v132 = vld [vmem:[%s2 + $0x278] sm:$0xff]
  %v133 = vld [vmem:[%s2 + $0x280] sm:$0xff]
  %v134 = vld [vmem:[%s2 + $0x288] sm:$0xff]
  %v135 = vld [vmem:[%s2 + $0x290] sm:$0xff]
  %v136 = vld [vmem:[%s2 + $0x298] sm:$0xff]
  %v137 = vld [vmem:[%s2 + $0x2a0] sm:$0xff]
  %v138 = vld [vmem:[%s2 + $0x2a8] sm:$0xff]
  %v139 = vld [vmem:[%s2 + $0x2b0] sm:$0xff]
  %v140 = vld [vmem:[%s2 + $0x2b8] sm:$0xff]
  %v141 = vld [vmem:[%s2 + $0x2c0] sm:$0xff]
  %v142 = vld [vmem:[%s2 + $0x2c8] sm:$0xff]
  %v143 = vld [vmem:[%s2 + $0x2d0] sm:$0xff]
  %v144 = vld [vmem:[%s2 + $0x2d8] sm:$0xff]
  %v145 = vld [vmem:[%s2 + $0x2e0] sm:$0xff]
  %v146 = vld [vmem:[%s2 + $0x2e8] sm:$0xff]
  %v147 = vld [vmem:[%s2 + $0x2f0] sm:$0xff]
  %v148 = vld [vmem:[%s2 + $0x2f8] sm:$0xff]
  %v149 = vld [vmem:[%s2 + $0x300] sm:$0xff]
  %v150 = vld [vmem:[%s2 + $0x308] sm:$0xff]
  %v151 = vld [vmem:[%s2 + $0x310] sm:$0xff]
  %v152 = vld [vmem:[%s2 + $0x318] sm:$0xff]
  %v153 = vld [vmem:[%s2 + $0x320] sm:$0xff]
  %v154 = vld [vmem:[%s2 + $0x328] sm:$0xff]
  %v155 = vld [vmem:[%s2 + $0x330] sm:$0xff]
  %v156 = vld [vmem:[%s2 + $0x338] sm:$0xff]
  %v157 = vld [vmem:[%s2 + $0x340] sm:$0xff]
  %v158 = vld [vmem:[%s2 + $0x348] sm:$0xff]
  %v159 = vld [vmem:[%s2 + $0x350] sm:$0xff]
  %v160 = vld [vmem:[%s2 + $0x358] sm:$0xff]
  %v161 = vld [vmem:[%s2 + $0x360] sm:$0xff]
  %v162 = vld [vmem:[%s2 + $0x368] sm:$0xff]
  %v163 = vld [vmem:[%s2 + $0x370] sm:$0xff]
  %v164 = vld [vmem:[%s2 + $0x378] sm:$0xff]
  %v165 = vld [vmem:[%s2 + $0x380] sm:$0xff]
  %v166 = vld [vmem:[%s2 + $0x388] sm:$0xff]
  %v167 = vld [vmem:[%s2 + $0x390] sm:$0xff]
  %v168 = vld [vmem:[%s2 + $0x398] sm:$0xff]
  %v169 = vld [vmem:[%s2 + $0x3a0] sm:$0xff]
  %v170 = vld [vmem:[%s2 + $0x3a8] sm:$0xff]
  %v171 = vld [vmem:[%s2 + $0x3b0] sm:$0xff]
  %v172 = vld [vmem:[%s2 + $0x3b8] sm:$0xff]
  %v173 = vld [vmem:[%s2 + $0x3c0] sm:$0xff]
  %v174 = vld [vmem:[%s2 + $0x3c8] sm:$0xff]
  %v175 = vld [vmem:[%s2 + $0x3d0] sm:$0xff]
  %v176 = vld [vmem:[%s2 + $0x3d8] sm:$0xff]
  %v177 = vld [vmem:[%s2 + $0x3e0] sm:$0xff]
  %v178 = vld [vmem:[%s2 + $0x3e8] sm:$0xff]
  %v179 = vld [vmem:[%s2 + $0x3f0] sm:$0xff]
  %v180 = vld [vmem:[%s2 + $0x3f8] sm:$0xff]
  %v181 = vld [vmem:[%s3] sm:$0x3]
  %v183 = vlaneseq
  %v184 = vshrl.u32 %v183, 7
  %v185 = vsub.s32 0, %v184
  %v186 = vrot.slane %v181, %v185
  %v187 = vlaneseq
  %v188 = vshrl.u32 %v187, 7
  %v189 = vsub.s32 1, %v188
  %v190 = vrot.slane %v181, %v189
  %193 = vmatprep.subr.mxu0 %v84
  %194 = vmatpush1.msra.mxu0 %v83
  %195 = vmatprep.subr.mxu0 %v82
  %196 = vmatpush1.msra.mxu0 %v81
  %197 = vmatprep.subr.mxu0 %v80
  %198 = vmatpush1.msra.mxu0 %v79
  %199 = vmatprep.subr.mxu0 %v78
  %200 = vmatpush1.msra.mxu0 %v77
  %201 = vmatprep.subr.mxu0 %v76
  %202 = vmatpush1.msra.mxu0 %v75
  %203 = vmatprep.subr.mxu0 %v74
  %204 = vmatpush1.msra.mxu0 %v73
  %205 = vmatprep.subr.mxu0 %v72
  %206 = vmatpush1.msra.mxu0 %v71
  %207 = vmatprep.subr.mxu0 %v70
  %208 = vmatpush1.msra.mxu0 %v69
  %209 = vmatprep.subr.mxu0 %v68
  %210 = vmatpush1.msra.mxu0 %v67
  %211 = vmatprep.subr.mxu0 %v66
  %212 = vmatpush1.msra.mxu0 %v65
  %213 = vmatprep.subr.mxu0 %v64
  %214 = vmatpush1.msra.mxu0 %v63
  %215 = vmatprep.subr.mxu0 %v62
  %216 = vmatpush1.msra.mxu0 %v61
  %217 = vmatprep.subr.mxu0 %v60
  %218 = vmatpush1.msra.mxu0 %v59
  %219 = vmatprep.subr.mxu0 %v58
  %220 = vmatpush1.msra.mxu0 %v57
  %221 = vmatprep.subr.mxu0 %v56
  %222 = vmatpush1.msra.mxu0 %v55
  %223 = vmatprep.subr.mxu0 %v54
  %224 = vmatpush1.msra.mxu0 %v53
  %225 = vmatprep.subr.mxu0 %v116
  %226 = vmatpush2.msra.mxu0 %v115
  %227 = vmatprep.subr.mxu0 %v114
  %228 = vmatpush2.msra.mxu0 %v113
  %229 = vmatprep.subr.mxu0 %v112
  %230 = vmatpush2.msra.mxu0 %v111
  %231 = vmatprep.subr.mxu0 %v110
  %232 = vmatpush2.msra.mxu0 %v109
  %233 = vmatprep.subr.mxu0 %v108
  %234 = vmatpush2.msra.mxu0 %v107
  %235 = vmatprep.subr.mxu0 %v106
  %236 = vmatpush2.msra.mxu0 %v105
  %237 = vmatprep.subr.mxu0 %v104
  %238 = vmatpush2.msra.mxu0 %v103
  %239 = vmatprep.subr.mxu0 %v102
  %240 = vmatpush2.msra.mxu0 %v101
  %241 = vmatprep.subr.mxu0 %v100
  %242 = vmatpush2.msra.mxu0 %v99
  %243 = vmatprep.subr.mxu0 %v98
  %244 = vmatpush2.msra.mxu0 %v97
  %245 = vmatprep.subr.mxu0 %v96
  %246 = vmatpush2.msra.mxu0 %v95
  %247 = vmatprep.subr.mxu0 %v94
  %248 = vmatpush2.msra.mxu0 %v93
  %249 = vmatprep.subr.mxu0 %v92
  %250 = vmatpush2.msra.mxu0 %v91
  %251 = vmatprep.subr.mxu0 %v90
  %252 = vmatpush2.msra.mxu0 %v89
  %253 = vmatprep.subr.mxu0 %v88
  %254 = vmatpush2.msra.mxu0 %v87
  %255 = vmatprep.subr.mxu0 %v86
  %256 = vmatpush2.msra.mxu0 %v85
  %257 = vmatprep.mubr.f32.mxu0 %v50
  %258 = vmatmul.mubr.f32.gmra.mxu0 %v49
  %v259 = vpop.f32.mrf.mxu0
  %v260 = vadd.f32 %v186, %v259
  %v261 = vpop.f32.mrf.mxu0
  %v262 = vadd.f32 %v190, %v261
  %263 = vdwg.mxu0
  %264 = vmatprep.subr.mxu0 %v148
  %265 = vmatpush1.msra.mxu0 %v147
  %266 = vmatprep.subr.mxu0 %v146
  %267 = vmatpush1.msra.mxu0 %v145
  %268 = vmatprep.subr.mxu0 %v144
  %269 = vmatpush1.msra.mxu0 %v143
  %270 = vmatprep.subr.mxu0 %v142
  %271 = vmatpush1.msra.mxu0 %v141
  %272 = vmatprep.subr.mxu0 %v140
  %273 = vmatpush1.msra.mxu0 %v139
  %274 = vmatprep.subr.mxu0 %v138
  %275 = vmatpush1.msra.mxu0 %v137
  %276 = vmatprep.subr.mxu0 %v136
  %277 = vmatpush1.msra.mxu0 %v135
  %278 = vmatprep.subr.mxu0 %v134
  %279 = vmatpush1.msra.mxu0 %v133
  %280 = vmatprep.subr.mxu0 %v132
  %281 = vmatpush1.msra.mxu0 %v131
  %282 = vmatprep.subr.mxu0 %v130
  %283 = vmatpush1.msra.mxu0 %v129
  %284 = vmatprep.subr.mxu0 %v128
  %285 = vmatpush1.msra.mxu0 %v127
  %286 = vmatprep.subr.mxu0 %v126
  %287 = vmatpush1.msra.mxu0 %v125
  %288 = vmatprep.subr.mxu0 %v124
  %289 = vmatpush1.msra.mxu0 %v123
  %290 = vmatprep.subr.mxu0 %v122
  %291 = vmatpush1.msra.mxu0 %v121
  %292 = vmatprep.subr.mxu0 %v120
  %293 = vmatpush1.msra.mxu0 %v119
  %294 = vmatprep.subr.mxu0 %v118
  %295 = vmatpush1.msra.mxu0 %v117
  %296 = vmatprep.subr.mxu0 %v180
  %297 = vmatpush2.msra.mxu0 %v179
  %298 = vmatprep.subr.mxu0 %v178
  %299 = vmatpush2.msra.mxu0 %v177
  %300 = vmatprep.subr.mxu0 %v176
  %301 = vmatpush2.msra.mxu0 %v175
  %302 = vmatprep.subr.mxu0 %v174
  %303 = vmatpush2.msra.mxu0 %v173
  %304 = vmatprep.subr.mxu0 %v172
  %305 = vmatpush2.msra.mxu0 %v171
  %306 = vmatprep.subr.mxu0 %v170
  %307 = vmatpush2.msra.mxu0 %v169
  %308 = vmatprep.subr.mxu0 %v168
  %309 = vmatpush2.msra.mxu0 %v167
  %310 = vmatprep.subr.mxu0 %v166
  %311 = vmatpush2.msra.mxu0 %v165
  %312 = vmatprep.subr.mxu0 %v164
  %313 = vmatpush2.msra.mxu0 %v163
  %314 = vmatprep.subr.mxu0 %v162
  %315 = vmatpush2.msra.mxu0 %v161
  %316 = vmatprep.subr.mxu0 %v160
  %317 = vmatpush2.msra.mxu0 %v159
  %318 = vmatprep.subr.mxu0 %v158
  %319 = vmatpush2.msra.mxu0 %v157
  %320 = vmatprep.subr.mxu0 %v156
  %321 = vmatpush2.msra.mxu0 %v155
  %322 = vmatprep.subr.mxu0 %v154
  %323 = vmatpush2.msra.mxu0 %v153
  %324 = vmatprep.subr.mxu0 %v152
  %325 = vmatpush2.msra.mxu0 %v151
  %326 = vmatprep.subr.mxu0 %v150
  %327 = vmatpush2.msra.mxu0 %v149
  %328 = vmatprep.mubr.f32.mxu0 %v52
  %329 = vmatmul.mubr.f32.gmra.mxu0 %v51
  %v330 = vpop.f32.mrf.mxu0
  %v331 = vadd.f32 %v260, %v330
  %v332 = vpop.f32.mrf.mxu0
  %v333 = vadd.f32 %v262, %v332
  %334 = vdwg.mxu0
  %v335 = vld [vmem:[%s4] sm:$0xff]
  %v336 = vld [vmem:[%s4 + $0x8] sm:$0xff]
  %v337 = vld [vmem:[%s4 + $0x10] sm:$0xff]
  %v338 = vld [vmem:[%s4 + $0x18] sm:$0xff]
  %v339 = vld [vmem:[%s4 + $0x20] sm:$0xff]
  %v340 = vld [vmem:[%s4 + $0x28] sm:$0xff]
  %v341 = vld [vmem:[%s4 + $0x30] sm:$0xff]
  %v342 = vld [vmem:[%s4 + $0x38] sm:$0xff]
  %v343 = vld [vmem:[%s4 + $0x40] sm:$0xff]
  %v344 = vld [vmem:[%s4 + $0x48] sm:$0xff]
  %v345 = vld [vmem:[%s4 + $0x50] sm:$0xff]
  %v346 = vld [vmem:[%s4 + $0x58] sm:$0xff]
  %v347 = vld [vmem:[%s4 + $0x60] sm:$0xff]
  %v348 = vld [vmem:[%s4 + $0x68] sm:$0xff]
  %v349 = vld [vmem:[%s4 + $0x70] sm:$0xff]
  %v350 = vld [vmem:[%s4 + $0x78] sm:$0xff]
  %v351 = vld [vmem:[%s4 + $0x80] sm:$0xff]
  %v352 = vld [vmem:[%s4 + $0x88] sm:$0xff]
  %v353 = vld [vmem:[%s4 + $0x90] sm:$0xff]
  %v354 = vld [vmem:[%s4 + $0x98] sm:$0xff]
  %v355 = vld [vmem:[%s4 + $0xa0] sm:$0xff]
  %v356 = vld [vmem:[%s4 + $0xa8] sm:$0xff]
  %v357 = vld [vmem:[%s4 + $0xb0] sm:$0xff]
  %v358 = vld [vmem:[%s4 + $0xb8] sm:$0xff]
  %v359 = vld [vmem:[%s4 + $0xc0] sm:$0xff]
  %v360 = vld [vmem:[%s4 + $0xc8] sm:$0xff]
  %v361 = vld [vmem:[%s4 + $0xd0] sm:$0xff]
  %v362 = vld [vmem:[%s4 + $0xd8] sm:$0xff]
  %v363 = vld [vmem:[%s4 + $0xe0] sm:$0xff]
  %v364 = vld [vmem:[%s4 + $0xe8] sm:$0xff]
  %v365 = vld [vmem:[%s4 + $0xf0] sm:$0xff]
  %v366 = vld [vmem:[%s4 + $0xf8] sm:$0xff]
  %v367 = vld [vmem:[%s4 + $0x100] sm:$0xff]
  %v368 = vld [vmem:[%s4 + $0x108] sm:$0xff]
  %v369 = vld [vmem:[%s4 + $0x110] sm:$0xff]
  %v370 = vld [vmem:[%s4 + $0x118] sm:$0xff]
  %v371 = vld [vmem:[%s4 + $0x120] sm:$0xff]
  %v372 = vld [vmem:[%s4 + $0x128] sm:$0xff]
  %v373 = vld [vmem:[%s4 + $0x130] sm:$0xff]
  %v374 = vld [vmem:[%s4 + $0x138] sm:$0xff]
  %v375 = vld [vmem:[%s4 + $0x140] sm:$0xff]
  %v376 = vld [vmem:[%s4 + $0x148] sm:$0xff]
  %v377 = vld [vmem:[%s4 + $0x150] sm:$0xff]
  %v378 = vld [vmem:[%s4 + $0x158] sm:$0xff]
  %v379 = vld [vmem:[%s4 + $0x160] sm:$0xff]
  %v380 = vld [vmem:[%s4 + $0x168] sm:$0xff]
  %v381 = vld [vmem:[%s4 + $0x170] sm:$0xff]
  %v382 = vld [vmem:[%s4 + $0x178] sm:$0xff]
  %v383 = vld [vmem:[%s4 + $0x180] sm:$0xff]
  %v384 = vld [vmem:[%s4 + $0x188] sm:$0xff]
  %v385 = vld [vmem:[%s4 + $0x190] sm:$0xff]
  %v386 = vld [vmem:[%s4 + $0x198] sm:$0xff]
  %v387 = vld [vmem:[%s4 + $0x1a0] sm:$0xff]
  %v388 = vld [vmem:[%s4 + $0x1a8] sm:$0xff]
  %v389 = vld [vmem:[%s4 + $0x1b0] sm:$0xff]
  %v390 = vld [vmem:[%s4 + $0x1b8] sm:$0xff]
  %v391 = vld [vmem:[%s4 + $0x1c0] sm:$0xff]
  %v392 = vld [vmem:[%s4 + $0x1c8] sm:$0xff]
  %v393 = vld [vmem:[%s4 + $0x1d0] sm:$0xff]
  %v394 = vld [vmem:[%s4 + $0x1d8] sm:$0xff]
  %v395 = vld [vmem:[%s4 + $0x1e0] sm:$0xff]
  %v396 = vld [vmem:[%s4 + $0x1e8] sm:$0xff]
  %v397 = vld [vmem:[%s4 + $0x1f0] sm:$0xff]
  %v398 = vld [vmem:[%s4 + $0x1f8] sm:$0xff]
  %v399 = vld [vmem:[%s5] sm:$0x3]
  %v401 = vlaneseq
  %v402 = vshrl.u32 %v401, 7
  %v403 = vsub.s32 0, %v402
  %v404 = vrot.slane %v399, %v403
  %v405 = vlaneseq
  %v406 = vshrl.u32 %v405, 7
  %v407 = vsub.s32 1, %v406
  %v408 = vrot.slane %v399, %v407
  %411 = vmatprep.subr.mxu0 %v366
  %412 = vmatpush1.msra.mxu0 %v365
  %413 = vmatprep.subr.mxu0 %v364
  %414 = vmatpush1.msra.mxu0 %v363
  %415 = vmatprep.subr.mxu0 %v362
  %416 = vmatpush1.msra.mxu0 %v361
  %417 = vmatprep.subr.mxu0 %v360
  %418 = vmatpush1.msra.mxu0 %v359
  %419 = vmatprep.subr.mxu0 %v358
  %420 = vmatpush1.msra.mxu0 %v357
  %421 = vmatprep.subr.mxu0 %v356
  %422 = vmatpush1.msra.mxu0 %v355
  %423 = vmatprep.subr.mxu0 %v354
  %424 = vmatpush1.msra.mxu0 %v353
  %425 = vmatprep.subr.mxu0 %v352
  %426 = vmatpush1.msra.mxu0 %v351
  %427 = vmatprep.subr.mxu0 %v350
  %428 = vmatpush1.msra.mxu0 %v349
  %429 = vmatprep.subr.mxu0 %v348
  %430 = vmatpush1.msra.mxu0 %v347
  %431 = vmatprep.subr.mxu0 %v346
  %432 = vmatpush1.msra.mxu0 %v345
  %433 = vmatprep.subr.mxu0 %v344
  %434 = vmatpush1.msra.mxu0 %v343
  %435 = vmatprep.subr.mxu0 %v342
  %436 = vmatpush1.msra.mxu0 %v341
  %437 = vmatprep.subr.mxu0 %v340
  %438 = vmatpush1.msra.mxu0 %v339
  %439 = vmatprep.subr.mxu0 %v338
  %440 = vmatpush1.msra.mxu0 %v337
  %441 = vmatprep.subr.mxu0 %v336
  %442 = vmatpush1.msra.mxu0 %v335
  %443 = vmatprep.subr.mxu0 %v398
  %444 = vmatpush2.msra.mxu0 %v397
  %445 = vmatprep.subr.mxu0 %v396
  %446 = vmatpush2.msra.mxu0 %v395
  %447 = vmatprep.subr.mxu0 %v394
  %448 = vmatpush2.msra.mxu0 %v393
  %449 = vmatprep.subr.mxu0 %v392
  %450 = vmatpush2.msra.mxu0 %v391
  %451 = vmatprep.subr.mxu0 %v390
  %452 = vmatpush2.msra.mxu0 %v389
  %453 = vmatprep.subr.mxu0 %v388
  %454 = vmatpush2.msra.mxu0 %v387
  %455 = vmatprep.subr.mxu0 %v386
  %456 = vmatpush2.msra.mxu0 %v385
  %457 = vmatprep.subr.mxu0 %v384
  %458 = vmatpush2.msra.mxu0 %v383
  %459 = vmatprep.subr.mxu0 %v382
  %460 = vmatpush2.msra.mxu0 %v381
  %461 = vmatprep.subr.mxu0 %v380
  %462 = vmatpush2.msra.mxu0 %v379
  %463 = vmatprep.subr.mxu0 %v378
  %464 = vmatpush2.msra.mxu0 %v377
  %465 = vmatprep.subr.mxu0 %v376
  %466 = vmatpush2.msra.mxu0 %v375
  %467 = vmatprep.subr.mxu0 %v374
  %468 = vmatpush2.msra.mxu0 %v373
  %469 = vmatprep.subr.mxu0 %v372
  %470 = vmatpush2.msra.mxu0 %v371
  %471 = vmatprep.subr.mxu0 %v370
  %472 = vmatpush2.msra.mxu0 %v369
  %473 = vmatprep.subr.mxu0 %v368
  %474 = vmatpush2.msra.mxu0 %v367
  %475 = vmatprep.mubr.f32.mxu0 %v333
  %476 = vmatmul.mubr.f32.gmra.mxu0 %v331
  %v477 = vpop.f32.mrf.mxu0
  %v478 = vadd.f32 %v404, %v477
  %v479 = vpop.f32.mrf.mxu0
  %v480 = vadd.f32 %v408, %v479
  %481 = vdwg.mxu0
  %v482 = vld [vmem:[%s6] sm:$0xff]
  %v483 = vld [vmem:[%s6 + $0x8] sm:$0xff]
  %v484 = vld [vmem:[%s6 + $0x10] sm:$0xff]
  %v485 = vld [vmem:[%s6 + $0x18] sm:$0xff]
  %v486 = vld [vmem:[%s6 + $0x20] sm:$0xff]
  %v487 = vld [vmem:[%s6 + $0x28] sm:$0xff]
  %v488 = vld [vmem:[%s6 + $0x30] sm:$0xff]
  %v489 = vld [vmem:[%s6 + $0x38] sm:$0xff]
  %v490 = vld [vmem:[%s6 + $0x40] sm:$0xff]
  %v491 = vld [vmem:[%s6 + $0x48] sm:$0xff]
  %v492 = vld [vmem:[%s6 + $0x50] sm:$0xff]
  %v493 = vld [vmem:[%s6 + $0x58] sm:$0xff]
  %v494 = vld [vmem:[%s6 + $0x60] sm:$0xff]
  %v495 = vld [vmem:[%s6 + $0x68] sm:$0xff]
  %v496 = vld [vmem:[%s6 + $0x70] sm:$0xff]
  %v497 = vld [vmem:[%s6 + $0x78] sm:$0xff]
  %v498 = vld [vmem:[%s6 + $0x80] sm:$0xff]
  %v499 = vld [vmem:[%s6 + $0x88] sm:$0xff]
  %v500 = vld [vmem:[%s6 + $0x90] sm:$0xff]
  %v501 = vld [vmem:[%s6 + $0x98] sm:$0xff]
  %v502 = vld [vmem:[%s6 + $0xa0] sm:$0xff]
  %v503 = vld [vmem:[%s6 + $0xa8] sm:$0xff]
  %v504 = vld [vmem:[%s6 + $0xb0] sm:$0xff]
  %v505 = vld [vmem:[%s6 + $0xb8] sm:$0xff]
  %v506 = vld [vmem:[%s6 + $0xc0] sm:$0xff]
  %v507 = vld [vmem:[%s6 + $0xc8] sm:$0xff]
  %v508 = vld [vmem:[%s6 + $0xd0] sm:$0xff]
  %v509 = vld [vmem:[%s6 + $0xd8] sm:$0xff]
  %v510 = vld [vmem:[%s6 + $0xe0] sm:$0xff]
  %v511 = vld [vmem:[%s6 + $0xe8] sm:$0xff]
  %v512 = vld [vmem:[%s6 + $0xf0] sm:$0xff]
  %v513 = vld [vmem:[%s6 + $0xf8] sm:$0xff]
  %v514 = vld [vmem:[%s7] sm:$0x1]
  %v516 = vlaneseq
  %v517 = vshrl.u32 %v516, 7
  %v518 = vsub.s32 0, %v517
  %v519 = vrot.slane %v514, %v518
  %521 = vmatprep.subr.mxu0 0.0
  %522 = vmatpush1.msra.mxu0 %v497
  %523 = vmatprep.subr.mxu0 0.0
  %524 = vmatpush1.msra.mxu0 %v496
  %525 = vmatprep.subr.mxu0 0.0
  %526 = vmatpush1.msra.mxu0 %v495
  %527 = vmatprep.subr.mxu0 0.0
  %528 = vmatpush1.msra.mxu0 %v494
  %529 = vmatprep.subr.mxu0 0.0
  %530 = vmatpush1.msra.mxu0 %v493
  %531 = vmatprep.subr.mxu0 0.0
  %532 = vmatpush1.msra.mxu0 %v492
  %533 = vmatprep.subr.mxu0 0.0
  %534 = vmatpush1.msra.mxu0 %v491
  %535 = vmatprep.subr.mxu0 0.0
  %536 = vmatpush1.msra.mxu0 %v490
  %537 = vmatprep.subr.mxu0 0.0
  %538 = vmatpush1.msra.mxu0 %v489
  %539 = vmatprep.subr.mxu0 0.0
  %540 = vmatpush1.msra.mxu0 %v488
  %541 = vmatprep.subr.mxu0 0.0
  %542 = vmatpush1.msra.mxu0 %v487
  %543 = vmatprep.subr.mxu0 0.0
  %544 = vmatpush1.msra.mxu0 %v486
  %545 = vmatprep.subr.mxu0 0.0
  %546 = vmatpush1.msra.mxu0 %v485
  %547 = vmatprep.subr.mxu0 0.0
  %548 = vmatpush1.msra.mxu0 %v484
  %549 = vmatprep.subr.mxu0 0.0
  %550 = vmatpush1.msra.mxu0 %v483
  %551 = vmatprep.subr.mxu0 0.0
  %552 = vmatpush1.msra.mxu0 %v482
  %553 = vmatprep.subr.mxu0 0.0
  %554 = vmatpush2.msra.mxu0 %v513
  %555 = vmatprep.subr.mxu0 0.0
  %556 = vmatpush2.msra.mxu0 %v512
  %557 = vmatprep.subr.mxu0 0.0
  %558 = vmatpush2.msra.mxu0 %v511
  %559 = vmatprep.subr.mxu0 0.0
  %560 = vmatpush2.msra.mxu0 %v510
  %561 = vmatprep.subr.mxu0 0.0
  %562 = vmatpush2.msra.mxu0 %v509
  %563 = vmatprep.subr.mxu0 0.0
  %564 = vmatpush2.msra.mxu0 %v508
  %565 = vmatprep.subr.mxu0 0.0
  %566 = vmatpush2.msra.mxu0 %v507
  %567 = vmatprep.subr.mxu0 0.0
  %568 = vmatpush2.msra.mxu0 %v506
  %569 = vmatprep.subr.mxu0 0.0
  %570 = vmatpush2.msra.mxu0 %v505
  %571 = vmatprep.subr.mxu0 0.0
  %572 = vmatpush2.msra.mxu0 %v504
  %573 = vmatprep.subr.mxu0 0.0
  %574 = vmatpush2.msra.mxu0 %v503
  %575 = vmatprep.subr.mxu0 0.0
  %576 = vmatpush2.msra.mxu0 %v502
  %577 = vmatprep.subr.mxu0 0.0
  %578 = vmatpush2.msra.mxu0 %v501
  %579 = vmatprep.subr.mxu0 0.0
  %580 = vmatpush2.msra.mxu0 %v500
  %581 = vmatprep.subr.mxu0 0.0
  %582 = vmatpush2.msra.mxu0 %v499
  %583 = vmatprep.subr.mxu0 0.0
  %584 = vmatpush2.msra.mxu0 %v498
  %585 = vmatprep.mubr.f32.mxu0 %v480
  %586 = vmatmul.mubr.f32.gmra.mxu0 %v478
  %v587 = vpop.f32.mrf.mxu0
  %v588 = vadd.f32 %v519, %v587
  %v589 = vpop.f32.mrf.mxu0
  %590 = vdwg.mxu0
  %vm591 = vcmask 523264
  %592 = vst.msk [vmem:[%s14] sm:$0xff] %vm591, %v588
  %v593 = vmul.f32 %v588, 0.5
  %v594 = vmul.f32 %v593, 1.442695
  %v595 = vpow.pop %v594
  %v596 = vld [vmem:[%s1] sm:$0xff]
  %598 = vrot.lane.b32.xlu0 %v596, 32
  %v599 = vpop.permute.xlu0 %598
  %v601 = vmul.f32 %v595, %v599
  %603 = vrot.lane.b32.xlu0 %v601, 96
  %v604 = vpop.permute.xlu0 %603
  %v606 = vadd.f32 %v588, %v604
  %v607 = vld [vmem:[%s8] sm:$0xff]
  %v608 = vld [vmem:[%s8 + $0x8] sm:$0xff]
  %v609 = vld [vmem:[%s8 + $0x10] sm:$0xff]
  %v610 = vld [vmem:[%s8 + $0x18] sm:$0xff]
  %v611 = vld [vmem:[%s8 + $0x20] sm:$0xff]
  %v612 = vld [vmem:[%s8 + $0x28] sm:$0xff]
  %v613 = vld [vmem:[%s8 + $0x30] sm:$0xff]
  %v614 = vld [vmem:[%s8 + $0x38] sm:$0xff]
  %v615 = vld [vmem:[%s9] sm:$0x3]
  %v617 = vlaneseq
  %v618 = vshrl.u32 %v617, 7
  %v619 = vsub.s32 0, %v618
  %v620 = vrot.slane %v615, %v619
  %v621 = vlaneseq
  %v622 = vshrl.u32 %v621, 7
  %v623 = vsub.s32 1, %v622
  %v624 = vrot.slane %v615, %v623
  %vm627 = vcmask 261120
  %v629 = vsel %vm627, %v606, 0
  %631 = vmatprep.subr.mxu0 0.0
  %632 = vmatpush1.msra.mxu0 0.0
  %633 = vmatprep.subr.mxu0 0.0
  %634 = vmatpush1.msra.mxu0 0.0
  %635 = vmatprep.subr.mxu0 0.0
  %636 = vmatpush1.msra.mxu0 0.0
  %637 = vmatprep.subr.mxu0 0.0
  %638 = vmatpush1.msra.mxu0 0.0
  %639 = vmatprep.subr.mxu0 0.0
  %640 = vmatpush1.msra.mxu0 0.0
  %641 = vmatprep.subr.mxu0 0.0
  %642 = vmatpush1.msra.mxu0 0.0
  %643 = vmatprep.subr.mxu0 0.0
  %644 = vmatpush1.msra.mxu0 0.0
  %645 = vmatprep.subr.mxu0 0.0
  %646 = vmatpush1.msra.mxu0 0.0
  %647 = vmatprep.subr.mxu0 0.0
  %648 = vmatpush1.msra.mxu0 0.0
  %649 = vmatprep.subr.mxu0 0.0
  %650 = vmatpush1.msra.mxu0 0.0
  %651 = vmatprep.subr.mxu0 0.0
  %652 = vmatpush1.msra.mxu0 0.0
  %653 = vmatprep.subr.mxu0 0.0
  %654 = vmatpush1.msra.mxu0 0.0
  %655 = vmatprep.subr.mxu0 %v614
  %656 = vmatpush1.msra.mxu0 %v613
  %657 = vmatprep.subr.mxu0 %v612
  %658 = vmatpush1.msra.mxu0 %v611
  %659 = vmatprep.subr.mxu0 %v610
  %660 = vmatpush1.msra.mxu0 %v609
  %661 = vmatprep.subr.mxu0 %v608
  %662 = vmatpush1.msra.mxu0 %v607
  %663 = vmatprep.subr.mxu0 0.0
  %664 = vmatpush2.msra.mxu0 0.0
  %665 = vmatprep.subr.mxu0 0.0
  %666 = vmatpush2.msra.mxu0 0.0
  %667 = vmatprep.subr.mxu0 0.0
  %668 = vmatpush2.msra.mxu0 0.0
  %669 = vmatprep.subr.mxu0 0.0
  %670 = vmatpush2.msra.mxu0 0.0
  %671 = vmatprep.subr.mxu0 0.0
  %672 = vmatpush2.msra.mxu0 0.0
  %673 = vmatprep.subr.mxu0 0.0
  %674 = vmatpush2.msra.mxu0 0.0
  %675 = vmatprep.subr.mxu0 0.0
  %676 = vmatpush2.msra.mxu0 0.0
  %677 = vmatprep.subr.mxu0 0.0
  %678 = vmatpush2.msra.mxu0 0.0
  %679 = vmatprep.subr.mxu0 0.0
  %680 = vmatpush2.msra.mxu0 0.0
  %681 = vmatprep.subr.mxu0 0.0
  %682 = vmatpush2.msra.mxu0 0.0
  %683 = vmatprep.subr.mxu0 0.0
  %684 = vmatpush2.msra.mxu0 0.0
  %685 = vmatprep.subr.mxu0 0.0
  %686 = vmatpush2.msra.mxu0 0.0
  %687 = vmatprep.subr.mxu0 0.0
  %688 = vmatpush2.msra.mxu0 0.0
  %689 = vmatprep.subr.mxu0 0.0
  %690 = vmatpush2.msra.mxu0 0.0
  %691 = vmatprep.subr.mxu0 0.0
  %692 = vmatpush2.msra.mxu0 0.0
  %693 = vmatprep.subr.mxu0 0.0
  %694 = vmatpush2.msra.mxu0 0.0
  %695 = vmatprep.mubr.f32.mxu0 0.0
  %696 = vmatmul.mubr.f32.gmra.mxu0 %v629
  %v697 = vpop.f32.mrf.mxu0
  %v698 = vadd.f32 %v620, %v697
  %v699 = vpop.f32.mrf.mxu0
  %v700 = vadd.f32 %v624, %v699
  %701 = vdwg.mxu0
  %v702 = vld [vmem:[%s10] sm:$0xff]
  %v703 = vld [vmem:[%s10 + $0x8] sm:$0xff]
  %v704 = vld [vmem:[%s10 + $0x10] sm:$0xff]
  %v705 = vld [vmem:[%s10 + $0x18] sm:$0xff]
  %v706 = vld [vmem:[%s10 + $0x20] sm:$0xff]
  %v707 = vld [vmem:[%s10 + $0x28] sm:$0xff]
  %v708 = vld [vmem:[%s10 + $0x30] sm:$0xff]
  %v709 = vld [vmem:[%s10 + $0x38] sm:$0xff]
  %v710 = vld [vmem:[%s10 + $0x40] sm:$0xff]
  %v711 = vld [vmem:[%s10 + $0x48] sm:$0xff]
  %v712 = vld [vmem:[%s10 + $0x50] sm:$0xff]
  %v713 = vld [vmem:[%s10 + $0x58] sm:$0xff]
  %v714 = vld [vmem:[%s10 + $0x60] sm:$0xff]
  %v715 = vld [vmem:[%s10 + $0x68] sm:$0xff]
  %v716 = vld [vmem:[%s10 + $0x70] sm:$0xff]
  %v717 = vld [vmem:[%s10 + $0x78] sm:$0xff]
  %v718 = vld [vmem:[%s10 + $0x80] sm:$0xff]
  %v719 = vld [vmem:[%s10 + $0x88] sm:$0xff]
  %v720 = vld [vmem:[%s10 + $0x90] sm:$0xff]
  %v721 = vld [vmem:[%s10 + $0x98] sm:$0xff]
  %v722 = vld [vmem:[%s10 + $0xa0] sm:$0xff]
  %v723 = vld [vmem:[%s10 + $0xa8] sm:$0xff]
  %v724 = vld [vmem:[%s10 + $0xb0] sm:$0xff]
  %v725 = vld [vmem:[%s10 + $0xb8] sm:$0xff]
  %v726 = vld [vmem:[%s10 + $0xc0] sm:$0xff]
  %v727 = vld [vmem:[%s10 + $0xc8] sm:$0xff]
  %v728 = vld [vmem:[%s10 + $0xd0] sm:$0xff]
  %v729 = vld [vmem:[%s10 + $0xd8] sm:$0xff]
  %v730 = vld [vmem:[%s10 + $0xe0] sm:$0xff]
  %v731 = vld [vmem:[%s10 + $0xe8] sm:$0xff]
  %v732 = vld [vmem:[%s10 + $0xf0] sm:$0xff]
  %v733 = vld [vmem:[%s10 + $0xf8] sm:$0xff]
  %v734 = vld [vmem:[%s10 + $0x100] sm:$0xff]
  %v735 = vld [vmem:[%s10 + $0x108] sm:$0xff]
  %v736 = vld [vmem:[%s10 + $0x110] sm:$0xff]
  %v737 = vld [vmem:[%s10 + $0x118] sm:$0xff]
  %v738 = vld [vmem:[%s10 + $0x120] sm:$0xff]
  %v739 = vld [vmem:[%s10 + $0x128] sm:$0xff]
  %v740 = vld [vmem:[%s10 + $0x130] sm:$0xff]
  %v741 = vld [vmem:[%s10 + $0x138] sm:$0xff]
  %v742 = vld [vmem:[%s10 + $0x140] sm:$0xff]
  %v743 = vld [vmem:[%s10 + $0x148] sm:$0xff]
  %v744 = vld [vmem:[%s10 + $0x150] sm:$0xff]
  %v745 = vld [vmem:[%s10 + $0x158] sm:$0xff]
  %v746 = vld [vmem:[%s10 + $0x160] sm:$0xff]
  %v747 = vld [vmem:[%s10 + $0x168] sm:$0xff]
  %v748 = vld [vmem:[%s10 + $0x170] sm:$0xff]
  %v749 = vld [vmem:[%s10 + $0x178] sm:$0xff]
  %v750 = vld [vmem:[%s10 + $0x180] sm:$0xff]
  %v751 = vld [vmem:[%s10 + $0x188] sm:$0xff]
  %v752 = vld [vmem:[%s10 + $0x190] sm:$0xff]
  %v753 = vld [vmem:[%s10 + $0x198] sm:$0xff]
  %v754 = vld [vmem:[%s10 + $0x1a0] sm:$0xff]
  %v755 = vld [vmem:[%s10 + $0x1a8] sm:$0xff]
  %v756 = vld [vmem:[%s10 + $0x1b0] sm:$0xff]
  %v757 = vld [vmem:[%s10 + $0x1b8] sm:$0xff]
  %v758 = vld [vmem:[%s10 + $0x1c0] sm:$0xff]
  %v759 = vld [vmem:[%s10 + $0x1c8] sm:$0xff]
  %v760 = vld [vmem:[%s10 + $0x1d0] sm:$0xff]
  %v761 = vld [vmem:[%s10 + $0x1d8] sm:$0xff]
  %v762 = vld [vmem:[%s10 + $0x1e0] sm:$0xff]
  %v763 = vld [vmem:[%s10 + $0x1e8] sm:$0xff]
  %v764 = vld [vmem:[%s10 + $0x1f0] sm:$0xff]
  %v765 = vld [vmem:[%s10 + $0x1f8] sm:$0xff]
  %v766 = vld [vmem:[%s11] sm:$0x3]
  %v768 = vlaneseq
  %v769 = vshrl.u32 %v768, 7
  %v770 = vsub.s32 0, %v769
  %v771 = vrot.slane %v766, %v770
  %v772 = vlaneseq
  %v773 = vshrl.u32 %v772, 7
  %v774 = vsub.s32 1, %v773
  %v775 = vrot.slane %v766, %v774
  %778 = vmatprep.subr.mxu0 %v733
  %779 = vmatpush1.msra.mxu0 %v732
  %780 = vmatprep.subr.mxu0 %v731
  %781 = vmatpush1.msra.mxu0 %v730
  %782 = vmatprep.subr.mxu0 %v729
  %783 = vmatpush1.msra.mxu0 %v728
  %784 = vmatprep.subr.mxu0 %v727
  %785 = vmatpush1.msra.mxu0 %v726
  %786 = vmatprep.subr.mxu0 %v725
  %787 = vmatpush1.msra.mxu0 %v724
  %788 = vmatprep.subr.mxu0 %v723
  %789 = vmatpush1.msra.mxu0 %v722
  %790 = vmatprep.subr.mxu0 %v721
  %791 = vmatpush1.msra.mxu0 %v720
  %792 = vmatprep.subr.mxu0 %v719
  %793 = vmatpush1.msra.mxu0 %v718
  %794 = vmatprep.subr.mxu0 %v717
  %795 = vmatpush1.msra.mxu0 %v716
  %796 = vmatprep.subr.mxu0 %v715
  %797 = vmatpush1.msra.mxu0 %v714
  %798 = vmatprep.subr.mxu0 %v713
  %799 = vmatpush1.msra.mxu0 %v712
  %800 = vmatprep.subr.mxu0 %v711
  %801 = vmatpush1.msra.mxu0 %v710
  %802 = vmatprep.subr.mxu0 %v709
  %803 = vmatpush1.msra.mxu0 %v708
  %804 = vmatprep.subr.mxu0 %v707
  %805 = vmatpush1.msra.mxu0 %v706
  %806 = vmatprep.subr.mxu0 %v705
  %807 = vmatpush1.msra.mxu0 %v704
  %808 = vmatprep.subr.mxu0 %v703
  %809 = vmatpush1.msra.mxu0 %v702
  %810 = vmatprep.subr.mxu0 %v765
  %811 = vmatpush2.msra.mxu0 %v764
  %812 = vmatprep.subr.mxu0 %v763
  %813 = vmatpush2.msra.mxu0 %v762
  %814 = vmatprep.subr.mxu0 %v761
  %815 = vmatpush2.msra.mxu0 %v760
  %816 = vmatprep.subr.mxu0 %v759
  %817 = vmatpush2.msra.mxu0 %v758
  %818 = vmatprep.subr.mxu0 %v757
  %819 = vmatpush2.msra.mxu0 %v756
  %820 = vmatprep.subr.mxu0 %v755
  %821 = vmatpush2.msra.mxu0 %v754
  %822 = vmatprep.subr.mxu0 %v753
  %823 = vmatpush2.msra.mxu0 %v752
  %824 = vmatprep.subr.mxu0 %v751
  %825 = vmatpush2.msra.mxu0 %v750
  %826 = vmatprep.subr.mxu0 %v749
  %827 = vmatpush2.msra.mxu0 %v748
  %828 = vmatprep.subr.mxu0 %v747
  %829 = vmatpush2.msra.mxu0 %v746
  %830 = vmatprep.subr.mxu0 %v745
  %831 = vmatpush2.msra.mxu0 %v744
  %832 = vmatprep.subr.mxu0 %v743
  %833 = vmatpush2.msra.mxu0 %v742
  %834 = vmatprep.subr.mxu0 %v741
  %835 = vmatpush2.msra.mxu0 %v740
  %836 = vmatprep.subr.mxu0 %v739
  %837 = vmatpush2.msra.mxu0 %v738
  %838 = vmatprep.subr.mxu0 %v737
  %839 = vmatpush2.msra.mxu0 %v736
  %840 = vmatprep.subr.mxu0 %v735
  %841 = vmatpush2.msra.mxu0 %v734
  %842 = vmatprep.mubr.f32.mxu0 %v700
  %843 = vmatmul.mubr.f32.gmra.mxu0 %v698
  %v844 = vpop.f32.mrf.mxu0
  %v845 = vadd.f32 %v771, %v844
  %v846 = vpop.f32.mrf.mxu0
  %v847 = vadd.f32 %v775, %v846
  %848 = vdwg.mxu0
  %v849 = vld [vmem:[%s12] sm:$0xff]
  %v850 = vld [vmem:[%s12 + $0x8] sm:$0xff]
  %v851 = vld [vmem:[%s12 + $0x10] sm:$0xff]
  %v852 = vld [vmem:[%s12 + $0x18] sm:$0xff]
  %v853 = vld [vmem:[%s12 + $0x20] sm:$0xff]
  %v854 = vld [vmem:[%s12 + $0x28] sm:$0xff]
  %v855 = vld [vmem:[%s12 + $0x30] sm:$0xff]
  %v856 = vld [vmem:[%s12 + $0x38] sm:$0xff]
  %v857 = vld [vmem:[%s12 + $0x40] sm:$0xff]
  %v858 = vld [vmem:[%s12 + $0x48] sm:$0xff]
  %v859 = vld [vmem:[%s12 + $0x50] sm:$0xff]
  %v860 = vld [vmem:[%s12 + $0x58] sm:$0xff]
  %v861 = vld [vmem:[%s12 + $0x60] sm:$0xff]
  %v862 = vld [vmem:[%s12 + $0x68] sm:$0xff]
  %v863 = vld [vmem:[%s12 + $0x70] sm:$0xff]
  %v864 = vld [vmem:[%s12 + $0x78] sm:$0xff]
  %v865 = vld [vmem:[%s12 + $0x80] sm:$0xff]
  %v866 = vld [vmem:[%s12 + $0x88] sm:$0xff]
  %v867 = vld [vmem:[%s12 + $0x90] sm:$0xff]
  %v868 = vld [vmem:[%s12 + $0x98] sm:$0xff]
  %v869 = vld [vmem:[%s12 + $0xa0] sm:$0xff]
  %v870 = vld [vmem:[%s12 + $0xa8] sm:$0xff]
  %v871 = vld [vmem:[%s12 + $0xb0] sm:$0xff]
  %v872 = vld [vmem:[%s12 + $0xb8] sm:$0xff]
  %v873 = vld [vmem:[%s12 + $0xc0] sm:$0xff]
  %v874 = vld [vmem:[%s12 + $0xc8] sm:$0xff]
  %v875 = vld [vmem:[%s12 + $0xd0] sm:$0xff]
  %v876 = vld [vmem:[%s12 + $0xd8] sm:$0xff]
  %v877 = vld [vmem:[%s12 + $0xe0] sm:$0xff]
  %v878 = vld [vmem:[%s12 + $0xe8] sm:$0xff]
  %v879 = vld [vmem:[%s12 + $0xf0] sm:$0xff]
  %v880 = vld [vmem:[%s12 + $0xf8] sm:$0xff]
  %v881 = vld [vmem:[%s12 + $0x100] sm:$0xff]
  %v882 = vld [vmem:[%s12 + $0x108] sm:$0xff]
  %v883 = vld [vmem:[%s12 + $0x110] sm:$0xff]
  %v884 = vld [vmem:[%s12 + $0x118] sm:$0xff]
  %v885 = vld [vmem:[%s12 + $0x120] sm:$0xff]
  %v886 = vld [vmem:[%s12 + $0x128] sm:$0xff]
  %v887 = vld [vmem:[%s12 + $0x130] sm:$0xff]
  %v888 = vld [vmem:[%s12 + $0x138] sm:$0xff]
  %v889 = vld [vmem:[%s12 + $0x140] sm:$0xff]
  %v890 = vld [vmem:[%s12 + $0x148] sm:$0xff]
  %v891 = vld [vmem:[%s12 + $0x150] sm:$0xff]
  %v892 = vld [vmem:[%s12 + $0x158] sm:$0xff]
  %v893 = vld [vmem:[%s12 + $0x160] sm:$0xff]
  %v894 = vld [vmem:[%s12 + $0x168] sm:$0xff]
  %v895 = vld [vmem:[%s12 + $0x170] sm:$0xff]
  %v896 = vld [vmem:[%s12 + $0x178] sm:$0xff]
  %v897 = vld [vmem:[%s12 + $0x180] sm:$0xff]
  %v898 = vld [vmem:[%s12 + $0x188] sm:$0xff]
  %v899 = vld [vmem:[%s12 + $0x190] sm:$0xff]
  %v900 = vld [vmem:[%s12 + $0x198] sm:$0xff]
  %v901 = vld [vmem:[%s12 + $0x1a0] sm:$0xff]
  %v902 = vld [vmem:[%s12 + $0x1a8] sm:$0xff]
  %v903 = vld [vmem:[%s12 + $0x1b0] sm:$0xff]
  %v904 = vld [vmem:[%s12 + $0x1b8] sm:$0xff]
  %v905 = vld [vmem:[%s12 + $0x1c0] sm:$0xff]
  %v906 = vld [vmem:[%s12 + $0x1c8] sm:$0xff]
  %v907 = vld [vmem:[%s12 + $0x1d0] sm:$0xff]
  %v908 = vld [vmem:[%s12 + $0x1d8] sm:$0xff]
  %v909 = vld [vmem:[%s12 + $0x1e0] sm:$0xff]
  %v910 = vld [vmem:[%s12 + $0x1e8] sm:$0xff]
  %v911 = vld [vmem:[%s12 + $0x1f0] sm:$0xff]
  %v912 = vld [vmem:[%s12 + $0x1f8] sm:$0xff]
  %v913 = vld [vmem:[%s12 + $0x200] sm:$0xff]
  %v914 = vld [vmem:[%s12 + $0x208] sm:$0xff]
  %v915 = vld [vmem:[%s12 + $0x210] sm:$0xff]
  %v916 = vld [vmem:[%s12 + $0x218] sm:$0xff]
  %v917 = vld [vmem:[%s12 + $0x220] sm:$0xff]
  %v918 = vld [vmem:[%s12 + $0x228] sm:$0xff]
  %v919 = vld [vmem:[%s12 + $0x230] sm:$0xff]
  %v920 = vld [vmem:[%s12 + $0x238] sm:$0xff]
  %v921 = vld [vmem:[%s12 + $0x240] sm:$0xff]
  %v922 = vld [vmem:[%s12 + $0x248] sm:$0xff]
  %v923 = vld [vmem:[%s12 + $0x250] sm:$0xff]
  %v924 = vld [vmem:[%s12 + $0x258] sm:$0xff]
  %v925 = vld [vmem:[%s12 + $0x260] sm:$0xff]
  %v926 = vld [vmem:[%s12 + $0x268] sm:$0xff]
  %v927 = vld [vmem:[%s12 + $0x270] sm:$0xff]
  %v928 = vld [vmem:[%s12 + $0x278] sm:$0xff]
  %v929 = vld [vmem:[%s12 + $0x280] sm:$0xff]
  %v930 = vld [vmem:[%s12 + $0x288] sm:$0xff]
  %v931 = vld [vmem:[%s12 + $0x290] sm:$0xff]
  %v932 = vld [vmem:[%s12 + $0x298] sm:$0xff]
  %v933 = vld [vmem:[%s12 + $0x2a0] sm:$0xff]
  %v934 = vld [vmem:[%s12 + $0x2a8] sm:$0xff]
  %v935 = vld [vmem:[%s12 + $0x2b0] sm:$0xff]
  %v936 = vld [vmem:[%s12 + $0x2b8] sm:$0xff]
  %v937 = vld [vmem:[%s12 + $0x2c0] sm:$0xff]
  %v938 = vld [vmem:[%s12 + $0x2c8] sm:$0xff]
  %v939 = vld [vmem:[%s12 + $0x2d0] sm:$0xff]
  %v940 = vld [vmem:[%s12 + $0x2d8] sm:$0xff]
  %v941 = vld [vmem:[%s12 + $0x2e0] sm:$0xff]
  %v942 = vld [vmem:[%s12 + $0x2e8] sm:$0xff]
  %v943 = vld [vmem:[%s12 + $0x2f0] sm:$0xff]
  %v944 = vld [vmem:[%s12 + $0x2f8] sm:$0xff]
  %v945 = vld [vmem:[%s12 + $0x300] sm:$0xff]
  %v946 = vld [vmem:[%s12 + $0x308] sm:$0xff]
  %v947 = vld [vmem:[%s12 + $0x310] sm:$0xff]
  %v948 = vld [vmem:[%s12 + $0x318] sm:$0xff]
  %v949 = vld [vmem:[%s12 + $0x320] sm:$0xff]
  %v950 = vld [vmem:[%s12 + $0x328] sm:$0xff]
  %v951 = vld [vmem:[%s12 + $0x330] sm:$0xff]
  %v952 = vld [vmem:[%s12 + $0x338] sm:$0xff]
  %v953 = vld [vmem:[%s12 + $0x340] sm:$0xff]
  %v954 = vld [vmem:[%s12 + $0x348] sm:$0xff]
  %v955 = vld [vmem:[%s12 + $0x350] sm:$0xff]
  %v956 = vld [vmem:[%s12 + $0x358] sm:$0xff]
  %v957 = vld [vmem:[%s12 + $0x360] sm:$0xff]
  %v958 = vld [vmem:[%s12 + $0x368] sm:$0xff]
  %v959 = vld [vmem:[%s12 + $0x370] sm:$0xff]
  %v960 = vld [vmem:[%s12 + $0x378] sm:$0xff]
  %v961 = vld [vmem:[%s12 + $0x380] sm:$0xff]
  %v962 = vld [vmem:[%s12 + $0x388] sm:$0xff]
  %v963 = vld [vmem:[%s12 + $0x390] sm:$0xff]
  %v964 = vld [vmem:[%s12 + $0x398] sm:$0xff]
  %v965 = vld [vmem:[%s12 + $0x3a0] sm:$0xff]
  %v966 = vld [vmem:[%s12 + $0x3a8] sm:$0xff]
  %v967 = vld [vmem:[%s12 + $0x3b0] sm:$0xff]
  %v968 = vld [vmem:[%s12 + $0x3b8] sm:$0xff]
  %v969 = vld [vmem:[%s12 + $0x3c0] sm:$0xff]
  %v970 = vld [vmem:[%s12 + $0x3c8] sm:$0xff]
  %v971 = vld [vmem:[%s12 + $0x3d0] sm:$0xff]
  %v972 = vld [vmem:[%s12 + $0x3d8] sm:$0xff]
  %v973 = vld [vmem:[%s12 + $0x3e0] sm:$0xff]
  %v974 = vld [vmem:[%s12 + $0x3e8] sm:$0xff]
  %v975 = vld [vmem:[%s12 + $0x3f0] sm:$0xff]
  %v976 = vld [vmem:[%s12 + $0x3f8] sm:$0xff]
  %v977 = vld [vmem:[%s13] sm:$0xf]
  %v979 = vlaneseq
  %v980 = vshrl.u32 %v979, 7
  %v981 = vsub.s32 0, %v980
  %v982 = vrot.slane %v977, %v981
  %v983 = vlaneseq
  %v984 = vshrl.u32 %v983, 7
  %v985 = vsub.s32 1, %v984
  %v986 = vrot.slane %v977, %v985
  %v987 = vlaneseq
  %v988 = vshrl.u32 %v987, 7
  %v989 = vsub.s32 2, %v988
  %v990 = vrot.slane %v977, %v989
  %v991 = vlaneseq
  %v992 = vshrl.u32 %v991, 7
  %v993 = vsub.s32 3, %v992
  %v994 = vrot.slane %v977, %v993
  %999 = vmatprep.subr.mxu0 %v910
  %1000 = vmatpush1.msra.mxu0 %v909
  %1001 = vmatprep.subr.mxu0 %v906
  %1002 = vmatpush1.msra.mxu0 %v905
  %1003 = vmatprep.subr.mxu0 %v902
  %1004 = vmatpush1.msra.mxu0 %v901
  %1005 = vmatprep.subr.mxu0 %v898
  %1006 = vmatpush1.msra.mxu0 %v897
  %1007 = vmatprep.subr.mxu0 %v894
  %1008 = vmatpush1.msra.mxu0 %v893
  %1009 = vmatprep.subr.mxu0 %v890
  %1010 = vmatpush1.msra.mxu0 %v889
  %1011 = vmatprep.subr.mxu0 %v886
  %1012 = vmatpush1.msra.mxu0 %v885
  %1013 = vmatprep.subr.mxu0 %v882
  %1014 = vmatpush1.msra.mxu0 %v881
  %1015 = vmatprep.subr.mxu0 %v878
  %1016 = vmatpush1.msra.mxu0 %v877
  %1017 = vmatprep.subr.mxu0 %v874
  %1018 = vmatpush1.msra.mxu0 %v873
  %1019 = vmatprep.subr.mxu0 %v870
  %1020 = vmatpush1.msra.mxu0 %v869
  %1021 = vmatprep.subr.mxu0 %v866
  %1022 = vmatpush1.msra.mxu0 %v865
  %1023 = vmatprep.subr.mxu0 %v862
  %1024 = vmatpush1.msra.mxu0 %v861
  %1025 = vmatprep.subr.mxu0 %v858
  %1026 = vmatpush1.msra.mxu0 %v857
  %1027 = vmatprep.subr.mxu0 %v854
  %1028 = vmatpush1.msra.mxu0 %v853
  %1029 = vmatprep.subr.mxu0 %v850
  %1030 = vmatpush1.msra.mxu0 %v849
  %1031 = vmatprep.subr.mxu0 %v974
  %1032 = vmatpush2.msra.mxu0 %v973
  %1033 = vmatprep.subr.mxu0 %v970
  %1034 = vmatpush2.msra.mxu0 %v969
  %1035 = vmatprep.subr.mxu0 %v966
  %1036 = vmatpush2.msra.mxu0 %v965
  %1037 = vmatprep.subr.mxu0 %v962
  %1038 = vmatpush2.msra.mxu0 %v961
  %1039 = vmatprep.subr.mxu0 %v958
  %1040 = vmatpush2.msra.mxu0 %v957
  %1041 = vmatprep.subr.mxu0 %v954
  %1042 = vmatpush2.msra.mxu0 %v953
  %1043 = vmatprep.subr.mxu0 %v950
  %1044 = vmatpush2.msra.mxu0 %v949
  %1045 = vmatprep.subr.mxu0 %v946
  %1046 = vmatpush2.msra.mxu0 %v945
  %1047 = vmatprep.subr.mxu0 %v942
  %1048 = vmatpush2.msra.mxu0 %v941
  %1049 = vmatprep.subr.mxu0 %v938
  %1050 = vmatpush2.msra.mxu0 %v937
  %1051 = vmatprep.subr.mxu0 %v934
  %1052 = vmatpush2.msra.mxu0 %v933
  %1053 = vmatprep.subr.mxu0 %v930
  %1054 = vmatpush2.msra.mxu0 %v929
  %1055 = vmatprep.subr.mxu0 %v926
  %1056 = vmatpush2.msra.mxu0 %v925
  %1057 = vmatprep.subr.mxu0 %v922
  %1058 = vmatpush2.msra.mxu0 %v921
  %1059 = vmatprep.subr.mxu0 %v918
  %1060 = vmatpush2.msra.mxu0 %v917
  %1061 = vmatprep.subr.mxu0 %v914
  %1062 = vmatpush2.msra.mxu0 %v913
  %1063 = vmatprep.mubr.f32.mxu0 %v847
  %1064 = vmatmul.mubr.f32.gmra.mxu0 %v845
  %v1065 = vpop.f32.mrf.mxu0
  %v1066 = vadd.f32 %v982, %v1065
  %v1067 = vpop.f32.mrf.mxu0
  %v1068 = vadd.f32 %v986, %v1067
  %1069 = vdwg.mxu0
  %1070 = vmatprep.subr.mxu0 %v912
  %1071 = vmatpush1.msra.mxu0 %v911
  %1072 = vmatprep.subr.mxu0 %v908
  %1073 = vmatpush1.msra.mxu0 %v907
  %1074 = vmatprep.subr.mxu0 %v904
  %1075 = vmatpush1.msra.mxu0 %v903
  %1076 = vmatprep.subr.mxu0 %v900
  %1077 = vmatpush1.msra.mxu0 %v899
  %1078 = vmatprep.subr.mxu0 %v896
  %1079 = vmatpush1.msra.mxu0 %v895
  %1080 = vmatprep.subr.mxu0 %v892
  %1081 = vmatpush1.msra.mxu0 %v891
  %1082 = vmatprep.subr.mxu0 %v888
  %1083 = vmatpush1.msra.mxu0 %v887
  %1084 = vmatprep.subr.mxu0 %v884
  %1085 = vmatpush1.msra.mxu0 %v883
  %1086 = vmatprep.subr.mxu0 %v880
  %1087 = vmatpush1.msra.mxu0 %v879
  %1088 = vmatprep.subr.mxu0 %v876
  %1089 = vmatpush1.msra.mxu0 %v875
  %1090 = vmatprep.subr.mxu0 %v872
  %1091 = vmatpush1.msra.mxu0 %v871
  %1092 = vmatprep.subr.mxu0 %v868
  %1093 = vmatpush1.msra.mxu0 %v867
  %1094 = vmatprep.subr.mxu0 %v864
  %1095 = vmatpush1.msra.mxu0 %v863
  %1096 = vmatprep.subr.mxu0 %v860
  %1097 = vmatpush1.msra.mxu0 %v859
  %1098 = vmatprep.subr.mxu0 %v856
  %1099 = vmatpush1.msra.mxu0 %v855
  %1100 = vmatprep.subr.mxu0 %v852
  %1101 = vmatpush1.msra.mxu0 %v851
  %1102 = vmatprep.subr.mxu0 %v976
  %1103 = vmatpush2.msra.mxu0 %v975
  %1104 = vmatprep.subr.mxu0 %v972
  %1105 = vmatpush2.msra.mxu0 %v971
  %1106 = vmatprep.subr.mxu0 %v968
  %1107 = vmatpush2.msra.mxu0 %v967
  %1108 = vmatprep.subr.mxu0 %v964
  %1109 = vmatpush2.msra.mxu0 %v963
  %1110 = vmatprep.subr.mxu0 %v960
  %1111 = vmatpush2.msra.mxu0 %v959
  %1112 = vmatprep.subr.mxu0 %v956
  %1113 = vmatpush2.msra.mxu0 %v955
  %1114 = vmatprep.subr.mxu0 %v952
  %1115 = vmatpush2.msra.mxu0 %v951
  %1116 = vmatprep.subr.mxu0 %v948
  %1117 = vmatpush2.msra.mxu0 %v947
  %1118 = vmatprep.subr.mxu0 %v944
  %1119 = vmatpush2.msra.mxu0 %v943
  %1120 = vmatprep.subr.mxu0 %v940
  %1121 = vmatpush2.msra.mxu0 %v939
  %1122 = vmatprep.subr.mxu0 %v936
  %1123 = vmatpush2.msra.mxu0 %v935
  %1124 = vmatprep.subr.mxu0 %v932
  %1125 = vmatpush2.msra.mxu0 %v931
  %1126 = vmatprep.subr.mxu0 %v928
  %1127 = vmatpush2.msra.mxu0 %v927
  %1128 = vmatprep.subr.mxu0 %v924
  %1129 = vmatpush2.msra.mxu0 %v923
  %1130 = vmatprep.subr.mxu0 %v920
  %1131 = vmatpush2.msra.mxu0 %v919
  %1132 = vmatprep.subr.mxu0 %v916
  %1133 = vmatpush2.msra.mxu0 %v915
  %1134 = vmatprep.mubr.f32.mxu0 %v847
  %1135 = vmatmul.mubr.f32.gmra.mxu0 %v845
  %v1136 = vpop.f32.mrf.mxu0
  %v1137 = vadd.f32 %v990, %v1136
  %v1138 = vpop.f32.mrf.mxu0
  %v1139 = vadd.f32 %v994, %v1138
  %1140 = vdwg.mxu0
  %1141 = vst [vmem:[%s15] sm:$0xff] %v1066
  %1142 = vst [vmem:[%s15 + $0x8] sm:$0xff] %v1068
  %1143 = vst [vmem:[%s15 + $0x10] sm:$0xff] %v1137
  %1144 = vst [vmem:[%s15 + $0x18] sm:$0xff] %v1139
  // Predicated region
  $region58: #{_lambda_.13} parent=0 // pred_check
    _
  $region59: #{_lambda_.13} parent=0 // pred_check_branch
    %1146 = sbr.rel (0) target = $region61
  $region60: #{_lambda_.13} parent=0 // pred_region
    _
  $region61: #{_lambda_.13} parent=0 // pred_fallthru
    _
  // Predicated region
  $region62: #{_lambda_.13} parent=0 // pred_check
    _
  $region63: #{_lambda_.13} parent=0 // pred_check_branch
    %1148 = sbr.rel (0) target = $region65
  $region64: #{_lambda_.13} parent=0 // pred_region
    _
  $region65: #{_lambda_.13} parent=0 // pred_fallthru
    _
  // Predicated region
  $region66: #{_lambda_.13} parent=0 // pred_check
    _
  $region67: #{_lambda_.13} parent=0 // pred_check_branch
    %1150 = sbr.rel (0) target = $region69
  $region68: #{_lambda_.13} parent=0 // pred_region
    _
  $region69: #{_lambda_.13} parent=0 // pred_fallthru
    _
  // Predicated region
  $region70: #{_lambda_.13} parent=0 // pred_check
    _
  $region71: #{_lambda_.13} parent=0 // pred_check_branch
    %1152 = sbr.rel (0) target = $region73
  $region72: #{_lambda_.13} parent=0 // pred_region
    _
  $region73: #{_lambda_.13} parent=0 // pred_fallthru
    _

// kernel: _lambda_.16
$region0: #{_lambda_.16}
  #allocation0 [shape = 'u32[]', space=smem, size = 0x4, offset = 0x4, fixed_abs, tag = 'smem constant byte address 0x4 - core index']
  #allocation1 [shape = 'u32[144,128]{1,0:T(1,128)}', space=vmem, size = 0x12000, scoped, tag = 'internal scratch']
  %s0 = inlined_call_operand.vmem [shape: f32[2048,512], index: 0, kind: input, shape index: {}]
  %s1 = inlined_call_operand.vmem [shape: f32[512,32], index: 1, kind: input, shape index: {}]
  %s2 = inlined_call_operand.vmem [shape: f32[1,32], index: 2, kind: input, shape index: {}]
  %s3 = inlined_call_operand.vmem [shape: f32[2048,32], index: 3, kind: output, shape index: {}]
  %s4 = sld [smem:[#allocation0]]
  $region45: #{_lambda_.16} parent=0
    _
  %s6 = ssub.s32 1, %s4
  %s7 = scalar_select 0, %s6, %s4
  loop: start=0, step=1, limit=4
  $region2: #{_lambda_.16} parent=0 // loop_pre_header
    _
  $region3: #{_lambda_.16} parent=0 // loop_header
    %s9 = sphi 0, %s13
    %p10 = scmp.ge.s32.totalorder %s9, 4
    %s19 = sphi 0, %s21
    %s22 = sphi 0, %s19
    %s23 = sphi 0, %s22
    %s39 = sphi 0, %s23
    %s43 = sphi 0, %s43
    %s45 = sphi 0, %s43
    %s46 = sphi 0, %s45
    %s60 = sphi 0, %s46
    %s64 = sphi 0, %s64
    %s66 = sphi 0, %s64
    %s67 = sphi 0, %s66
    %s81 = sphi 0, %s67
    %s87 = sphi 0, %s89
    %s90 = sphi 0, %s87
    %s91 = sphi 0, %s90
    %s107 = sphi 0, %s91
  $region4: #{_lambda_.16} parent=0 // loop_header_branch
    %12 = sbr.rel (%p10) target = $region8
  $region5: #{_lambda_.16} parent=0 // loop_body
    %s14 = ssub.s32 %s9, 1
    %s15 = ssub.s32 %s9, 2
    %s16 = sadd.s32 %s9, 1
    %s17 = ssub.s32 %s9, %s16
    %p18 = scmp.eq.s32.totalorder %s17, 0
    %s20 = sadd.s32 %s19, 1
    %s21 = scalar_select %p18, %s19, %s20
    %p24 = pneg %p18
    %p25 = scmp.eq.s32.totalorder %s9, 1
    %p26 = por %p24, %p25
    %p27 = scmp.ne.s32.totalorder %s19, %s22
    %p28 = scmp.eq.s32.totalorder %s9, 0
    %p29 = por %p27, %p28
    %p30 = scmp.ne.s32.totalorder %s19, %s22
    %p31 = scmp.eq.s32.totalorder %s14, 1
    %p32 = por %p30, %p31
    %p33 = scmp.ne.s32.totalorder %s22, %s23
    %p34 = scmp.eq.s32.totalorder %s14, 0
    %p35 = por %p33, %p34
    %p36 = scmp.ne.s32.totalorder %s22, %s23
    %p37 = scmp.eq.s32.totalorder %s15, 1
    %p38 = por %p36, %p37
    %p40 = scmp.ne.s32.totalorder %s23, %s39
    %p41 = scmp.eq.s32.totalorder %s15, 0
    %p42 = por %p40, %p41
    %s44 = sadd.s32 %s43, 1
    %p47 = scmp.eq.s32.totalorder %s9, 1
    %p48 = scmp.ne.s32.totalorder %s43, %s45
    %p49 = scmp.eq.s32.totalorder %s9, 0
    %p50 = por %p48, %p49
    %p51 = scmp.ne.s32.totalorder %s43, %s45
    %p52 = scmp.eq.s32.totalorder %s14, 1
    %p53 = por %p51, %p52
    %p54 = scmp.ne.s32.totalorder %s45, %s46
    %p55 = scmp.eq.s32.totalorder %s14, 0
    %p56 = por %p54, %p55
    %p57 = scmp.ne.s32.totalorder %s45, %s46
    %p58 = scmp.eq.s32.totalorder %s15, 1
    %p59 = por %p57, %p58
    %p61 = scmp.ne.s32.totalorder %s46, %s60
    %p62 = scmp.eq.s32.totalorder %s15, 0
    %p63 = por %p61, %p62
    %s65 = sadd.s32 %s64, 1
    %p68 = scmp.eq.s32.totalorder %s9, 1
    %p69 = scmp.ne.s32.totalorder %s64, %s66
    %p70 = scmp.eq.s32.totalorder %s9, 0
    %p71 = por %p69, %p70
    %p72 = scmp.ne.s32.totalorder %s64, %s66
    %p73 = scmp.eq.s32.totalorder %s14, 1
    %p74 = por %p72, %p73
    %p75 = scmp.ne.s32.totalorder %s66, %s67
    %p76 = scmp.eq.s32.totalorder %s14, 0
    %p77 = por %p75, %p76
    %p78 = scmp.ne.s32.totalorder %s66, %s67
    %p79 = scmp.eq.s32.totalorder %s15, 1
    %p80 = por %p78, %p79
    %p82 = scmp.ne.s32.totalorder %s67, %s81
    %p83 = scmp.eq.s32.totalorder %s15, 0
    %p84 = por %p82, %p83
    %s85 = ssub.s32 %s9, %s16
    %p86 = scmp.eq.s32.totalorder %s85, 0
    %s88 = sadd.s32 %s87, 1
    %s89 = scalar_select %p86, %s87, %s88
    %p92 = pneg %p86
    %p93 = scmp.eq.s32.totalorder %s9, 1
    %p94 = por %p92, %p93
    %p95 = scmp.ne.s32.totalorder %s87, %s90
    %p96 = scmp.eq.s32.totalorder %s9, 0
    %p97 = por %p95, %p96
    %p98 = scmp.ne.s32.totalorder %s87, %s90
    %p99 = scmp.eq.s32.totalorder %s14, 1
    %p100 = por %p98, %p99
    %p101 = scmp.ne.s32.totalorder %s90, %s91
    %p102 = scmp.eq.s32.totalorder %s14, 0
    %p103 = por %p101, %p102
    %p104 = scmp.ne.s32.totalorder %s90, %s91
    %p105 = scmp.eq.s32.totalorder %s15, 1
    %p106 = por %p104, %p105
    %p108 = scmp.ne.s32.totalorder %s91, %s107
    %p109 = scmp.eq.s32.totalorder %s15, 0
    %p110 = por %p108, %p109
    %p111 = scmp.le.s32.totalorder 1, %s9
    %p112 = scmp.lt.s32.totalorder %s9, 3
    %p113 = pnand %p111, %p112
    %p114 = pneg %p113
    // Predicated region
    $region9: #{_lambda_.16} parent=5 // pred_check
      _
    $region10: #{_lambda_.16} parent=5 // pred_check_branch
      %116 = sbr.rel (%p113) target = $region12
    $region11: #{_lambda_.16} parent=5 // pred_region
      %s117 = ssub.s32 %s9, 1
      // Predicated region
      $region13: #{_lambda_.16} parent=11 // pred_check
        %p118 = pneg %p56
      $region14: #{_lambda_.16} parent=11 // pred_check_branch
        %120 = sbr.rel (%p118) target = $region16
      $region15: #{_lambda_.16} parent=11 // pred_region
        _
      $region16: #{_lambda_.16} parent=11 // pred_fallthru
        _
      // Predicated region
      $region17: #{_lambda_.16} parent=11 // pred_check
        %p121 = pneg %p77
      $region18: #{_lambda_.16} parent=11 // pred_check_branch
        %123 = sbr.rel (%p121) target = $region20
      $region19: #{_lambda_.16} parent=11 // pred_region
        _
      $region20: #{_lambda_.16} parent=11 // pred_fallthru
        _
    $region12: #{_lambda_.16} parent=5 // pred_fallthru
      _
    %p124 = scmp.lt.s32.totalorder %s9, 2
    // Predicated region
    $region21: #{_lambda_.16} parent=5 // pred_check
      %p125 = pneg %p124
    $region22: #{_lambda_.16} parent=5 // pred_check_branch
      %127 = sbr.rel (%p125) target = $region24
    $region23: #{_lambda_.16} parent=5 // pred_region
      // Predicated region
      $region25: #{_lambda_.16} parent=23 // pred_check
        %p128 = pneg %p29
      $region26: #{_lambda_.16} parent=23 // pred_check_branch
        %130 = sbr.rel (%p128) target = $region28
      $region27: #{_lambda_.16} parent=23 // pred_region
        %s131 = smul.u32 128, %s9
        %p132 = scmp.lt.s32.totalorder %s131, 255
        %s133 = scalar_select %p132, %s131, 255
        %s134 = smul.addr %s133, 4
        %s135 = smul.addr %s134, 8
        %s136 = scalar_lea.vmem %s0, %s135
        %s137 = smul.u32 128, %s9
      $region28: #{_lambda_.16} parent=23 // pred_fallthru
        _
    $region24: #{_lambda_.16} parent=5 // pred_fallthru
      _
    %p138 = scmp.le.s32.totalorder 1, %s9
    %p139 = scmp.lt.s32.totalorder %s9, 3
    %p140 = pnand %p138, %p139
    %p141 = pneg %p140
    // Predicated region
    $region29: #{_lambda_.16} parent=5 // pred_check
      _
    $region30: #{_lambda_.16} parent=5 // pred_check_branch
      %143 = sbr.rel (%p140) target = $region32
    $region31: #{_lambda_.16} parent=5 // pred_region
      %s144 = ssub.s32 %s9, 1
      %s145 = smul.u32 128, %s14
      %p146 = scmp.lt.s32.totalorder %s145, 255
      %s147 = scalar_select %p146, %s145, 255
      %s148 = smul.addr %s147, 4
      %s149 = smul.addr %s148, 8
      %s150 = scalar_lea.vmem %s0, %s149
      %p151 = pneg %p35
      %p152 = pneg %p32
      %p153 = pneg %p56
      %p154 = pneg %p53
      %p155 = pneg %p77
      %p156 = pneg %p74
      %p157 = pneg %p103
      %p158 = pneg %p100
      %s159 = smul.u32 128, %s14
      %p160 = scmp.lt.s32.totalorder %s159, 255
      %s161 = scalar_select %p160, %s159, 255
      %s162 = smul.addr %s161, 8
      %s163 = scalar_lea.vmem %s3, %s162
      %s164 = smul.u32 128, %s14
      %p165 = scmp.lt.s32.totalorder %s164, 255
      %s166 = scalar_select %p165, %s164, 255
      %s167 = smul.addr %s166, 4
      %s168 = smul.addr %s167, 8
      %s169 = scalar_lea.vmem %s0, %s168
      %s170 = smul.u32 128, %s14
      %s171 = smul.u32 128, %s14
      %p172 = scmp.lt.s32.totalorder %s171, 255
      %s173 = scalar_select %p172, %s171, 255
      %s174 = smul.addr %s173, 8
      %s175 = scalar_lea.vmem %s3, %s174
      %s176 = smul.u32 128, %s14
      %v177 = vld [vmem:[%s169] sm:$0xff]
      %v178 = vld [vmem:[%s169 + $0x8] sm:$0xff]
      %v179 = vld [vmem:[%s169 + $0x10] sm:$0xff]
      %v180 = vld [vmem:[%s169 + $0x18] sm:$0xff]
      %v181 = vld [vmem:[%s169 + $0x20] sm:$0xff]
      %v182 = vld [vmem:[%s169 + $0x28] sm:$0xff]
      %v183 = vld [vmem:[%s169 + $0x30] sm:$0xff]
      %v184 = vld [vmem:[%s169 + $0x38] sm:$0xff]
      %v185 = vld [vmem:[%s169 + $0x40] sm:$0xff]
      %v186 = vld [vmem:[%s169 + $0x48] sm:$0xff]
      %v187 = vld [vmem:[%s169 + $0x50] sm:$0xff]
      %v188 = vld [vmem:[%s169 + $0x58] sm:$0xff]
      %v189 = vld [vmem:[%s169 + $0x60] sm:$0xff]
      %v190 = vld [vmem:[%s169 + $0x68] sm:$0xff]
      %v191 = vld [vmem:[%s169 + $0x70] sm:$0xff]
      %v192 = vld [vmem:[%s169 + $0x78] sm:$0xff]
      %v193 = vld [vmem:[%s169 + $0x80] sm:$0xff]
      %v194 = vld [vmem:[%s169 + $0x88] sm:$0xff]
      %v195 = vld [vmem:[%s169 + $0x90] sm:$0xff]
      %v196 = vld [vmem:[%s169 + $0x98] sm:$0xff]
      %v197 = vld [vmem:[%s169 + $0xa0] sm:$0xff]
      %v198 = vld [vmem:[%s169 + $0xa8] sm:$0xff]
      %v199 = vld [vmem:[%s169 + $0xb0] sm:$0xff]
      %v200 = vld [vmem:[%s169 + $0xb8] sm:$0xff]
      %v201 = vld [vmem:[%s169 + $0xc0] sm:$0xff]
      %v202 = vld [vmem:[%s169 + $0xc8] sm:$0xff]
      %v203 = vld [vmem:[%s169 + $0xd0] sm:$0xff]
      %v204 = vld [vmem:[%s169 + $0xd8] sm:$0xff]
      %v205 = vld [vmem:[%s169 + $0xe0] sm:$0xff]
      %v206 = vld [vmem:[%s169 + $0xe8] sm:$0xff]
      %v207 = vld [vmem:[%s169 + $0xf0] sm:$0xff]
      %v208 = vld [vmem:[%s169 + $0xf8] sm:$0xff]
      %v209 = vld [vmem:[%s169 + $0x100] sm:$0xff]
      %v210 = vld [vmem:[%s169 + $0x108] sm:$0xff]
      %v211 = vld [vmem:[%s169 + $0x110] sm:$0xff]
      %v212 = vld [vmem:[%s169 + $0x118] sm:$0xff]
      %v213 = vld [vmem:[%s169 + $0x120] sm:$0xff]
      %v214 = vld [vmem:[%s169 + $0x128] sm:$0xff]
      %v215 = vld [vmem:[%s169 + $0x130] sm:$0xff]
      %v216 = vld [vmem:[%s169 + $0x138] sm:$0xff]
      %v217 = vld [vmem:[%s169 + $0x140] sm:$0xff]
      %v218 = vld [vmem:[%s169 + $0x148] sm:$0xff]
      %v219 = vld [vmem:[%s169 + $0x150] sm:$0xff]
      %v220 = vld [vmem:[%s169 + $0x158] sm:$0xff]
      %v221 = vld [vmem:[%s169 + $0x160] sm:$0xff]
      %v222 = vld [vmem:[%s169 + $0x168] sm:$0xff]
      %v223 = vld [vmem:[%s169 + $0x170] sm:$0xff]
      %v224 = vld [vmem:[%s169 + $0x178] sm:$0xff]
      %v225 = vld [vmem:[%s169 + $0x180] sm:$0xff]
      %v226 = vld [vmem:[%s169 + $0x188] sm:$0xff]
      %v227 = vld [vmem:[%s169 + $0x190] sm:$0xff]
      %v228 = vld [vmem:[%s169 + $0x198] sm:$0xff]
      %v229 = vld [vmem:[%s169 + $0x1a0] sm:$0xff]
      %v230 = vld [vmem:[%s169 + $0x1a8] sm:$0xff]
      %v231 = vld [vmem:[%s169 + $0x1b0] sm:$0xff]
      %v232 = vld [vmem:[%s169 + $0x1b8] sm:$0xff]
      %v233 = vld [vmem:[%s169 + $0x1c0] sm:$0xff]
      %v234 = vld [vmem:[%s169 + $0x1c8] sm:$0xff]
      %v235 = vld [vmem:[%s169 + $0x1d0] sm:$0xff]
      %v236 = vld [vmem:[%s169 + $0x1d8] sm:$0xff]
      %v237 = vld [vmem:[%s169 + $0x1e0] sm:$0xff]
      %v238 = vld [vmem:[%s169 + $0x1e8] sm:$0xff]
      %v239 = vld [vmem:[%s169 + $0x1f0] sm:$0xff]
      %v240 = vld [vmem:[%s169 + $0x1f8] sm:$0xff]
      %v241 = vld [vmem:[%s169 + $0x200] sm:$0xff]
      %v242 = vld [vmem:[%s169 + $0x208] sm:$0xff]
      %v243 = vld [vmem:[%s169 + $0x210] sm:$0xff]
      %v244 = vld [vmem:[%s169 + $0x218] sm:$0xff]
      %v245 = vld [vmem:[%s169 + $0x220] sm:$0xff]
      %v246 = vld [vmem:[%s169 + $0x228] sm:$0xff]
      %v247 = vld [vmem:[%s169 + $0x230] sm:$0xff]
      %v248 = vld [vmem:[%s169 + $0x238] sm:$0xff]
      %v249 = vld [vmem:[%s169 + $0x240] sm:$0xff]
      %v250 = vld [vmem:[%s169 + $0x248] sm:$0xff]
      %v251 = vld [vmem:[%s169 + $0x250] sm:$0xff]
      %v252 = vld [vmem:[%s169 + $0x258] sm:$0xff]
      %v253 = vld [vmem:[%s169 + $0x260] sm:$0xff]
      %v254 = vld [vmem:[%s169 + $0x268] sm:$0xff]
      %v255 = vld [vmem:[%s169 + $0x270] sm:$0xff]
      %v256 = vld [vmem:[%s169 + $0x278] sm:$0xff]
      %v257 = vld [vmem:[%s169 + $0x280] sm:$0xff]
      %v258 = vld [vmem:[%s169 + $0x288] sm:$0xff]
      %v259 = vld [vmem:[%s169 + $0x290] sm:$0xff]
      %v260 = vld [vmem:[%s169 + $0x298] sm:$0xff]
      %v261 = vld [vmem:[%s169 + $0x2a0] sm:$0xff]
      %v262 = vld [vmem:[%s169 + $0x2a8] sm:$0xff]
      %v263 = vld [vmem:[%s169 + $0x2b0] sm:$0xff]
      %v264 = vld [vmem:[%s169 + $0x2b8] sm:$0xff]
      %v265 = vld [vmem:[%s169 + $0x2c0] sm:$0xff]
      %v266 = vld [vmem:[%s169 + $0x2c8] sm:$0xff]
      %v267 = vld [vmem:[%s169 + $0x2d0] sm:$0xff]
      %v268 = vld [vmem:[%s169 + $0x2d8] sm:$0xff]
      %v269 = vld [vmem:[%s169 + $0x2e0] sm:$0xff]
      %v270 = vld [vmem:[%s169 + $0x2e8] sm:$0xff]
      %v271 = vld [vmem:[%s169 + $0x2f0] sm:$0xff]
      %v272 = vld [vmem:[%s169 + $0x2f8] sm:$0xff]
      %v273 = vld [vmem:[%s169 + $0x300] sm:$0xff]
      %v274 = vld [vmem:[%s169 + $0x308] sm:$0xff]
      %v275 = vld [vmem:[%s169 + $0x310] sm:$0xff]
      %v276 = vld [vmem:[%s169 + $0x318] sm:$0xff]
      %v277 = vld [vmem:[%s169 + $0x320] sm:$0xff]
      %v278 = vld [vmem:[%s169 + $0x328] sm:$0xff]
      %v279 = vld [vmem:[%s169 + $0x330] sm:$0xff]
      %v280 = vld [vmem:[%s169 + $0x338] sm:$0xff]
      %v281 = vld [vmem:[%s169 + $0x340] sm:$0xff]
      %v282 = vld [vmem:[%s169 + $0x348] sm:$0xff]
      %v283 = vld [vmem:[%s169 + $0x350] sm:$0xff]
      %v284 = vld [vmem:[%s169 + $0x358] sm:$0xff]
      %v285 = vld [vmem:[%s169 + $0x360] sm:$0xff]
      %v286 = vld [vmem:[%s169 + $0x368] sm:$0xff]
      %v287 = vld [vmem:[%s169 + $0x370] sm:$0xff]
      %v288 = vld [vmem:[%s169 + $0x378] sm:$0xff]
      %v289 = vld [vmem:[%s169 + $0x380] sm:$0xff]
      %v290 = vld [vmem:[%s169 + $0x388] sm:$0xff]
      %v291 = vld [vmem:[%s169 + $0x390] sm:$0xff]
      %v292 = vld [vmem:[%s169 + $0x398] sm:$0xff]
      %v293 = vld [vmem:[%s169 + $0x3a0] sm:$0xff]
      %v294 = vld [vmem:[%s169 + $0x3a8] sm:$0xff]
      %v295 = vld [vmem:[%s169 + $0x3b0] sm:$0xff]
      %v296 = vld [vmem:[%s169 + $0x3b8] sm:$0xff]
      %v297 = vld [vmem:[%s169 + $0x3c0] sm:$0xff]
      %v298 = vld [vmem:[%s169 + $0x3c8] sm:$0xff]
      %v299 = vld [vmem:[%s169 + $0x3d0] sm:$0xff]
      %v300 = vld [vmem:[%s169 + $0x3d8] sm:$0xff]
      %v301 = vld [vmem:[%s169 + $0x3e0] sm:$0xff]
      %v302 = vld [vmem:[%s169 + $0x3e8] sm:$0xff]
      %v303 = vld [vmem:[%s169 + $0x3f0] sm:$0xff]
      %v304 = vld [vmem:[%s169 + $0x3f8] sm:$0xff]
      %v305 = vld [vmem:[%s169 + $0x400] sm:$0xff]
      %v306 = vld [vmem:[%s169 + $0x408] sm:$0xff]
      %v307 = vld [vmem:[%s169 + $0x410] sm:$0xff]
      %v308 = vld [vmem:[%s169 + $0x418] sm:$0xff]
      %v309 = vld [vmem:[%s169 + $0x420] sm:$0xff]
      %v310 = vld [vmem:[%s169 + $0x428] sm:$0xff]
      %v311 = vld [vmem:[%s169 + $0x430] sm:$0xff]
      %v312 = vld [vmem:[%s169 + $0x438] sm:$0xff]
      %v313 = vld [vmem:[%s169 + $0x440] sm:$0xff]
      %v314 = vld [vmem:[%s169 + $0x448] sm:$0xff]
      %v315 = vld [vmem:[%s169 + $0x450] sm:$0xff]
      %v316 = vld [vmem:[%s169 + $0x458] sm:$0xff]
      %v317 = vld [vmem:[%s169 + $0x460] sm:$0xff]
      %v318 = vld [vmem:[%s169 + $0x468] sm:$0xff]
      %v319 = vld [vmem:[%s169 + $0x470] sm:$0xff]
      %v320 = vld [vmem:[%s169 + $0x478] sm:$0xff]
      %v321 = vld [vmem:[%s169 + $0x480] sm:$0xff]
      %v322 = vld [vmem:[%s169 + $0x488] sm:$0xff]
      %v323 = vld [vmem:[%s169 + $0x490] sm:$0xff]
      %v324 = vld [vmem:[%s169 + $0x498] sm:$0xff]
      %v325 = vld [vmem:[%s169 + $0x4a0] sm:$0xff]
      %v326 = vld [vmem:[%s169 + $0x4a8] sm:$0xff]
      %v327 = vld [vmem:[%s169 + $0x4b0] sm:$0xff]
      %v328 = vld [vmem:[%s169 + $0x4b8] sm:$0xff]
      %v329 = vld [vmem:[%s169 + $0x4c0] sm:$0xff]
      %v330 = vld [vmem:[%s169 + $0x4c8] sm:$0xff]
      %v331 = vld [vmem:[%s169 + $0x4d0] sm:$0xff]
      %v332 = vld [vmem:[%s169 + $0x4d8] sm:$0xff]
      %v333 = vld [vmem:[%s169 + $0x4e0] sm:$0xff]
      %v334 = vld [vmem:[%s169 + $0x4e8] sm:$0xff]
      %v335 = vld [vmem:[%s169 + $0x4f0] sm:$0xff]
      %v336 = vld [vmem:[%s169 + $0x4f8] sm:$0xff]
      %v337 = vld [vmem:[%s169 + $0x500] sm:$0xff]
      %v338 = vld [vmem:[%s169 + $0x508] sm:$0xff]
      %v339 = vld [vmem:[%s169 + $0x510] sm:$0xff]
      %v340 = vld [vmem:[%s169 + $0x518] sm:$0xff]
      %v341 = vld [vmem:[%s169 + $0x520] sm:$0xff]
      %v342 = vld [vmem:[%s169 + $0x528] sm:$0xff]
      %v343 = vld [vmem:[%s169 + $0x530] sm:$0xff]
      %v344 = vld [vmem:[%s169 + $0x538] sm:$0xff]
      %v345 = vld [vmem:[%s169 + $0x540] sm:$0xff]
      %v346 = vld [vmem:[%s169 + $0x548] sm:$0xff]
      %v347 = vld [vmem:[%s169 + $0x550] sm:$0xff]
      %v348 = vld [vmem:[%s169 + $0x558] sm:$0xff]
      %v349 = vld [vmem:[%s169 + $0x560] sm:$0xff]
      %v350 = vld [vmem:[%s169 + $0x568] sm:$0xff]
      %v351 = vld [vmem:[%s169 + $0x570] sm:$0xff]
      %v352 = vld [vmem:[%s169 + $0x578] sm:$0xff]
      %v353 = vld [vmem:[%s169 + $0x580] sm:$0xff]
      %v354 = vld [vmem:[%s169 + $0x588] sm:$0xff]
      %v355 = vld [vmem:[%s169 + $0x590] sm:$0xff]
      %v356 = vld [vmem:[%s169 + $0x598] sm:$0xff]
      %v357 = vld [vmem:[%s169 + $0x5a0] sm:$0xff]
      %v358 = vld [vmem:[%s169 + $0x5a8] sm:$0xff]
      %v359 = vld [vmem:[%s169 + $0x5b0] sm:$0xff]
      %v360 = vld [vmem:[%s169 + $0x5b8] sm:$0xff]
      %v361 = vld [vmem:[%s169 + $0x5c0] sm:$0xff]
      %v362 = vld [vmem:[%s169 + $0x5c8] sm:$0xff]
      %v363 = vld [vmem:[%s169 + $0x5d0] sm:$0xff]
      %v364 = vld [vmem:[%s169 + $0x5d8] sm:$0xff]
      %v365 = vld [vmem:[%s169 + $0x5e0] sm:$0xff]
      %v366 = vld [vmem:[%s169 + $0x5e8] sm:$0xff]
      %v367 = vld [vmem:[%s169 + $0x5f0] sm:$0xff]
      %v368 = vld [vmem:[%s169 + $0x5f8] sm:$0xff]
      %v369 = vld [vmem:[%s169 + $0x600] sm:$0xff]
      %v370 = vld [vmem:[%s169 + $0x608] sm:$0xff]
      %v371 = vld [vmem:[%s169 + $0x610] sm:$0xff]
      %v372 = vld [vmem:[%s169 + $0x618] sm:$0xff]
      %v373 = vld [vmem:[%s169 + $0x620] sm:$0xff]
      %v374 = vld [vmem:[%s169 + $0x628] sm:$0xff]
      %v375 = vld [vmem:[%s169 + $0x630] sm:$0xff]
      %v376 = vld [vmem:[%s169 + $0x638] sm:$0xff]
      %v377 = vld [vmem:[%s169 + $0x640] sm:$0xff]
      %v378 = vld [vmem:[%s169 + $0x648] sm:$0xff]
      %v379 = vld [vmem:[%s169 + $0x650] sm:$0xff]
      %v380 = vld [vmem:[%s169 + $0x658] sm:$0xff]
      %v381 = vld [vmem:[%s169 + $0x660] sm:$0xff]
      %v382 = vld [vmem:[%s169 + $0x668] sm:$0xff]
      %v383 = vld [vmem:[%s169 + $0x670] sm:$0xff]
      %v384 = vld [vmem:[%s169 + $0x678] sm:$0xff]
      %v385 = vld [vmem:[%s169 + $0x680] sm:$0xff]
      %v386 = vld [vmem:[%s169 + $0x688] sm:$0xff]
      %v387 = vld [vmem:[%s169 + $0x690] sm:$0xff]
      %v388 = vld [vmem:[%s169 + $0x698] sm:$0xff]
      %v389 = vld [vmem:[%s169 + $0x6a0] sm:$0xff]
      %v390 = vld [vmem:[%s169 + $0x6a8] sm:$0xff]
      %v391 = vld [vmem:[%s169 + $0x6b0] sm:$0xff]
      %v392 = vld [vmem:[%s169 + $0x6b8] sm:$0xff]
      %v393 = vld [vmem:[%s169 + $0x6c0] sm:$0xff]
      %v394 = vld [vmem:[%s169 + $0x6c8] sm:$0xff]
      %v395 = vld [vmem:[%s169 + $0x6d0] sm:$0xff]
      %v396 = vld [vmem:[%s169 + $0x6d8] sm:$0xff]
      %v397 = vld [vmem:[%s169 + $0x6e0] sm:$0xff]
      %v398 = vld [vmem:[%s169 + $0x6e8] sm:$0xff]
      %v399 = vld [vmem:[%s169 + $0x6f0] sm:$0xff]
      %v400 = vld [vmem:[%s169 + $0x6f8] sm:$0xff]
      %v401 = vld [vmem:[%s169 + $0x700] sm:$0xff]
      %v402 = vld [vmem:[%s169 + $0x708] sm:$0xff]
      %v403 = vld [vmem:[%s169 + $0x710] sm:$0xff]
      %v404 = vld [vmem:[%s169 + $0x718] sm:$0xff]
      %v405 = vld [vmem:[%s169 + $0x720] sm:$0xff]
      %v406 = vld [vmem:[%s169 + $0x728] sm:$0xff]
      %v407 = vld [vmem:[%s169 + $0x730] sm:$0xff]
      %v408 = vld [vmem:[%s169 + $0x738] sm:$0xff]
      %v409 = vld [vmem:[%s169 + $0x740] sm:$0xff]
      %v410 = vld [vmem:[%s169 + $0x748] sm:$0xff]
      %v411 = vld [vmem:[%s169 + $0x750] sm:$0xff]
      %v412 = vld [vmem:[%s169 + $0x758] sm:$0xff]
      %v413 = vld [vmem:[%s169 + $0x760] sm:$0xff]
      %v414 = vld [vmem:[%s169 + $0x768] sm:$0xff]
      %v415 = vld [vmem:[%s169 + $0x770] sm:$0xff]
      %v416 = vld [vmem:[%s169 + $0x778] sm:$0xff]
      %v417 = vld [vmem:[%s169 + $0x780] sm:$0xff]
      %v418 = vld [vmem:[%s169 + $0x788] sm:$0xff]
      %v419 = vld [vmem:[%s169 + $0x790] sm:$0xff]
      %v420 = vld [vmem:[%s169 + $0x798] sm:$0xff]
      %v421 = vld [vmem:[%s169 + $0x7a0] sm:$0xff]
      %v422 = vld [vmem:[%s169 + $0x7a8] sm:$0xff]
      %v423 = vld [vmem:[%s169 + $0x7b0] sm:$0xff]
      %v424 = vld [vmem:[%s169 + $0x7b8] sm:$0xff]
      %v425 = vld [vmem:[%s169 + $0x7c0] sm:$0xff]
      %v426 = vld [vmem:[%s169 + $0x7c8] sm:$0xff]
      %v427 = vld [vmem:[%s169 + $0x7d0] sm:$0xff]
      %v428 = vld [vmem:[%s169 + $0x7d8] sm:$0xff]
      %v429 = vld [vmem:[%s169 + $0x7e0] sm:$0xff]
      %v430 = vld [vmem:[%s169 + $0x7e8] sm:$0xff]
      %v431 = vld [vmem:[%s169 + $0x7f0] sm:$0xff]
      %v432 = vld [vmem:[%s169 + $0x7f8] sm:$0xff]
      %v433 = vld [vmem:[%s169 + $0x800] sm:$0xff]
      %v434 = vld [vmem:[%s169 + $0x808] sm:$0xff]
      %v435 = vld [vmem:[%s169 + $0x810] sm:$0xff]
      %v436 = vld [vmem:[%s169 + $0x818] sm:$0xff]
      %v437 = vld [vmem:[%s169 + $0x820] sm:$0xff]
      %v438 = vld [vmem:[%s169 + $0x828] sm:$0xff]
      %v439 = vld [vmem:[%s169 + $0x830] sm:$0xff]
      %v440 = vld [vmem:[%s169 + $0x838] sm:$0xff]
      %v441 = vld [vmem:[%s169 + $0x840] sm:$0xff]
      %v442 = vld [vmem:[%s169 + $0x848] sm:$0xff]
      %v443 = vld [vmem:[%s169 + $0x850] sm:$0xff]
      %v444 = vld [vmem:[%s169 + $0x858] sm:$0xff]
      %v445 = vld [vmem:[%s169 + $0x860] sm:$0xff]
      %v446 = vld [vmem:[%s169 + $0x868] sm:$0xff]
      %v447 = vld [vmem:[%s169 + $0x870] sm:$0xff]
      %v448 = vld [vmem:[%s169 + $0x878] sm:$0xff]
      %v449 = vld [vmem:[%s169 + $0x880] sm:$0xff]
      %v450 = vld [vmem:[%s169 + $0x888] sm:$0xff]
      %v451 = vld [vmem:[%s169 + $0x890] sm:$0xff]
      %v452 = vld [vmem:[%s169 + $0x898] sm:$0xff]
      %v453 = vld [vmem:[%s169 + $0x8a0] sm:$0xff]
      %v454 = vld [vmem:[%s169 + $0x8a8] sm:$0xff]
      %v455 = vld [vmem:[%s169 + $0x8b0] sm:$0xff]
      %v456 = vld [vmem:[%s169 + $0x8b8] sm:$0xff]
      %v457 = vld [vmem:[%s169 + $0x8c0] sm:$0xff]
      %v458 = vld [vmem:[%s169 + $0x8c8] sm:$0xff]
      %v459 = vld [vmem:[%s169 + $0x8d0] sm:$0xff]
      %v460 = vld [vmem:[%s169 + $0x8d8] sm:$0xff]
      %v461 = vld [vmem:[%s169 + $0x8e0] sm:$0xff]
      %v462 = vld [vmem:[%s169 + $0x8e8] sm:$0xff]
      %v463 = vld [vmem:[%s169 + $0x8f0] sm:$0xff]
      %v464 = vld [vmem:[%s169 + $0x8f8] sm:$0xff]
      %v465 = vld [vmem:[%s169 + $0x900] sm:$0xff]
      %v466 = vld [vmem:[%s169 + $0x908] sm:$0xff]
      %v467 = vld [vmem:[%s169 + $0x910] sm:$0xff]
      %v468 = vld [vmem:[%s169 + $0x918] sm:$0xff]
      %v469 = vld [vmem:[%s169 + $0x920] sm:$0xff]
      %v470 = vld [vmem:[%s169 + $0x928] sm:$0xff]
      %v471 = vld [vmem:[%s169 + $0x930] sm:$0xff]
      %v472 = vld [vmem:[%s169 + $0x938] sm:$0xff]
      %v473 = vld [vmem:[%s169 + $0x940] sm:$0xff]
      %v474 = vld [vmem:[%s169 + $0x948] sm:$0xff]
      %v475 = vld [vmem:[%s169 + $0x950] sm:$0xff]
      %v476 = vld [vmem:[%s169 + $0x958] sm:$0xff]
      %v477 = vld [vmem:[%s169 + $0x960] sm:$0xff]
      %v478 = vld [vmem:[%s169 + $0x968] sm:$0xff]
      %v479 = vld [vmem:[%s169 + $0x970] sm:$0xff]
      %v480 = vld [vmem:[%s169 + $0x978] sm:$0xff]
      %v481 = vld [vmem:[%s169 + $0x980] sm:$0xff]
      %v482 = vld [vmem:[%s169 + $0x988] sm:$0xff]
      %v483 = vld [vmem:[%s169 + $0x990] sm:$0xff]
      %v484 = vld [vmem:[%s169 + $0x998] sm:$0xff]
      %v485 = vld [vmem:[%s169 + $0x9a0] sm:$0xff]
      %v486 = vld [vmem:[%s169 + $0x9a8] sm:$0xff]
      %v487 = vld [vmem:[%s169 + $0x9b0] sm:$0xff]
      %v488 = vld [vmem:[%s169 + $0x9b8] sm:$0xff]
      %v489 = vld [vmem:[%s169 + $0x9c0] sm:$0xff]
      %v490 = vld [vmem:[%s169 + $0x9c8] sm:$0xff]
      %v491 = vld [vmem:[%s169 + $0x9d0] sm:$0xff]
      %v492 = vld [vmem:[%s169 + $0x9d8] sm:$0xff]
      %v493 = vld [vmem:[%s169 + $0x9e0] sm:$0xff]
      %v494 = vld [vmem:[%s169 + $0x9e8] sm:$0xff]
      %v495 = vld [vmem:[%s169 + $0x9f0] sm:$0xff]
      %v496 = vld [vmem:[%s169 + $0x9f8] sm:$0xff]
      %v497 = vld [vmem:[%s169 + $0xa00] sm:$0xff]
      %v498 = vld [vmem:[%s169 + $0xa08] sm:$0xff]
      %v499 = vld [vmem:[%s169 + $0xa10] sm:$0xff]
      %v500 = vld [vmem:[%s169 + $0xa18] sm:$0xff]
      %v501 = vld [vmem:[%s169 + $0xa20] sm:$0xff]
      %v502 = vld [vmem:[%s169 + $0xa28] sm:$0xff]
      %v503 = vld [vmem:[%s169 + $0xa30] sm:$0xff]
      %v504 = vld [vmem:[%s169 + $0xa38] sm:$0xff]
      %v505 = vld [vmem:[%s169 + $0xa40] sm:$0xff]
      %v506 = vld [vmem:[%s169 + $0xa48] sm:$0xff]
      %v507 = vld [vmem:[%s169 + $0xa50] sm:$0xff]
      %v508 = vld [vmem:[%s169 + $0xa58] sm:$0xff]
      %v509 = vld [vmem:[%s169 + $0xa60] sm:$0xff]
      %v510 = vld [vmem:[%s169 + $0xa68] sm:$0xff]
      %v511 = vld [vmem:[%s169 + $0xa70] sm:$0xff]
      %v512 = vld [vmem:[%s169 + $0xa78] sm:$0xff]
      %v513 = vld [vmem:[%s169 + $0xa80] sm:$0xff]
      %v514 = vld [vmem:[%s169 + $0xa88] sm:$0xff]
      %v515 = vld [vmem:[%s169 + $0xa90] sm:$0xff]
      %v516 = vld [vmem:[%s169 + $0xa98] sm:$0xff]
      %v517 = vld [vmem:[%s169 + $0xaa0] sm:$0xff]
      %v518 = vld [vmem:[%s169 + $0xaa8] sm:$0xff]
      %v519 = vld [vmem:[%s169 + $0xab0] sm:$0xff]
      %v520 = vld [vmem:[%s169 + $0xab8] sm:$0xff]
      %v521 = vld [vmem:[%s169 + $0xac0] sm:$0xff]
      %v522 = vld [vmem:[%s169 + $0xac8] sm:$0xff]
      %v523 = vld [vmem:[%s169 + $0xad0] sm:$0xff]
      %v524 = vld [vmem:[%s169 + $0xad8] sm:$0xff]
      %v525 = vld [vmem:[%s169 + $0xae0] sm:$0xff]
      %v526 = vld [vmem:[%s169 + $0xae8] sm:$0xff]
      %v527 = vld [vmem:[%s169 + $0xaf0] sm:$0xff]
      %v528 = vld [vmem:[%s169 + $0xaf8] sm:$0xff]
      %v529 = vld [vmem:[%s169 + $0xb00] sm:$0xff]
      %v530 = vld [vmem:[%s169 + $0xb08] sm:$0xff]
      %v531 = vld [vmem:[%s169 + $0xb10] sm:$0xff]
      %v532 = vld [vmem:[%s169 + $0xb18] sm:$0xff]
      %v533 = vld [vmem:[%s169 + $0xb20] sm:$0xff]
      %v534 = vld [vmem:[%s169 + $0xb28] sm:$0xff]
      %v535 = vld [vmem:[%s169 + $0xb30] sm:$0xff]
      %v536 = vld [vmem:[%s169 + $0xb38] sm:$0xff]
      %v537 = vld [vmem:[%s169 + $0xb40] sm:$0xff]
      %v538 = vld [vmem:[%s169 + $0xb48] sm:$0xff]
      %v539 = vld [vmem:[%s169 + $0xb50] sm:$0xff]
      %v540 = vld [vmem:[%s169 + $0xb58] sm:$0xff]
      %v541 = vld [vmem:[%s169 + $0xb60] sm:$0xff]
      %v542 = vld [vmem:[%s169 + $0xb68] sm:$0xff]
      %v543 = vld [vmem:[%s169 + $0xb70] sm:$0xff]
      %v544 = vld [vmem:[%s169 + $0xb78] sm:$0xff]
      %v545 = vld [vmem:[%s169 + $0xb80] sm:$0xff]
      %v546 = vld [vmem:[%s169 + $0xb88] sm:$0xff]
      %v547 = vld [vmem:[%s169 + $0xb90] sm:$0xff]
      %v548 = vld [vmem:[%s169 + $0xb98] sm:$0xff]
      %v549 = vld [vmem:[%s169 + $0xba0] sm:$0xff]
      %v550 = vld [vmem:[%s169 + $0xba8] sm:$0xff]
      %v551 = vld [vmem:[%s169 + $0xbb0] sm:$0xff]
      %v552 = vld [vmem:[%s169 + $0xbb8] sm:$0xff]
      %v553 = vld [vmem:[%s169 + $0xbc0] sm:$0xff]
      %v554 = vld [vmem:[%s169 + $0xbc8] sm:$0xff]
      %v555 = vld [vmem:[%s169 + $0xbd0] sm:$0xff]
      %v556 = vld [vmem:[%s169 + $0xbd8] sm:$0xff]
      %v557 = vld [vmem:[%s169 + $0xbe0] sm:$0xff]
      %v558 = vld [vmem:[%s169 + $0xbe8] sm:$0xff]
      %v559 = vld [vmem:[%s169 + $0xbf0] sm:$0xff]
      %v560 = vld [vmem:[%s169 + $0xbf8] sm:$0xff]
      %v561 = vld [vmem:[%s169 + $0xc00] sm:$0xff]
      %v562 = vld [vmem:[%s169 + $0xc08] sm:$0xff]
      %v563 = vld [vmem:[%s169 + $0xc10] sm:$0xff]
      %v564 = vld [vmem:[%s169 + $0xc18] sm:$0xff]
      %v565 = vld [vmem:[%s169 + $0xc20] sm:$0xff]
      %v566 = vld [vmem:[%s169 + $0xc28] sm:$0xff]
      %v567 = vld [vmem:[%s169 + $0xc30] sm:$0xff]
      %v568 = vld [vmem:[%s169 + $0xc38] sm:$0xff]
      %v569 = vld [vmem:[%s169 + $0xc40] sm:$0xff]
      %v570 = vld [vmem:[%s169 + $0xc48] sm:$0xff]
      %v571 = vld [vmem:[%s169 + $0xc50] sm:$0xff]
      %v572 = vld [vmem:[%s169 + $0xc58] sm:$0xff]
      %v573 = vld [vmem:[%s169 + $0xc60] sm:$0xff]
      %v574 = vld [vmem:[%s169 + $0xc68] sm:$0xff]
      %v575 = vld [vmem:[%s169 + $0xc70] sm:$0xff]
      %v576 = vld [vmem:[%s169 + $0xc78] sm:$0xff]
      %v577 = vld [vmem:[%s169 + $0xc80] sm:$0xff]
      %v578 = vld [vmem:[%s169 + $0xc88] sm:$0xff]
      %v579 = vld [vmem:[%s169 + $0xc90] sm:$0xff]
      %v580 = vld [vmem:[%s169 + $0xc98] sm:$0xff]
      %v581 = vld [vmem:[%s169 + $0xca0] sm:$0xff]
      %v582 = vld [vmem:[%s169 + $0xca8] sm:$0xff]
      %v583 = vld [vmem:[%s169 + $0xcb0] sm:$0xff]
      %v584 = vld [vmem:[%s169 + $0xcb8] sm:$0xff]
      %v585 = vld [vmem:[%s169 + $0xcc0] sm:$0xff]
      %v586 = vld [vmem:[%s169 + $0xcc8] sm:$0xff]
      %v587 = vld [vmem:[%s169 + $0xcd0] sm:$0xff]
      %v588 = vld [vmem:[%s169 + $0xcd8] sm:$0xff]
      %v589 = vld [vmem:[%s169 + $0xce0] sm:$0xff]
      %v590 = vld [vmem:[%s169 + $0xce8] sm:$0xff]
      %v591 = vld [vmem:[%s169 + $0xcf0] sm:$0xff]
      %v592 = vld [vmem:[%s169 + $0xcf8] sm:$0xff]
      %v593 = vld [vmem:[%s169 + $0xd00] sm:$0xff]
      %v594 = vld [vmem:[%s169 + $0xd08] sm:$0xff]
      %v595 = vld [vmem:[%s169 + $0xd10] sm:$0xff]
      %v596 = vld [vmem:[%s169 + $0xd18] sm:$0xff]
      %v597 = vld [vmem:[%s169 + $0xd20] sm:$0xff]
      %v598 = vld [vmem:[%s169 + $0xd28] sm:$0xff]
      %v599 = vld [vmem:[%s169 + $0xd30] sm:$0xff]
      %v600 = vld [vmem:[%s169 + $0xd38] sm:$0xff]
      %v601 = vld [vmem:[%s169 + $0xd40] sm:$0xff]
      %v602 = vld [vmem:[%s169 + $0xd48] sm:$0xff]
      %v603 = vld [vmem:[%s169 + $0xd50] sm:$0xff]
      %v604 = vld [vmem:[%s169 + $0xd58] sm:$0xff]
      %v605 = vld [vmem:[%s169 + $0xd60] sm:$0xff]
      %v606 = vld [vmem:[%s169 + $0xd68] sm:$0xff]
      %v607 = vld [vmem:[%s169 + $0xd70] sm:$0xff]
      %v608 = vld [vmem:[%s169 + $0xd78] sm:$0xff]
      %v609 = vld [vmem:[%s169 + $0xd80] sm:$0xff]
      %v610 = vld [vmem:[%s169 + $0xd88] sm:$0xff]
      %v611 = vld [vmem:[%s169 + $0xd90] sm:$0xff]
      %v612 = vld [vmem:[%s169 + $0xd98] sm:$0xff]
      %v613 = vld [vmem:[%s169 + $0xda0] sm:$0xff]
      %v614 = vld [vmem:[%s169 + $0xda8] sm:$0xff]
      %v615 = vld [vmem:[%s169 + $0xdb0] sm:$0xff]
      %v616 = vld [vmem:[%s169 + $0xdb8] sm:$0xff]
      %v617 = vld [vmem:[%s169 + $0xdc0] sm:$0xff]
      %v618 = vld [vmem:[%s169 + $0xdc8] sm:$0xff]
      %v619 = vld [vmem:[%s169 + $0xdd0] sm:$0xff]
      %v620 = vld [vmem:[%s169 + $0xdd8] sm:$0xff]
      %v621 = vld [vmem:[%s169 + $0xde0] sm:$0xff]
      %v622 = vld [vmem:[%s169 + $0xde8] sm:$0xff]
      %v623 = vld [vmem:[%s169 + $0xdf0] sm:$0xff]
      %v624 = vld [vmem:[%s169 + $0xdf8] sm:$0xff]
      %v625 = vld [vmem:[%s169 + $0xe00] sm:$0xff]
      %v626 = vld [vmem:[%s169 + $0xe08] sm:$0xff]
      %v627 = vld [vmem:[%s169 + $0xe10] sm:$0xff]
      %v628 = vld [vmem:[%s169 + $0xe18] sm:$0xff]
      %v629 = vld [vmem:[%s169 + $0xe20] sm:$0xff]
      %v630 = vld [vmem:[%s169 + $0xe28] sm:$0xff]
      %v631 = vld [vmem:[%s169 + $0xe30] sm:$0xff]
      %v632 = vld [vmem:[%s169 + $0xe38] sm:$0xff]
      %v633 = vld [vmem:[%s169 + $0xe40] sm:$0xff]
      %v634 = vld [vmem:[%s169 + $0xe48] sm:$0xff]
      %v635 = vld [vmem:[%s169 + $0xe50] sm:$0xff]
      %v636 = vld [vmem:[%s169 + $0xe58] sm:$0xff]
      %v637 = vld [vmem:[%s169 + $0xe60] sm:$0xff]
      %v638 = vld [vmem:[%s169 + $0xe68] sm:$0xff]
      %v639 = vld [vmem:[%s169 + $0xe70] sm:$0xff]
      %v640 = vld [vmem:[%s169 + $0xe78] sm:$0xff]
      %v641 = vld [vmem:[%s169 + $0xe80] sm:$0xff]
      %v642 = vld [vmem:[%s169 + $0xe88] sm:$0xff]
      %v643 = vld [vmem:[%s169 + $0xe90] sm:$0xff]
      %v644 = vld [vmem:[%s169 + $0xe98] sm:$0xff]
      %v645 = vld [vmem:[%s169 + $0xea0] sm:$0xff]
      %v646 = vld [vmem:[%s169 + $0xea8] sm:$0xff]
      %v647 = vld [vmem:[%s169 + $0xeb0] sm:$0xff]
      %v648 = vld [vmem:[%s169 + $0xeb8] sm:$0xff]
      %v649 = vld [vmem:[%s169 + $0xec0] sm:$0xff]
      %v650 = vld [vmem:[%s169 + $0xec8] sm:$0xff]
      %v651 = vld [vmem:[%s169 + $0xed0] sm:$0xff]
      %v652 = vld [vmem:[%s169 + $0xed8] sm:$0xff]
      %v653 = vld [vmem:[%s169 + $0xee0] sm:$0xff]
      %v654 = vld [vmem:[%s169 + $0xee8] sm:$0xff]
      %v655 = vld [vmem:[%s169 + $0xef0] sm:$0xff]
      %v656 = vld [vmem:[%s169 + $0xef8] sm:$0xff]
      %v657 = vld [vmem:[%s169 + $0xf00] sm:$0xff]
      %v658 = vld [vmem:[%s169 + $0xf08] sm:$0xff]
      %v659 = vld [vmem:[%s169 + $0xf10] sm:$0xff]
      %v660 = vld [vmem:[%s169 + $0xf18] sm:$0xff]
      %v661 = vld [vmem:[%s169 + $0xf20] sm:$0xff]
      %v662 = vld [vmem:[%s169 + $0xf28] sm:$0xff]
      %v663 = vld [vmem:[%s169 + $0xf30] sm:$0xff]
      %v664 = vld [vmem:[%s169 + $0xf38] sm:$0xff]
      %v665 = vld [vmem:[%s169 + $0xf40] sm:$0xff]
      %v666 = vld [vmem:[%s169 + $0xf48] sm:$0xff]
      %v667 = vld [vmem:[%s169 + $0xf50] sm:$0xff]
      %v668 = vld [vmem:[%s169 + $0xf58] sm:$0xff]
      %v669 = vld [vmem:[%s169 + $0xf60] sm:$0xff]
      %v670 = vld [vmem:[%s169 + $0xf68] sm:$0xff]
      %v671 = vld [vmem:[%s169 + $0xf70] sm:$0xff]
      %v672 = vld [vmem:[%s169 + $0xf78] sm:$0xff]
      %v673 = vld [vmem:[%s169 + $0xf80] sm:$0xff]
      %v674 = vld [vmem:[%s169 + $0xf88] sm:$0xff]
      %v675 = vld [vmem:[%s169 + $0xf90] sm:$0xff]
      %v676 = vld [vmem:[%s169 + $0xf98] sm:$0xff]
      %v677 = vld [vmem:[%s169 + $0xfa0] sm:$0xff]
      %v678 = vld [vmem:[%s169 + $0xfa8] sm:$0xff]
      %v679 = vld [vmem:[%s169 + $0xfb0] sm:$0xff]
      %v680 = vld [vmem:[%s169 + $0xfb8] sm:$0xff]
      %v681 = vld [vmem:[%s169 + $0xfc0] sm:$0xff]
      %v682 = vld [vmem:[%s169 + $0xfc8] sm:$0xff]
      %v683 = vld [vmem:[%s169 + $0xfd0] sm:$0xff]
      %v684 = vld [vmem:[%s169 + $0xfd8] sm:$0xff]
      %v685 = vld [vmem:[%s169 + $0xfe0] sm:$0xff]
      %v686 = vld [vmem:[%s169 + $0xfe8] sm:$0xff]
      %v687 = vld [vmem:[%s169 + $0xff0] sm:$0xff]
      %v688 = vld [vmem:[%s169 + $0xff8] sm:$0xff]
      %v689 = vld [vmem:[%s1] sm:$0xff]
      %v690 = vld [vmem:[%s1 + $0x8] sm:$0xff]
      %v691 = vld [vmem:[%s1 + $0x10] sm:$0xff]
      %v692 = vld [vmem:[%s1 + $0x18] sm:$0xff]
      %v693 = vld [vmem:[%s1 + $0x20] sm:$0xff]
      %v694 = vld [vmem:[%s1 + $0x28] sm:$0xff]
      %v695 = vld [vmem:[%s1 + $0x30] sm:$0xff]
      %v696 = vld [vmem:[%s1 + $0x38] sm:$0xff]
      %v697 = vld [vmem:[%s1 + $0x40] sm:$0xff]
      %v698 = vld [vmem:[%s1 + $0x48] sm:$0xff]
      %v699 = vld [vmem:[%s1 + $0x50] sm:$0xff]
      %v700 = vld [vmem:[%s1 + $0x58] sm:$0xff]
      %v701 = vld [vmem:[%s1 + $0x60] sm:$0xff]
      %v702 = vld [vmem:[%s1 + $0x68] sm:$0xff]
      %v703 = vld [vmem:[%s1 + $0x70] sm:$0xff]
      %v704 = vld [vmem:[%s1 + $0x78] sm:$0xff]
      %v705 = vld [vmem:[%s1 + $0x80] sm:$0xff]
      %v706 = vld [vmem:[%s1 + $0x88] sm:$0xff]
      %v707 = vld [vmem:[%s1 + $0x90] sm:$0xff]
      %v708 = vld [vmem:[%s1 + $0x98] sm:$0xff]
      %v709 = vld [vmem:[%s1 + $0xa0] sm:$0xff]
      %v710 = vld [vmem:[%s1 + $0xa8] sm:$0xff]
      %v711 = vld [vmem:[%s1 + $0xb0] sm:$0xff]
      %v712 = vld [vmem:[%s1 + $0xb8] sm:$0xff]
      %v713 = vld [vmem:[%s1 + $0xc0] sm:$0xff]
      %v714 = vld [vmem:[%s1 + $0xc8] sm:$0xff]
      %v715 = vld [vmem:[%s1 + $0xd0] sm:$0xff]
      %v716 = vld [vmem:[%s1 + $0xd8] sm:$0xff]
      %v717 = vld [vmem:[%s1 + $0xe0] sm:$0xff]
      %v718 = vld [vmem:[%s1 + $0xe8] sm:$0xff]
      %v719 = vld [vmem:[%s1 + $0xf0] sm:$0xff]
      %v720 = vld [vmem:[%s1 + $0xf8] sm:$0xff]
      %v721 = vld [vmem:[%s1 + $0x100] sm:$0xff]
      %v722 = vld [vmem:[%s1 + $0x108] sm:$0xff]
      %v723 = vld [vmem:[%s1 + $0x110] sm:$0xff]
      %v724 = vld [vmem:[%s1 + $0x118] sm:$0xff]
      %v725 = vld [vmem:[%s1 + $0x120] sm:$0xff]
      %v726 = vld [vmem:[%s1 + $0x128] sm:$0xff]
      %v727 = vld [vmem:[%s1 + $0x130] sm:$0xff]
      %v728 = vld [vmem:[%s1 + $0x138] sm:$0xff]
      %v729 = vld [vmem:[%s1 + $0x140] sm:$0xff]
      %v730 = vld [vmem:[%s1 + $0x148] sm:$0xff]
      %v731 = vld [vmem:[%s1 + $0x150] sm:$0xff]
      %v732 = vld [vmem:[%s1 + $0x158] sm:$0xff]
      %v733 = vld [vmem:[%s1 + $0x160] sm:$0xff]
      %v734 = vld [vmem:[%s1 + $0x168] sm:$0xff]
      %v735 = vld [vmem:[%s1 + $0x170] sm:$0xff]
      %v736 = vld [vmem:[%s1 + $0x178] sm:$0xff]
      %v737 = vld [vmem:[%s1 + $0x180] sm:$0xff]
      %v738 = vld [vmem:[%s1 + $0x188] sm:$0xff]
      %v739 = vld [vmem:[%s1 + $0x190] sm:$0xff]
      %v740 = vld [vmem:[%s1 + $0x198] sm:$0xff]
      %v741 = vld [vmem:[%s1 + $0x1a0] sm:$0xff]
      %v742 = vld [vmem:[%s1 + $0x1a8] sm:$0xff]
      %v743 = vld [vmem:[%s1 + $0x1b0] sm:$0xff]
      %v744 = vld [vmem:[%s1 + $0x1b8] sm:$0xff]
      %v745 = vld [vmem:[%s1 + $0x1c0] sm:$0xff]
      %v746 = vld [vmem:[%s1 + $0x1c8] sm:$0xff]
      %v747 = vld [vmem:[%s1 + $0x1d0] sm:$0xff]
      %v748 = vld [vmem:[%s1 + $0x1d8] sm:$0xff]
      %v749 = vld [vmem:[%s1 + $0x1e0] sm:$0xff]
      %v750 = vld [vmem:[%s1 + $0x1e8] sm:$0xff]
      %v751 = vld [vmem:[%s1 + $0x1f0] sm:$0xff]
      %v752 = vld [vmem:[%s1 + $0x1f8] sm:$0xff]
      %v753 = vld [vmem:[%s2] sm:$0x1]
      %v755 = vlaneseq
      %v756 = vshrl.u32 %v755, 7
      %v757 = vsub.s32 0, %v756
      %v758 = vrot.slane %v753, %v757
      %760 = vmatprep.subr.mxu0 0.0
      %761 = vmatpush1.msra.mxu0 %v704
      %762 = vmatprep.subr.mxu0 0.0
      %763 = vmatpush1.msra.mxu0 %v703
      %764 = vmatprep.subr.mxu0 0.0
      %765 = vmatpush1.msra.mxu0 %v702
      %766 = vmatprep.subr.mxu0 0.0
      %767 = vmatpush1.msra.mxu0 %v701
      %768 = vmatprep.subr.mxu0 0.0
      %769 = vmatpush1.msra.mxu0 %v700
      %770 = vmatprep.subr.mxu0 0.0
      %771 = vmatpush1.msra.mxu0 %v699
      %772 = vmatprep.subr.mxu0 0.0
      %773 = vmatpush1.msra.mxu0 %v698
      %774 = vmatprep.subr.mxu0 0.0
      %775 = vmatpush1.msra.mxu0 %v697
      %776 = vmatprep.subr.mxu0 0.0
      %777 = vmatpush1.msra.mxu0 %v696
      %778 = vmatprep.subr.mxu0 0.0
      %779 = vmatpush1.msra.mxu0 %v695
      %780 = vmatprep.subr.mxu0 0.0
      %781 = vmatpush1.msra.mxu0 %v694
      %782 = vmatprep.subr.mxu0 0.0
      %783 = vmatpush1.msra.mxu0 %v693
      %784 = vmatprep.subr.mxu0 0.0
      %785 = vmatpush1.msra.mxu0 %v692
      %786 = vmatprep.subr.mxu0 0.0
      %787 = vmatpush1.msra.mxu0 %v691
      %788 = vmatprep.subr.mxu0 0.0
      %789 = vmatpush1.msra.mxu0 %v690
      %790 = vmatprep.subr.mxu0 0.0
      %791 = vmatpush1.msra.mxu0 %v689
      %792 = vmatprep.subr.mxu0 0.0
      %793 = vmatpush2.msra.mxu0 %v720
      %794 = vmatprep.subr.mxu0 0.0
      %795 = vmatpush2.msra.mxu0 %v719
      %796 = vmatprep.subr.mxu0 0.0
      %797 = vmatpush2.msra.mxu0 %v718
      %798 = vmatprep.subr.mxu0 0.0
      %799 = vmatpush2.msra.mxu0 %v717
      %800 = vmatprep.subr.mxu0 0.0
      %801 = vmatpush2.msra.mxu0 %v716
      %802 = vmatprep.subr.mxu0 0.0
      %803 = vmatpush2.msra.mxu0 %v715
      %804 = vmatprep.subr.mxu0 0.0
      %805 = vmatpush2.msra.mxu0 %v714
      %806 = vmatprep.subr.mxu0 0.0
      %807 = vmatpush2.msra.mxu0 %v713
      %808 = vmatprep.subr.mxu0 0.0
      %809 = vmatpush2.msra.mxu0 %v712
      %810 = vmatprep.subr.mxu0 0.0
      %811 = vmatpush2.msra.mxu0 %v711
      %812 = vmatprep.subr.mxu0 0.0
      %813 = vmatpush2.msra.mxu0 %v710
      %814 = vmatprep.subr.mxu0 0.0
      %815 = vmatpush2.msra.mxu0 %v709
      %816 = vmatprep.subr.mxu0 0.0
      %817 = vmatpush2.msra.mxu0 %v708
      %818 = vmatprep.subr.mxu0 0.0
      %819 = vmatpush2.msra.mxu0 %v707
      %820 = vmatprep.subr.mxu0 0.0
      %821 = vmatpush2.msra.mxu0 %v706
      %822 = vmatprep.subr.mxu0 0.0
      %823 = vmatpush2.msra.mxu0 %v705
      %824 = vmatprep.mubr.f32.mxu0 %v178
      %825 = vmatmul.mubr.f32.gmra.mxu0 %v177
      %v826 = vpop.f32.mrf.mxu0
      %v827 = vadd.f32 %v758, %v826
      %v828 = vpop.f32.mrf.mxu0
      %829 = vmatprep.mubr.f32.mxu0 %v182
      %830 = vmatmul.mubr.f32.gmra.mxu0 %v181
      %v831 = vpop.f32.mrf.mxu0
      %v832 = vadd.f32 %v758, %v831
      %v833 = vpop.f32.mrf.mxu0
      %834 = vmatprep.mubr.f32.mxu0 %v186
      %835 = vmatmul.mubr.f32.gmra.mxu0 %v185
      %v836 = vpop.f32.mrf.mxu0
      %v837 = vadd.f32 %v758, %v836
      %v838 = vpop.f32.mrf.mxu0
      %839 = vmatprep.mubr.f32.mxu0 %v190
      %840 = vmatmul.mubr.f32.gmra.mxu0 %v189
      %v841 = vpop.f32.mrf.mxu0
      %v842 = vadd.f32 %v758, %v841
      %v843 = vpop.f32.mrf.mxu0
      %844 = vmatprep.mubr.f32.mxu0 %v194
      %845 = vmatmul.mubr.f32.gmra.mxu0 %v193
      %v846 = vpop.f32.mrf.mxu0
      %v847 = vadd.f32 %v758, %v846
      %v848 = vpop.f32.mrf.mxu0
      %849 = vmatprep.mubr.f32.mxu0 %v198
      %850 = vmatmul.mubr.f32.gmra.mxu0 %v197
      %v851 = vpop.f32.mrf.mxu0
      %v852 = vadd.f32 %v758, %v851
      %v853 = vpop.f32.mrf.mxu0
      %854 = vmatprep.mubr.f32.mxu0 %v202
      %855 = vmatmul.mubr.f32.gmra.mxu0 %v201
      %v856 = vpop.f32.mrf.mxu0
      %v857 = vadd.f32 %v758, %v856
      %v858 = vpop.f32.mrf.mxu0
      %859 = vmatprep.mubr.f32.mxu0 %v206
      %860 = vmatmul.mubr.f32.gmra.mxu0 %v205
      %v861 = vpop.f32.mrf.mxu0
      %v862 = vadd.f32 %v758, %v861
      %v863 = vpop.f32.mrf.mxu0
      %864 = vmatprep.mubr.f32.mxu0 %v210
      %865 = vmatmul.mubr.f32.gmra.mxu0 %v209
      %v866 = vpop.f32.mrf.mxu0
      %v867 = vadd.f32 %v758, %v866
      %v868 = vpop.f32.mrf.mxu0
      %869 = vmatprep.mubr.f32.mxu0 %v214
      %870 = vmatmul.mubr.f32.gmra.mxu0 %v213
      %v871 = vpop.f32.mrf.mxu0
      %v872 = vadd.f32 %v758, %v871
      %v873 = vpop.f32.mrf.mxu0
      %874 = vmatprep.mubr.f32.mxu0 %v218
      %875 = vmatmul.mubr.f32.gmra.mxu0 %v217
      %v876 = vpop.f32.mrf.mxu0
      %v877 = vadd.f32 %v758, %v876
      %v878 = vpop.f32.mrf.mxu0
      %879 = vmatprep.mubr.f32.mxu0 %v222
      %880 = vmatmul.mubr.f32.gmra.mxu0 %v221
      %v881 = vpop.f32.mrf.mxu0
      %v882 = vadd.f32 %v758, %v881
      %v883 = vpop.f32.mrf.mxu0
      %884 = vmatprep.mubr.f32.mxu0 %v226
      %885 = vmatmul.mubr.f32.gmra.mxu0 %v225
      %v886 = vpop.f32.mrf.mxu0
      %v887 = vadd.f32 %v758, %v886
      %v888 = vpop.f32.mrf.mxu0
      %889 = vmatprep.mubr.f32.mxu0 %v230
      %890 = vmatmul.mubr.f32.gmra.mxu0 %v229
      %v891 = vpop.f32.mrf.mxu0
      %v892 = vadd.f32 %v758, %v891
      %v893 = vpop.f32.mrf.mxu0
      %894 = vmatprep.mubr.f32.mxu0 %v234
      %895 = vmatmul.mubr.f32.gmra.mxu0 %v233
      %v896 = vpop.f32.mrf.mxu0
      %v897 = vadd.f32 %v758, %v896
      %v898 = vpop.f32.mrf.mxu0
      %899 = vmatprep.mubr.f32.mxu0 %v238
      %900 = vmatmul.mubr.f32.gmra.mxu0 %v237
      %v901 = vpop.f32.mrf.mxu0
      %v902 = vadd.f32 %v758, %v901
      %v903 = vpop.f32.mrf.mxu0
      %904 = vmatprep.mubr.f32.mxu0 %v242
      %905 = vmatmul.mubr.f32.gmra.mxu0 %v241
      %v906 = vpop.f32.mrf.mxu0
      %v907 = vadd.f32 %v758, %v906
      %v908 = vpop.f32.mrf.mxu0
      %909 = vmatprep.mubr.f32.mxu0 %v246
      %910 = vmatmul.mubr.f32.gmra.mxu0 %v245
      %v911 = vpop.f32.mrf.mxu0
      %v912 = vadd.f32 %v758, %v911
      %v913 = vpop.f32.mrf.mxu0
      %914 = vmatprep.mubr.f32.mxu0 %v250
      %915 = vmatmul.mubr.f32.gmra.mxu0 %v249
      %v916 = vpop.f32.mrf.mxu0
      %v917 = vadd.f32 %v758, %v916
      %v918 = vpop.f32.mrf.mxu0
      %919 = vmatprep.mubr.f32.mxu0 %v254
      %920 = vmatmul.mubr.f32.gmra.mxu0 %v253
      %v921 = vpop.f32.mrf.mxu0
      %v922 = vadd.f32 %v758, %v921
      %v923 = vpop.f32.mrf.mxu0
      %924 = vmatprep.mubr.f32.mxu0 %v258
      %925 = vmatmul.mubr.f32.gmra.mxu0 %v257
      %v926 = vpop.f32.mrf.mxu0
      %v927 = vadd.f32 %v758, %v926
      %v928 = vpop.f32.mrf.mxu0
      %929 = vmatprep.mubr.f32.mxu0 %v262
      %930 = vmatmul.mubr.f32.gmra.mxu0 %v261
      %v931 = vpop.f32.mrf.mxu0
      %v932 = vadd.f32 %v758, %v931
      %v933 = vpop.f32.mrf.mxu0
      %934 = vmatprep.mubr.f32.mxu0 %v266
      %935 = vmatmul.mubr.f32.gmra.mxu0 %v265
      %v936 = vpop.f32.mrf.mxu0
      %v937 = vadd.f32 %v758, %v936
      %v938 = vpop.f32.mrf.mxu0
      %939 = vmatprep.mubr.f32.mxu0 %v270
      %940 = vmatmul.mubr.f32.gmra.mxu0 %v269
      %v941 = vpop.f32.mrf.mxu0
      %v942 = vadd.f32 %v758, %v941
      %v943 = vpop.f32.mrf.mxu0
      %944 = vmatprep.mubr.f32.mxu0 %v274
      %945 = vmatmul.mubr.f32.gmra.mxu0 %v273
      %v946 = vpop.f32.mrf.mxu0
      %v947 = vadd.f32 %v758, %v946
      %v948 = vpop.f32.mrf.mxu0
      %949 = vmatprep.mubr.f32.mxu0 %v278
      %950 = vmatmul.mubr.f32.gmra.mxu0 %v277
      %v951 = vpop.f32.mrf.mxu0
      %v952 = vadd.f32 %v758, %v951
      %v953 = vpop.f32.mrf.mxu0
      %954 = vmatprep.mubr.f32.mxu0 %v282
      %955 = vmatmul.mubr.f32.gmra.mxu0 %v281
      %v956 = vpop.f32.mrf.mxu0
      %v957 = vadd.f32 %v758, %v956
      %v958 = vpop.f32.mrf.mxu0
      %959 = vmatprep.mubr.f32.mxu0 %v286
      %960 = vmatmul.mubr.f32.gmra.mxu0 %v285
      %v961 = vpop.f32.mrf.mxu0
      %v962 = vadd.f32 %v758, %v961
      %v963 = vpop.f32.mrf.mxu0
      %964 = vmatprep.mubr.f32.mxu0 %v290
      %965 = vmatmul.mubr.f32.gmra.mxu0 %v289
      %v966 = vpop.f32.mrf.mxu0
      %v967 = vadd.f32 %v758, %v966
      %v968 = vpop.f32.mrf.mxu0
      %969 = vmatprep.mubr.f32.mxu0 %v294
      %970 = vmatmul.mubr.f32.gmra.mxu0 %v293
      %v971 = vpop.f32.mrf.mxu0
      %v972 = vadd.f32 %v758, %v971
      %v973 = vpop.f32.mrf.mxu0
      %974 = vmatprep.mubr.f32.mxu0 %v298
      %975 = vmatmul.mubr.f32.gmra.mxu0 %v297
      %v976 = vpop.f32.mrf.mxu0
      %v977 = vadd.f32 %v758, %v976
      %v978 = vpop.f32.mrf.mxu0
      %979 = vmatprep.mubr.f32.mxu0 %v302
      %980 = vmatmul.mubr.f32.gmra.mxu0 %v301
      %v981 = vpop.f32.mrf.mxu0
      %v982 = vadd.f32 %v758, %v981
      %v983 = vpop.f32.mrf.mxu0
      %984 = vmatprep.mubr.f32.mxu0 %v306
      %985 = vmatmul.mubr.f32.gmra.mxu0 %v305
      %v986 = vpop.f32.mrf.mxu0
      %v987 = vadd.f32 %v758, %v986
      %v988 = vpop.f32.mrf.mxu0
      %989 = vmatprep.mubr.f32.mxu0 %v310
      %990 = vmatmul.mubr.f32.gmra.mxu0 %v309
      %v991 = vpop.f32.mrf.mxu0
      %v992 = vadd.f32 %v758, %v991
      %v993 = vpop.f32.mrf.mxu0
      %994 = vmatprep.mubr.f32.mxu0 %v314
      %995 = vmatmul.mubr.f32.gmra.mxu0 %v313
      %v996 = vpop.f32.mrf.mxu0
      %v997 = vadd.f32 %v758, %v996
      %v998 = vpop.f32.mrf.mxu0
      %999 = vmatprep.mubr.f32.mxu0 %v318
      %1000 = vmatmul.mubr.f32.gmra.mxu0 %v317
      %v1001 = vpop.f32.mrf.mxu0
      %v1002 = vadd.f32 %v758, %v1001
      %v1003 = vpop.f32.mrf.mxu0
      %1004 = vmatprep.mubr.f32.mxu0 %v322
      %1005 = vmatmul.mubr.f32.gmra.mxu0 %v321
      %v1006 = vpop.f32.mrf.mxu0
      %v1007 = vadd.f32 %v758, %v1006
      %v1008 = vpop.f32.mrf.mxu0
      %1009 = vmatprep.mubr.f32.mxu0 %v326
      %1010 = vmatmul.mubr.f32.gmra.mxu0 %v325
      %v1011 = vpop.f32.mrf.mxu0
      %v1012 = vadd.f32 %v758, %v1011
      %v1013 = vpop.f32.mrf.mxu0
      %1014 = vmatprep.mubr.f32.mxu0 %v330
      %1015 = vmatmul.mubr.f32.gmra.mxu0 %v329
      %v1016 = vpop.f32.mrf.mxu0
      %v1017 = vadd.f32 %v758, %v1016
      %v1018 = vpop.f32.mrf.mxu0
      %1019 = vmatprep.mubr.f32.mxu0 %v334
      %1020 = vmatmul.mubr.f32.gmra.mxu0 %v333
      %v1021 = vpop.f32.mrf.mxu0
      %v1022 = vadd.f32 %v758, %v1021
      %v1023 = vpop.f32.mrf.mxu0
      %1024 = vmatprep.mubr.f32.mxu0 %v338
      %1025 = vmatmul.mubr.f32.gmra.mxu0 %v337
      %v1026 = vpop.f32.mrf.mxu0
      %v1027 = vadd.f32 %v758, %v1026
      %v1028 = vpop.f32.mrf.mxu0
      %1029 = vmatprep.mubr.f32.mxu0 %v342
      %1030 = vmatmul.mubr.f32.gmra.mxu0 %v341
      %v1031 = vpop.f32.mrf.mxu0
      %v1032 = vadd.f32 %v758, %v1031
      %v1033 = vpop.f32.mrf.mxu0
      %1034 = vmatprep.mubr.f32.mxu0 %v346
      %1035 = vmatmul.mubr.f32.gmra.mxu0 %v345
      %v1036 = vpop.f32.mrf.mxu0
      %v1037 = vadd.f32 %v758, %v1036
      %v1038 = vpop.f32.mrf.mxu0
      %1039 = vmatprep.mubr.f32.mxu0 %v350
      %1040 = vmatmul.mubr.f32.gmra.mxu0 %v349
      %v1041 = vpop.f32.mrf.mxu0
      %v1042 = vadd.f32 %v758, %v1041
      %v1043 = vpop.f32.mrf.mxu0
      %1044 = vmatprep.mubr.f32.mxu0 %v354
      %1045 = vmatmul.mubr.f32.gmra.mxu0 %v353
      %v1046 = vpop.f32.mrf.mxu0
      %v1047 = vadd.f32 %v758, %v1046
      %v1048 = vpop.f32.mrf.mxu0
      %1049 = vmatprep.mubr.f32.mxu0 %v358
      %1050 = vmatmul.mubr.f32.gmra.mxu0 %v357
      %v1051 = vpop.f32.mrf.mxu0
      %v1052 = vadd.f32 %v758, %v1051
      %v1053 = vpop.f32.mrf.mxu0
      %1054 = vmatprep.mubr.f32.mxu0 %v362
      %1055 = vmatmul.mubr.f32.gmra.mxu0 %v361
      %v1056 = vpop.f32.mrf.mxu0
      %v1057 = vadd.f32 %v758, %v1056
      %v1058 = vpop.f32.mrf.mxu0
      %1059 = vmatprep.mubr.f32.mxu0 %v366
      %1060 = vmatmul.mubr.f32.gmra.mxu0 %v365
      %v1061 = vpop.f32.mrf.mxu0
      %v1062 = vadd.f32 %v758, %v1061
      %v1063 = vpop.f32.mrf.mxu0
      %1064 = vmatprep.mubr.f32.mxu0 %v370
      %1065 = vmatmul.mubr.f32.gmra.mxu0 %v369
      %v1066 = vpop.f32.mrf.mxu0
      %v1067 = vadd.f32 %v758, %v1066
      %v1068 = vpop.f32.mrf.mxu0
      %1069 = vmatprep.mubr.f32.mxu0 %v374
      %1070 = vmatmul.mubr.f32.gmra.mxu0 %v373
      %v1071 = vpop.f32.mrf.mxu0
      %v1072 = vadd.f32 %v758, %v1071
      %v1073 = vpop.f32.mrf.mxu0
      %1074 = vmatprep.mubr.f32.mxu0 %v378
      %1075 = vmatmul.mubr.f32.gmra.mxu0 %v377
      %v1076 = vpop.f32.mrf.mxu0
      %v1077 = vadd.f32 %v758, %v1076
      %v1078 = vpop.f32.mrf.mxu0
      %1079 = vmatprep.mubr.f32.mxu0 %v382
      %1080 = vmatmul.mubr.f32.gmra.mxu0 %v381
      %v1081 = vpop.f32.mrf.mxu0
      %v1082 = vadd.f32 %v758, %v1081
      %v1083 = vpop.f32.mrf.mxu0
      %1084 = vmatprep.mubr.f32.mxu0 %v386
      %1085 = vmatmul.mubr.f32.gmra.mxu0 %v385
      %v1086 = vpop.f32.mrf.mxu0
      %v1087 = vadd.f32 %v758, %v1086
      %v1088 = vpop.f32.mrf.mxu0
      %1089 = vmatprep.mubr.f32.mxu0 %v390
      %1090 = vmatmul.mubr.f32.gmra.mxu0 %v389
      %v1091 = vpop.f32.mrf.mxu0
      %v1092 = vadd.f32 %v758, %v1091
      %v1093 = vpop.f32.mrf.mxu0
      %1094 = vmatprep.mubr.f32.mxu0 %v394
      %1095 = vmatmul.mubr.f32.gmra.mxu0 %v393
      %v1096 = vpop.f32.mrf.mxu0
      %v1097 = vadd.f32 %v758, %v1096
      %v1098 = vpop.f32.mrf.mxu0
      %1099 = vmatprep.mubr.f32.mxu0 %v398
      %1100 = vmatmul.mubr.f32.gmra.mxu0 %v397
      %v1101 = vpop.f32.mrf.mxu0
      %v1102 = vadd.f32 %v758, %v1101
      %v1103 = vpop.f32.mrf.mxu0
      %1104 = vmatprep.mubr.f32.mxu0 %v402
      %1105 = vmatmul.mubr.f32.gmra.mxu0 %v401
      %v1106 = vpop.f32.mrf.mxu0
      %v1107 = vadd.f32 %v758, %v1106
      %v1108 = vpop.f32.mrf.mxu0
      %1109 = vmatprep.mubr.f32.mxu0 %v406
      %1110 = vmatmul.mubr.f32.gmra.mxu0 %v405
      %v1111 = vpop.f32.mrf.mxu0
      %v1112 = vadd.f32 %v758, %v1111
      %v1113 = vpop.f32.mrf.mxu0
      %1114 = vmatprep.mubr.f32.mxu0 %v410
      %1115 = vmatmul.mubr.f32.gmra.mxu0 %v409
      %v1116 = vpop.f32.mrf.mxu0
      %v1117 = vadd.f32 %v758, %v1116
      %v1118 = vpop.f32.mrf.mxu0
      %1119 = vmatprep.mubr.f32.mxu0 %v414
      %1120 = vmatmul.mubr.f32.gmra.mxu0 %v413
      %v1121 = vpop.f32.mrf.mxu0
      %v1122 = vadd.f32 %v758, %v1121
      %v1123 = vpop.f32.mrf.mxu0
      %1124 = vmatprep.mubr.f32.mxu0 %v418
      %1125 = vmatmul.mubr.f32.gmra.mxu0 %v417
      %v1126 = vpop.f32.mrf.mxu0
      %v1127 = vadd.f32 %v758, %v1126
      %v1128 = vpop.f32.mrf.mxu0
      %1129 = vmatprep.mubr.f32.mxu0 %v422
      %1130 = vmatmul.mubr.f32.gmra.mxu0 %v421
      %v1131 = vpop.f32.mrf.mxu0
      %v1132 = vadd.f32 %v758, %v1131
      %v1133 = vpop.f32.mrf.mxu0
      %1134 = vmatprep.mubr.f32.mxu0 %v426
      %1135 = vmatmul.mubr.f32.gmra.mxu0 %v425
      %v1136 = vpop.f32.mrf.mxu0
      %v1137 = vadd.f32 %v758, %v1136
      %v1138 = vpop.f32.mrf.mxu0
      %1139 = vmatprep.mubr.f32.mxu0 %v430
      %1140 = vmatmul.mubr.f32.gmra.mxu0 %v429
      %v1141 = vpop.f32.mrf.mxu0
      %v1142 = vadd.f32 %v758, %v1141
      %v1143 = vpop.f32.mrf.mxu0
      %1144 = vmatprep.mubr.f32.mxu0 %v434
      %1145 = vmatmul.mubr.f32.gmra.mxu0 %v433
      %v1146 = vpop.f32.mrf.mxu0
      %v1147 = vadd.f32 %v758, %v1146
      %v1148 = vpop.f32.mrf.mxu0
      %1149 = vmatprep.mubr.f32.mxu0 %v438
      %1150 = vmatmul.mubr.f32.gmra.mxu0 %v437
      %v1151 = vpop.f32.mrf.mxu0
      %v1152 = vadd.f32 %v758, %v1151
      %v1153 = vpop.f32.mrf.mxu0
      %1154 = vmatprep.mubr.f32.mxu0 %v442
      %1155 = vmatmul.mubr.f32.gmra.mxu0 %v441
      %v1156 = vpop.f32.mrf.mxu0
      %v1157 = vadd.f32 %v758, %v1156
      %v1158 = vpop.f32.mrf.mxu0
      %1159 = vmatprep.mubr.f32.mxu0 %v446
      %1160 = vmatmul.mubr.f32.gmra.mxu0 %v445
      %v1161 = vpop.f32.mrf.mxu0
      %v1162 = vadd.f32 %v758, %v1161
      %v1163 = vpop.f32.mrf.mxu0
      %1164 = vmatprep.mubr.f32.mxu0 %v450
      %1165 = vmatmul.mubr.f32.gmra.mxu0 %v449
      %v1166 = vpop.f32.mrf.mxu0
      %v1167 = vadd.f32 %v758, %v1166
      %v1168 = vpop.f32.mrf.mxu0
      %1169 = vmatprep.mubr.f32.mxu0 %v454
      %1170 = vmatmul.mubr.f32.gmra.mxu0 %v453
      %v1171 = vpop.f32.mrf.mxu0
      %v1172 = vadd.f32 %v758, %v1171
      %v1173 = vpop.f32.mrf.mxu0
      %1174 = vmatprep.mubr.f32.mxu0 %v458
      %1175 = vmatmul.mubr.f32.gmra.mxu0 %v457
      %v1176 = vpop.f32.mrf.mxu0
      %v1177 = vadd.f32 %v758, %v1176
      %v1178 = vpop.f32.mrf.mxu0
      %1179 = vmatprep.mubr.f32.mxu0 %v462
      %1180 = vmatmul.mubr.f32.gmra.mxu0 %v461
      %v1181 = vpop.f32.mrf.mxu0
      %v1182 = vadd.f32 %v758, %v1181
      %v1183 = vpop.f32.mrf.mxu0
      %1184 = vmatprep.mubr.f32.mxu0 %v466
      %1185 = vmatmul.mubr.f32.gmra.mxu0 %v465
      %v1186 = vpop.f32.mrf.mxu0
      %v1187 = vadd.f32 %v758, %v1186
      %v1188 = vpop.f32.mrf.mxu0
      %1189 = vmatprep.mubr.f32.mxu0 %v470
      %1190 = vmatmul.mubr.f32.gmra.mxu0 %v469
      %v1191 = vpop.f32.mrf.mxu0
      %v1192 = vadd.f32 %v758, %v1191
      %v1193 = vpop.f32.mrf.mxu0
      %1194 = vmatprep.mubr.f32.mxu0 %v474
      %1195 = vmatmul.mubr.f32.gmra.mxu0 %v473
      %v1196 = vpop.f32.mrf.mxu0
      %v1197 = vadd.f32 %v758, %v1196
      %v1198 = vpop.f32.mrf.mxu0
      %1199 = vmatprep.mubr.f32.mxu0 %v478
      %1200 = vmatmul.mubr.f32.gmra.mxu0 %v477
      %v1201 = vpop.f32.mrf.mxu0
      %v1202 = vadd.f32 %v758, %v1201
      %v1203 = vpop.f32.mrf.mxu0
      %1204 = vmatprep.mubr.f32.mxu0 %v482
      %1205 = vmatmul.mubr.f32.gmra.mxu0 %v481
      %v1206 = vpop.f32.mrf.mxu0
      %v1207 = vadd.f32 %v758, %v1206
      %v1208 = vpop.f32.mrf.mxu0
      %1209 = vmatprep.mubr.f32.mxu0 %v486
      %1210 = vmatmul.mubr.f32.gmra.mxu0 %v485
      %v1211 = vpop.f32.mrf.mxu0
      %v1212 = vadd.f32 %v758, %v1211
      %v1213 = vpop.f32.mrf.mxu0
      %1214 = vmatprep.mubr.f32.mxu0 %v490
      %1215 = vmatmul.mubr.f32.gmra.mxu0 %v489
      %v1216 = vpop.f32.mrf.mxu0
      %v1217 = vadd.f32 %v758, %v1216
      %v1218 = vpop.f32.mrf.mxu0
      %1219 = vmatprep.mubr.f32.mxu0 %v494
      %1220 = vmatmul.mubr.f32.gmra.mxu0 %v493
      %v1221 = vpop.f32.mrf.mxu0
      %v1222 = vadd.f32 %v758, %v1221
      %v1223 = vpop.f32.mrf.mxu0
      %1224 = vmatprep.mubr.f32.mxu0 %v498
      %1225 = vmatmul.mubr.f32.gmra.mxu0 %v497
      %v1226 = vpop.f32.mrf.mxu0
      %v1227 = vadd.f32 %v758, %v1226
      %v1228 = vpop.f32.mrf.mxu0
      %1229 = vmatprep.mubr.f32.mxu0 %v502
      %1230 = vmatmul.mubr.f32.gmra.mxu0 %v501
      %v1231 = vpop.f32.mrf.mxu0
      %v1232 = vadd.f32 %v758, %v1231
      %v1233 = vpop.f32.mrf.mxu0
      %1234 = vmatprep.mubr.f32.mxu0 %v506
      %1235 = vmatmul.mubr.f32.gmra.mxu0 %v505
      %v1236 = vpop.f32.mrf.mxu0
      %v1237 = vadd.f32 %v758, %v1236
      %v1238 = vpop.f32.mrf.mxu0
      %1239 = vmatprep.mubr.f32.mxu0 %v510
      %1240 = vmatmul.mubr.f32.gmra.mxu0 %v509
      %v1241 = vpop.f32.mrf.mxu0
      %v1242 = vadd.f32 %v758, %v1241
      %v1243 = vpop.f32.mrf.mxu0
      %1244 = vmatprep.mubr.f32.mxu0 %v514
      %1245 = vmatmul.mubr.f32.gmra.mxu0 %v513
      %v1246 = vpop.f32.mrf.mxu0
      %v1247 = vadd.f32 %v758, %v1246
      %v1248 = vpop.f32.mrf.mxu0
      %1249 = vmatprep.mubr.f32.mxu0 %v518
      %1250 = vmatmul.mubr.f32.gmra.mxu0 %v517
      %v1251 = vpop.f32.mrf.mxu0
      %v1252 = vadd.f32 %v758, %v1251
      %v1253 = vpop.f32.mrf.mxu0
      %1254 = vmatprep.mubr.f32.mxu0 %v522
      %1255 = vmatmul.mubr.f32.gmra.mxu0 %v521
      %v1256 = vpop.f32.mrf.mxu0
      %v1257 = vadd.f32 %v758, %v1256
      %v1258 = vpop.f32.mrf.mxu0
      %1259 = vmatprep.mubr.f32.mxu0 %v526
      %1260 = vmatmul.mubr.f32.gmra.mxu0 %v525
      %v1261 = vpop.f32.mrf.mxu0
      %v1262 = vadd.f32 %v758, %v1261
      %v1263 = vpop.f32.mrf.mxu0
      %1264 = vmatprep.mubr.f32.mxu0 %v530
      %1265 = vmatmul.mubr.f32.gmra.mxu0 %v529
      %v1266 = vpop.f32.mrf.mxu0
      %v1267 = vadd.f32 %v758, %v1266
      %v1268 = vpop.f32.mrf.mxu0
      %1269 = vmatprep.mubr.f32.mxu0 %v534
      %1270 = vmatmul.mubr.f32.gmra.mxu0 %v533
      %v1271 = vpop.f32.mrf.mxu0
      %v1272 = vadd.f32 %v758, %v1271
      %v1273 = vpop.f32.mrf.mxu0
      %1274 = vmatprep.mubr.f32.mxu0 %v538
      %1275 = vmatmul.mubr.f32.gmra.mxu0 %v537
      %v1276 = vpop.f32.mrf.mxu0
      %v1277 = vadd.f32 %v758, %v1276
      %v1278 = vpop.f32.mrf.mxu0
      %1279 = vmatprep.mubr.f32.mxu0 %v542
      %1280 = vmatmul.mubr.f32.gmra.mxu0 %v541
      %v1281 = vpop.f32.mrf.mxu0
      %v1282 = vadd.f32 %v758, %v1281
      %v1283 = vpop.f32.mrf.mxu0
      %1284 = vmatprep.mubr.f32.mxu0 %v546
      %1285 = vmatmul.mubr.f32.gmra.mxu0 %v545
      %v1286 = vpop.f32.mrf.mxu0
      %v1287 = vadd.f32 %v758, %v1286
      %v1288 = vpop.f32.mrf.mxu0
      %1289 = vmatprep.mubr.f32.mxu0 %v550
      %1290 = vmatmul.mubr.f32.gmra.mxu0 %v549
      %v1291 = vpop.f32.mrf.mxu0
      %v1292 = vadd.f32 %v758, %v1291
      %v1293 = vpop.f32.mrf.mxu0
      %1294 = vmatprep.mubr.f32.mxu0 %v554
      %1295 = vmatmul.mubr.f32.gmra.mxu0 %v553
      %v1296 = vpop.f32.mrf.mxu0
      %v1297 = vadd.f32 %v758, %v1296
      %v1298 = vpop.f32.mrf.mxu0
      %1299 = vmatprep.mubr.f32.mxu0 %v558
      %1300 = vmatmul.mubr.f32.gmra.mxu0 %v557
      %v1301 = vpop.f32.mrf.mxu0
      %v1302 = vadd.f32 %v758, %v1301
      %v1303 = vpop.f32.mrf.mxu0
      %1304 = vmatprep.mubr.f32.mxu0 %v562
      %1305 = vmatmul.mubr.f32.gmra.mxu0 %v561
      %v1306 = vpop.f32.mrf.mxu0
      %v1307 = vadd.f32 %v758, %v1306
      %v1308 = vpop.f32.mrf.mxu0
      %1309 = vmatprep.mubr.f32.mxu0 %v566
      %1310 = vmatmul.mubr.f32.gmra.mxu0 %v565
      %v1311 = vpop.f32.mrf.mxu0
      %v1312 = vadd.f32 %v758, %v1311
      %v1313 = vpop.f32.mrf.mxu0
      %1314 = vmatprep.mubr.f32.mxu0 %v570
      %1315 = vmatmul.mubr.f32.gmra.mxu0 %v569
      %v1316 = vpop.f32.mrf.mxu0
      %v1317 = vadd.f32 %v758, %v1316
      %v1318 = vpop.f32.mrf.mxu0
      %1319 = vmatprep.mubr.f32.mxu0 %v574
      %1320 = vmatmul.mubr.f32.gmra.mxu0 %v573
      %v1321 = vpop.f32.mrf.mxu0
      %v1322 = vadd.f32 %v758, %v1321
      %v1323 = vpop.f32.mrf.mxu0
      %1324 = vmatprep.mubr.f32.mxu0 %v578
      %1325 = vmatmul.mubr.f32.gmra.mxu0 %v577
      %v1326 = vpop.f32.mrf.mxu0
      %v1327 = vadd.f32 %v758, %v1326
      %v1328 = vpop.f32.mrf.mxu0
      %1329 = vmatprep.mubr.f32.mxu0 %v582
      %1330 = vmatmul.mubr.f32.gmra.mxu0 %v581
      %v1331 = vpop.f32.mrf.mxu0
      %v1332 = vadd.f32 %v758, %v1331
      %v1333 = vpop.f32.mrf.mxu0
      %1334 = vmatprep.mubr.f32.mxu0 %v586
      %1335 = vmatmul.mubr.f32.gmra.mxu0 %v585
      %v1336 = vpop.f32.mrf.mxu0
      %v1337 = vadd.f32 %v758, %v1336
      %v1338 = vpop.f32.mrf.mxu0
      %1339 = vmatprep.mubr.f32.mxu0 %v590
      %1340 = vmatmul.mubr.f32.gmra.mxu0 %v589
      %v1341 = vpop.f32.mrf.mxu0
      %v1342 = vadd.f32 %v758, %v1341
      %v1343 = vpop.f32.mrf.mxu0
      %1344 = vmatprep.mubr.f32.mxu0 %v594
      %1345 = vmatmul.mubr.f32.gmra.mxu0 %v593
      %v1346 = vpop.f32.mrf.mxu0
      %v1347 = vadd.f32 %v758, %v1346
      %v1348 = vpop.f32.mrf.mxu0
      %1349 = vmatprep.mubr.f32.mxu0 %v598
      %1350 = vmatmul.mubr.f32.gmra.mxu0 %v597
      %v1351 = vpop.f32.mrf.mxu0
      %v1352 = vadd.f32 %v758, %v1351
      %v1353 = vpop.f32.mrf.mxu0
      %1354 = vmatprep.mubr.f32.mxu0 %v602
      %1355 = vmatmul.mubr.f32.gmra.mxu0 %v601
      %v1356 = vpop.f32.mrf.mxu0
      %v1357 = vadd.f32 %v758, %v1356
      %v1358 = vpop.f32.mrf.mxu0
      %1359 = vmatprep.mubr.f32.mxu0 %v606
      %1360 = vmatmul.mubr.f32.gmra.mxu0 %v605
      %v1361 = vpop.f32.mrf.mxu0
      %v1362 = vadd.f32 %v758, %v1361
      %v1363 = vpop.f32.mrf.mxu0
      %1364 = vmatprep.mubr.f32.mxu0 %v610
      %1365 = vmatmul.mubr.f32.gmra.mxu0 %v609
      %v1366 = vpop.f32.mrf.mxu0
      %v1367 = vadd.f32 %v758, %v1366
      %v1368 = vpop.f32.mrf.mxu0
      %1369 = vmatprep.mubr.f32.mxu0 %v614
      %1370 = vmatmul.mubr.f32.gmra.mxu0 %v613
      %v1371 = vpop.f32.mrf.mxu0
      %v1372 = vadd.f32 %v758, %v1371
      %v1373 = vpop.f32.mrf.mxu0
      %1374 = vmatprep.mubr.f32.mxu0 %v618
      %1375 = vmatmul.mubr.f32.gmra.mxu0 %v617
      %v1376 = vpop.f32.mrf.mxu0
      %v1377 = vadd.f32 %v758, %v1376
      %v1378 = vpop.f32.mrf.mxu0
      %1379 = vmatprep.mubr.f32.mxu0 %v622
      %1380 = vmatmul.mubr.f32.gmra.mxu0 %v621
      %v1381 = vpop.f32.mrf.mxu0
      %v1382 = vadd.f32 %v758, %v1381
      %v1383 = vpop.f32.mrf.mxu0
      %1384 = vmatprep.mubr.f32.mxu0 %v626
      %1385 = vmatmul.mubr.f32.gmra.mxu0 %v625
      %v1386 = vpop.f32.mrf.mxu0
      %v1387 = vadd.f32 %v758, %v1386
      %v1388 = vpop.f32.mrf.mxu0
      %1389 = vmatprep.mubr.f32.mxu0 %v630
      %1390 = vmatmul.mubr.f32.gmra.mxu0 %v629
      %v1391 = vpop.f32.mrf.mxu0
      %v1392 = vadd.f32 %v758, %v1391
      %v1393 = vpop.f32.mrf.mxu0
      %1394 = vmatprep.mubr.f32.mxu0 %v634
      %1395 = vmatmul.mubr.f32.gmra.mxu0 %v633
      %v1396 = vpop.f32.mrf.mxu0
      %v1397 = vadd.f32 %v758, %v1396
      %v1398 = vpop.f32.mrf.mxu0
      %1399 = vmatprep.mubr.f32.mxu0 %v638
      %1400 = vmatmul.mubr.f32.gmra.mxu0 %v637
      %v1401 = vpop.f32.mrf.mxu0
      %v1402 = vadd.f32 %v758, %v1401
      %v1403 = vpop.f32.mrf.mxu0
      %1404 = vmatprep.mubr.f32.mxu0 %v642
      %1405 = vmatmul.mubr.f32.gmra.mxu0 %v641
      %v1406 = vpop.f32.mrf.mxu0
      %v1407 = vadd.f32 %v758, %v1406
      %v1408 = vpop.f32.mrf.mxu0
      %1409 = vmatprep.mubr.f32.mxu0 %v646
      %1410 = vmatmul.mubr.f32.gmra.mxu0 %v645
      %v1411 = vpop.f32.mrf.mxu0
      %v1412 = vadd.f32 %v758, %v1411
      %v1413 = vpop.f32.mrf.mxu0
      %1414 = vmatprep.mubr.f32.mxu0 %v650
      %1415 = vmatmul.mubr.f32.gmra.mxu0 %v649
      %v1416 = vpop.f32.mrf.mxu0
      %v1417 = vadd.f32 %v758, %v1416
      %v1418 = vpop.f32.mrf.mxu0
      %1419 = vmatprep.mubr.f32.mxu0 %v654
      %1420 = vmatmul.mubr.f32.gmra.mxu0 %v653
      %v1421 = vpop.f32.mrf.mxu0
      %v1422 = vadd.f32 %v758, %v1421
      %v1423 = vpop.f32.mrf.mxu0
      %1424 = vmatprep.mubr.f32.mxu0 %v658
      %1425 = vmatmul.mubr.f32.gmra.mxu0 %v657
      %v1426 = vpop.f32.mrf.mxu0
      %v1427 = vadd.f32 %v758, %v1426
      %v1428 = vpop.f32.mrf.mxu0
      %1429 = vmatprep.mubr.f32.mxu0 %v662
      %1430 = vmatmul.mubr.f32.gmra.mxu0 %v661
      %v1431 = vpop.f32.mrf.mxu0
      %v1432 = vadd.f32 %v758, %v1431
      %v1433 = vpop.f32.mrf.mxu0
      %1434 = vmatprep.mubr.f32.mxu0 %v666
      %1435 = vmatmul.mubr.f32.gmra.mxu0 %v665
      %v1436 = vpop.f32.mrf.mxu0
      %v1437 = vadd.f32 %v758, %v1436
      %v1438 = vpop.f32.mrf.mxu0
      %1439 = vmatprep.mubr.f32.mxu0 %v670
      %1440 = vmatmul.mubr.f32.gmra.mxu0 %v669
      %v1441 = vpop.f32.mrf.mxu0
      %v1442 = vadd.f32 %v758, %v1441
      %v1443 = vpop.f32.mrf.mxu0
      %1444 = vmatprep.mubr.f32.mxu0 %v674
      %1445 = vmatmul.mubr.f32.gmra.mxu0 %v673
      %v1446 = vpop.f32.mrf.mxu0
      %v1447 = vadd.f32 %v758, %v1446
      %v1448 = vpop.f32.mrf.mxu0
      %1449 = vmatprep.mubr.f32.mxu0 %v678
      %1450 = vmatmul.mubr.f32.gmra.mxu0 %v677
      %v1451 = vpop.f32.mrf.mxu0
      %v1452 = vadd.f32 %v758, %v1451
      %v1453 = vpop.f32.mrf.mxu0
      %1454 = vmatprep.mubr.f32.mxu0 %v682
      %1455 = vmatmul.mubr.f32.gmra.mxu0 %v681
      %v1456 = vpop.f32.mrf.mxu0
      %v1457 = vadd.f32 %v758, %v1456
      %v1458 = vpop.f32.mrf.mxu0
      %1459 = vmatprep.mubr.f32.mxu0 %v686
      %1460 = vmatmul.mubr.f32.gmra.mxu0 %v685
      %v1461 = vpop.f32.mrf.mxu0
      %v1462 = vadd.f32 %v758, %v1461
      %v1463 = vpop.f32.mrf.mxu0
      %1464 = vdwg.mxu0
      %1465 = vmatprep.subr.mxu0 0.0
      %1466 = vmatpush1.msra.mxu0 %v736
      %1467 = vmatprep.subr.mxu0 0.0
      %1468 = vmatpush1.msra.mxu0 %v735
      %1469 = vmatprep.subr.mxu0 0.0
      %1470 = vmatpush1.msra.mxu0 %v734
      %1471 = vmatprep.subr.mxu0 0.0
      %1472 = vmatpush1.msra.mxu0 %v733
      %1473 = vmatprep.subr.mxu0 0.0
      %1474 = vmatpush1.msra.mxu0 %v732
      %1475 = vmatprep.subr.mxu0 0.0
      %1476 = vmatpush1.msra.mxu0 %v731
      %1477 = vmatprep.subr.mxu0 0.0
      %1478 = vmatpush1.msra.mxu0 %v730
      %1479 = vmatprep.subr.mxu0 0.0
      %1480 = vmatpush1.msra.mxu0 %v729
      %1481 = vmatprep.subr.mxu0 0.0
      %1482 = vmatpush1.msra.mxu0 %v728
      %1483 = vmatprep.subr.mxu0 0.0
      %1484 = vmatpush1.msra.mxu0 %v727
      %1485 = vmatprep.subr.mxu0 0.0
      %1486 = vmatpush1.msra.mxu0 %v726
      %1487 = vmatprep.subr.mxu0 0.0
      %1488 = vmatpush1.msra.mxu0 %v725
      %1489 = vmatprep.subr.mxu0 0.0
      %1490 = vmatpush1.msra.mxu0 %v724
      %1491 = vmatprep.subr.mxu0 0.0
      %1492 = vmatpush1.msra.mxu0 %v723
      %1493 = vmatprep.subr.mxu0 0.0
      %1494 = vmatpush1.msra.mxu0 %v722
      %1495 = vmatprep.subr.mxu0 0.0
      %1496 = vmatpush1.msra.mxu0 %v721
      %1497 = vmatprep.subr.mxu0 0.0
      %1498 = vmatpush2.msra.mxu0 %v752
      %1499 = vmatprep.subr.mxu0 0.0
      %1500 = vmatpush2.msra.mxu0 %v751
      %1501 = vmatprep.subr.mxu0 0.0
      %1502 = vmatpush2.msra.mxu0 %v750
      %1503 = vmatprep.subr.mxu0 0.0
      %1504 = vmatpush2.msra.mxu0 %v749
      %1505 = vmatprep.subr.mxu0 0.0
      %1506 = vmatpush2.msra.mxu0 %v748
      %1507 = vmatprep.subr.mxu0 0.0
      %1508 = vmatpush2.msra.mxu0 %v747
      %1509 = vmatprep.subr.mxu0 0.0
      %1510 = vmatpush2.msra.mxu0 %v746
      %1511 = vmatprep.subr.mxu0 0.0
      %1512 = vmatpush2.msra.mxu0 %v745
      %1513 = vmatprep.subr.mxu0 0.0
      %1514 = vmatpush2.msra.mxu0 %v744
      %1515 = vmatprep.subr.mxu0 0.0
      %1516 = vmatpush2.msra.mxu0 %v743
      %1517 = vmatprep.subr.mxu0 0.0
      %1518 = vmatpush2.msra.mxu0 %v742
      %1519 = vmatprep.subr.mxu0 0.0
      %1520 = vmatpush2.msra.mxu0 %v741
      %1521 = vmatprep.subr.mxu0 0.0
      %1522 = vmatpush2.msra.mxu0 %v740
      %1523 = vmatprep.subr.mxu0 0.0
      %1524 = vmatpush2.msra.mxu0 %v739
      %1525 = vmatprep.subr.mxu0 0.0
      %1526 = vmatpush2.msra.mxu0 %v738
      %1527 = vmatprep.subr.mxu0 0.0
      %1528 = vmatpush2.msra.mxu0 %v737
      %1529 = vmatprep.mubr.f32.mxu0 %v180
      %1530 = vmatmul.mubr.f32.gmra.mxu0 %v179
      %v1531 = vpop.f32.mrf.mxu0
      %v1532 = vadd.f32 %v827, %v1531
      %v1533 = vpop.f32.mrf.mxu0
      %1534 = vmatprep.mubr.f32.mxu0 %v184
      %1535 = vmatmul.mubr.f32.gmra.mxu0 %v183
      %v1536 = vpop.f32.mrf.mxu0
      %v1537 = vadd.f32 %v832, %v1536
      %v1538 = vpop.f32.mrf.mxu0
      %1539 = vmatprep.mubr.f32.mxu0 %v188
      %1540 = vmatmul.mubr.f32.gmra.mxu0 %v187
      %v1541 = vpop.f32.mrf.mxu0
      %v1542 = vadd.f32 %v837, %v1541
      %v1543 = vpop.f32.mrf.mxu0
      %1544 = vmatprep.mubr.f32.mxu0 %v192
      %1545 = vmatmul.mubr.f32.gmra.mxu0 %v191
      %v1546 = vpop.f32.mrf.mxu0
      %v1547 = vadd.f32 %v842, %v1546
      %v1548 = vpop.f32.mrf.mxu0
      %1549 = vmatprep.mubr.f32.mxu0 %v196
      %1550 = vmatmul.mubr.f32.gmra.mxu0 %v195
      %v1551 = vpop.f32.mrf.mxu0
      %v1552 = vadd.f32 %v847, %v1551
      %v1553 = vpop.f32.mrf.mxu0
      %1554 = vmatprep.mubr.f32.mxu0 %v200
      %1555 = vmatmul.mubr.f32.gmra.mxu0 %v199
      %v1556 = vpop.f32.mrf.mxu0
      %v1557 = vadd.f32 %v852, %v1556
      %v1558 = vpop.f32.mrf.mxu0
      %1559 = vmatprep.mubr.f32.mxu0 %v204
      %1560 = vmatmul.mubr.f32.gmra.mxu0 %v203
      %v1561 = vpop.f32.mrf.mxu0
      %v1562 = vadd.f32 %v857, %v1561
      %v1563 = vpop.f32.mrf.mxu0
      %1564 = vmatprep.mubr.f32.mxu0 %v208
      %1565 = vmatmul.mubr.f32.gmra.mxu0 %v207
      %v1566 = vpop.f32.mrf.mxu0
      %v1567 = vadd.f32 %v862, %v1566
      %v1568 = vpop.f32.mrf.mxu0
      %1569 = vmatprep.mubr.f32.mxu0 %v212
      %1570 = vmatmul.mubr.f32.gmra.mxu0 %v211
      %v1571 = vpop.f32.mrf.mxu0
      %v1572 = vadd.f32 %v867, %v1571
      %v1573 = vpop.f32.mrf.mxu0
      %1574 = vmatprep.mubr.f32.mxu0 %v216
      %1575 = vmatmul.mubr.f32.gmra.mxu0 %v215
      %v1576 = vpop.f32.mrf.mxu0
      %v1577 = vadd.f32 %v872, %v1576
      %v1578 = vpop.f32.mrf.mxu0
      %1579 = vmatprep.mubr.f32.mxu0 %v220
      %1580 = vmatmul.mubr.f32.gmra.mxu0 %v219
      %v1581 = vpop.f32.mrf.mxu0
      %v1582 = vadd.f32 %v877, %v1581
      %v1583 = vpop.f32.mrf.mxu0
      %1584 = vmatprep.mubr.f32.mxu0 %v224
      %1585 = vmatmul.mubr.f32.gmra.mxu0 %v223
      %v1586 = vpop.f32.mrf.mxu0
      %v1587 = vadd.f32 %v882, %v1586
      %v1588 = vpop.f32.mrf.mxu0
      %1589 = vmatprep.mubr.f32.mxu0 %v228
      %1590 = vmatmul.mubr.f32.gmra.mxu0 %v227
      %v1591 = vpop.f32.mrf.mxu0
      %v1592 = vadd.f32 %v887, %v1591
      %v1593 = vpop.f32.mrf.mxu0
      %1594 = vmatprep.mubr.f32.mxu0 %v232
      %1595 = vmatmul.mubr.f32.gmra.mxu0 %v231
      %v1596 = vpop.f32.mrf.mxu0
      %v1597 = vadd.f32 %v892, %v1596
      %v1598 = vpop.f32.mrf.mxu0
      %1599 = vmatprep.mubr.f32.mxu0 %v236
      %1600 = vmatmul.mubr.f32.gmra.mxu0 %v235
      %v1601 = vpop.f32.mrf.mxu0
      %v1602 = vadd.f32 %v897, %v1601
      %v1603 = vpop.f32.mrf.mxu0
      %1604 = vmatprep.mubr.f32.mxu0 %v240
      %1605 = vmatmul.mubr.f32.gmra.mxu0 %v239
      %v1606 = vpop.f32.mrf.mxu0
      %v1607 = vadd.f32 %v902, %v1606
      %v1608 = vpop.f32.mrf.mxu0
      %1609 = vmatprep.mubr.f32.mxu0 %v244
      %1610 = vmatmul.mubr.f32.gmra.mxu0 %v243
      %v1611 = vpop.f32.mrf.mxu0
      %v1612 = vadd.f32 %v907, %v1611
      %v1613 = vpop.f32.mrf.mxu0
      %1614 = vmatprep.mubr.f32.mxu0 %v248
      %1615 = vmatmul.mubr.f32.gmra.mxu0 %v247
      %v1616 = vpop.f32.mrf.mxu0
      %v1617 = vadd.f32 %v912, %v1616
      %v1618 = vpop.f32.mrf.mxu0
      %1619 = vmatprep.mubr.f32.mxu0 %v252
      %1620 = vmatmul.mubr.f32.gmra.mxu0 %v251
      %v1621 = vpop.f32.mrf.mxu0
      %v1622 = vadd.f32 %v917, %v1621
      %v1623 = vpop.f32.mrf.mxu0
      %1624 = vmatprep.mubr.f32.mxu0 %v256
      %1625 = vmatmul.mubr.f32.gmra.mxu0 %v255
      %v1626 = vpop.f32.mrf.mxu0
      %v1627 = vadd.f32 %v922, %v1626
      %v1628 = vpop.f32.mrf.mxu0
      %1629 = vmatprep.mubr.f32.mxu0 %v260
      %1630 = vmatmul.mubr.f32.gmra.mxu0 %v259
      %v1631 = vpop.f32.mrf.mxu0
      %v1632 = vadd.f32 %v927, %v1631
      %v1633 = vpop.f32.mrf.mxu0
      %1634 = vmatprep.mubr.f32.mxu0 %v264
      %1635 = vmatmul.mubr.f32.gmra.mxu0 %v263
      %v1636 = vpop.f32.mrf.mxu0
      %v1637 = vadd.f32 %v932, %v1636
      %v1638 = vpop.f32.mrf.mxu0
      %1639 = vmatprep.mubr.f32.mxu0 %v268
      %1640 = vmatmul.mubr.f32.gmra.mxu0 %v267
      %v1641 = vpop.f32.mrf.mxu0
      %v1642 = vadd.f32 %v937, %v1641
      %v1643 = vpop.f32.mrf.mxu0
      %1644 = vmatprep.mubr.f32.mxu0 %v272
      %1645 = vmatmul.mubr.f32.gmra.mxu0 %v271
      %v1646 = vpop.f32.mrf.mxu0
      %v1647 = vadd.f32 %v942, %v1646
      %v1648 = vpop.f32.mrf.mxu0
      %1649 = vmatprep.mubr.f32.mxu0 %v276
      %1650 = vmatmul.mubr.f32.gmra.mxu0 %v275
      %v1651 = vpop.f32.mrf.mxu0
      %v1652 = vadd.f32 %v947, %v1651
      %v1653 = vpop.f32.mrf.mxu0
      %1654 = vmatprep.mubr.f32.mxu0 %v280
      %1655 = vmatmul.mubr.f32.gmra.mxu0 %v279
      %v1656 = vpop.f32.mrf.mxu0
      %v1657 = vadd.f32 %v952, %v1656
      %v1658 = vpop.f32.mrf.mxu0
      %1659 = vmatprep.mubr.f32.mxu0 %v284
      %1660 = vmatmul.mubr.f32.gmra.mxu0 %v283
      %v1661 = vpop.f32.mrf.mxu0
      %v1662 = vadd.f32 %v957, %v1661
      %v1663 = vpop.f32.mrf.mxu0
      %1664 = vmatprep.mubr.f32.mxu0 %v288
      %1665 = vmatmul.mubr.f32.gmra.mxu0 %v287
      %v1666 = vpop.f32.mrf.mxu0
      %v1667 = vadd.f32 %v962, %v1666
      %v1668 = vpop.f32.mrf.mxu0
      %1669 = vmatprep.mubr.f32.mxu0 %v292
      %1670 = vmatmul.mubr.f32.gmra.mxu0 %v291
      %v1671 = vpop.f32.mrf.mxu0
      %v1672 = vadd.f32 %v967, %v1671
      %v1673 = vpop.f32.mrf.mxu0
      %1674 = vmatprep.mubr.f32.mxu0 %v296
      %1675 = vmatmul.mubr.f32.gmra.mxu0 %v295
      %v1676 = vpop.f32.mrf.mxu0
      %v1677 = vadd.f32 %v972, %v1676
      %v1678 = vpop.f32.mrf.mxu0
      %1679 = vmatprep.mubr.f32.mxu0 %v300
      %1680 = vmatmul.mubr.f32.gmra.mxu0 %v299
      %v1681 = vpop.f32.mrf.mxu0
      %v1682 = vadd.f32 %v977, %v1681
      %v1683 = vpop.f32.mrf.mxu0
      %1684 = vmatprep.mubr.f32.mxu0 %v304
      %1685 = vmatmul.mubr.f32.gmra.mxu0 %v303
      %v1686 = vpop.f32.mrf.mxu0
      %v1687 = vadd.f32 %v982, %v1686
      %v1688 = vpop.f32.mrf.mxu0
      %1689 = vmatprep.mubr.f32.mxu0 %v308
      %1690 = vmatmul.mubr.f32.gmra.mxu0 %v307
      %v1691 = vpop.f32.mrf.mxu0
      %v1692 = vadd.f32 %v987, %v1691
      %v1693 = vpop.f32.mrf.mxu0
      %1694 = vmatprep.mubr.f32.mxu0 %v312
      %1695 = vmatmul.mubr.f32.gmra.mxu0 %v311
      %v1696 = vpop.f32.mrf.mxu0
      %v1697 = vadd.f32 %v992, %v1696
      %v1698 = vpop.f32.mrf.mxu0
      %1699 = vmatprep.mubr.f32.mxu0 %v316
      %1700 = vmatmul.mubr.f32.gmra.mxu0 %v315
      %v1701 = vpop.f32.mrf.mxu0
      %v1702 = vadd.f32 %v997, %v1701
      %v1703 = vpop.f32.mrf.mxu0
      %1704 = vmatprep.mubr.f32.mxu0 %v320
      %1705 = vmatmul.mubr.f32.gmra.mxu0 %v319
      %v1706 = vpop.f32.mrf.mxu0
      %v1707 = vadd.f32 %v1002, %v1706
      %v1708 = vpop.f32.mrf.mxu0
      %1709 = vmatprep.mubr.f32.mxu0 %v324
      %1710 = vmatmul.mubr.f32.gmra.mxu0 %v323
      %v1711 = vpop.f32.mrf.mxu0
      %v1712 = vadd.f32 %v1007, %v1711
      %v1713 = vpop.f32.mrf.mxu0
      %1714 = vmatprep.mubr.f32.mxu0 %v328
      %1715 = vmatmul.mubr.f32.gmra.mxu0 %v327
      %v1716 = vpop.f32.mrf.mxu0
      %v1717 = vadd.f32 %v1012, %v1716
      %v1718 = vpop.f32.mrf.mxu0
      %1719 = vmatprep.mubr.f32.mxu0 %v332
      %1720 = vmatmul.mubr.f32.gmra.mxu0 %v331
      %v1721 = vpop.f32.mrf.mxu0
      %v1722 = vadd.f32 %v1017, %v1721
      %v1723 = vpop.f32.mrf.mxu0
      %1724 = vmatprep.mubr.f32.mxu0 %v336
      %1725 = vmatmul.mubr.f32.gmra.mxu0 %v335
      %v1726 = vpop.f32.mrf.mxu0
      %v1727 = vadd.f32 %v1022, %v1726
      %v1728 = vpop.f32.mrf.mxu0
      %1729 = vmatprep.mubr.f32.mxu0 %v340
      %1730 = vmatmul.mubr.f32.gmra.mxu0 %v339
      %v1731 = vpop.f32.mrf.mxu0
      %v1732 = vadd.f32 %v1027, %v1731
      %v1733 = vpop.f32.mrf.mxu0
      %1734 = vmatprep.mubr.f32.mxu0 %v344
      %1735 = vmatmul.mubr.f32.gmra.mxu0 %v343
      %v1736 = vpop.f32.mrf.mxu0
      %v1737 = vadd.f32 %v1032, %v1736
      %v1738 = vpop.f32.mrf.mxu0
      %1739 = vmatprep.mubr.f32.mxu0 %v348
      %1740 = vmatmul.mubr.f32.gmra.mxu0 %v347
      %v1741 = vpop.f32.mrf.mxu0
      %v1742 = vadd.f32 %v1037, %v1741
      %v1743 = vpop.f32.mrf.mxu0
      %1744 = vmatprep.mubr.f32.mxu0 %v352
      %1745 = vmatmul.mubr.f32.gmra.mxu0 %v351
      %v1746 = vpop.f32.mrf.mxu0
      %v1747 = vadd.f32 %v1042, %v1746
      %v1748 = vpop.f32.mrf.mxu0
      %1749 = vmatprep.mubr.f32.mxu0 %v356
      %1750 = vmatmul.mubr.f32.gmra.mxu0 %v355
      %v1751 = vpop.f32.mrf.mxu0
      %v1752 = vadd.f32 %v1047, %v1751
      %v1753 = vpop.f32.mrf.mxu0
      %1754 = vmatprep.mubr.f32.mxu0 %v360
      %1755 = vmatmul.mubr.f32.gmra.mxu0 %v359
      %v1756 = vpop.f32.mrf.mxu0
      %v1757 = vadd.f32 %v1052, %v1756
      %v1758 = vpop.f32.mrf.mxu0
      %1759 = vmatprep.mubr.f32.mxu0 %v364
      %1760 = vmatmul.mubr.f32.gmra.mxu0 %v363
      %v1761 = vpop.f32.mrf.mxu0
      %v1762 = vadd.f32 %v1057, %v1761
      %v1763 = vpop.f32.mrf.mxu0
      %1764 = vmatprep.mubr.f32.mxu0 %v368
      %1765 = vmatmul.mubr.f32.gmra.mxu0 %v367
      %v1766 = vpop.f32.mrf.mxu0
      %v1767 = vadd.f32 %v1062, %v1766
      %v1768 = vpop.f32.mrf.mxu0
      %1769 = vmatprep.mubr.f32.mxu0 %v372
      %1770 = vmatmul.mubr.f32.gmra.mxu0 %v371
      %v1771 = vpop.f32.mrf.mxu0
      %v1772 = vadd.f32 %v1067, %v1771
      %v1773 = vpop.f32.mrf.mxu0
      %1774 = vmatprep.mubr.f32.mxu0 %v376
      %1775 = vmatmul.mubr.f32.gmra.mxu0 %v375
      %v1776 = vpop.f32.mrf.mxu0
      %v1777 = vadd.f32 %v1072, %v1776
      %v1778 = vpop.f32.mrf.mxu0
      %1779 = vmatprep.mubr.f32.mxu0 %v380
      %1780 = vmatmul.mubr.f32.gmra.mxu0 %v379
      %v1781 = vpop.f32.mrf.mxu0
      %v1782 = vadd.f32 %v1077, %v1781
      %v1783 = vpop.f32.mrf.mxu0
      %1784 = vmatprep.mubr.f32.mxu0 %v384
      %1785 = vmatmul.mubr.f32.gmra.mxu0 %v383
      %v1786 = vpop.f32.mrf.mxu0
      %v1787 = vadd.f32 %v1082, %v1786
      %v1788 = vpop.f32.mrf.mxu0
      %1789 = vmatprep.mubr.f32.mxu0 %v388
      %1790 = vmatmul.mubr.f32.gmra.mxu0 %v387
      %v1791 = vpop.f32.mrf.mxu0
      %v1792 = vadd.f32 %v1087, %v1791
      %v1793 = vpop.f32.mrf.mxu0
      %1794 = vmatprep.mubr.f32.mxu0 %v392
      %1795 = vmatmul.mubr.f32.gmra.mxu0 %v391
      %v1796 = vpop.f32.mrf.mxu0
      %v1797 = vadd.f32 %v1092, %v1796
      %v1798 = vpop.f32.mrf.mxu0
      %1799 = vmatprep.mubr.f32.mxu0 %v396
      %1800 = vmatmul.mubr.f32.gmra.mxu0 %v395
      %v1801 = vpop.f32.mrf.mxu0
      %v1802 = vadd.f32 %v1097, %v1801
      %v1803 = vpop.f32.mrf.mxu0
      %1804 = vmatprep.mubr.f32.mxu0 %v400
      %1805 = vmatmul.mubr.f32.gmra.mxu0 %v399
      %v1806 = vpop.f32.mrf.mxu0
      %v1807 = vadd.f32 %v1102, %v1806
      %v1808 = vpop.f32.mrf.mxu0
      %1809 = vmatprep.mubr.f32.mxu0 %v404
      %1810 = vmatmul.mubr.f32.gmra.mxu0 %v403
      %v1811 = vpop.f32.mrf.mxu0
      %v1812 = vadd.f32 %v1107, %v1811
      %v1813 = vpop.f32.mrf.mxu0
      %1814 = vmatprep.mubr.f32.mxu0 %v408
      %1815 = vmatmul.mubr.f32.gmra.mxu0 %v407
      %v1816 = vpop.f32.mrf.mxu0
      %v1817 = vadd.f32 %v1112, %v1816
      %v1818 = vpop.f32.mrf.mxu0
      %1819 = vmatprep.mubr.f32.mxu0 %v412
      %1820 = vmatmul.mubr.f32.gmra.mxu0 %v411
      %v1821 = vpop.f32.mrf.mxu0
      %v1822 = vadd.f32 %v1117, %v1821
      %v1823 = vpop.f32.mrf.mxu0
      %1824 = vmatprep.mubr.f32.mxu0 %v416
      %1825 = vmatmul.mubr.f32.gmra.mxu0 %v415
      %v1826 = vpop.f32.mrf.mxu0
      %v1827 = vadd.f32 %v1122, %v1826
      %v1828 = vpop.f32.mrf.mxu0
      %1829 = vmatprep.mubr.f32.mxu0 %v420
      %1830 = vmatmul.mubr.f32.gmra.mxu0 %v419
      %v1831 = vpop.f32.mrf.mxu0
      %v1832 = vadd.f32 %v1127, %v1831
      %v1833 = vpop.f32.mrf.mxu0
      %1834 = vmatprep.mubr.f32.mxu0 %v424
      %1835 = vmatmul.mubr.f32.gmra.mxu0 %v423
      %v1836 = vpop.f32.mrf.mxu0
      %v1837 = vadd.f32 %v1132, %v1836
      %v1838 = vpop.f32.mrf.mxu0
      %1839 = vmatprep.mubr.f32.mxu0 %v428
      %1840 = vmatmul.mubr.f32.gmra.mxu0 %v427
      %v1841 = vpop.f32.mrf.mxu0
      %v1842 = vadd.f32 %v1137, %v1841
      %v1843 = vpop.f32.mrf.mxu0
      %1844 = vmatprep.mubr.f32.mxu0 %v432
      %1845 = vmatmul.mubr.f32.gmra.mxu0 %v431
      %v1846 = vpop.f32.mrf.mxu0
      %v1847 = vadd.f32 %v1142, %v1846
      %v1848 = vpop.f32.mrf.mxu0
      %1849 = vmatprep.mubr.f32.mxu0 %v436
      %1850 = vmatmul.mubr.f32.gmra.mxu0 %v435
      %v1851 = vpop.f32.mrf.mxu0
      %v1852 = vadd.f32 %v1147, %v1851
      %v1853 = vpop.f32.mrf.mxu0
      %1854 = vmatprep.mubr.f32.mxu0 %v440
      %1855 = vmatmul.mubr.f32.gmra.mxu0 %v439
      %v1856 = vpop.f32.mrf.mxu0
      %v1857 = vadd.f32 %v1152, %v1856
      %v1858 = vpop.f32.mrf.mxu0
      %1859 = vmatprep.mubr.f32.mxu0 %v444
      %1860 = vmatmul.mubr.f32.gmra.mxu0 %v443
      %v1861 = vpop.f32.mrf.mxu0
      %v1862 = vadd.f32 %v1157, %v1861
      %v1863 = vpop.f32.mrf.mxu0
      %1864 = vmatprep.mubr.f32.mxu0 %v448
      %1865 = vmatmul.mubr.f32.gmra.mxu0 %v447
      %v1866 = vpop.f32.mrf.mxu0
      %v1867 = vadd.f32 %v1162, %v1866
      %v1868 = vpop.f32.mrf.mxu0
      %1869 = vmatprep.mubr.f32.mxu0 %v452
      %1870 = vmatmul.mubr.f32.gmra.mxu0 %v451
      %v1871 = vpop.f32.mrf.mxu0
      %v1872 = vadd.f32 %v1167, %v1871
      %v1873 = vpop.f32.mrf.mxu0
      %1874 = vmatprep.mubr.f32.mxu0 %v456
      %1875 = vmatmul.mubr.f32.gmra.mxu0 %v455
      %v1876 = vpop.f32.mrf.mxu0
      %v1877 = vadd.f32 %v1172, %v1876
      %v1878 = vpop.f32.mrf.mxu0
      %1879 = vmatprep.mubr.f32.mxu0 %v460
      %1880 = vmatmul.mubr.f32.gmra.mxu0 %v459
      %v1881 = vpop.f32.mrf.mxu0
      %v1882 = vadd.f32 %v1177, %v1881
      %v1883 = vpop.f32.mrf.mxu0
      %1884 = vmatprep.mubr.f32.mxu0 %v464
      %1885 = vmatmul.mubr.f32.gmra.mxu0 %v463
      %v1886 = vpop.f32.mrf.mxu0
      %v1887 = vadd.f32 %v1182, %v1886
      %v1888 = vpop.f32.mrf.mxu0
      %1889 = vmatprep.mubr.f32.mxu0 %v468
      %1890 = vmatmul.mubr.f32.gmra.mxu0 %v467
      %v1891 = vpop.f32.mrf.mxu0
      %v1892 = vadd.f32 %v1187, %v1891
      %v1893 = vpop.f32.mrf.mxu0
      %1894 = vmatprep.mubr.f32.mxu0 %v472
      %1895 = vmatmul.mubr.f32.gmra.mxu0 %v471
      %v1896 = vpop.f32.mrf.mxu0
      %v1897 = vadd.f32 %v1192, %v1896
      %v1898 = vpop.f32.mrf.mxu0
      %1899 = vmatprep.mubr.f32.mxu0 %v476
      %1900 = vmatmul.mubr.f32.gmra.mxu0 %v475
      %v1901 = vpop.f32.mrf.mxu0
      %v1902 = vadd.f32 %v1197, %v1901
      %v1903 = vpop.f32.mrf.mxu0
      %1904 = vmatprep.mubr.f32.mxu0 %v480
      %1905 = vmatmul.mubr.f32.gmra.mxu0 %v479
      %v1906 = vpop.f32.mrf.mxu0
      %v1907 = vadd.f32 %v1202, %v1906
      %v1908 = vpop.f32.mrf.mxu0
      %1909 = vmatprep.mubr.f32.mxu0 %v484
      %1910 = vmatmul.mubr.f32.gmra.mxu0 %v483
      %v1911 = vpop.f32.mrf.mxu0
      %v1912 = vadd.f32 %v1207, %v1911
      %v1913 = vpop.f32.mrf.mxu0
      %1914 = vmatprep.mubr.f32.mxu0 %v488
      %1915 = vmatmul.mubr.f32.gmra.mxu0 %v487
      %v1916 = vpop.f32.mrf.mxu0
      %v1917 = vadd.f32 %v1212, %v1916
      %v1918 = vpop.f32.mrf.mxu0
      %1919 = vmatprep.mubr.f32.mxu0 %v492
      %1920 = vmatmul.mubr.f32.gmra.mxu0 %v491
      %v1921 = vpop.f32.mrf.mxu0
      %v1922 = vadd.f32 %v1217, %v1921
      %v1923 = vpop.f32.mrf.mxu0
      %1924 = vmatprep.mubr.f32.mxu0 %v496
      %1925 = vmatmul.mubr.f32.gmra.mxu0 %v495
      %v1926 = vpop.f32.mrf.mxu0
      %v1927 = vadd.f32 %v1222, %v1926
      %v1928 = vpop.f32.mrf.mxu0
      %1929 = vmatprep.mubr.f32.mxu0 %v500
      %1930 = vmatmul.mubr.f32.gmra.mxu0 %v499
      %v1931 = vpop.f32.mrf.mxu0
      %v1932 = vadd.f32 %v1227, %v1931
      %v1933 = vpop.f32.mrf.mxu0
      %1934 = vmatprep.mubr.f32.mxu0 %v504
      %1935 = vmatmul.mubr.f32.gmra.mxu0 %v503
      %v1936 = vpop.f32.mrf.mxu0
      %v1937 = vadd.f32 %v1232, %v1936
      %v1938 = vpop.f32.mrf.mxu0
      %1939 = vmatprep.mubr.f32.mxu0 %v508
      %1940 = vmatmul.mubr.f32.gmra.mxu0 %v507
      %v1941 = vpop.f32.mrf.mxu0
      %v1942 = vadd.f32 %v1237, %v1941
      %v1943 = vpop.f32.mrf.mxu0
      %1944 = vmatprep.mubr.f32.mxu0 %v512
      %1945 = vmatmul.mubr.f32.gmra.mxu0 %v511
      %v1946 = vpop.f32.mrf.mxu0
      %v1947 = vadd.f32 %v1242, %v1946
      %v1948 = vpop.f32.mrf.mxu0
      %1949 = vmatprep.mubr.f32.mxu0 %v516
      %1950 = vmatmul.mubr.f32.gmra.mxu0 %v515
      %v1951 = vpop.f32.mrf.mxu0
      %v1952 = vadd.f32 %v1247, %v1951
      %v1953 = vpop.f32.mrf.mxu0
      %1954 = vmatprep.mubr.f32.mxu0 %v520
      %1955 = vmatmul.mubr.f32.gmra.mxu0 %v519
      %v1956 = vpop.f32.mrf.mxu0
      %v1957 = vadd.f32 %v1252, %v1956
      %v1958 = vpop.f32.mrf.mxu0
      %1959 = vmatprep.mubr.f32.mxu0 %v524
      %1960 = vmatmul.mubr.f32.gmra.mxu0 %v523
      %v1961 = vpop.f32.mrf.mxu0
      %v1962 = vadd.f32 %v1257, %v1961
      %v1963 = vpop.f32.mrf.mxu0
      %1964 = vmatprep.mubr.f32.mxu0 %v528
      %1965 = vmatmul.mubr.f32.gmra.mxu0 %v527
      %v1966 = vpop.f32.mrf.mxu0
      %v1967 = vadd.f32 %v1262, %v1966
      %v1968 = vpop.f32.mrf.mxu0
      %1969 = vmatprep.mubr.f32.mxu0 %v532
      %1970 = vmatmul.mubr.f32.gmra.mxu0 %v531
      %v1971 = vpop.f32.mrf.mxu0
      %v1972 = vadd.f32 %v1267, %v1971
      %v1973 = vpop.f32.mrf.mxu0
      %1974 = vmatprep.mubr.f32.mxu0 %v536
      %1975 = vmatmul.mubr.f32.gmra.mxu0 %v535
      %v1976 = vpop.f32.mrf.mxu0
      %v1977 = vadd.f32 %v1272, %v1976
      %v1978 = vpop.f32.mrf.mxu0
      %1979 = vmatprep.mubr.f32.mxu0 %v540
      %1980 = vmatmul.mubr.f32.gmra.mxu0 %v539
      %v1981 = vpop.f32.mrf.mxu0
      %v1982 = vadd.f32 %v1277, %v1981
      %v1983 = vpop.f32.mrf.mxu0
      %1984 = vmatprep.mubr.f32.mxu0 %v544
      %1985 = vmatmul.mubr.f32.gmra.mxu0 %v543
      %v1986 = vpop.f32.mrf.mxu0
      %v1987 = vadd.f32 %v1282, %v1986
      %v1988 = vpop.f32.mrf.mxu0
      %1989 = vmatprep.mubr.f32.mxu0 %v548
      %1990 = vmatmul.mubr.f32.gmra.mxu0 %v547
      %v1991 = vpop.f32.mrf.mxu0
      %v1992 = vadd.f32 %v1287, %v1991
      %v1993 = vpop.f32.mrf.mxu0
      %1994 = vmatprep.mubr.f32.mxu0 %v552
      %1995 = vmatmul.mubr.f32.gmra.mxu0 %v551
      %v1996 = vpop.f32.mrf.mxu0
      %v1997 = vadd.f32 %v1292, %v1996
      %v1998 = vpop.f32.mrf.mxu0
      %1999 = vmatprep.mubr.f32.mxu0 %v556
      %2000 = vmatmul.mubr.f32.gmra.mxu0 %v555
      %v2001 = vpop.f32.mrf.mxu0
      %v2002 = vadd.f32 %v1297, %v2001
      %v2003 = vpop.f32.mrf.mxu0
      %2004 = vmatprep.mubr.f32.mxu0 %v560
      %2005 = vmatmul.mubr.f32.gmra.mxu0 %v559
      %v2006 = vpop.f32.mrf.mxu0
      %v2007 = vadd.f32 %v1302, %v2006
      %v2008 = vpop.f32.mrf.mxu0
      %2009 = vmatprep.mubr.f32.mxu0 %v564
      %2010 = vmatmul.mubr.f32.gmra.mxu0 %v563
      %v2011 = vpop.f32.mrf.mxu0
      %v2012 = vadd.f32 %v1307, %v2011
      %v2013 = vpop.f32.mrf.mxu0
      %2014 = vmatprep.mubr.f32.mxu0 %v568
      %2015 = vmatmul.mubr.f32.gmra.mxu0 %v567
      %v2016 = vpop.f32.mrf.mxu0
      %v2017 = vadd.f32 %v1312, %v2016
      %v2018 = vpop.f32.mrf.mxu0
      %2019 = vmatprep.mubr.f32.mxu0 %v572
      %2020 = vmatmul.mubr.f32.gmra.mxu0 %v571
      %v2021 = vpop.f32.mrf.mxu0
      %v2022 = vadd.f32 %v1317, %v2021
      %v2023 = vpop.f32.mrf.mxu0
      %2024 = vmatprep.mubr.f32.mxu0 %v576
      %2025 = vmatmul.mubr.f32.gmra.mxu0 %v575
      %v2026 = vpop.f32.mrf.mxu0
      %v2027 = vadd.f32 %v1322, %v2026
      %v2028 = vpop.f32.mrf.mxu0
      %2029 = vmatprep.mubr.f32.mxu0 %v580
      %2030 = vmatmul.mubr.f32.gmra.mxu0 %v579
      %v2031 = vpop.f32.mrf.mxu0
      %v2032 = vadd.f32 %v1327, %v2031
      %v2033 = vpop.f32.mrf.mxu0
      %2034 = vmatprep.mubr.f32.mxu0 %v584
      %2035 = vmatmul.mubr.f32.gmra.mxu0 %v583
      %v2036 = vpop.f32.mrf.mxu0
      %v2037 = vadd.f32 %v1332, %v2036
      %v2038 = vpop.f32.mrf.mxu0
      %2039 = vmatprep.mubr.f32.mxu0 %v588
      %2040 = vmatmul.mubr.f32.gmra.mxu0 %v587
      %v2041 = vpop.f32.mrf.mxu0
      %v2042 = vadd.f32 %v1337, %v2041
      %v2043 = vpop.f32.mrf.mxu0
      %2044 = vmatprep.mubr.f32.mxu0 %v592
      %2045 = vmatmul.mubr.f32.gmra.mxu0 %v591
      %v2046 = vpop.f32.mrf.mxu0
      %v2047 = vadd.f32 %v1342, %v2046
      %v2048 = vpop.f32.mrf.mxu0
      %2049 = vmatprep.mubr.f32.mxu0 %v596
      %2050 = vmatmul.mubr.f32.gmra.mxu0 %v595
      %v2051 = vpop.f32.mrf.mxu0
      %v2052 = vadd.f32 %v1347, %v2051
      %v2053 = vpop.f32.mrf.mxu0
      %2054 = vmatprep.mubr.f32.mxu0 %v600
      %2055 = vmatmul.mubr.f32.gmra.mxu0 %v599
      %v2056 = vpop.f32.mrf.mxu0
      %v2057 = vadd.f32 %v1352, %v2056
      %v2058 = vpop.f32.mrf.mxu0
      %2059 = vmatprep.mubr.f32.mxu0 %v604
      %2060 = vmatmul.mubr.f32.gmra.mxu0 %v603
      %v2061 = vpop.f32.mrf.mxu0
      %v2062 = vadd.f32 %v1357, %v2061
      %v2063 = vpop.f32.mrf.mxu0
      %2064 = vmatprep.mubr.f32.mxu0 %v608
      %2065 = vmatmul.mubr.f32.gmra.mxu0 %v607
      %v2066 = vpop.f32.mrf.mxu0
      %v2067 = vadd.f32 %v1362, %v2066
      %v2068 = vpop.f32.mrf.mxu0
      %2069 = vmatprep.mubr.f32.mxu0 %v612
      %2070 = vmatmul.mubr.f32.gmra.mxu0 %v611
      %v2071 = vpop.f32.mrf.mxu0
      %v2072 = vadd.f32 %v1367, %v2071
      %v2073 = vpop.f32.mrf.mxu0
      %2074 = vmatprep.mubr.f32.mxu0 %v616
      %2075 = vmatmul.mubr.f32.gmra.mxu0 %v615
      %v2076 = vpop.f32.mrf.mxu0
      %v2077 = vadd.f32 %v1372, %v2076
      %v2078 = vpop.f32.mrf.mxu0
      %2079 = vmatprep.mubr.f32.mxu0 %v620
      %2080 = vmatmul.mubr.f32.gmra.mxu0 %v619
      %v2081 = vpop.f32.mrf.mxu0
      %v2082 = vadd.f32 %v1377, %v2081
      %v2083 = vpop.f32.mrf.mxu0
      %2084 = vmatprep.mubr.f32.mxu0 %v624
      %2085 = vmatmul.mubr.f32.gmra.mxu0 %v623
      %v2086 = vpop.f32.mrf.mxu0
      %v2087 = vadd.f32 %v1382, %v2086
      %v2088 = vpop.f32.mrf.mxu0
      %2089 = vmatprep.mubr.f32.mxu0 %v628
      %2090 = vmatmul.mubr.f32.gmra.mxu0 %v627
      %v2091 = vpop.f32.mrf.mxu0
      %v2092 = vadd.f32 %v1387, %v2091
      %v2093 = vpop.f32.mrf.mxu0
      %2094 = vmatprep.mubr.f32.mxu0 %v632
      %2095 = vmatmul.mubr.f32.gmra.mxu0 %v631
      %v2096 = vpop.f32.mrf.mxu0
      %v2097 = vadd.f32 %v1392, %v2096
      %v2098 = vpop.f32.mrf.mxu0
      %2099 = vmatprep.mubr.f32.mxu0 %v636
      %2100 = vmatmul.mubr.f32.gmra.mxu0 %v635
      %v2101 = vpop.f32.mrf.mxu0
      %v2102 = vadd.f32 %v1397, %v2101
      %v2103 = vpop.f32.mrf.mxu0
      %2104 = vmatprep.mubr.f32.mxu0 %v640
      %2105 = vmatmul.mubr.f32.gmra.mxu0 %v639
      %v2106 = vpop.f32.mrf.mxu0
      %v2107 = vadd.f32 %v1402, %v2106
      %v2108 = vpop.f32.mrf.mxu0
      %2109 = vmatprep.mubr.f32.mxu0 %v644
      %2110 = vmatmul.mubr.f32.gmra.mxu0 %v643
      %v2111 = vpop.f32.mrf.mxu0
      %v2112 = vadd.f32 %v1407, %v2111
      %v2113 = vpop.f32.mrf.mxu0
      %2114 = vmatprep.mubr.f32.mxu0 %v648
      %2115 = vmatmul.mubr.f32.gmra.mxu0 %v647
      %v2116 = vpop.f32.mrf.mxu0
      %v2117 = vadd.f32 %v1412, %v2116
      %v2118 = vpop.f32.mrf.mxu0
      %2119 = vmatprep.mubr.f32.mxu0 %v652
      %2120 = vmatmul.mubr.f32.gmra.mxu0 %v651
      %v2121 = vpop.f32.mrf.mxu0
      %v2122 = vadd.f32 %v1417, %v2121
      %v2123 = vpop.f32.mrf.mxu0
      %2124 = vmatprep.mubr.f32.mxu0 %v656
      %2125 = vmatmul.mubr.f32.gmra.mxu0 %v655
      %v2126 = vpop.f32.mrf.mxu0
      %v2127 = vadd.f32 %v1422, %v2126
      %v2128 = vpop.f32.mrf.mxu0
      %2129 = vmatprep.mubr.f32.mxu0 %v660
      %2130 = vmatmul.mubr.f32.gmra.mxu0 %v659
      %v2131 = vpop.f32.mrf.mxu0
      %v2132 = vadd.f32 %v1427, %v2131
      %v2133 = vpop.f32.mrf.mxu0
      %2134 = vmatprep.mubr.f32.mxu0 %v664
      %2135 = vmatmul.mubr.f32.gmra.mxu0 %v663
      %v2136 = vpop.f32.mrf.mxu0
      %v2137 = vadd.f32 %v1432, %v2136
      %v2138 = vpop.f32.mrf.mxu0
      %2139 = vmatprep.mubr.f32.mxu0 %v668
      %2140 = vmatmul.mubr.f32.gmra.mxu0 %v667
      %v2141 = vpop.f32.mrf.mxu0
      %v2142 = vadd.f32 %v1437, %v2141
      %v2143 = vpop.f32.mrf.mxu0
      %2144 = vmatprep.mubr.f32.mxu0 %v672
      %2145 = vmatmul.mubr.f32.gmra.mxu0 %v671
      %v2146 = vpop.f32.mrf.mxu0
      %v2147 = vadd.f32 %v1442, %v2146
      %v2148 = vpop.f32.mrf.mxu0
      %2149 = vmatprep.mubr.f32.mxu0 %v676
      %2150 = vmatmul.mubr.f32.gmra.mxu0 %v675
      %v2151 = vpop.f32.mrf.mxu0
      %v2152 = vadd.f32 %v1447, %v2151
      %v2153 = vpop.f32.mrf.mxu0
      %2154 = vmatprep.mubr.f32.mxu0 %v680
      %2155 = vmatmul.mubr.f32.gmra.mxu0 %v679
      %v2156 = vpop.f32.mrf.mxu0
      %v2157 = vadd.f32 %v1452, %v2156
      %v2158 = vpop.f32.mrf.mxu0
      %2159 = vmatprep.mubr.f32.mxu0 %v684
      %2160 = vmatmul.mubr.f32.gmra.mxu0 %v683
      %v2161 = vpop.f32.mrf.mxu0
      %v2162 = vadd.f32 %v1457, %v2161
      %v2163 = vpop.f32.mrf.mxu0
      %2164 = vmatprep.mubr.f32.mxu0 %v688
      %2165 = vmatmul.mubr.f32.gmra.mxu0 %v687
      %v2166 = vpop.f32.mrf.mxu0
      %v2167 = vadd.f32 %v1462, %v2166
      %v2168 = vpop.f32.mrf.mxu0
      %2169 = vdwg.mxu0
      %vm2170 = vcmask 261120
      %2171 = vst.msk [vmem:[%s175] sm:$0xff] %vm2170, %v1532
      %2172 = vst.msk [vmem:[%s175 + $0x8] sm:$0xff] %vm2170, %v1537
      %2173 = vst.msk [vmem:[%s175 + $0x10] sm:$0xff] %vm2170, %v1542
      %2174 = vst.msk [vmem:[%s175 + $0x18] sm:$0xff] %vm2170, %v1547
      %2175 = vst.msk [vmem:[%s175 + $0x20] sm:$0xff] %vm2170, %v1552
      %2176 = vst.msk [vmem:[%s175 + $0x28] sm:$0xff] %vm2170, %v1557
      %2177 = vst.msk [vmem:[%s175 + $0x30] sm:$0xff] %vm2170, %v1562
      %2178 = vst.msk [vmem:[%s175 + $0x38] sm:$0xff] %vm2170, %v1567
      %2179 = vst.msk [vmem:[%s175 + $0x40] sm:$0xff] %vm2170, %v1572
      %2180 = vst.msk [vmem:[%s175 + $0x48] sm:$0xff] %vm2170, %v1577
      %2181 = vst.msk [vmem:[%s175 + $0x50] sm:$0xff] %vm2170, %v1582
      %2182 = vst.msk [vmem:[%s175 + $0x58] sm:$0xff] %vm2170, %v1587
      %2183 = vst.msk [vmem:[%s175 + $0x60] sm:$0xff] %vm2170, %v1592
      %2184 = vst.msk [vmem:[%s175 + $0x68] sm:$0xff] %vm2170, %v1597
      %2185 = vst.msk [vmem:[%s175 + $0x70] sm:$0xff] %vm2170, %v1602
      %2186 = vst.msk [vmem:[%s175 + $0x78] sm:$0xff] %vm2170, %v1607
      %2187 = vst.msk [vmem:[%s175 + $0x80] sm:$0xff] %vm2170, %v1612
      %2188 = vst.msk [vmem:[%s175 + $0x88] sm:$0xff] %vm2170, %v1617
      %2189 = vst.msk [vmem:[%s175 + $0x90] sm:$0xff] %vm2170, %v1622
      %2190 = vst.msk [vmem:[%s175 + $0x98] sm:$0xff] %vm2170, %v1627
      %2191 = vst.msk [vmem:[%s175 + $0xa0] sm:$0xff] %vm2170, %v1632
      %2192 = vst.msk [vmem:[%s175 + $0xa8] sm:$0xff] %vm2170, %v1637
      %2193 = vst.msk [vmem:[%s175 + $0xb0] sm:$0xff] %vm2170, %v1642
      %2194 = vst.msk [vmem:[%s175 + $0xb8] sm:$0xff] %vm2170, %v1647
      %2195 = vst.msk [vmem:[%s175 + $0xc0] sm:$0xff] %vm2170, %v1652
      %2196 = vst.msk [vmem:[%s175 + $0xc8] sm:$0xff] %vm2170, %v1657
      %2197 = vst.msk [vmem:[%s175 + $0xd0] sm:$0xff] %vm2170, %v1662
      %2198 = vst.msk [vmem:[%s175 + $0xd8] sm:$0xff] %vm2170, %v1667
      %2199 = vst.msk [vmem:[%s175 + $0xe0] sm:$0xff] %vm2170, %v1672
      %2200 = vst.msk [vmem:[%s175 + $0xe8] sm:$0xff] %vm2170, %v1677
      %2201 = vst.msk [vmem:[%s175 + $0xf0] sm:$0xff] %vm2170, %v1682
      %2202 = vst.msk [vmem:[%s175 + $0xf8] sm:$0xff] %vm2170, %v1687
      %2203 = vst.msk [vmem:[%s175 + $0x100] sm:$0xff] %vm2170, %v1692
      %2204 = vst.msk [vmem:[%s175 + $0x108] sm:$0xff] %vm2170, %v1697
      %2205 = vst.msk [vmem:[%s175 + $0x110] sm:$0xff] %vm2170, %v1702
      %2206 = vst.msk [vmem:[%s175 + $0x118] sm:$0xff] %vm2170, %v1707
      %2207 = vst.msk [vmem:[%s175 + $0x120] sm:$0xff] %vm2170, %v1712
      %2208 = vst.msk [vmem:[%s175 + $0x128] sm:$0xff] %vm2170, %v1717
      %2209 = vst.msk [vmem:[%s175 + $0x130] sm:$0xff] %vm2170, %v1722
      %2210 = vst.msk [vmem:[%s175 + $0x138] sm:$0xff] %vm2170, %v1727
      %2211 = vst.msk [vmem:[%s175 + $0x140] sm:$0xff] %vm2170, %v1732
      %2212 = vst.msk [vmem:[%s175 + $0x148] sm:$0xff] %vm2170, %v1737
      %2213 = vst.msk [vmem:[%s175 + $0x150] sm:$0xff] %vm2170, %v1742
      %2214 = vst.msk [vmem:[%s175 + $0x158] sm:$0xff] %vm2170, %v1747
      %2215 = vst.msk [vmem:[%s175 + $0x160] sm:$0xff] %vm2170, %v1752
      %2216 = vst.msk [vmem:[%s175 + $0x168] sm:$0xff] %vm2170, %v1757
      %2217 = vst.msk [vmem:[%s175 + $0x170] sm:$0xff] %vm2170, %v1762
      %2218 = vst.msk [vmem:[%s175 + $0x178] sm:$0xff] %vm2170, %v1767
      %2219 = vst.msk [vmem:[%s175 + $0x180] sm:$0xff] %vm2170, %v1772
      %2220 = vst.msk [vmem:[%s175 + $0x188] sm:$0xff] %vm2170, %v1777
      %2221 = vst.msk [vmem:[%s175 + $0x190] sm:$0xff] %vm2170, %v1782
      %2222 = vst.msk [vmem:[%s175 + $0x198] sm:$0xff] %vm2170, %v1787
      %2223 = vst.msk [vmem:[%s175 + $0x1a0] sm:$0xff] %vm2170, %v1792
      %2224 = vst.msk [vmem:[%s175 + $0x1a8] sm:$0xff] %vm2170, %v1797
      %2225 = vst.msk [vmem:[%s175 + $0x1b0] sm:$0xff] %vm2170, %v1802
      %2226 = vst.msk [vmem:[%s175 + $0x1b8] sm:$0xff] %vm2170, %v1807
      %2227 = vst.msk [vmem:[%s175 + $0x1c0] sm:$0xff] %vm2170, %v1812
      %2228 = vst.msk [vmem:[%s175 + $0x1c8] sm:$0xff] %vm2170, %v1817
      %2229 = vst.msk [vmem:[%s175 + $0x1d0] sm:$0xff] %vm2170, %v1822
      %2230 = vst.msk [vmem:[%s175 + $0x1d8] sm:$0xff] %vm2170, %v1827
      %2231 = vst.msk [vmem:[%s175 + $0x1e0] sm:$0xff] %vm2170, %v1832
      %2232 = vst.msk [vmem:[%s175 + $0x1e8] sm:$0xff] %vm2170, %v1837
      %2233 = vst.msk [vmem:[%s175 + $0x1f0] sm:$0xff] %vm2170, %v1842
      %2234 = vst.msk [vmem:[%s175 + $0x1f8] sm:$0xff] %vm2170, %v1847
      %2235 = vst.msk [vmem:[%s175 + $0x200] sm:$0xff] %vm2170, %v1852
      %2236 = vst.msk [vmem:[%s175 + $0x208] sm:$0xff] %vm2170, %v1857
      %2237 = vst.msk [vmem:[%s175 + $0x210] sm:$0xff] %vm2170, %v1862
      %2238 = vst.msk [vmem:[%s175 + $0x218] sm:$0xff] %vm2170, %v1867
      %2239 = vst.msk [vmem:[%s175 + $0x220] sm:$0xff] %vm2170, %v1872
      %2240 = vst.msk [vmem:[%s175 + $0x228] sm:$0xff] %vm2170, %v1877
      %2241 = vst.msk [vmem:[%s175 + $0x230] sm:$0xff] %vm2170, %v1882
      %2242 = vst.msk [vmem:[%s175 + $0x238] sm:$0xff] %vm2170, %v1887
      %2243 = vst.msk [vmem:[%s175 + $0x240] sm:$0xff] %vm2170, %v1892
      %2244 = vst.msk [vmem:[%s175 + $0x248] sm:$0xff] %vm2170, %v1897
      %2245 = vst.msk [vmem:[%s175 + $0x250] sm:$0xff] %vm2170, %v1902
      %2246 = vst.msk [vmem:[%s175 + $0x258] sm:$0xff] %vm2170, %v1907
      %2247 = vst.msk [vmem:[%s175 + $0x260] sm:$0xff] %vm2170, %v1912
      %2248 = vst.msk [vmem:[%s175 + $0x268] sm:$0xff] %vm2170, %v1917
      %2249 = vst.msk [vmem:[%s175 + $0x270] sm:$0xff] %vm2170, %v1922
      %2250 = vst.msk [vmem:[%s175 + $0x278] sm:$0xff] %vm2170, %v1927
      %2251 = vst.msk [vmem:[%s175 + $0x280] sm:$0xff] %vm2170, %v1932
      %2252 = vst.msk [vmem:[%s175 + $0x288] sm:$0xff] %vm2170, %v1937
      %2253 = vst.msk [vmem:[%s175 + $0x290] sm:$0xff] %vm2170, %v1942
      %2254 = vst.msk [vmem:[%s175 + $0x298] sm:$0xff] %vm2170, %v1947
      %2255 = vst.msk [vmem:[%s175 + $0x2a0] sm:$0xff] %vm2170, %v1952
      %2256 = vst.msk [vmem:[%s175 + $0x2a8] sm:$0xff] %vm2170, %v1957
      %2257 = vst.msk [vmem:[%s175 + $0x2b0] sm:$0xff] %vm2170, %v1962
      %2258 = vst.msk [vmem:[%s175 + $0x2b8] sm:$0xff] %vm2170, %v1967
      %2259 = vst.msk [vmem:[%s175 + $0x2c0] sm:$0xff] %vm2170, %v1972
      %2260 = vst.msk [vmem:[%s175 + $0x2c8] sm:$0xff] %vm2170, %v1977
      %2261 = vst.msk [vmem:[%s175 + $0x2d0] sm:$0xff] %vm2170, %v1982
      %2262 = vst.msk [vmem:[%s175 + $0x2d8] sm:$0xff] %vm2170, %v1987
      %2263 = vst.msk [vmem:[%s175 + $0x2e0] sm:$0xff] %vm2170, %v1992
      %2264 = vst.msk [vmem:[%s175 + $0x2e8] sm:$0xff] %vm2170, %v1997
      %2265 = vst.msk [vmem:[%s175 + $0x2f0] sm:$0xff] %vm2170, %v2002
      %2266 = vst.msk [vmem:[%s175 + $0x2f8] sm:$0xff] %vm2170, %v2007
      %2267 = vst.msk [vmem:[%s175 + $0x300] sm:$0xff] %vm2170, %v2012
      %2268 = vst.msk [vmem:[%s175 + $0x308] sm:$0xff] %vm2170, %v2017
      %2269 = vst.msk [vmem:[%s175 + $0x310] sm:$0xff] %vm2170, %v2022
      %2270 = vst.msk [vmem:[%s175 + $0x318] sm:$0xff] %vm2170, %v2027
      %2271 = vst.msk [vmem:[%s175 + $0x320] sm:$0xff] %vm2170, %v2032
      %2272 = vst.msk [vmem:[%s175 + $0x328] sm:$0xff] %vm2170, %v2037
      %2273 = vst.msk [vmem:[%s175 + $0x330] sm:$0xff] %vm2170, %v2042
      %2274 = vst.msk [vmem:[%s175 + $0x338] sm:$0xff] %vm2170, %v2047
      %2275 = vst.msk [vmem:[%s175 + $0x340] sm:$0xff] %vm2170, %v2052
      %2276 = vst.msk [vmem:[%s175 + $0x348] sm:$0xff] %vm2170, %v2057
      %2277 = vst.msk [vmem:[%s175 + $0x350] sm:$0xff] %vm2170, %v2062
      %2278 = vst.msk [vmem:[%s175 + $0x358] sm:$0xff] %vm2170, %v2067
      %2279 = vst.msk [vmem:[%s175 + $0x360] sm:$0xff] %vm2170, %v2072
      %2280 = vst.msk [vmem:[%s175 + $0x368] sm:$0xff] %vm2170, %v2077
      %2281 = vst.msk [vmem:[%s175 + $0x370] sm:$0xff] %vm2170, %v2082
      %2282 = vst.msk [vmem:[%s175 + $0x378] sm:$0xff] %vm2170, %v2087
      %2283 = vst.msk [vmem:[%s175 + $0x380] sm:$0xff] %vm2170, %v2092
      %2284 = vst.msk [vmem:[%s175 + $0x388] sm:$0xff] %vm2170, %v2097
      %2285 = vst.msk [vmem:[%s175 + $0x390] sm:$0xff] %vm2170, %v2102
      %2286 = vst.msk [vmem:[%s175 + $0x398] sm:$0xff] %vm2170, %v2107
      %2287 = vst.msk [vmem:[%s175 + $0x3a0] sm:$0xff] %vm2170, %v2112
      %2288 = vst.msk [vmem:[%s175 + $0x3a8] sm:$0xff] %vm2170, %v2117
      %2289 = vst.msk [vmem:[%s175 + $0x3b0] sm:$0xff] %vm2170, %v2122
      %2290 = vst.msk [vmem:[%s175 + $0x3b8] sm:$0xff] %vm2170, %v2127
      %2291 = vst.msk [vmem:[%s175 + $0x3c0] sm:$0xff] %vm2170, %v2132
      %2292 = vst.msk [vmem:[%s175 + $0x3c8] sm:$0xff] %vm2170, %v2137
      %2293 = vst.msk [vmem:[%s175 + $0x3d0] sm:$0xff] %vm2170, %v2142
      %2294 = vst.msk [vmem:[%s175 + $0x3d8] sm:$0xff] %vm2170, %v2147
      %2295 = vst.msk [vmem:[%s175 + $0x3e0] sm:$0xff] %vm2170, %v2152
      %2296 = vst.msk [vmem:[%s175 + $0x3e8] sm:$0xff] %vm2170, %v2157
      %2297 = vst.msk [vmem:[%s175 + $0x3f0] sm:$0xff] %vm2170, %v2162
      %2298 = vst.msk [vmem:[%s175 + $0x3f8] sm:$0xff] %vm2170, %v2167
      %s2299 = smul.u32 128, %s14
      %p2300 = scmp.lt.s32.totalorder %s2299, 255
      %s2301 = scalar_select %p2300, %s2299, 255
      %s2302 = smul.addr %s2301, 8
      %s2303 = scalar_lea.vmem %s3, %s2302
      // Predicated region
      $region33: #{_lambda_.16} parent=31 // pred_check
        %p2304 = pneg %p100
      $region34: #{_lambda_.16} parent=31 // pred_check_branch
        %2306 = sbr.rel (%p2304) target = $region36
      $region35: #{_lambda_.16} parent=31 // pred_region
        %s2307 = smul.u32 128, %s14
      $region36: #{_lambda_.16} parent=31 // pred_fallthru
        _
    $region32: #{_lambda_.16} parent=5 // pred_fallthru
      _
    %p2308 = scmp.le.s32.totalorder 2, %s9
    // Predicated region
    $region37: #{_lambda_.16} parent=5 // pred_check
      %p2309 = pneg %p2308
    $region38: #{_lambda_.16} parent=5 // pred_check_branch
      %2311 = sbr.rel (%p2309) target = $region40
    $region39: #{_lambda_.16} parent=5 // pred_region
      %s2312 = ssub.s32 %s9, 2
      // Predicated region
      $region41: #{_lambda_.16} parent=39 // pred_check
        %p2313 = pneg %p106
      $region42: #{_lambda_.16} parent=39 // pred_check_branch
        %2315 = sbr.rel (%p2313) target = $region44
      $region43: #{_lambda_.16} parent=39 // pred_region
        %s2316 = smul.u32 128, %s15
        %p2317 = scmp.lt.s32.totalorder %s2316, 255
        %s2318 = scalar_select %p2317, %s2316, 255
        %s2319 = smul.addr %s2318, 8
        %s2320 = scalar_lea.vmem %s3, %s2319
      $region44: #{_lambda_.16} parent=39 // pred_fallthru
        _
    $region40: #{_lambda_.16} parent=5 // pred_fallthru
      _
  $region6: #{_lambda_.16} parent=0 // loop_footer
    %s13 = sadd.s32 1, %s9
  $region7: #{_lambda_.16} parent=0 // loop_footer_branch
    %8 = sbr.rel target = $region3
  $region8: #{_lambda_.16} parent=0 // loop_exit
    _

// kernel: _lambda_.17
$region0: #{_lambda_.17}
  #allocation0 [shape = 'u32[]', space=smem, size = 0x4, offset = 0x4, fixed_abs, tag = 'smem constant byte address 0x4 - core index']
  #allocation1 [shape = 'u32[144,128]{1,0:T(1,128)}', space=vmem, size = 0x12000, scoped, tag = 'internal scratch']
  %s0 = inlined_call_operand.vmem [shape: f32[8192,512], index: 0, kind: input, shape index: {}]
  %s1 = inlined_call_operand.vmem [shape: f32[512,3], index: 1, kind: input, shape index: {}]
  %s2 = inlined_call_operand.vmem [shape: f32[1,3], index: 2, kind: input, shape index: {}]
  %s3 = inlined_call_operand.vmem [shape: f32[8192,3], index: 3, kind: output, shape index: {}]
  %s4 = sld [smem:[#allocation0]]
  $region45: #{_lambda_.17} parent=0
    _
  %s6 = ssub.s32 1, %s4
  %s7 = scalar_select 0, %s6, %s4
  loop: start=0, step=1, limit=10
  $region2: #{_lambda_.17} parent=0 // loop_pre_header
    _
  $region3: #{_lambda_.17} parent=0 // loop_header
    %s9 = sphi 0, %s13
    %p10 = scmp.ge.s32.totalorder %s9, 10
    %s19 = sphi 0, %s21
    %s22 = sphi 0, %s19
    %s23 = sphi 0, %s22
    %s39 = sphi 0, %s23
    %s43 = sphi 0, %s43
    %s45 = sphi 0, %s43
    %s46 = sphi 0, %s45
    %s60 = sphi 0, %s46
    %s64 = sphi 0, %s64
    %s66 = sphi 0, %s64
    %s67 = sphi 0, %s66
    %s81 = sphi 0, %s67
    %s87 = sphi 0, %s89
    %s90 = sphi 0, %s87
    %s91 = sphi 0, %s90
    %s107 = sphi 0, %s91
  $region4: #{_lambda_.17} parent=0 // loop_header_branch
    %12 = sbr.rel (%p10) target = $region8
  $region5: #{_lambda_.17} parent=0 // loop_body
    %s14 = ssub.s32 %s9, 1
    %s15 = ssub.s32 %s9, 2
    %s16 = sadd.s32 %s9, 1
    %s17 = ssub.s32 %s9, %s16
    %p18 = scmp.eq.s32.totalorder %s17, 0
    %s20 = sadd.s32 %s19, 1
    %s21 = scalar_select %p18, %s19, %s20
    %p24 = pneg %p18
    %p25 = scmp.eq.s32.totalorder %s9, 7
    %p26 = por %p24, %p25
    %p27 = scmp.ne.s32.totalorder %s19, %s22
    %p28 = scmp.eq.s32.totalorder %s9, 0
    %p29 = por %p27, %p28
    %p30 = scmp.ne.s32.totalorder %s19, %s22
    %p31 = scmp.eq.s32.totalorder %s14, 7
    %p32 = por %p30, %p31
    %p33 = scmp.ne.s32.totalorder %s22, %s23
    %p34 = scmp.eq.s32.totalorder %s14, 0
    %p35 = por %p33, %p34
    %p36 = scmp.ne.s32.totalorder %s22, %s23
    %p37 = scmp.eq.s32.totalorder %s15, 7
    %p38 = por %p36, %p37
    %p40 = scmp.ne.s32.totalorder %s23, %s39
    %p41 = scmp.eq.s32.totalorder %s15, 0
    %p42 = por %p40, %p41
    %s44 = sadd.s32 %s43, 1
    %p47 = scmp.eq.s32.totalorder %s9, 7
    %p48 = scmp.ne.s32.totalorder %s43, %s45
    %p49 = scmp.eq.s32.totalorder %s9, 0
    %p50 = por %p48, %p49
    %p51 = scmp.ne.s32.totalorder %s43, %s45
    %p52 = scmp.eq.s32.totalorder %s14, 7
    %p53 = por %p51, %p52
    %p54 = scmp.ne.s32.totalorder %s45, %s46
    %p55 = scmp.eq.s32.totalorder %s14, 0
    %p56 = por %p54, %p55
    %p57 = scmp.ne.s32.totalorder %s45, %s46
    %p58 = scmp.eq.s32.totalorder %s15, 7
    %p59 = por %p57, %p58
    %p61 = scmp.ne.s32.totalorder %s46, %s60
    %p62 = scmp.eq.s32.totalorder %s15, 0
    %p63 = por %p61, %p62
    %s65 = sadd.s32 %s64, 1
    %p68 = scmp.eq.s32.totalorder %s9, 7
    %p69 = scmp.ne.s32.totalorder %s64, %s66
    %p70 = scmp.eq.s32.totalorder %s9, 0
    %p71 = por %p69, %p70
    %p72 = scmp.ne.s32.totalorder %s64, %s66
    %p73 = scmp.eq.s32.totalorder %s14, 7
    %p74 = por %p72, %p73
    %p75 = scmp.ne.s32.totalorder %s66, %s67
    %p76 = scmp.eq.s32.totalorder %s14, 0
    %p77 = por %p75, %p76
    %p78 = scmp.ne.s32.totalorder %s66, %s67
    %p79 = scmp.eq.s32.totalorder %s15, 7
    %p80 = por %p78, %p79
    %p82 = scmp.ne.s32.totalorder %s67, %s81
    %p83 = scmp.eq.s32.totalorder %s15, 0
    %p84 = por %p82, %p83
    %s85 = ssub.s32 %s9, %s16
    %p86 = scmp.eq.s32.totalorder %s85, 0
    %s88 = sadd.s32 %s87, 1
    %s89 = scalar_select %p86, %s87, %s88
    %p92 = pneg %p86
    %p93 = scmp.eq.s32.totalorder %s9, 7
    %p94 = por %p92, %p93
    %p95 = scmp.ne.s32.totalorder %s87, %s90
    %p96 = scmp.eq.s32.totalorder %s9, 0
    %p97 = por %p95, %p96
    %p98 = scmp.ne.s32.totalorder %s87, %s90
    %p99 = scmp.eq.s32.totalorder %s14, 7
    %p100 = por %p98, %p99
    %p101 = scmp.ne.s32.totalorder %s90, %s91
    %p102 = scmp.eq.s32.totalorder %s14, 0
    %p103 = por %p101, %p102
    %p104 = scmp.ne.s32.totalorder %s90, %s91
    %p105 = scmp.eq.s32.totalorder %s15, 7
    %p106 = por %p104, %p105
    %p108 = scmp.ne.s32.totalorder %s91, %s107
    %p109 = scmp.eq.s32.totalorder %s15, 0
    %p110 = por %p108, %p109
    %p111 = scmp.le.s32.totalorder 1, %s9
    %p112 = scmp.lt.s32.totalorder %s9, 9
    %p113 = pnand %p111, %p112
    %p114 = pneg %p113
    // Predicated region
    $region9: #{_lambda_.17} parent=5 // pred_check
      _
    $region10: #{_lambda_.17} parent=5 // pred_check_branch
      %116 = sbr.rel (%p113) target = $region12
    $region11: #{_lambda_.17} parent=5 // pred_region
      %s117 = ssub.s32 %s9, 1
      // Predicated region
      $region13: #{_lambda_.17} parent=11 // pred_check
        %p118 = pneg %p56
      $region14: #{_lambda_.17} parent=11 // pred_check_branch
        %120 = sbr.rel (%p118) target = $region16
      $region15: #{_lambda_.17} parent=11 // pred_region
        _
      $region16: #{_lambda_.17} parent=11 // pred_fallthru
        _
      // Predicated region
      $region17: #{_lambda_.17} parent=11 // pred_check
        %p121 = pneg %p77
      $region18: #{_lambda_.17} parent=11 // pred_check_branch
        %123 = sbr.rel (%p121) target = $region20
      $region19: #{_lambda_.17} parent=11 // pred_region
        _
      $region20: #{_lambda_.17} parent=11 // pred_fallthru
        _
    $region12: #{_lambda_.17} parent=5 // pred_fallthru
      _
    %p124 = scmp.lt.s32.totalorder %s9, 8
    // Predicated region
    $region21: #{_lambda_.17} parent=5 // pred_check
      %p125 = pneg %p124
    $region22: #{_lambda_.17} parent=5 // pred_check_branch
      %127 = sbr.rel (%p125) target = $region24
    $region23: #{_lambda_.17} parent=5 // pred_region
      // Predicated region
      $region25: #{_lambda_.17} parent=23 // pred_check
        %p128 = pneg %p29
      $region26: #{_lambda_.17} parent=23 // pred_check_branch
        %130 = sbr.rel (%p128) target = $region28
      $region27: #{_lambda_.17} parent=23 // pred_region
        %s131 = smul.u32 128, %s9
        %p132 = scmp.lt.s32.totalorder %s131, 1023
        %s133 = scalar_select %p132, %s131, 1023
        %s134 = smul.addr %s133, 4
        %s135 = smul.addr %s134, 8
        %s136 = scalar_lea.vmem %s0, %s135
        %s137 = smul.u32 128, %s9
      $region28: #{_lambda_.17} parent=23 // pred_fallthru
        _
    $region24: #{_lambda_.17} parent=5 // pred_fallthru
      _
    %p138 = scmp.le.s32.totalorder 1, %s9
    %p139 = scmp.lt.s32.totalorder %s9, 9
    %p140 = pnand %p138, %p139
    %p141 = pneg %p140
    // Predicated region
    $region29: #{_lambda_.17} parent=5 // pred_check
      _
    $region30: #{_lambda_.17} parent=5 // pred_check_branch
      %143 = sbr.rel (%p140) target = $region32
    $region31: #{_lambda_.17} parent=5 // pred_region
      %s144 = ssub.s32 %s9, 1
      %s145 = smul.u32 128, %s14
      %p146 = scmp.lt.s32.totalorder %s145, 1023
      %s147 = scalar_select %p146, %s145, 1023
      %s148 = smul.addr %s147, 4
      %s149 = smul.addr %s148, 8
      %s150 = scalar_lea.vmem %s0, %s149
      %p151 = pneg %p35
      %p152 = pneg %p32
      %p153 = pneg %p56
      %p154 = pneg %p53
      %p155 = pneg %p77
      %p156 = pneg %p74
      %p157 = pneg %p103
      %p158 = pneg %p100
      %s159 = smul.u32 128, %s14
      %p160 = scmp.lt.s32.totalorder %s159, 1023
      %s161 = scalar_select %p160, %s159, 1023
      %s162 = smul.addr %s161, 8
      %s163 = scalar_lea.vmem %s3, %s162
      %s164 = smul.u32 128, %s14
      %p165 = scmp.lt.s32.totalorder %s164, 1023
      %s166 = scalar_select %p165, %s164, 1023
      %s167 = smul.addr %s166, 4
      %s168 = smul.addr %s167, 8
      %s169 = scalar_lea.vmem %s0, %s168
      %s170 = smul.u32 128, %s14
      %s171 = smul.u32 128, %s14
      %p172 = scmp.lt.s32.totalorder %s171, 1023
      %s173 = scalar_select %p172, %s171, 1023
      %s174 = smul.addr %s173, 8
      %s175 = scalar_lea.vmem %s3, %s174
      %s176 = smul.u32 128, %s14
      %v177 = vld [vmem:[%s169] sm:$0xff]
      %v178 = vld [vmem:[%s169 + $0x8] sm:$0xff]
      %v179 = vld [vmem:[%s169 + $0x10] sm:$0xff]
      %v180 = vld [vmem:[%s169 + $0x18] sm:$0xff]
      %v181 = vld [vmem:[%s169 + $0x20] sm:$0xff]
      %v182 = vld [vmem:[%s169 + $0x28] sm:$0xff]
      %v183 = vld [vmem:[%s169 + $0x30] sm:$0xff]
      %v184 = vld [vmem:[%s169 + $0x38] sm:$0xff]
      %v185 = vld [vmem:[%s169 + $0x40] sm:$0xff]
      %v186 = vld [vmem:[%s169 + $0x48] sm:$0xff]
      %v187 = vld [vmem:[%s169 + $0x50] sm:$0xff]
      %v188 = vld [vmem:[%s169 + $0x58] sm:$0xff]
      %v189 = vld [vmem:[%s169 + $0x60] sm:$0xff]
      %v190 = vld [vmem:[%s169 + $0x68] sm:$0xff]
      %v191 = vld [vmem:[%s169 + $0x70] sm:$0xff]
      %v192 = vld [vmem:[%s169 + $0x78] sm:$0xff]
      %v193 = vld [vmem:[%s169 + $0x80] sm:$0xff]
      %v194 = vld [vmem:[%s169 + $0x88] sm:$0xff]
      %v195 = vld [vmem:[%s169 + $0x90] sm:$0xff]
      %v196 = vld [vmem:[%s169 + $0x98] sm:$0xff]
      %v197 = vld [vmem:[%s169 + $0xa0] sm:$0xff]
      %v198 = vld [vmem:[%s169 + $0xa8] sm:$0xff]
      %v199 = vld [vmem:[%s169 + $0xb0] sm:$0xff]
      %v200 = vld [vmem:[%s169 + $0xb8] sm:$0xff]
      %v201 = vld [vmem:[%s169 + $0xc0] sm:$0xff]
      %v202 = vld [vmem:[%s169 + $0xc8] sm:$0xff]
      %v203 = vld [vmem:[%s169 + $0xd0] sm:$0xff]
      %v204 = vld [vmem:[%s169 + $0xd8] sm:$0xff]
      %v205 = vld [vmem:[%s169 + $0xe0] sm:$0xff]
      %v206 = vld [vmem:[%s169 + $0xe8] sm:$0xff]
      %v207 = vld [vmem:[%s169 + $0xf0] sm:$0xff]
      %v208 = vld [vmem:[%s169 + $0xf8] sm:$0xff]
      %v209 = vld [vmem:[%s169 + $0x100] sm:$0xff]
      %v210 = vld [vmem:[%s169 + $0x108] sm:$0xff]
      %v211 = vld [vmem:[%s169 + $0x110] sm:$0xff]
      %v212 = vld [vmem:[%s169 + $0x118] sm:$0xff]
      %v213 = vld [vmem:[%s169 + $0x120] sm:$0xff]
      %v214 = vld [vmem:[%s169 + $0x128] sm:$0xff]
      %v215 = vld [vmem:[%s169 + $0x130] sm:$0xff]
      %v216 = vld [vmem:[%s169 + $0x138] sm:$0xff]
      %v217 = vld [vmem:[%s169 + $0x140] sm:$0xff]
      %v218 = vld [vmem:[%s169 + $0x148] sm:$0xff]
      %v219 = vld [vmem:[%s169 + $0x150] sm:$0xff]
      %v220 = vld [vmem:[%s169 + $0x158] sm:$0xff]
      %v221 = vld [vmem:[%s169 + $0x160] sm:$0xff]
      %v222 = vld [vmem:[%s169 + $0x168] sm:$0xff]
      %v223 = vld [vmem:[%s169 + $0x170] sm:$0xff]
      %v224 = vld [vmem:[%s169 + $0x178] sm:$0xff]
      %v225 = vld [vmem:[%s169 + $0x180] sm:$0xff]
      %v226 = vld [vmem:[%s169 + $0x188] sm:$0xff]
      %v227 = vld [vmem:[%s169 + $0x190] sm:$0xff]
      %v228 = vld [vmem:[%s169 + $0x198] sm:$0xff]
      %v229 = vld [vmem:[%s169 + $0x1a0] sm:$0xff]
      %v230 = vld [vmem:[%s169 + $0x1a8] sm:$0xff]
      %v231 = vld [vmem:[%s169 + $0x1b0] sm:$0xff]
      %v232 = vld [vmem:[%s169 + $0x1b8] sm:$0xff]
      %v233 = vld [vmem:[%s169 + $0x1c0] sm:$0xff]
      %v234 = vld [vmem:[%s169 + $0x1c8] sm:$0xff]
      %v235 = vld [vmem:[%s169 + $0x1d0] sm:$0xff]
      %v236 = vld [vmem:[%s169 + $0x1d8] sm:$0xff]
      %v237 = vld [vmem:[%s169 + $0x1e0] sm:$0xff]
      %v238 = vld [vmem:[%s169 + $0x1e8] sm:$0xff]
      %v239 = vld [vmem:[%s169 + $0x1f0] sm:$0xff]
      %v240 = vld [vmem:[%s169 + $0x1f8] sm:$0xff]
      %v241 = vld [vmem:[%s169 + $0x200] sm:$0xff]
      %v242 = vld [vmem:[%s169 + $0x208] sm:$0xff]
      %v243 = vld [vmem:[%s169 + $0x210] sm:$0xff]
      %v244 = vld [vmem:[%s169 + $0x218] sm:$0xff]
      %v245 = vld [vmem:[%s169 + $0x220] sm:$0xff]
      %v246 = vld [vmem:[%s169 + $0x228] sm:$0xff]
      %v247 = vld [vmem:[%s169 + $0x230] sm:$0xff]
      %v248 = vld [vmem:[%s169 + $0x238] sm:$0xff]
      %v249 = vld [vmem:[%s169 + $0x240] sm:$0xff]
      %v250 = vld [vmem:[%s169 + $0x248] sm:$0xff]
      %v251 = vld [vmem:[%s169 + $0x250] sm:$0xff]
      %v252 = vld [vmem:[%s169 + $0x258] sm:$0xff]
      %v253 = vld [vmem:[%s169 + $0x260] sm:$0xff]
      %v254 = vld [vmem:[%s169 + $0x268] sm:$0xff]
      %v255 = vld [vmem:[%s169 + $0x270] sm:$0xff]
      %v256 = vld [vmem:[%s169 + $0x278] sm:$0xff]
      %v257 = vld [vmem:[%s169 + $0x280] sm:$0xff]
      %v258 = vld [vmem:[%s169 + $0x288] sm:$0xff]
      %v259 = vld [vmem:[%s169 + $0x290] sm:$0xff]
      %v260 = vld [vmem:[%s169 + $0x298] sm:$0xff]
      %v261 = vld [vmem:[%s169 + $0x2a0] sm:$0xff]
      %v262 = vld [vmem:[%s169 + $0x2a8] sm:$0xff]
      %v263 = vld [vmem:[%s169 + $0x2b0] sm:$0xff]
      %v264 = vld [vmem:[%s169 + $0x2b8] sm:$0xff]
      %v265 = vld [vmem:[%s169 + $0x2c0] sm:$0xff]
      %v266 = vld [vmem:[%s169 + $0x2c8] sm:$0xff]
      %v267 = vld [vmem:[%s169 + $0x2d0] sm:$0xff]
      %v268 = vld [vmem:[%s169 + $0x2d8] sm:$0xff]
      %v269 = vld [vmem:[%s169 + $0x2e0] sm:$0xff]
      %v270 = vld [vmem:[%s169 + $0x2e8] sm:$0xff]
      %v271 = vld [vmem:[%s169 + $0x2f0] sm:$0xff]
      %v272 = vld [vmem:[%s169 + $0x2f8] sm:$0xff]
      %v273 = vld [vmem:[%s169 + $0x300] sm:$0xff]
      %v274 = vld [vmem:[%s169 + $0x308] sm:$0xff]
      %v275 = vld [vmem:[%s169 + $0x310] sm:$0xff]
      %v276 = vld [vmem:[%s169 + $0x318] sm:$0xff]
      %v277 = vld [vmem:[%s169 + $0x320] sm:$0xff]
      %v278 = vld [vmem:[%s169 + $0x328] sm:$0xff]
      %v279 = vld [vmem:[%s169 + $0x330] sm:$0xff]
      %v280 = vld [vmem:[%s169 + $0x338] sm:$0xff]
      %v281 = vld [vmem:[%s169 + $0x340] sm:$0xff]
      %v282 = vld [vmem:[%s169 + $0x348] sm:$0xff]
      %v283 = vld [vmem:[%s169 + $0x350] sm:$0xff]
      %v284 = vld [vmem:[%s169 + $0x358] sm:$0xff]
      %v285 = vld [vmem:[%s169 + $0x360] sm:$0xff]
      %v286 = vld [vmem:[%s169 + $0x368] sm:$0xff]
      %v287 = vld [vmem:[%s169 + $0x370] sm:$0xff]
      %v288 = vld [vmem:[%s169 + $0x378] sm:$0xff]
      %v289 = vld [vmem:[%s169 + $0x380] sm:$0xff]
      %v290 = vld [vmem:[%s169 + $0x388] sm:$0xff]
      %v291 = vld [vmem:[%s169 + $0x390] sm:$0xff]
      %v292 = vld [vmem:[%s169 + $0x398] sm:$0xff]
      %v293 = vld [vmem:[%s169 + $0x3a0] sm:$0xff]
      %v294 = vld [vmem:[%s169 + $0x3a8] sm:$0xff]
      %v295 = vld [vmem:[%s169 + $0x3b0] sm:$0xff]
      %v296 = vld [vmem:[%s169 + $0x3b8] sm:$0xff]
      %v297 = vld [vmem:[%s169 + $0x3c0] sm:$0xff]
      %v298 = vld [vmem:[%s169 + $0x3c8] sm:$0xff]
      %v299 = vld [vmem:[%s169 + $0x3d0] sm:$0xff]
      %v300 = vld [vmem:[%s169 + $0x3d8] sm:$0xff]
      %v301 = vld [vmem:[%s169 + $0x3e0] sm:$0xff]
      %v302 = vld [vmem:[%s169 + $0x3e8] sm:$0xff]
      %v303 = vld [vmem:[%s169 + $0x3f0] sm:$0xff]
      %v304 = vld [vmem:[%s169 + $0x3f8] sm:$0xff]
      %v305 = vld [vmem:[%s169 + $0x400] sm:$0xff]
      %v306 = vld [vmem:[%s169 + $0x408] sm:$0xff]
      %v307 = vld [vmem:[%s169 + $0x410] sm:$0xff]
      %v308 = vld [vmem:[%s169 + $0x418] sm:$0xff]
      %v309 = vld [vmem:[%s169 + $0x420] sm:$0xff]
      %v310 = vld [vmem:[%s169 + $0x428] sm:$0xff]
      %v311 = vld [vmem:[%s169 + $0x430] sm:$0xff]
      %v312 = vld [vmem:[%s169 + $0x438] sm:$0xff]
      %v313 = vld [vmem:[%s169 + $0x440] sm:$0xff]
      %v314 = vld [vmem:[%s169 + $0x448] sm:$0xff]
      %v315 = vld [vmem:[%s169 + $0x450] sm:$0xff]
      %v316 = vld [vmem:[%s169 + $0x458] sm:$0xff]
      %v317 = vld [vmem:[%s169 + $0x460] sm:$0xff]
      %v318 = vld [vmem:[%s169 + $0x468] sm:$0xff]
      %v319 = vld [vmem:[%s169 + $0x470] sm:$0xff]
      %v320 = vld [vmem:[%s169 + $0x478] sm:$0xff]
      %v321 = vld [vmem:[%s169 + $0x480] sm:$0xff]
      %v322 = vld [vmem:[%s169 + $0x488] sm:$0xff]
      %v323 = vld [vmem:[%s169 + $0x490] sm:$0xff]
      %v324 = vld [vmem:[%s169 + $0x498] sm:$0xff]
      %v325 = vld [vmem:[%s169 + $0x4a0] sm:$0xff]
      %v326 = vld [vmem:[%s169 + $0x4a8] sm:$0xff]
      %v327 = vld [vmem:[%s169 + $0x4b0] sm:$0xff]
      %v328 = vld [vmem:[%s169 + $0x4b8] sm:$0xff]
      %v329 = vld [vmem:[%s169 + $0x4c0] sm:$0xff]
      %v330 = vld [vmem:[%s169 + $0x4c8] sm:$0xff]
      %v331 = vld [vmem:[%s169 + $0x4d0] sm:$0xff]
      %v332 = vld [vmem:[%s169 + $0x4d8] sm:$0xff]
      %v333 = vld [vmem:[%s169 + $0x4e0] sm:$0xff]
      %v334 = vld [vmem:[%s169 + $0x4e8] sm:$0xff]
      %v335 = vld [vmem:[%s169 + $0x4f0] sm:$0xff]
      %v336 = vld [vmem:[%s169 + $0x4f8] sm:$0xff]
      %v337 = vld [vmem:[%s169 + $0x500] sm:$0xff]
      %v338 = vld [vmem:[%s169 + $0x508] sm:$0xff]
      %v339 = vld [vmem:[%s169 + $0x510] sm:$0xff]
      %v340 = vld [vmem:[%s169 + $0x518] sm:$0xff]
      %v341 = vld [vmem:[%s169 + $0x520] sm:$0xff]
      %v342 = vld [vmem:[%s169 + $0x528] sm:$0xff]
      %v343 = vld [vmem:[%s169 + $0x530] sm:$0xff]
      %v344 = vld [vmem:[%s169 + $0x538] sm:$0xff]
      %v345 = vld [vmem:[%s169 + $0x540] sm:$0xff]
      %v346 = vld [vmem:[%s169 + $0x548] sm:$0xff]
      %v347 = vld [vmem:[%s169 + $0x550] sm:$0xff]
      %v348 = vld [vmem:[%s169 + $0x558] sm:$0xff]
      %v349 = vld [vmem:[%s169 + $0x560] sm:$0xff]
      %v350 = vld [vmem:[%s169 + $0x568] sm:$0xff]
      %v351 = vld [vmem:[%s169 + $0x570] sm:$0xff]
      %v352 = vld [vmem:[%s169 + $0x578] sm:$0xff]
      %v353 = vld [vmem:[%s169 + $0x580] sm:$0xff]
      %v354 = vld [vmem:[%s169 + $0x588] sm:$0xff]
      %v355 = vld [vmem:[%s169 + $0x590] sm:$0xff]
      %v356 = vld [vmem:[%s169 + $0x598] sm:$0xff]
      %v357 = vld [vmem:[%s169 + $0x5a0] sm:$0xff]
      %v358 = vld [vmem:[%s169 + $0x5a8] sm:$0xff]
      %v359 = vld [vmem:[%s169 + $0x5b0] sm:$0xff]
      %v360 = vld [vmem:[%s169 + $0x5b8] sm:$0xff]
      %v361 = vld [vmem:[%s169 + $0x5c0] sm:$0xff]
      %v362 = vld [vmem:[%s169 + $0x5c8] sm:$0xff]
      %v363 = vld [vmem:[%s169 + $0x5d0] sm:$0xff]
      %v364 = vld [vmem:[%s169 + $0x5d8] sm:$0xff]
      %v365 = vld [vmem:[%s169 + $0x5e0] sm:$0xff]
      %v366 = vld [vmem:[%s169 + $0x5e8] sm:$0xff]
      %v367 = vld [vmem:[%s169 + $0x5f0] sm:$0xff]
      %v368 = vld [vmem:[%s169 + $0x5f8] sm:$0xff]
      %v369 = vld [vmem:[%s169 + $0x600] sm:$0xff]
      %v370 = vld [vmem:[%s169 + $0x608] sm:$0xff]
      %v371 = vld [vmem:[%s169 + $0x610] sm:$0xff]
      %v372 = vld [vmem:[%s169 + $0x618] sm:$0xff]
      %v373 = vld [vmem:[%s169 + $0x620] sm:$0xff]
      %v374 = vld [vmem:[%s169 + $0x628] sm:$0xff]
      %v375 = vld [vmem:[%s169 + $0x630] sm:$0xff]
      %v376 = vld [vmem:[%s169 + $0x638] sm:$0xff]
      %v377 = vld [vmem:[%s169 + $0x640] sm:$0xff]
      %v378 = vld [vmem:[%s169 + $0x648] sm:$0xff]
      %v379 = vld [vmem:[%s169 + $0x650] sm:$0xff]
      %v380 = vld [vmem:[%s169 + $0x658] sm:$0xff]
      %v381 = vld [vmem:[%s169 + $0x660] sm:$0xff]
      %v382 = vld [vmem:[%s169 + $0x668] sm:$0xff]
      %v383 = vld [vmem:[%s169 + $0x670] sm:$0xff]
      %v384 = vld [vmem:[%s169 + $0x678] sm:$0xff]
      %v385 = vld [vmem:[%s169 + $0x680] sm:$0xff]
      %v386 = vld [vmem:[%s169 + $0x688] sm:$0xff]
      %v387 = vld [vmem:[%s169 + $0x690] sm:$0xff]
      %v388 = vld [vmem:[%s169 + $0x698] sm:$0xff]
      %v389 = vld [vmem:[%s169 + $0x6a0] sm:$0xff]
      %v390 = vld [vmem:[%s169 + $0x6a8] sm:$0xff]
      %v391 = vld [vmem:[%s169 + $0x6b0] sm:$0xff]
      %v392 = vld [vmem:[%s169 + $0x6b8] sm:$0xff]
      %v393 = vld [vmem:[%s169 + $0x6c0] sm:$0xff]
      %v394 = vld [vmem:[%s169 + $0x6c8] sm:$0xff]
      %v395 = vld [vmem:[%s169 + $0x6d0] sm:$0xff]
      %v396 = vld [vmem:[%s169 + $0x6d8] sm:$0xff]
      %v397 = vld [vmem:[%s169 + $0x6e0] sm:$0xff]
      %v398 = vld [vmem:[%s169 + $0x6e8] sm:$0xff]
      %v399 = vld [vmem:[%s169 + $0x6f0] sm:$0xff]
      %v400 = vld [vmem:[%s169 + $0x6f8] sm:$0xff]
      %v401 = vld [vmem:[%s169 + $0x700] sm:$0xff]
      %v402 = vld [vmem:[%s169 + $0x708] sm:$0xff]
      %v403 = vld [vmem:[%s169 + $0x710] sm:$0xff]
      %v404 = vld [vmem:[%s169 + $0x718] sm:$0xff]
      %v405 = vld [vmem:[%s169 + $0x720] sm:$0xff]
      %v406 = vld [vmem:[%s169 + $0x728] sm:$0xff]
      %v407 = vld [vmem:[%s169 + $0x730] sm:$0xff]
      %v408 = vld [vmem:[%s169 + $0x738] sm:$0xff]
      %v409 = vld [vmem:[%s169 + $0x740] sm:$0xff]
      %v410 = vld [vmem:[%s169 + $0x748] sm:$0xff]
      %v411 = vld [vmem:[%s169 + $0x750] sm:$0xff]
      %v412 = vld [vmem:[%s169 + $0x758] sm:$0xff]
      %v413 = vld [vmem:[%s169 + $0x760] sm:$0xff]
      %v414 = vld [vmem:[%s169 + $0x768] sm:$0xff]
      %v415 = vld [vmem:[%s169 + $0x770] sm:$0xff]
      %v416 = vld [vmem:[%s169 + $0x778] sm:$0xff]
      %v417 = vld [vmem:[%s169 + $0x780] sm:$0xff]
      %v418 = vld [vmem:[%s169 + $0x788] sm:$0xff]
      %v419 = vld [vmem:[%s169 + $0x790] sm:$0xff]
      %v420 = vld [vmem:[%s169 + $0x798] sm:$0xff]
      %v421 = vld [vmem:[%s169 + $0x7a0] sm:$0xff]
      %v422 = vld [vmem:[%s169 + $0x7a8] sm:$0xff]
      %v423 = vld [vmem:[%s169 + $0x7b0] sm:$0xff]
      %v424 = vld [vmem:[%s169 + $0x7b8] sm:$0xff]
      %v425 = vld [vmem:[%s169 + $0x7c0] sm:$0xff]
      %v426 = vld [vmem:[%s169 + $0x7c8] sm:$0xff]
      %v427 = vld [vmem:[%s169 + $0x7d0] sm:$0xff]
      %v428 = vld [vmem:[%s169 + $0x7d8] sm:$0xff]
      %v429 = vld [vmem:[%s169 + $0x7e0] sm:$0xff]
      %v430 = vld [vmem:[%s169 + $0x7e8] sm:$0xff]
      %v431 = vld [vmem:[%s169 + $0x7f0] sm:$0xff]
      %v432 = vld [vmem:[%s169 + $0x7f8] sm:$0xff]
      %v433 = vld [vmem:[%s169 + $0x800] sm:$0xff]
      %v434 = vld [vmem:[%s169 + $0x808] sm:$0xff]
      %v435 = vld [vmem:[%s169 + $0x810] sm:$0xff]
      %v436 = vld [vmem:[%s169 + $0x818] sm:$0xff]
      %v437 = vld [vmem:[%s169 + $0x820] sm:$0xff]
      %v438 = vld [vmem:[%s169 + $0x828] sm:$0xff]
      %v439 = vld [vmem:[%s169 + $0x830] sm:$0xff]
      %v440 = vld [vmem:[%s169 + $0x838] sm:$0xff]
      %v441 = vld [vmem:[%s169 + $0x840] sm:$0xff]
      %v442 = vld [vmem:[%s169 + $0x848] sm:$0xff]
      %v443 = vld [vmem:[%s169 + $0x850] sm:$0xff]
      %v444 = vld [vmem:[%s169 + $0x858] sm:$0xff]
      %v445 = vld [vmem:[%s169 + $0x860] sm:$0xff]
      %v446 = vld [vmem:[%s169 + $0x868] sm:$0xff]
      %v447 = vld [vmem:[%s169 + $0x870] sm:$0xff]
      %v448 = vld [vmem:[%s169 + $0x878] sm:$0xff]
      %v449 = vld [vmem:[%s169 + $0x880] sm:$0xff]
      %v450 = vld [vmem:[%s169 + $0x888] sm:$0xff]
      %v451 = vld [vmem:[%s169 + $0x890] sm:$0xff]
      %v452 = vld [vmem:[%s169 + $0x898] sm:$0xff]
      %v453 = vld [vmem:[%s169 + $0x8a0] sm:$0xff]
      %v454 = vld [vmem:[%s169 + $0x8a8] sm:$0xff]
      %v455 = vld [vmem:[%s169 + $0x8b0] sm:$0xff]
      %v456 = vld [vmem:[%s169 + $0x8b8] sm:$0xff]
      %v457 = vld [vmem:[%s169 + $0x8c0] sm:$0xff]
      %v458 = vld [vmem:[%s169 + $0x8c8] sm:$0xff]
      %v459 = vld [vmem:[%s169 + $0x8d0] sm:$0xff]
      %v460 = vld [vmem:[%s169 + $0x8d8] sm:$0xff]
      %v461 = vld [vmem:[%s169 + $0x8e0] sm:$0xff]
      %v462 = vld [vmem:[%s169 + $0x8e8] sm:$0xff]
      %v463 = vld [vmem:[%s169 + $0x8f0] sm:$0xff]
      %v464 = vld [vmem:[%s169 + $0x8f8] sm:$0xff]
      %v465 = vld [vmem:[%s169 + $0x900] sm:$0xff]
      %v466 = vld [vmem:[%s169 + $0x908] sm:$0xff]
      %v467 = vld [vmem:[%s169 + $0x910] sm:$0xff]
      %v468 = vld [vmem:[%s169 + $0x918] sm:$0xff]
      %v469 = vld [vmem:[%s169 + $0x920] sm:$0xff]
      %v470 = vld [vmem:[%s169 + $0x928] sm:$0xff]
      %v471 = vld [vmem:[%s169 + $0x930] sm:$0xff]
      %v472 = vld [vmem:[%s169 + $0x938] sm:$0xff]
      %v473 = vld [vmem:[%s169 + $0x940] sm:$0xff]
      %v474 = vld [vmem:[%s169 + $0x948] sm:$0xff]
      %v475 = vld [vmem:[%s169 + $0x950] sm:$0xff]
      %v476 = vld [vmem:[%s169 + $0x958] sm:$0xff]
      %v477 = vld [vmem:[%s169 + $0x960] sm:$0xff]
      %v478 = vld [vmem:[%s169 + $0x968] sm:$0xff]
      %v479 = vld [vmem:[%s169 + $0x970] sm:$0xff]
      %v480 = vld [vmem:[%s169 + $0x978] sm:$0xff]
      %v481 = vld [vmem:[%s169 + $0x980] sm:$0xff]
      %v482 = vld [vmem:[%s169 + $0x988] sm:$0xff]
      %v483 = vld [vmem:[%s169 + $0x990] sm:$0xff]
      %v484 = vld [vmem:[%s169 + $0x998] sm:$0xff]
      %v485 = vld [vmem:[%s169 + $0x9a0] sm:$0xff]
      %v486 = vld [vmem:[%s169 + $0x9a8] sm:$0xff]
      %v487 = vld [vmem:[%s169 + $0x9b0] sm:$0xff]
      %v488 = vld [vmem:[%s169 + $0x9b8] sm:$0xff]
      %v489 = vld [vmem:[%s169 + $0x9c0] sm:$0xff]
      %v490 = vld [vmem:[%s169 + $0x9c8] sm:$0xff]
      %v491 = vld [vmem:[%s169 + $0x9d0] sm:$0xff]
      %v492 = vld [vmem:[%s169 + $0x9d8] sm:$0xff]
      %v493 = vld [vmem:[%s169 + $0x9e0] sm:$0xff]
      %v494 = vld [vmem:[%s169 + $0x9e8] sm:$0xff]
      %v495 = vld [vmem:[%s169 + $0x9f0] sm:$0xff]
      %v496 = vld [vmem:[%s169 + $0x9f8] sm:$0xff]
      %v497 = vld [vmem:[%s169 + $0xa00] sm:$0xff]
      %v498 = vld [vmem:[%s169 + $0xa08] sm:$0xff]
      %v499 = vld [vmem:[%s169 + $0xa10] sm:$0xff]
      %v500 = vld [vmem:[%s169 + $0xa18] sm:$0xff]
      %v501 = vld [vmem:[%s169 + $0xa20] sm:$0xff]
      %v502 = vld [vmem:[%s169 + $0xa28] sm:$0xff]
      %v503 = vld [vmem:[%s169 + $0xa30] sm:$0xff]
      %v504 = vld [vmem:[%s169 + $0xa38] sm:$0xff]
      %v505 = vld [vmem:[%s169 + $0xa40] sm:$0xff]
      %v506 = vld [vmem:[%s169 + $0xa48] sm:$0xff]
      %v507 = vld [vmem:[%s169 + $0xa50] sm:$0xff]
      %v508 = vld [vmem:[%s169 + $0xa58] sm:$0xff]
      %v509 = vld [vmem:[%s169 + $0xa60] sm:$0xff]
      %v510 = vld [vmem:[%s169 + $0xa68] sm:$0xff]
      %v511 = vld [vmem:[%s169 + $0xa70] sm:$0xff]
      %v512 = vld [vmem:[%s169 + $0xa78] sm:$0xff]
      %v513 = vld [vmem:[%s169 + $0xa80] sm:$0xff]
      %v514 = vld [vmem:[%s169 + $0xa88] sm:$0xff]
      %v515 = vld [vmem:[%s169 + $0xa90] sm:$0xff]
      %v516 = vld [vmem:[%s169 + $0xa98] sm:$0xff]
      %v517 = vld [vmem:[%s169 + $0xaa0] sm:$0xff]
      %v518 = vld [vmem:[%s169 + $0xaa8] sm:$0xff]
      %v519 = vld [vmem:[%s169 + $0xab0] sm:$0xff]
      %v520 = vld [vmem:[%s169 + $0xab8] sm:$0xff]
      %v521 = vld [vmem:[%s169 + $0xac0] sm:$0xff]
      %v522 = vld [vmem:[%s169 + $0xac8] sm:$0xff]
      %v523 = vld [vmem:[%s169 + $0xad0] sm:$0xff]
      %v524 = vld [vmem:[%s169 + $0xad8] sm:$0xff]
      %v525 = vld [vmem:[%s169 + $0xae0] sm:$0xff]
      %v526 = vld [vmem:[%s169 + $0xae8] sm:$0xff]
      %v527 = vld [vmem:[%s169 + $0xaf0] sm:$0xff]
      %v528 = vld [vmem:[%s169 + $0xaf8] sm:$0xff]
      %v529 = vld [vmem:[%s169 + $0xb00] sm:$0xff]
      %v530 = vld [vmem:[%s169 + $0xb08] sm:$0xff]
      %v531 = vld [vmem:[%s169 + $0xb10] sm:$0xff]
      %v532 = vld [vmem:[%s169 + $0xb18] sm:$0xff]
      %v533 = vld [vmem:[%s169 + $0xb20] sm:$0xff]
      %v534 = vld [vmem:[%s169 + $0xb28] sm:$0xff]
      %v535 = vld [vmem:[%s169 + $0xb30] sm:$0xff]
      %v536 = vld [vmem:[%s169 + $0xb38] sm:$0xff]
      %v537 = vld [vmem:[%s169 + $0xb40] sm:$0xff]
      %v538 = vld [vmem:[%s169 + $0xb48] sm:$0xff]
      %v539 = vld [vmem:[%s169 + $0xb50] sm:$0xff]
      %v540 = vld [vmem:[%s169 + $0xb58] sm:$0xff]
      %v541 = vld [vmem:[%s169 + $0xb60] sm:$0xff]
      %v542 = vld [vmem:[%s169 + $0xb68] sm:$0xff]
      %v543 = vld [vmem:[%s169 + $0xb70] sm:$0xff]
      %v544 = vld [vmem:[%s169 + $0xb78] sm:$0xff]
      %v545 = vld [vmem:[%s169 + $0xb80] sm:$0xff]
      %v546 = vld [vmem:[%s169 + $0xb88] sm:$0xff]
      %v547 = vld [vmem:[%s169 + $0xb90] sm:$0xff]
      %v548 = vld [vmem:[%s169 + $0xb98] sm:$0xff]
      %v549 = vld [vmem:[%s169 + $0xba0] sm:$0xff]
      %v550 = vld [vmem:[%s169 + $0xba8] sm:$0xff]
      %v551 = vld [vmem:[%s169 + $0xbb0] sm:$0xff]
      %v552 = vld [vmem:[%s169 + $0xbb8] sm:$0xff]
      %v553 = vld [vmem:[%s169 + $0xbc0] sm:$0xff]
      %v554 = vld [vmem:[%s169 + $0xbc8] sm:$0xff]
      %v555 = vld [vmem:[%s169 + $0xbd0] sm:$0xff]
      %v556 = vld [vmem:[%s169 + $0xbd8] sm:$0xff]
      %v557 = vld [vmem:[%s169 + $0xbe0] sm:$0xff]
      %v558 = vld [vmem:[%s169 + $0xbe8] sm:$0xff]
      %v559 = vld [vmem:[%s169 + $0xbf0] sm:$0xff]
      %v560 = vld [vmem:[%s169 + $0xbf8] sm:$0xff]
      %v561 = vld [vmem:[%s169 + $0xc00] sm:$0xff]
      %v562 = vld [vmem:[%s169 + $0xc08] sm:$0xff]
      %v563 = vld [vmem:[%s169 + $0xc10] sm:$0xff]
      %v564 = vld [vmem:[%s169 + $0xc18] sm:$0xff]
      %v565 = vld [vmem:[%s169 + $0xc20] sm:$0xff]
      %v566 = vld [vmem:[%s169 + $0xc28] sm:$0xff]
      %v567 = vld [vmem:[%s169 + $0xc30] sm:$0xff]
      %v568 = vld [vmem:[%s169 + $0xc38] sm:$0xff]
      %v569 = vld [vmem:[%s169 + $0xc40] sm:$0xff]
      %v570 = vld [vmem:[%s169 + $0xc48] sm:$0xff]
      %v571 = vld [vmem:[%s169 + $0xc50] sm:$0xff]
      %v572 = vld [vmem:[%s169 + $0xc58] sm:$0xff]
      %v573 = vld [vmem:[%s169 + $0xc60] sm:$0xff]
      %v574 = vld [vmem:[%s169 + $0xc68] sm:$0xff]
      %v575 = vld [vmem:[%s169 + $0xc70] sm:$0xff]
      %v576 = vld [vmem:[%s169 + $0xc78] sm:$0xff]
      %v577 = vld [vmem:[%s169 + $0xc80] sm:$0xff]
      %v578 = vld [vmem:[%s169 + $0xc88] sm:$0xff]
      %v579 = vld [vmem:[%s169 + $0xc90] sm:$0xff]
      %v580 = vld [vmem:[%s169 + $0xc98] sm:$0xff]
      %v581 = vld [vmem:[%s169 + $0xca0] sm:$0xff]
      %v582 = vld [vmem:[%s169 + $0xca8] sm:$0xff]
      %v583 = vld [vmem:[%s169 + $0xcb0] sm:$0xff]
      %v584 = vld [vmem:[%s169 + $0xcb8] sm:$0xff]
      %v585 = vld [vmem:[%s169 + $0xcc0] sm:$0xff]
      %v586 = vld [vmem:[%s169 + $0xcc8] sm:$0xff]
      %v587 = vld [vmem:[%s169 + $0xcd0] sm:$0xff]
      %v588 = vld [vmem:[%s169 + $0xcd8] sm:$0xff]
      %v589 = vld [vmem:[%s169 + $0xce0] sm:$0xff]
      %v590 = vld [vmem:[%s169 + $0xce8] sm:$0xff]
      %v591 = vld [vmem:[%s169 + $0xcf0] sm:$0xff]
      %v592 = vld [vmem:[%s169 + $0xcf8] sm:$0xff]
      %v593 = vld [vmem:[%s169 + $0xd00] sm:$0xff]
      %v594 = vld [vmem:[%s169 + $0xd08] sm:$0xff]
      %v595 = vld [vmem:[%s169 + $0xd10] sm:$0xff]
      %v596 = vld [vmem:[%s169 + $0xd18] sm:$0xff]
      %v597 = vld [vmem:[%s169 + $0xd20] sm:$0xff]
      %v598 = vld [vmem:[%s169 + $0xd28] sm:$0xff]
      %v599 = vld [vmem:[%s169 + $0xd30] sm:$0xff]
      %v600 = vld [vmem:[%s169 + $0xd38] sm:$0xff]
      %v601 = vld [vmem:[%s169 + $0xd40] sm:$0xff]
      %v602 = vld [vmem:[%s169 + $0xd48] sm:$0xff]
      %v603 = vld [vmem:[%s169 + $0xd50] sm:$0xff]
      %v604 = vld [vmem:[%s169 + $0xd58] sm:$0xff]
      %v605 = vld [vmem:[%s169 + $0xd60] sm:$0xff]
      %v606 = vld [vmem:[%s169 + $0xd68] sm:$0xff]
      %v607 = vld [vmem:[%s169 + $0xd70] sm:$0xff]
      %v608 = vld [vmem:[%s169 + $0xd78] sm:$0xff]
      %v609 = vld [vmem:[%s169 + $0xd80] sm:$0xff]
      %v610 = vld [vmem:[%s169 + $0xd88] sm:$0xff]
      %v611 = vld [vmem:[%s169 + $0xd90] sm:$0xff]
      %v612 = vld [vmem:[%s169 + $0xd98] sm:$0xff]
      %v613 = vld [vmem:[%s169 + $0xda0] sm:$0xff]
      %v614 = vld [vmem:[%s169 + $0xda8] sm:$0xff]
      %v615 = vld [vmem:[%s169 + $0xdb0] sm:$0xff]
      %v616 = vld [vmem:[%s169 + $0xdb8] sm:$0xff]
      %v617 = vld [vmem:[%s169 + $0xdc0] sm:$0xff]
      %v618 = vld [vmem:[%s169 + $0xdc8] sm:$0xff]
      %v619 = vld [vmem:[%s169 + $0xdd0] sm:$0xff]
      %v620 = vld [vmem:[%s169 + $0xdd8] sm:$0xff]
      %v621 = vld [vmem:[%s169 + $0xde0] sm:$0xff]
      %v622 = vld [vmem:[%s169 + $0xde8] sm:$0xff]
      %v623 = vld [vmem:[%s169 + $0xdf0] sm:$0xff]
      %v624 = vld [vmem:[%s169 + $0xdf8] sm:$0xff]
      %v625 = vld [vmem:[%s169 + $0xe00] sm:$0xff]
      %v626 = vld [vmem:[%s169 + $0xe08] sm:$0xff]
      %v627 = vld [vmem:[%s169 + $0xe10] sm:$0xff]
      %v628 = vld [vmem:[%s169 + $0xe18] sm:$0xff]
      %v629 = vld [vmem:[%s169 + $0xe20] sm:$0xff]
      %v630 = vld [vmem:[%s169 + $0xe28] sm:$0xff]
      %v631 = vld [vmem:[%s169 + $0xe30] sm:$0xff]
      %v632 = vld [vmem:[%s169 + $0xe38] sm:$0xff]
      %v633 = vld [vmem:[%s169 + $0xe40] sm:$0xff]
      %v634 = vld [vmem:[%s169 + $0xe48] sm:$0xff]
      %v635 = vld [vmem:[%s169 + $0xe50] sm:$0xff]
      %v636 = vld [vmem:[%s169 + $0xe58] sm:$0xff]
      %v637 = vld [vmem:[%s169 + $0xe60] sm:$0xff]
      %v638 = vld [vmem:[%s169 + $0xe68] sm:$0xff]
      %v639 = vld [vmem:[%s169 + $0xe70] sm:$0xff]
      %v640 = vld [vmem:[%s169 + $0xe78] sm:$0xff]
      %v641 = vld [vmem:[%s169 + $0xe80] sm:$0xff]
      %v642 = vld [vmem:[%s169 + $0xe88] sm:$0xff]
      %v643 = vld [vmem:[%s169 + $0xe90] sm:$0xff]
      %v644 = vld [vmem:[%s169 + $0xe98] sm:$0xff]
      %v645 = vld [vmem:[%s169 + $0xea0] sm:$0xff]
      %v646 = vld [vmem:[%s169 + $0xea8] sm:$0xff]
      %v647 = vld [vmem:[%s169 + $0xeb0] sm:$0xff]
      %v648 = vld [vmem:[%s169 + $0xeb8] sm:$0xff]
      %v649 = vld [vmem:[%s169 + $0xec0] sm:$0xff]
      %v650 = vld [vmem:[%s169 + $0xec8] sm:$0xff]
      %v651 = vld [vmem:[%s169 + $0xed0] sm:$0xff]
      %v652 = vld [vmem:[%s169 + $0xed8] sm:$0xff]
      %v653 = vld [vmem:[%s169 + $0xee0] sm:$0xff]
      %v654 = vld [vmem:[%s169 + $0xee8] sm:$0xff]
      %v655 = vld [vmem:[%s169 + $0xef0] sm:$0xff]
      %v656 = vld [vmem:[%s169 + $0xef8] sm:$0xff]
      %v657 = vld [vmem:[%s169 + $0xf00] sm:$0xff]
      %v658 = vld [vmem:[%s169 + $0xf08] sm:$0xff]
      %v659 = vld [vmem:[%s169 + $0xf10] sm:$0xff]
      %v660 = vld [vmem:[%s169 + $0xf18] sm:$0xff]
      %v661 = vld [vmem:[%s169 + $0xf20] sm:$0xff]
      %v662 = vld [vmem:[%s169 + $0xf28] sm:$0xff]
      %v663 = vld [vmem:[%s169 + $0xf30] sm:$0xff]
      %v664 = vld [vmem:[%s169 + $0xf38] sm:$0xff]
      %v665 = vld [vmem:[%s169 + $0xf40] sm:$0xff]
      %v666 = vld [vmem:[%s169 + $0xf48] sm:$0xff]
      %v667 = vld [vmem:[%s169 + $0xf50] sm:$0xff]
      %v668 = vld [vmem:[%s169 + $0xf58] sm:$0xff]
      %v669 = vld [vmem:[%s169 + $0xf60] sm:$0xff]
      %v670 = vld [vmem:[%s169 + $0xf68] sm:$0xff]
      %v671 = vld [vmem:[%s169 + $0xf70] sm:$0xff]
      %v672 = vld [vmem:[%s169 + $0xf78] sm:$0xff]
      %v673 = vld [vmem:[%s169 + $0xf80] sm:$0xff]
      %v674 = vld [vmem:[%s169 + $0xf88] sm:$0xff]
      %v675 = vld [vmem:[%s169 + $0xf90] sm:$0xff]
      %v676 = vld [vmem:[%s169 + $0xf98] sm:$0xff]
      %v677 = vld [vmem:[%s169 + $0xfa0] sm:$0xff]
      %v678 = vld [vmem:[%s169 + $0xfa8] sm:$0xff]
      %v679 = vld [vmem:[%s169 + $0xfb0] sm:$0xff]
      %v680 = vld [vmem:[%s169 + $0xfb8] sm:$0xff]
      %v681 = vld [vmem:[%s169 + $0xfc0] sm:$0xff]
      %v682 = vld [vmem:[%s169 + $0xfc8] sm:$0xff]
      %v683 = vld [vmem:[%s169 + $0xfd0] sm:$0xff]
      %v684 = vld [vmem:[%s169 + $0xfd8] sm:$0xff]
      %v685 = vld [vmem:[%s169 + $0xfe0] sm:$0xff]
      %v686 = vld [vmem:[%s169 + $0xfe8] sm:$0xff]
      %v687 = vld [vmem:[%s169 + $0xff0] sm:$0xff]
      %v688 = vld [vmem:[%s169 + $0xff8] sm:$0xff]
      %v689 = vld [vmem:[%s1] sm:$0xff]
      %v690 = vld [vmem:[%s1 + $0x8] sm:$0xff]
      %v691 = vld [vmem:[%s1 + $0x10] sm:$0xff]
      %v692 = vld [vmem:[%s1 + $0x18] sm:$0xff]
      %v693 = vld [vmem:[%s1 + $0x20] sm:$0xff]
      %v694 = vld [vmem:[%s1 + $0x28] sm:$0xff]
      %v695 = vld [vmem:[%s1 + $0x30] sm:$0xff]
      %v696 = vld [vmem:[%s1 + $0x38] sm:$0xff]
      %v697 = vld [vmem:[%s1 + $0x40] sm:$0xff]
      %v698 = vld [vmem:[%s1 + $0x48] sm:$0xff]
      %v699 = vld [vmem:[%s1 + $0x50] sm:$0xff]
      %v700 = vld [vmem:[%s1 + $0x58] sm:$0xff]
      %v701 = vld [vmem:[%s1 + $0x60] sm:$0xff]
      %v702 = vld [vmem:[%s1 + $0x68] sm:$0xff]
      %v703 = vld [vmem:[%s1 + $0x70] sm:$0xff]
      %v704 = vld [vmem:[%s1 + $0x78] sm:$0xff]
      %v705 = vld [vmem:[%s1 + $0x80] sm:$0xff]
      %v706 = vld [vmem:[%s1 + $0x88] sm:$0xff]
      %v707 = vld [vmem:[%s1 + $0x90] sm:$0xff]
      %v708 = vld [vmem:[%s1 + $0x98] sm:$0xff]
      %v709 = vld [vmem:[%s1 + $0xa0] sm:$0xff]
      %v710 = vld [vmem:[%s1 + $0xa8] sm:$0xff]
      %v711 = vld [vmem:[%s1 + $0xb0] sm:$0xff]
      %v712 = vld [vmem:[%s1 + $0xb8] sm:$0xff]
      %v713 = vld [vmem:[%s1 + $0xc0] sm:$0xff]
      %v714 = vld [vmem:[%s1 + $0xc8] sm:$0xff]
      %v715 = vld [vmem:[%s1 + $0xd0] sm:$0xff]
      %v716 = vld [vmem:[%s1 + $0xd8] sm:$0xff]
      %v717 = vld [vmem:[%s1 + $0xe0] sm:$0xff]
      %v718 = vld [vmem:[%s1 + $0xe8] sm:$0xff]
      %v719 = vld [vmem:[%s1 + $0xf0] sm:$0xff]
      %v720 = vld [vmem:[%s1 + $0xf8] sm:$0xff]
      %v721 = vld [vmem:[%s1 + $0x100] sm:$0xff]
      %v722 = vld [vmem:[%s1 + $0x108] sm:$0xff]
      %v723 = vld [vmem:[%s1 + $0x110] sm:$0xff]
      %v724 = vld [vmem:[%s1 + $0x118] sm:$0xff]
      %v725 = vld [vmem:[%s1 + $0x120] sm:$0xff]
      %v726 = vld [vmem:[%s1 + $0x128] sm:$0xff]
      %v727 = vld [vmem:[%s1 + $0x130] sm:$0xff]
      %v728 = vld [vmem:[%s1 + $0x138] sm:$0xff]
      %v729 = vld [vmem:[%s1 + $0x140] sm:$0xff]
      %v730 = vld [vmem:[%s1 + $0x148] sm:$0xff]
      %v731 = vld [vmem:[%s1 + $0x150] sm:$0xff]
      %v732 = vld [vmem:[%s1 + $0x158] sm:$0xff]
      %v733 = vld [vmem:[%s1 + $0x160] sm:$0xff]
      %v734 = vld [vmem:[%s1 + $0x168] sm:$0xff]
      %v735 = vld [vmem:[%s1 + $0x170] sm:$0xff]
      %v736 = vld [vmem:[%s1 + $0x178] sm:$0xff]
      %v737 = vld [vmem:[%s1 + $0x180] sm:$0xff]
      %v738 = vld [vmem:[%s1 + $0x188] sm:$0xff]
      %v739 = vld [vmem:[%s1 + $0x190] sm:$0xff]
      %v740 = vld [vmem:[%s1 + $0x198] sm:$0xff]
      %v741 = vld [vmem:[%s1 + $0x1a0] sm:$0xff]
      %v742 = vld [vmem:[%s1 + $0x1a8] sm:$0xff]
      %v743 = vld [vmem:[%s1 + $0x1b0] sm:$0xff]
      %v744 = vld [vmem:[%s1 + $0x1b8] sm:$0xff]
      %v745 = vld [vmem:[%s1 + $0x1c0] sm:$0xff]
      %v746 = vld [vmem:[%s1 + $0x1c8] sm:$0xff]
      %v747 = vld [vmem:[%s1 + $0x1d0] sm:$0xff]
      %v748 = vld [vmem:[%s1 + $0x1d8] sm:$0xff]
      %v749 = vld [vmem:[%s1 + $0x1e0] sm:$0xff]
      %v750 = vld [vmem:[%s1 + $0x1e8] sm:$0xff]
      %v751 = vld [vmem:[%s1 + $0x1f0] sm:$0xff]
      %v752 = vld [vmem:[%s1 + $0x1f8] sm:$0xff]
      %v753 = vld [vmem:[%s2] sm:$0x1]
      %v755 = vlaneseq
      %v756 = vshrl.u32 %v755, 7
      %v757 = vsub.s32 0, %v756
      %v758 = vrot.slane %v753, %v757
      %760 = vmatprep.subr.mxu0 0.0
      %761 = vmatpush1.msra.mxu0 %v704
      %762 = vmatprep.subr.mxu0 0.0
      %763 = vmatpush1.msra.mxu0 %v703
      %764 = vmatprep.subr.mxu0 0.0
      %765 = vmatpush1.msra.mxu0 %v702
      %766 = vmatprep.subr.mxu0 0.0
      %767 = vmatpush1.msra.mxu0 %v701
      %768 = vmatprep.subr.mxu0 0.0
      %769 = vmatpush1.msra.mxu0 %v700
      %770 = vmatprep.subr.mxu0 0.0
      %771 = vmatpush1.msra.mxu0 %v699
      %772 = vmatprep.subr.mxu0 0.0
      %773 = vmatpush1.msra.mxu0 %v698
      %774 = vmatprep.subr.mxu0 0.0
      %775 = vmatpush1.msra.mxu0 %v697
      %776 = vmatprep.subr.mxu0 0.0
      %777 = vmatpush1.msra.mxu0 %v696
      %778 = vmatprep.subr.mxu0 0.0
      %779 = vmatpush1.msra.mxu0 %v695
      %780 = vmatprep.subr.mxu0 0.0
      %781 = vmatpush1.msra.mxu0 %v694
      %782 = vmatprep.subr.mxu0 0.0
      %783 = vmatpush1.msra.mxu0 %v693
      %784 = vmatprep.subr.mxu0 0.0
      %785 = vmatpush1.msra.mxu0 %v692
      %786 = vmatprep.subr.mxu0 0.0
      %787 = vmatpush1.msra.mxu0 %v691
      %788 = vmatprep.subr.mxu0 0.0
      %789 = vmatpush1.msra.mxu0 %v690
      %790 = vmatprep.subr.mxu0 0.0
      %791 = vmatpush1.msra.mxu0 %v689
      %792 = vmatprep.subr.mxu0 0.0
      %793 = vmatpush2.msra.mxu0 %v720
      %794 = vmatprep.subr.mxu0 0.0
      %795 = vmatpush2.msra.mxu0 %v719
      %796 = vmatprep.subr.mxu0 0.0
      %797 = vmatpush2.msra.mxu0 %v718
      %798 = vmatprep.subr.mxu0 0.0
      %799 = vmatpush2.msra.mxu0 %v717
      %800 = vmatprep.subr.mxu0 0.0
      %801 = vmatpush2.msra.mxu0 %v716
      %802 = vmatprep.subr.mxu0 0.0
      %803 = vmatpush2.msra.mxu0 %v715
      %804 = vmatprep.subr.mxu0 0.0
      %805 = vmatpush2.msra.mxu0 %v714
      %806 = vmatprep.subr.mxu0 0.0
      %807 = vmatpush2.msra.mxu0 %v713
      %808 = vmatprep.subr.mxu0 0.0
      %809 = vmatpush2.msra.mxu0 %v712
      %810 = vmatprep.subr.mxu0 0.0
      %811 = vmatpush2.msra.mxu0 %v711
      %812 = vmatprep.subr.mxu0 0.0
      %813 = vmatpush2.msra.mxu0 %v710
      %814 = vmatprep.subr.mxu0 0.0
      %815 = vmatpush2.msra.mxu0 %v709
      %816 = vmatprep.subr.mxu0 0.0
      %817 = vmatpush2.msra.mxu0 %v708
      %818 = vmatprep.subr.mxu0 0.0
      %819 = vmatpush2.msra.mxu0 %v707
      %820 = vmatprep.subr.mxu0 0.0
      %821 = vmatpush2.msra.mxu0 %v706
      %822 = vmatprep.subr.mxu0 0.0
      %823 = vmatpush2.msra.mxu0 %v705
      %824 = vmatprep.mubr.f32.mxu0 %v178
      %825 = vmatmul.mubr.f32.gmra.mxu0 %v177
      %v826 = vpop.f32.mrf.mxu0
      %v827 = vadd.f32 %v758, %v826
      %v828 = vpop.f32.mrf.mxu0
      %829 = vmatprep.mubr.f32.mxu0 %v182
      %830 = vmatmul.mubr.f32.gmra.mxu0 %v181
      %v831 = vpop.f32.mrf.mxu0
      %v832 = vadd.f32 %v758, %v831
      %v833 = vpop.f32.mrf.mxu0
      %834 = vmatprep.mubr.f32.mxu0 %v186
      %835 = vmatmul.mubr.f32.gmra.mxu0 %v185
      %v836 = vpop.f32.mrf.mxu0
      %v837 = vadd.f32 %v758, %v836
      %v838 = vpop.f32.mrf.mxu0
      %839 = vmatprep.mubr.f32.mxu0 %v190
      %840 = vmatmul.mubr.f32.gmra.mxu0 %v189
      %v841 = vpop.f32.mrf.mxu0
      %v842 = vadd.f32 %v758, %v841
      %v843 = vpop.f32.mrf.mxu0
      %844 = vmatprep.mubr.f32.mxu0 %v194
      %845 = vmatmul.mubr.f32.gmra.mxu0 %v193
      %v846 = vpop.f32.mrf.mxu0
      %v847 = vadd.f32 %v758, %v846
      %v848 = vpop.f32.mrf.mxu0
      %849 = vmatprep.mubr.f32.mxu0 %v198
      %850 = vmatmul.mubr.f32.gmra.mxu0 %v197
      %v851 = vpop.f32.mrf.mxu0
      %v852 = vadd.f32 %v758, %v851
      %v853 = vpop.f32.mrf.mxu0
      %854 = vmatprep.mubr.f32.mxu0 %v202
      %855 = vmatmul.mubr.f32.gmra.mxu0 %v201
      %v856 = vpop.f32.mrf.mxu0
      %v857 = vadd.f32 %v758, %v856
      %v858 = vpop.f32.mrf.mxu0
      %859 = vmatprep.mubr.f32.mxu0 %v206
      %860 = vmatmul.mubr.f32.gmra.mxu0 %v205
      %v861 = vpop.f32.mrf.mxu0
      %v862 = vadd.f32 %v758, %v861
      %v863 = vpop.f32.mrf.mxu0
      %864 = vmatprep.mubr.f32.mxu0 %v210
      %865 = vmatmul.mubr.f32.gmra.mxu0 %v209
      %v866 = vpop.f32.mrf.mxu0
      %v867 = vadd.f32 %v758, %v866
      %v868 = vpop.f32.mrf.mxu0
      %869 = vmatprep.mubr.f32.mxu0 %v214
      %870 = vmatmul.mubr.f32.gmra.mxu0 %v213
      %v871 = vpop.f32.mrf.mxu0
      %v872 = vadd.f32 %v758, %v871
      %v873 = vpop.f32.mrf.mxu0
      %874 = vmatprep.mubr.f32.mxu0 %v218
      %875 = vmatmul.mubr.f32.gmra.mxu0 %v217
      %v876 = vpop.f32.mrf.mxu0
      %v877 = vadd.f32 %v758, %v876
      %v878 = vpop.f32.mrf.mxu0
      %879 = vmatprep.mubr.f32.mxu0 %v222
      %880 = vmatmul.mubr.f32.gmra.mxu0 %v221
      %v881 = vpop.f32.mrf.mxu0
      %v882 = vadd.f32 %v758, %v881
      %v883 = vpop.f32.mrf.mxu0
      %884 = vmatprep.mubr.f32.mxu0 %v226
      %885 = vmatmul.mubr.f32.gmra.mxu0 %v225
      %v886 = vpop.f32.mrf.mxu0
      %v887 = vadd.f32 %v758, %v886
      %v888 = vpop.f32.mrf.mxu0
      %889 = vmatprep.mubr.f32.mxu0 %v230
      %890 = vmatmul.mubr.f32.gmra.mxu0 %v229
      %v891 = vpop.f32.mrf.mxu0
      %v892 = vadd.f32 %v758, %v891
      %v893 = vpop.f32.mrf.mxu0
      %894 = vmatprep.mubr.f32.mxu0 %v234
      %895 = vmatmul.mubr.f32.gmra.mxu0 %v233
      %v896 = vpop.f32.mrf.mxu0
      %v897 = vadd.f32 %v758, %v896
      %v898 = vpop.f32.mrf.mxu0
      %899 = vmatprep.mubr.f32.mxu0 %v238
      %900 = vmatmul.mubr.f32.gmra.mxu0 %v237
      %v901 = vpop.f32.mrf.mxu0
      %v902 = vadd.f32 %v758, %v901
      %v903 = vpop.f32.mrf.mxu0
      %904 = vmatprep.mubr.f32.mxu0 %v242
      %905 = vmatmul.mubr.f32.gmra.mxu0 %v241
      %v906 = vpop.f32.mrf.mxu0
      %v907 = vadd.f32 %v758, %v906
      %v908 = vpop.f32.mrf.mxu0
      %909 = vmatprep.mubr.f32.mxu0 %v246
      %910 = vmatmul.mubr.f32.gmra.mxu0 %v245
      %v911 = vpop.f32.mrf.mxu0
      %v912 = vadd.f32 %v758, %v911
      %v913 = vpop.f32.mrf.mxu0
      %914 = vmatprep.mubr.f32.mxu0 %v250
      %915 = vmatmul.mubr.f32.gmra.mxu0 %v249
      %v916 = vpop.f32.mrf.mxu0
      %v917 = vadd.f32 %v758, %v916
      %v918 = vpop.f32.mrf.mxu0
      %919 = vmatprep.mubr.f32.mxu0 %v254
      %920 = vmatmul.mubr.f32.gmra.mxu0 %v253
      %v921 = vpop.f32.mrf.mxu0
      %v922 = vadd.f32 %v758, %v921
      %v923 = vpop.f32.mrf.mxu0
      %924 = vmatprep.mubr.f32.mxu0 %v258
      %925 = vmatmul.mubr.f32.gmra.mxu0 %v257
      %v926 = vpop.f32.mrf.mxu0
      %v927 = vadd.f32 %v758, %v926
      %v928 = vpop.f32.mrf.mxu0
      %929 = vmatprep.mubr.f32.mxu0 %v262
      %930 = vmatmul.mubr.f32.gmra.mxu0 %v261
      %v931 = vpop.f32.mrf.mxu0
      %v932 = vadd.f32 %v758, %v931
      %v933 = vpop.f32.mrf.mxu0
      %934 = vmatprep.mubr.f32.mxu0 %v266
      %935 = vmatmul.mubr.f32.gmra.mxu0 %v265
      %v936 = vpop.f32.mrf.mxu0
      %v937 = vadd.f32 %v758, %v936
      %v938 = vpop.f32.mrf.mxu0
      %939 = vmatprep.mubr.f32.mxu0 %v270
      %940 = vmatmul.mubr.f32.gmra.mxu0 %v269
      %v941 = vpop.f32.mrf.mxu0
      %v942 = vadd.f32 %v758, %v941
      %v943 = vpop.f32.mrf.mxu0
      %944 = vmatprep.mubr.f32.mxu0 %v274
      %945 = vmatmul.mubr.f32.gmra.mxu0 %v273
      %v946 = vpop.f32.mrf.mxu0
      %v947 = vadd.f32 %v758, %v946
      %v948 = vpop.f32.mrf.mxu0
      %949 = vmatprep.mubr.f32.mxu0 %v278
      %950 = vmatmul.mubr.f32.gmra.mxu0 %v277
      %v951 = vpop.f32.mrf.mxu0
      %v952 = vadd.f32 %v758, %v951
      %v953 = vpop.f32.mrf.mxu0
      %954 = vmatprep.mubr.f32.mxu0 %v282
      %955 = vmatmul.mubr.f32.gmra.mxu0 %v281
      %v956 = vpop.f32.mrf.mxu0
      %v957 = vadd.f32 %v758, %v956
      %v958 = vpop.f32.mrf.mxu0
      %959 = vmatprep.mubr.f32.mxu0 %v286
      %960 = vmatmul.mubr.f32.gmra.mxu0 %v285
      %v961 = vpop.f32.mrf.mxu0
      %v962 = vadd.f32 %v758, %v961
      %v963 = vpop.f32.mrf.mxu0
      %964 = vmatprep.mubr.f32.mxu0 %v290
      %965 = vmatmul.mubr.f32.gmra.mxu0 %v289
      %v966 = vpop.f32.mrf.mxu0
      %v967 = vadd.f32 %v758, %v966
      %v968 = vpop.f32.mrf.mxu0
      %969 = vmatprep.mubr.f32.mxu0 %v294
      %970 = vmatmul.mubr.f32.gmra.mxu0 %v293
      %v971 = vpop.f32.mrf.mxu0
      %v972 = vadd.f32 %v758, %v971
      %v973 = vpop.f32.mrf.mxu0
      %974 = vmatprep.mubr.f32.mxu0 %v298
      %975 = vmatmul.mubr.f32.gmra.mxu0 %v297
      %v976 = vpop.f32.mrf.mxu0
      %v977 = vadd.f32 %v758, %v976
      %v978 = vpop.f32.mrf.mxu0
      %979 = vmatprep.mubr.f32.mxu0 %v302
      %980 = vmatmul.mubr.f32.gmra.mxu0 %v301
      %v981 = vpop.f32.mrf.mxu0
      %v982 = vadd.f32 %v758, %v981
      %v983 = vpop.f32.mrf.mxu0
      %984 = vmatprep.mubr.f32.mxu0 %v306
      %985 = vmatmul.mubr.f32.gmra.mxu0 %v305
      %v986 = vpop.f32.mrf.mxu0
      %v987 = vadd.f32 %v758, %v986
      %v988 = vpop.f32.mrf.mxu0
      %989 = vmatprep.mubr.f32.mxu0 %v310
      %990 = vmatmul.mubr.f32.gmra.mxu0 %v309
      %v991 = vpop.f32.mrf.mxu0
      %v992 = vadd.f32 %v758, %v991
      %v993 = vpop.f32.mrf.mxu0
      %994 = vmatprep.mubr.f32.mxu0 %v314
      %995 = vmatmul.mubr.f32.gmra.mxu0 %v313
      %v996 = vpop.f32.mrf.mxu0
      %v997 = vadd.f32 %v758, %v996
      %v998 = vpop.f32.mrf.mxu0
      %999 = vmatprep.mubr.f32.mxu0 %v318
      %1000 = vmatmul.mubr.f32.gmra.mxu0 %v317
      %v1001 = vpop.f32.mrf.mxu0
      %v1002 = vadd.f32 %v758, %v1001
      %v1003 = vpop.f32.mrf.mxu0
      %1004 = vmatprep.mubr.f32.mxu0 %v322
      %1005 = vmatmul.mubr.f32.gmra.mxu0 %v321
      %v1006 = vpop.f32.mrf.mxu0
      %v1007 = vadd.f32 %v758, %v1006
      %v1008 = vpop.f32.mrf.mxu0
      %1009 = vmatprep.mubr.f32.mxu0 %v326
      %1010 = vmatmul.mubr.f32.gmra.mxu0 %v325
      %v1011 = vpop.f32.mrf.mxu0
      %v1012 = vadd.f32 %v758, %v1011
      %v1013 = vpop.f32.mrf.mxu0
      %1014 = vmatprep.mubr.f32.mxu0 %v330
      %1015 = vmatmul.mubr.f32.gmra.mxu0 %v329
      %v1016 = vpop.f32.mrf.mxu0
      %v1017 = vadd.f32 %v758, %v1016
      %v1018 = vpop.f32.mrf.mxu0
      %1019 = vmatprep.mubr.f32.mxu0 %v334
      %1020 = vmatmul.mubr.f32.gmra.mxu0 %v333
      %v1021 = vpop.f32.mrf.mxu0
      %v1022 = vadd.f32 %v758, %v1021
      %v1023 = vpop.f32.mrf.mxu0
      %1024 = vmatprep.mubr.f32.mxu0 %v338
      %1025 = vmatmul.mubr.f32.gmra.mxu0 %v337
      %v1026 = vpop.f32.mrf.mxu0
      %v1027 = vadd.f32 %v758, %v1026
      %v1028 = vpop.f32.mrf.mxu0
      %1029 = vmatprep.mubr.f32.mxu0 %v342
      %1030 = vmatmul.mubr.f32.gmra.mxu0 %v341
      %v1031 = vpop.f32.mrf.mxu0
      %v1032 = vadd.f32 %v758, %v1031
      %v1033 = vpop.f32.mrf.mxu0
      %1034 = vmatprep.mubr.f32.mxu0 %v346
      %1035 = vmatmul.mubr.f32.gmra.mxu0 %v345
      %v1036 = vpop.f32.mrf.mxu0
      %v1037 = vadd.f32 %v758, %v1036
      %v1038 = vpop.f32.mrf.mxu0
      %1039 = vmatprep.mubr.f32.mxu0 %v350
      %1040 = vmatmul.mubr.f32.gmra.mxu0 %v349
      %v1041 = vpop.f32.mrf.mxu0
      %v1042 = vadd.f32 %v758, %v1041
      %v1043 = vpop.f32.mrf.mxu0
      %1044 = vmatprep.mubr.f32.mxu0 %v354
      %1045 = vmatmul.mubr.f32.gmra.mxu0 %v353
      %v1046 = vpop.f32.mrf.mxu0
      %v1047 = vadd.f32 %v758, %v1046
      %v1048 = vpop.f32.mrf.mxu0
      %1049 = vmatprep.mubr.f32.mxu0 %v358
      %1050 = vmatmul.mubr.f32.gmra.mxu0 %v357
      %v1051 = vpop.f32.mrf.mxu0
      %v1052 = vadd.f32 %v758, %v1051
      %v1053 = vpop.f32.mrf.mxu0
      %1054 = vmatprep.mubr.f32.mxu0 %v362
      %1055 = vmatmul.mubr.f32.gmra.mxu0 %v361
      %v1056 = vpop.f32.mrf.mxu0
      %v1057 = vadd.f32 %v758, %v1056
      %v1058 = vpop.f32.mrf.mxu0
      %1059 = vmatprep.mubr.f32.mxu0 %v366
      %1060 = vmatmul.mubr.f32.gmra.mxu0 %v365
      %v1061 = vpop.f32.mrf.mxu0
      %v1062 = vadd.f32 %v758, %v1061
      %v1063 = vpop.f32.mrf.mxu0
      %1064 = vmatprep.mubr.f32.mxu0 %v370
      %1065 = vmatmul.mubr.f32.gmra.mxu0 %v369
      %v1066 = vpop.f32.mrf.mxu0
      %v1067 = vadd.f32 %v758, %v1066
      %v1068 = vpop.f32.mrf.mxu0
      %1069 = vmatprep.mubr.f32.mxu0 %v374
      %1070 = vmatmul.mubr.f32.gmra.mxu0 %v373
      %v1071 = vpop.f32.mrf.mxu0
      %v1072 = vadd.f32 %v758, %v1071
      %v1073 = vpop.f32.mrf.mxu0
      %1074 = vmatprep.mubr.f32.mxu0 %v378
      %1075 = vmatmul.mubr.f32.gmra.mxu0 %v377
      %v1076 = vpop.f32.mrf.mxu0
      %v1077 = vadd.f32 %v758, %v1076
      %v1078 = vpop.f32.mrf.mxu0
      %1079 = vmatprep.mubr.f32.mxu0 %v382
      %1080 = vmatmul.mubr.f32.gmra.mxu0 %v381
      %v1081 = vpop.f32.mrf.mxu0
      %v1082 = vadd.f32 %v758, %v1081
      %v1083 = vpop.f32.mrf.mxu0
      %1084 = vmatprep.mubr.f32.mxu0 %v386
      %1085 = vmatmul.mubr.f32.gmra.mxu0 %v385
      %v1086 = vpop.f32.mrf.mxu0
      %v1087 = vadd.f32 %v758, %v1086
      %v1088 = vpop.f32.mrf.mxu0
      %1089 = vmatprep.mubr.f32.mxu0 %v390
      %1090 = vmatmul.mubr.f32.gmra.mxu0 %v389
      %v1091 = vpop.f32.mrf.mxu0
      %v1092 = vadd.f32 %v758, %v1091
      %v1093 = vpop.f32.mrf.mxu0
      %1094 = vmatprep.mubr.f32.mxu0 %v394
      %1095 = vmatmul.mubr.f32.gmra.mxu0 %v393
      %v1096 = vpop.f32.mrf.mxu0
      %v1097 = vadd.f32 %v758, %v1096
      %v1098 = vpop.f32.mrf.mxu0
      %1099 = vmatprep.mubr.f32.mxu0 %v398
      %1100 = vmatmul.mubr.f32.gmra.mxu0 %v397
      %v1101 = vpop.f32.mrf.mxu0
      %v1102 = vadd.f32 %v758, %v1101
      %v1103 = vpop.f32.mrf.mxu0
      %1104 = vmatprep.mubr.f32.mxu0 %v402
      %1105 = vmatmul.mubr.f32.gmra.mxu0 %v401
      %v1106 = vpop.f32.mrf.mxu0
      %v1107 = vadd.f32 %v758, %v1106
      %v1108 = vpop.f32.mrf.mxu0
      %1109 = vmatprep.mubr.f32.mxu0 %v406
      %1110 = vmatmul.mubr.f32.gmra.mxu0 %v405
      %v1111 = vpop.f32.mrf.mxu0
      %v1112 = vadd.f32 %v758, %v1111
      %v1113 = vpop.f32.mrf.mxu0
      %1114 = vmatprep.mubr.f32.mxu0 %v410
      %1115 = vmatmul.mubr.f32.gmra.mxu0 %v409
      %v1116 = vpop.f32.mrf.mxu0
      %v1117 = vadd.f32 %v758, %v1116
      %v1118 = vpop.f32.mrf.mxu0
      %1119 = vmatprep.mubr.f32.mxu0 %v414
      %1120 = vmatmul.mubr.f32.gmra.mxu0 %v413
      %v1121 = vpop.f32.mrf.mxu0
      %v1122 = vadd.f32 %v758, %v1121
      %v1123 = vpop.f32.mrf.mxu0
      %1124 = vmatprep.mubr.f32.mxu0 %v418
      %1125 = vmatmul.mubr.f32.gmra.mxu0 %v417
      %v1126 = vpop.f32.mrf.mxu0
      %v1127 = vadd.f32 %v758, %v1126
      %v1128 = vpop.f32.mrf.mxu0
      %1129 = vmatprep.mubr.f32.mxu0 %v422
      %1130 = vmatmul.mubr.f32.gmra.mxu0 %v421
      %v1131 = vpop.f32.mrf.mxu0
      %v1132 = vadd.f32 %v758, %v1131
      %v1133 = vpop.f32.mrf.mxu0
      %1134 = vmatprep.mubr.f32.mxu0 %v426
      %1135 = vmatmul.mubr.f32.gmra.mxu0 %v425
      %v1136 = vpop.f32.mrf.mxu0
      %v1137 = vadd.f32 %v758, %v1136
      %v1138 = vpop.f32.mrf.mxu0
      %1139 = vmatprep.mubr.f32.mxu0 %v430
      %1140 = vmatmul.mubr.f32.gmra.mxu0 %v429
      %v1141 = vpop.f32.mrf.mxu0
      %v1142 = vadd.f32 %v758, %v1141
      %v1143 = vpop.f32.mrf.mxu0
      %1144 = vmatprep.mubr.f32.mxu0 %v434
      %1145 = vmatmul.mubr.f32.gmra.mxu0 %v433
      %v1146 = vpop.f32.mrf.mxu0
      %v1147 = vadd.f32 %v758, %v1146
      %v1148 = vpop.f32.mrf.mxu0
      %1149 = vmatprep.mubr.f32.mxu0 %v438
      %1150 = vmatmul.mubr.f32.gmra.mxu0 %v437
      %v1151 = vpop.f32.mrf.mxu0
      %v1152 = vadd.f32 %v758, %v1151
      %v1153 = vpop.f32.mrf.mxu0
      %1154 = vmatprep.mubr.f32.mxu0 %v442
      %1155 = vmatmul.mubr.f32.gmra.mxu0 %v441
      %v1156 = vpop.f32.mrf.mxu0
      %v1157 = vadd.f32 %v758, %v1156
      %v1158 = vpop.f32.mrf.mxu0
      %1159 = vmatprep.mubr.f32.mxu0 %v446
      %1160 = vmatmul.mubr.f32.gmra.mxu0 %v445
      %v1161 = vpop.f32.mrf.mxu0
      %v1162 = vadd.f32 %v758, %v1161
      %v1163 = vpop.f32.mrf.mxu0
      %1164 = vmatprep.mubr.f32.mxu0 %v450
      %1165 = vmatmul.mubr.f32.gmra.mxu0 %v449
      %v1166 = vpop.f32.mrf.mxu0
      %v1167 = vadd.f32 %v758, %v1166
      %v1168 = vpop.f32.mrf.mxu0
      %1169 = vmatprep.mubr.f32.mxu0 %v454
      %1170 = vmatmul.mubr.f32.gmra.mxu0 %v453
      %v1171 = vpop.f32.mrf.mxu0
      %v1172 = vadd.f32 %v758, %v1171
      %v1173 = vpop.f32.mrf.mxu0
      %1174 = vmatprep.mubr.f32.mxu0 %v458
      %1175 = vmatmul.mubr.f32.gmra.mxu0 %v457
      %v1176 = vpop.f32.mrf.mxu0
      %v1177 = vadd.f32 %v758, %v1176
      %v1178 = vpop.f32.mrf.mxu0
      %1179 = vmatprep.mubr.f32.mxu0 %v462
      %1180 = vmatmul.mubr.f32.gmra.mxu0 %v461
      %v1181 = vpop.f32.mrf.mxu0
      %v1182 = vadd.f32 %v758, %v1181
      %v1183 = vpop.f32.mrf.mxu0
      %1184 = vmatprep.mubr.f32.mxu0 %v466
      %1185 = vmatmul.mubr.f32.gmra.mxu0 %v465
      %v1186 = vpop.f32.mrf.mxu0
      %v1187 = vadd.f32 %v758, %v1186
      %v1188 = vpop.f32.mrf.mxu0
      %1189 = vmatprep.mubr.f32.mxu0 %v470
      %1190 = vmatmul.mubr.f32.gmra.mxu0 %v469
      %v1191 = vpop.f32.mrf.mxu0
      %v1192 = vadd.f32 %v758, %v1191
      %v1193 = vpop.f32.mrf.mxu0
      %1194 = vmatprep.mubr.f32.mxu0 %v474
      %1195 = vmatmul.mubr.f32.gmra.mxu0 %v473
      %v1196 = vpop.f32.mrf.mxu0
      %v1197 = vadd.f32 %v758, %v1196
      %v1198 = vpop.f32.mrf.mxu0
      %1199 = vmatprep.mubr.f32.mxu0 %v478
      %1200 = vmatmul.mubr.f32.gmra.mxu0 %v477
      %v1201 = vpop.f32.mrf.mxu0
      %v1202 = vadd.f32 %v758, %v1201
      %v1203 = vpop.f32.mrf.mxu0
      %1204 = vmatprep.mubr.f32.mxu0 %v482
      %1205 = vmatmul.mubr.f32.gmra.mxu0 %v481
      %v1206 = vpop.f32.mrf.mxu0
      %v1207 = vadd.f32 %v758, %v1206
      %v1208 = vpop.f32.mrf.mxu0
      %1209 = vmatprep.mubr.f32.mxu0 %v486
      %1210 = vmatmul.mubr.f32.gmra.mxu0 %v485
      %v1211 = vpop.f32.mrf.mxu0
      %v1212 = vadd.f32 %v758, %v1211
      %v1213 = vpop.f32.mrf.mxu0
      %1214 = vmatprep.mubr.f32.mxu0 %v490
      %1215 = vmatmul.mubr.f32.gmra.mxu0 %v489
      %v1216 = vpop.f32.mrf.mxu0
      %v1217 = vadd.f32 %v758, %v1216
      %v1218 = vpop.f32.mrf.mxu0
      %1219 = vmatprep.mubr.f32.mxu0 %v494
      %1220 = vmatmul.mubr.f32.gmra.mxu0 %v493
      %v1221 = vpop.f32.mrf.mxu0
      %v1222 = vadd.f32 %v758, %v1221
      %v1223 = vpop.f32.mrf.mxu0
      %1224 = vmatprep.mubr.f32.mxu0 %v498
      %1225 = vmatmul.mubr.f32.gmra.mxu0 %v497
      %v1226 = vpop.f32.mrf.mxu0
      %v1227 = vadd.f32 %v758, %v1226
      %v1228 = vpop.f32.mrf.mxu0
      %1229 = vmatprep.mubr.f32.mxu0 %v502
      %1230 = vmatmul.mubr.f32.gmra.mxu0 %v501
      %v1231 = vpop.f32.mrf.mxu0
      %v1232 = vadd.f32 %v758, %v1231
      %v1233 = vpop.f32.mrf.mxu0
      %1234 = vmatprep.mubr.f32.mxu0 %v506
      %1235 = vmatmul.mubr.f32.gmra.mxu0 %v505
      %v1236 = vpop.f32.mrf.mxu0
      %v1237 = vadd.f32 %v758, %v1236
      %v1238 = vpop.f32.mrf.mxu0
      %1239 = vmatprep.mubr.f32.mxu0 %v510
      %1240 = vmatmul.mubr.f32.gmra.mxu0 %v509
      %v1241 = vpop.f32.mrf.mxu0
      %v1242 = vadd.f32 %v758, %v1241
      %v1243 = vpop.f32.mrf.mxu0
      %1244 = vmatprep.mubr.f32.mxu0 %v514
      %1245 = vmatmul.mubr.f32.gmra.mxu0 %v513
      %v1246 = vpop.f32.mrf.mxu0
      %v1247 = vadd.f32 %v758, %v1246
      %v1248 = vpop.f32.mrf.mxu0
      %1249 = vmatprep.mubr.f32.mxu0 %v518
      %1250 = vmatmul.mubr.f32.gmra.mxu0 %v517
      %v1251 = vpop.f32.mrf.mxu0
      %v1252 = vadd.f32 %v758, %v1251
      %v1253 = vpop.f32.mrf.mxu0
      %1254 = vmatprep.mubr.f32.mxu0 %v522
      %1255 = vmatmul.mubr.f32.gmra.mxu0 %v521
      %v1256 = vpop.f32.mrf.mxu0
      %v1257 = vadd.f32 %v758, %v1256
      %v1258 = vpop.f32.mrf.mxu0
      %1259 = vmatprep.mubr.f32.mxu0 %v526
      %1260 = vmatmul.mubr.f32.gmra.mxu0 %v525
      %v1261 = vpop.f32.mrf.mxu0
      %v1262 = vadd.f32 %v758, %v1261
      %v1263 = vpop.f32.mrf.mxu0
      %1264 = vmatprep.mubr.f32.mxu0 %v530
      %1265 = vmatmul.mubr.f32.gmra.mxu0 %v529
      %v1266 = vpop.f32.mrf.mxu0
      %v1267 = vadd.f32 %v758, %v1266
      %v1268 = vpop.f32.mrf.mxu0
      %1269 = vmatprep.mubr.f32.mxu0 %v534
      %1270 = vmatmul.mubr.f32.gmra.mxu0 %v533
      %v1271 = vpop.f32.mrf.mxu0
      %v1272 = vadd.f32 %v758, %v1271
      %v1273 = vpop.f32.mrf.mxu0
      %1274 = vmatprep.mubr.f32.mxu0 %v538
      %1275 = vmatmul.mubr.f32.gmra.mxu0 %v537
      %v1276 = vpop.f32.mrf.mxu0
      %v1277 = vadd.f32 %v758, %v1276
      %v1278 = vpop.f32.mrf.mxu0
      %1279 = vmatprep.mubr.f32.mxu0 %v542
      %1280 = vmatmul.mubr.f32.gmra.mxu0 %v541
      %v1281 = vpop.f32.mrf.mxu0
      %v1282 = vadd.f32 %v758, %v1281
      %v1283 = vpop.f32.mrf.mxu0
      %1284 = vmatprep.mubr.f32.mxu0 %v546
      %1285 = vmatmul.mubr.f32.gmra.mxu0 %v545
      %v1286 = vpop.f32.mrf.mxu0
      %v1287 = vadd.f32 %v758, %v1286
      %v1288 = vpop.f32.mrf.mxu0
      %1289 = vmatprep.mubr.f32.mxu0 %v550
      %1290 = vmatmul.mubr.f32.gmra.mxu0 %v549
      %v1291 = vpop.f32.mrf.mxu0
      %v1292 = vadd.f32 %v758, %v1291
      %v1293 = vpop.f32.mrf.mxu0
      %1294 = vmatprep.mubr.f32.mxu0 %v554
      %1295 = vmatmul.mubr.f32.gmra.mxu0 %v553
      %v1296 = vpop.f32.mrf.mxu0
      %v1297 = vadd.f32 %v758, %v1296
      %v1298 = vpop.f32.mrf.mxu0
      %1299 = vmatprep.mubr.f32.mxu0 %v558
      %1300 = vmatmul.mubr.f32.gmra.mxu0 %v557
      %v1301 = vpop.f32.mrf.mxu0
      %v1302 = vadd.f32 %v758, %v1301
      %v1303 = vpop.f32.mrf.mxu0
      %1304 = vmatprep.mubr.f32.mxu0 %v562
      %1305 = vmatmul.mubr.f32.gmra.mxu0 %v561
      %v1306 = vpop.f32.mrf.mxu0
      %v1307 = vadd.f32 %v758, %v1306
      %v1308 = vpop.f32.mrf.mxu0
      %1309 = vmatprep.mubr.f32.mxu0 %v566
      %1310 = vmatmul.mubr.f32.gmra.mxu0 %v565
      %v1311 = vpop.f32.mrf.mxu0
      %v1312 = vadd.f32 %v758, %v1311
      %v1313 = vpop.f32.mrf.mxu0
      %1314 = vmatprep.mubr.f32.mxu0 %v570
      %1315 = vmatmul.mubr.f32.gmra.mxu0 %v569
      %v1316 = vpop.f32.mrf.mxu0
      %v1317 = vadd.f32 %v758, %v1316
      %v1318 = vpop.f32.mrf.mxu0
      %1319 = vmatprep.mubr.f32.mxu0 %v574
      %1320 = vmatmul.mubr.f32.gmra.mxu0 %v573
      %v1321 = vpop.f32.mrf.mxu0
      %v1322 = vadd.f32 %v758, %v1321
      %v1323 = vpop.f32.mrf.mxu0
      %1324 = vmatprep.mubr.f32.mxu0 %v578
      %1325 = vmatmul.mubr.f32.gmra.mxu0 %v577
      %v1326 = vpop.f32.mrf.mxu0
      %v1327 = vadd.f32 %v758, %v1326
      %v1328 = vpop.f32.mrf.mxu0
      %1329 = vmatprep.mubr.f32.mxu0 %v582
      %1330 = vmatmul.mubr.f32.gmra.mxu0 %v581
      %v1331 = vpop.f32.mrf.mxu0
      %v1332 = vadd.f32 %v758, %v1331
      %v1333 = vpop.f32.mrf.mxu0
      %1334 = vmatprep.mubr.f32.mxu0 %v586
      %1335 = vmatmul.mubr.f32.gmra.mxu0 %v585
      %v1336 = vpop.f32.mrf.mxu0
      %v1337 = vadd.f32 %v758, %v1336
      %v1338 = vpop.f32.mrf.mxu0
      %1339 = vmatprep.mubr.f32.mxu0 %v590
      %1340 = vmatmul.mubr.f32.gmra.mxu0 %v589
      %v1341 = vpop.f32.mrf.mxu0
      %v1342 = vadd.f32 %v758, %v1341
      %v1343 = vpop.f32.mrf.mxu0
      %1344 = vmatprep.mubr.f32.mxu0 %v594
      %1345 = vmatmul.mubr.f32.gmra.mxu0 %v593
      %v1346 = vpop.f32.mrf.mxu0
      %v1347 = vadd.f32 %v758, %v1346
      %v1348 = vpop.f32.mrf.mxu0
      %1349 = vmatprep.mubr.f32.mxu0 %v598
      %1350 = vmatmul.mubr.f32.gmra.mxu0 %v597
      %v1351 = vpop.f32.mrf.mxu0
      %v1352 = vadd.f32 %v758, %v1351
      %v1353 = vpop.f32.mrf.mxu0
      %1354 = vmatprep.mubr.f32.mxu0 %v602
      %1355 = vmatmul.mubr.f32.gmra.mxu0 %v601
      %v1356 = vpop.f32.mrf.mxu0
      %v1357 = vadd.f32 %v758, %v1356
      %v1358 = vpop.f32.mrf.mxu0
      %1359 = vmatprep.mubr.f32.mxu0 %v606
      %1360 = vmatmul.mubr.f32.gmra.mxu0 %v605
      %v1361 = vpop.f32.mrf.mxu0
      %v1362 = vadd.f32 %v758, %v1361
      %v1363 = vpop.f32.mrf.mxu0
      %1364 = vmatprep.mubr.f32.mxu0 %v610
      %1365 = vmatmul.mubr.f32.gmra.mxu0 %v609
      %v1366 = vpop.f32.mrf.mxu0
      %v1367 = vadd.f32 %v758, %v1366
      %v1368 = vpop.f32.mrf.mxu0
      %1369 = vmatprep.mubr.f32.mxu0 %v614
      %1370 = vmatmul.mubr.f32.gmra.mxu0 %v613
      %v1371 = vpop.f32.mrf.mxu0
      %v1372 = vadd.f32 %v758, %v1371
      %v1373 = vpop.f32.mrf.mxu0
      %1374 = vmatprep.mubr.f32.mxu0 %v618
      %1375 = vmatmul.mubr.f32.gmra.mxu0 %v617
      %v1376 = vpop.f32.mrf.mxu0
      %v1377 = vadd.f32 %v758, %v1376
      %v1378 = vpop.f32.mrf.mxu0
      %1379 = vmatprep.mubr.f32.mxu0 %v622
      %1380 = vmatmul.mubr.f32.gmra.mxu0 %v621
      %v1381 = vpop.f32.mrf.mxu0
      %v1382 = vadd.f32 %v758, %v1381
      %v1383 = vpop.f32.mrf.mxu0
      %1384 = vmatprep.mubr.f32.mxu0 %v626
      %1385 = vmatmul.mubr.f32.gmra.mxu0 %v625
      %v1386 = vpop.f32.mrf.mxu0
      %v1387 = vadd.f32 %v758, %v1386
      %v1388 = vpop.f32.mrf.mxu0
      %1389 = vmatprep.mubr.f32.mxu0 %v630
      %1390 = vmatmul.mubr.f32.gmra.mxu0 %v629
      %v1391 = vpop.f32.mrf.mxu0
      %v1392 = vadd.f32 %v758, %v1391
      %v1393 = vpop.f32.mrf.mxu0
      %1394 = vmatprep.mubr.f32.mxu0 %v634
      %1395 = vmatmul.mubr.f32.gmra.mxu0 %v633
      %v1396 = vpop.f32.mrf.mxu0
      %v1397 = vadd.f32 %v758, %v1396
      %v1398 = vpop.f32.mrf.mxu0
      %1399 = vmatprep.mubr.f32.mxu0 %v638
      %1400 = vmatmul.mubr.f32.gmra.mxu0 %v637
      %v1401 = vpop.f32.mrf.mxu0
      %v1402 = vadd.f32 %v758, %v1401
      %v1403 = vpop.f32.mrf.mxu0
      %1404 = vmatprep.mubr.f32.mxu0 %v642
      %1405 = vmatmul.mubr.f32.gmra.mxu0 %v641
      %v1406 = vpop.f32.mrf.mxu0
      %v1407 = vadd.f32 %v758, %v1406
      %v1408 = vpop.f32.mrf.mxu0
      %1409 = vmatprep.mubr.f32.mxu0 %v646
      %1410 = vmatmul.mubr.f32.gmra.mxu0 %v645
      %v1411 = vpop.f32.mrf.mxu0
      %v1412 = vadd.f32 %v758, %v1411
      %v1413 = vpop.f32.mrf.mxu0
      %1414 = vmatprep.mubr.f32.mxu0 %v650
      %1415 = vmatmul.mubr.f32.gmra.mxu0 %v649
      %v1416 = vpop.f32.mrf.mxu0
      %v1417 = vadd.f32 %v758, %v1416
      %v1418 = vpop.f32.mrf.mxu0
      %1419 = vmatprep.mubr.f32.mxu0 %v654
      %1420 = vmatmul.mubr.f32.gmra.mxu0 %v653
      %v1421 = vpop.f32.mrf.mxu0
      %v1422 = vadd.f32 %v758, %v1421
      %v1423 = vpop.f32.mrf.mxu0
      %1424 = vmatprep.mubr.f32.mxu0 %v658
      %1425 = vmatmul.mubr.f32.gmra.mxu0 %v657
      %v1426 = vpop.f32.mrf.mxu0
      %v1427 = vadd.f32 %v758, %v1426
      %v1428 = vpop.f32.mrf.mxu0
      %1429 = vmatprep.mubr.f32.mxu0 %v662
      %1430 = vmatmul.mubr.f32.gmra.mxu0 %v661
      %v1431 = vpop.f32.mrf.mxu0
      %v1432 = vadd.f32 %v758, %v1431
      %v1433 = vpop.f32.mrf.mxu0
      %1434 = vmatprep.mubr.f32.mxu0 %v666
      %1435 = vmatmul.mubr.f32.gmra.mxu0 %v665
      %v1436 = vpop.f32.mrf.mxu0
      %v1437 = vadd.f32 %v758, %v1436
      %v1438 = vpop.f32.mrf.mxu0
      %1439 = vmatprep.mubr.f32.mxu0 %v670
      %1440 = vmatmul.mubr.f32.gmra.mxu0 %v669
      %v1441 = vpop.f32.mrf.mxu0
      %v1442 = vadd.f32 %v758, %v1441
      %v1443 = vpop.f32.mrf.mxu0
      %1444 = vmatprep.mubr.f32.mxu0 %v674
      %1445 = vmatmul.mubr.f32.gmra.mxu0 %v673
      %v1446 = vpop.f32.mrf.mxu0
      %v1447 = vadd.f32 %v758, %v1446
      %v1448 = vpop.f32.mrf.mxu0
      %1449 = vmatprep.mubr.f32.mxu0 %v678
      %1450 = vmatmul.mubr.f32.gmra.mxu0 %v677
      %v1451 = vpop.f32.mrf.mxu0
      %v1452 = vadd.f32 %v758, %v1451
      %v1453 = vpop.f32.mrf.mxu0
      %1454 = vmatprep.mubr.f32.mxu0 %v682
      %1455 = vmatmul.mubr.f32.gmra.mxu0 %v681
      %v1456 = vpop.f32.mrf.mxu0
      %v1457 = vadd.f32 %v758, %v1456
      %v1458 = vpop.f32.mrf.mxu0
      %1459 = vmatprep.mubr.f32.mxu0 %v686
      %1460 = vmatmul.mubr.f32.gmra.mxu0 %v685
      %v1461 = vpop.f32.mrf.mxu0
      %v1462 = vadd.f32 %v758, %v1461
      %v1463 = vpop.f32.mrf.mxu0
      %1464 = vdwg.mxu0
      %1465 = vmatprep.subr.mxu0 0.0
      %1466 = vmatpush1.msra.mxu0 %v736
      %1467 = vmatprep.subr.mxu0 0.0
      %1468 = vmatpush1.msra.mxu0 %v735
      %1469 = vmatprep.subr.mxu0 0.0
      %1470 = vmatpush1.msra.mxu0 %v734
      %1471 = vmatprep.subr.mxu0 0.0
      %1472 = vmatpush1.msra.mxu0 %v733
      %1473 = vmatprep.subr.mxu0 0.0
      %1474 = vmatpush1.msra.mxu0 %v732
      %1475 = vmatprep.subr.mxu0 0.0
      %1476 = vmatpush1.msra.mxu0 %v731
      %1477 = vmatprep.subr.mxu0 0.0
      %1478 = vmatpush1.msra.mxu0 %v730
      %1479 = vmatprep.subr.mxu0 0.0
      %1480 = vmatpush1.msra.mxu0 %v729
      %1481 = vmatprep.subr.mxu0 0.0
      %1482 = vmatpush1.msra.mxu0 %v728
      %1483 = vmatprep.subr.mxu0 0.0
      %1484 = vmatpush1.msra.mxu0 %v727
      %1485 = vmatprep.subr.mxu0 0.0
      %1486 = vmatpush1.msra.mxu0 %v726
      %1487 = vmatprep.subr.mxu0 0.0
      %1488 = vmatpush1.msra.mxu0 %v725
      %1489 = vmatprep.subr.mxu0 0.0
      %1490 = vmatpush1.msra.mxu0 %v724
      %1491 = vmatprep.subr.mxu0 0.0
      %1492 = vmatpush1.msra.mxu0 %v723
      %1493 = vmatprep.subr.mxu0 0.0
      %1494 = vmatpush1.msra.mxu0 %v722
      %1495 = vmatprep.subr.mxu0 0.0
      %1496 = vmatpush1.msra.mxu0 %v721
      %1497 = vmatprep.subr.mxu0 0.0
      %1498 = vmatpush2.msra.mxu0 %v752
      %1499 = vmatprep.subr.mxu0 0.0
      %1500 = vmatpush2.msra.mxu0 %v751
      %1501 = vmatprep.subr.mxu0 0.0
      %1502 = vmatpush2.msra.mxu0 %v750
      %1503 = vmatprep.subr.mxu0 0.0
      %1504 = vmatpush2.msra.mxu0 %v749
      %1505 = vmatprep.subr.mxu0 0.0
      %1506 = vmatpush2.msra.mxu0 %v748
      %1507 = vmatprep.subr.mxu0 0.0
      %1508 = vmatpush2.msra.mxu0 %v747
      %1509 = vmatprep.subr.mxu0 0.0
      %1510 = vmatpush2.msra.mxu0 %v746
      %1511 = vmatprep.subr.mxu0 0.0
      %1512 = vmatpush2.msra.mxu0 %v745
      %1513 = vmatprep.subr.mxu0 0.0
      %1514 = vmatpush2.msra.mxu0 %v744
      %1515 = vmatprep.subr.mxu0 0.0
      %1516 = vmatpush2.msra.mxu0 %v743
      %1517 = vmatprep.subr.mxu0 0.0
      %1518 = vmatpush2.msra.mxu0 %v742
      %1519 = vmatprep.subr.mxu0 0.0
      %1520 = vmatpush2.msra.mxu0 %v741
      %1521 = vmatprep.subr.mxu0 0.0
      %1522 = vmatpush2.msra.mxu0 %v740
      %1523 = vmatprep.subr.mxu0 0.0
      %1524 = vmatpush2.msra.mxu0 %v739
      %1525 = vmatprep.subr.mxu0 0.0
      %1526 = vmatpush2.msra.mxu0 %v738
      %1527 = vmatprep.subr.mxu0 0.0
      %1528 = vmatpush2.msra.mxu0 %v737
      %1529 = vmatprep.mubr.f32.mxu0 %v180
      %1530 = vmatmul.mubr.f32.gmra.mxu0 %v179
      %v1531 = vpop.f32.mrf.mxu0
      %v1532 = vadd.f32 %v827, %v1531
      %v1533 = vpop.f32.mrf.mxu0
      %1534 = vmatprep.mubr.f32.mxu0 %v184
      %1535 = vmatmul.mubr.f32.gmra.mxu0 %v183
      %v1536 = vpop.f32.mrf.mxu0
      %v1537 = vadd.f32 %v832, %v1536
      %v1538 = vpop.f32.mrf.mxu0
      %1539 = vmatprep.mubr.f32.mxu0 %v188
      %1540 = vmatmul.mubr.f32.gmra.mxu0 %v187
      %v1541 = vpop.f32.mrf.mxu0
      %v1542 = vadd.f32 %v837, %v1541
      %v1543 = vpop.f32.mrf.mxu0
      %1544 = vmatprep.mubr.f32.mxu0 %v192
      %1545 = vmatmul.mubr.f32.gmra.mxu0 %v191
      %v1546 = vpop.f32.mrf.mxu0
      %v1547 = vadd.f32 %v842, %v1546
      %v1548 = vpop.f32.mrf.mxu0
      %1549 = vmatprep.mubr.f32.mxu0 %v196
      %1550 = vmatmul.mubr.f32.gmra.mxu0 %v195
      %v1551 = vpop.f32.mrf.mxu0
      %v1552 = vadd.f32 %v847, %v1551
      %v1553 = vpop.f32.mrf.mxu0
      %1554 = vmatprep.mubr.f32.mxu0 %v200
      %1555 = vmatmul.mubr.f32.gmra.mxu0 %v199
      %v1556 = vpop.f32.mrf.mxu0
      %v1557 = vadd.f32 %v852, %v1556
      %v1558 = vpop.f32.mrf.mxu0
      %1559 = vmatprep.mubr.f32.mxu0 %v204
      %1560 = vmatmul.mubr.f32.gmra.mxu0 %v203
      %v1561 = vpop.f32.mrf.mxu0
      %v1562 = vadd.f32 %v857, %v1561
      %v1563 = vpop.f32.mrf.mxu0
      %1564 = vmatprep.mubr.f32.mxu0 %v208
      %1565 = vmatmul.mubr.f32.gmra.mxu0 %v207
      %v1566 = vpop.f32.mrf.mxu0
      %v1567 = vadd.f32 %v862, %v1566
      %v1568 = vpop.f32.mrf.mxu0
      %1569 = vmatprep.mubr.f32.mxu0 %v212
      %1570 = vmatmul.mubr.f32.gmra.mxu0 %v211
      %v1571 = vpop.f32.mrf.mxu0
      %v1572 = vadd.f32 %v867, %v1571
      %v1573 = vpop.f32.mrf.mxu0
      %1574 = vmatprep.mubr.f32.mxu0 %v216
      %1575 = vmatmul.mubr.f32.gmra.mxu0 %v215
      %v1576 = vpop.f32.mrf.mxu0
      %v1577 = vadd.f32 %v872, %v1576
      %v1578 = vpop.f32.mrf.mxu0
      %1579 = vmatprep.mubr.f32.mxu0 %v220
      %1580 = vmatmul.mubr.f32.gmra.mxu0 %v219
      %v1581 = vpop.f32.mrf.mxu0
      %v1582 = vadd.f32 %v877, %v1581
      %v1583 = vpop.f32.mrf.mxu0
      %1584 = vmatprep.mubr.f32.mxu0 %v224
      %1585 = vmatmul.mubr.f32.gmra.mxu0 %v223
      %v1586 = vpop.f32.mrf.mxu0
      %v1587 = vadd.f32 %v882, %v1586
      %v1588 = vpop.f32.mrf.mxu0
      %1589 = vmatprep.mubr.f32.mxu0 %v228
      %1590 = vmatmul.mubr.f32.gmra.mxu0 %v227
      %v1591 = vpop.f32.mrf.mxu0
      %v1592 = vadd.f32 %v887, %v1591
      %v1593 = vpop.f32.mrf.mxu0
      %1594 = vmatprep.mubr.f32.mxu0 %v232
      %1595 = vmatmul.mubr.f32.gmra.mxu0 %v231
      %v1596 = vpop.f32.mrf.mxu0
      %v1597 = vadd.f32 %v892, %v1596
      %v1598 = vpop.f32.mrf.mxu0
      %1599 = vmatprep.mubr.f32.mxu0 %v236
      %1600 = vmatmul.mubr.f32.gmra.mxu0 %v235
      %v1601 = vpop.f32.mrf.mxu0
      %v1602 = vadd.f32 %v897, %v1601
      %v1603 = vpop.f32.mrf.mxu0
      %1604 = vmatprep.mubr.f32.mxu0 %v240
      %1605 = vmatmul.mubr.f32.gmra.mxu0 %v239
      %v1606 = vpop.f32.mrf.mxu0
      %v1607 = vadd.f32 %v902, %v1606
      %v1608 = vpop.f32.mrf.mxu0
      %1609 = vmatprep.mubr.f32.mxu0 %v244
      %1610 = vmatmul.mubr.f32.gmra.mxu0 %v243
      %v1611 = vpop.f32.mrf.mxu0
      %v1612 = vadd.f32 %v907, %v1611
      %v1613 = vpop.f32.mrf.mxu0
      %1614 = vmatprep.mubr.f32.mxu0 %v248
      %1615 = vmatmul.mubr.f32.gmra.mxu0 %v247
      %v1616 = vpop.f32.mrf.mxu0
      %v1617 = vadd.f32 %v912, %v1616
      %v1618 = vpop.f32.mrf.mxu0
      %1619 = vmatprep.mubr.f32.mxu0 %v252
      %1620 = vmatmul.mubr.f32.gmra.mxu0 %v251
      %v1621 = vpop.f32.mrf.mxu0
      %v1622 = vadd.f32 %v917, %v1621
      %v1623 = vpop.f32.mrf.mxu0
      %1624 = vmatprep.mubr.f32.mxu0 %v256
      %1625 = vmatmul.mubr.f32.gmra.mxu0 %v255
      %v1626 = vpop.f32.mrf.mxu0
      %v1627 = vadd.f32 %v922, %v1626
      %v1628 = vpop.f32.mrf.mxu0
      %1629 = vmatprep.mubr.f32.mxu0 %v260
      %1630 = vmatmul.mubr.f32.gmra.mxu0 %v259
      %v1631 = vpop.f32.mrf.mxu0
      %v1632 = vadd.f32 %v927, %v1631
      %v1633 = vpop.f32.mrf.mxu0
      %1634 = vmatprep.mubr.f32.mxu0 %v264
      %1635 = vmatmul.mubr.f32.gmra.mxu0 %v263
      %v1636 = vpop.f32.mrf.mxu0
      %v1637 = vadd.f32 %v932, %v1636
      %v1638 = vpop.f32.mrf.mxu0
      %1639 = vmatprep.mubr.f32.mxu0 %v268
      %1640 = vmatmul.mubr.f32.gmra.mxu0 %v267
      %v1641 = vpop.f32.mrf.mxu0
      %v1642 = vadd.f32 %v937, %v1641
      %v1643 = vpop.f32.mrf.mxu0
      %1644 = vmatprep.mubr.f32.mxu0 %v272
      %1645 = vmatmul.mubr.f32.gmra.mxu0 %v271
      %v1646 = vpop.f32.mrf.mxu0
      %v1647 = vadd.f32 %v942, %v1646
      %v1648 = vpop.f32.mrf.mxu0
      %1649 = vmatprep.mubr.f32.mxu0 %v276
      %1650 = vmatmul.mubr.f32.gmra.mxu0 %v275
      %v1651 = vpop.f32.mrf.mxu0
      %v1652 = vadd.f32 %v947, %v1651
      %v1653 = vpop.f32.mrf.mxu0
      %1654 = vmatprep.mubr.f32.mxu0 %v280
      %1655 = vmatmul.mubr.f32.gmra.mxu0 %v279
      %v1656 = vpop.f32.mrf.mxu0
      %v1657 = vadd.f32 %v952, %v1656
      %v1658 = vpop.f32.mrf.mxu0
      %1659 = vmatprep.mubr.f32.mxu0 %v284
      %1660 = vmatmul.mubr.f32.gmra.mxu0 %v283
      %v1661 = vpop.f32.mrf.mxu0
      %v1662 = vadd.f32 %v957, %v1661
      %v1663 = vpop.f32.mrf.mxu0
      %1664 = vmatprep.mubr.f32.mxu0 %v288
      %1665 = vmatmul.mubr.f32.gmra.mxu0 %v287
      %v1666 = vpop.f32.mrf.mxu0
      %v1667 = vadd.f32 %v962, %v1666
      %v1668 = vpop.f32.mrf.mxu0
      %1669 = vmatprep.mubr.f32.mxu0 %v292
      %1670 = vmatmul.mubr.f32.gmra.mxu0 %v291
      %v1671 = vpop.f32.mrf.mxu0
      %v1672 = vadd.f32 %v967, %v1671
      %v1673 = vpop.f32.mrf.mxu0
      %1674 = vmatprep.mubr.f32.mxu0 %v296
      %1675 = vmatmul.mubr.f32.gmra.mxu0 %v295
      %v1676 = vpop.f32.mrf.mxu0
      %v1677 = vadd.f32 %v972, %v1676
      %v1678 = vpop.f32.mrf.mxu0
      %1679 = vmatprep.mubr.f32.mxu0 %v300
      %1680 = vmatmul.mubr.f32.gmra.mxu0 %v299
      %v1681 = vpop.f32.mrf.mxu0
      %v1682 = vadd.f32 %v977, %v1681
      %v1683 = vpop.f32.mrf.mxu0
      %1684 = vmatprep.mubr.f32.mxu0 %v304
      %1685 = vmatmul.mubr.f32.gmra.mxu0 %v303
      %v1686 = vpop.f32.mrf.mxu0
      %v1687 = vadd.f32 %v982, %v1686
      %v1688 = vpop.f32.mrf.mxu0
      %1689 = vmatprep.mubr.f32.mxu0 %v308
      %1690 = vmatmul.mubr.f32.gmra.mxu0 %v307
      %v1691 = vpop.f32.mrf.mxu0
      %v1692 = vadd.f32 %v987, %v1691
      %v1693 = vpop.f32.mrf.mxu0
      %1694 = vmatprep.mubr.f32.mxu0 %v312
      %1695 = vmatmul.mubr.f32.gmra.mxu0 %v311
      %v1696 = vpop.f32.mrf.mxu0
      %v1697 = vadd.f32 %v992, %v1696
      %v1698 = vpop.f32.mrf.mxu0
      %1699 = vmatprep.mubr.f32.mxu0 %v316
      %1700 = vmatmul.mubr.f32.gmra.mxu0 %v315
      %v1701 = vpop.f32.mrf.mxu0
      %v1702 = vadd.f32 %v997, %v1701
      %v1703 = vpop.f32.mrf.mxu0
      %1704 = vmatprep.mubr.f32.mxu0 %v320
      %1705 = vmatmul.mubr.f32.gmra.mxu0 %v319
      %v1706 = vpop.f32.mrf.mxu0
      %v1707 = vadd.f32 %v1002, %v1706
      %v1708 = vpop.f32.mrf.mxu0
      %1709 = vmatprep.mubr.f32.mxu0 %v324
      %1710 = vmatmul.mubr.f32.gmra.mxu0 %v323
      %v1711 = vpop.f32.mrf.mxu0
      %v1712 = vadd.f32 %v1007, %v1711
      %v1713 = vpop.f32.mrf.mxu0
      %1714 = vmatprep.mubr.f32.mxu0 %v328
      %1715 = vmatmul.mubr.f32.gmra.mxu0 %v327
      %v1716 = vpop.f32.mrf.mxu0
      %v1717 = vadd.f32 %v1012, %v1716
      %v1718 = vpop.f32.mrf.mxu0
      %1719 = vmatprep.mubr.f32.mxu0 %v332
      %1720 = vmatmul.mubr.f32.gmra.mxu0 %v331
      %v1721 = vpop.f32.mrf.mxu0
      %v1722 = vadd.f32 %v1017, %v1721
      %v1723 = vpop.f32.mrf.mxu0
      %1724 = vmatprep.mubr.f32.mxu0 %v336
      %1725 = vmatmul.mubr.f32.gmra.mxu0 %v335
      %v1726 = vpop.f32.mrf.mxu0
      %v1727 = vadd.f32 %v1022, %v1726
      %v1728 = vpop.f32.mrf.mxu0
      %1729 = vmatprep.mubr.f32.mxu0 %v340
      %1730 = vmatmul.mubr.f32.gmra.mxu0 %v339
      %v1731 = vpop.f32.mrf.mxu0
      %v1732 = vadd.f32 %v1027, %v1731
      %v1733 = vpop.f32.mrf.mxu0
      %1734 = vmatprep.mubr.f32.mxu0 %v344
      %1735 = vmatmul.mubr.f32.gmra.mxu0 %v343
      %v1736 = vpop.f32.mrf.mxu0
      %v1737 = vadd.f32 %v1032, %v1736
      %v1738 = vpop.f32.mrf.mxu0
      %1739 = vmatprep.mubr.f32.mxu0 %v348
      %1740 = vmatmul.mubr.f32.gmra.mxu0 %v347
      %v1741 = vpop.f32.mrf.mxu0
      %v1742 = vadd.f32 %v1037, %v1741
      %v1743 = vpop.f32.mrf.mxu0
      %1744 = vmatprep.mubr.f32.mxu0 %v352
      %1745 = vmatmul.mubr.f32.gmra.mxu0 %v351
      %v1746 = vpop.f32.mrf.mxu0
      %v1747 = vadd.f32 %v1042, %v1746
      %v1748 = vpop.f32.mrf.mxu0
      %1749 = vmatprep.mubr.f32.mxu0 %v356
      %1750 = vmatmul.mubr.f32.gmra.mxu0 %v355
      %v1751 = vpop.f32.mrf.mxu0
      %v1752 = vadd.f32 %v1047, %v1751
      %v1753 = vpop.f32.mrf.mxu0
      %1754 = vmatprep.mubr.f32.mxu0 %v360
      %1755 = vmatmul.mubr.f32.gmra.mxu0 %v359
      %v1756 = vpop.f32.mrf.mxu0
      %v1757 = vadd.f32 %v1052, %v1756
      %v1758 = vpop.f32.mrf.mxu0
      %1759 = vmatprep.mubr.f32.mxu0 %v364
      %1760 = vmatmul.mubr.f32.gmra.mxu0 %v363
      %v1761 = vpop.f32.mrf.mxu0
      %v1762 = vadd.f32 %v1057, %v1761
      %v1763 = vpop.f32.mrf.mxu0
      %1764 = vmatprep.mubr.f32.mxu0 %v368
      %1765 = vmatmul.mubr.f32.gmra.mxu0 %v367
      %v1766 = vpop.f32.mrf.mxu0
      %v1767 = vadd.f32 %v1062, %v1766
      %v1768 = vpop.f32.mrf.mxu0
      %1769 = vmatprep.mubr.f32.mxu0 %v372
      %1770 = vmatmul.mubr.f32.gmra.mxu0 %v371
      %v1771 = vpop.f32.mrf.mxu0
      %v1772 = vadd.f32 %v1067, %v1771
      %v1773 = vpop.f32.mrf.mxu0
      %1774 = vmatprep.mubr.f32.mxu0 %v376
      %1775 = vmatmul.mubr.f32.gmra.mxu0 %v375
      %v1776 = vpop.f32.mrf.mxu0
      %v1777 = vadd.f32 %v1072, %v1776
      %v1778 = vpop.f32.mrf.mxu0
      %1779 = vmatprep.mubr.f32.mxu0 %v380
      %1780 = vmatmul.mubr.f32.gmra.mxu0 %v379
      %v1781 = vpop.f32.mrf.mxu0
      %v1782 = vadd.f32 %v1077, %v1781
      %v1783 = vpop.f32.mrf.mxu0
      %1784 = vmatprep.mubr.f32.mxu0 %v384
      %1785 = vmatmul.mubr.f32.gmra.mxu0 %v383
      %v1786 = vpop.f32.mrf.mxu0
      %v1787 = vadd.f32 %v1082, %v1786
      %v1788 = vpop.f32.mrf.mxu0
      %1789 = vmatprep.mubr.f32.mxu0 %v388
      %1790 = vmatmul.mubr.f32.gmra.mxu0 %v387
      %v1791 = vpop.f32.mrf.mxu0
      %v1792 = vadd.f32 %v1087, %v1791
      %v1793 = vpop.f32.mrf.mxu0
      %1794 = vmatprep.mubr.f32.mxu0 %v392
      %1795 = vmatmul.mubr.f32.gmra.mxu0 %v391
      %v1796 = vpop.f32.mrf.mxu0
      %v1797 = vadd.f32 %v1092, %v1796
      %v1798 = vpop.f32.mrf.mxu0
      %1799 = vmatprep.mubr.f32.mxu0 %v396
      %1800 = vmatmul.mubr.f32.gmra.mxu0 %v395
      %v1801 = vpop.f32.mrf.mxu0
      %v1802 = vadd.f32 %v1097, %v1801
      %v1803 = vpop.f32.mrf.mxu0
      %1804 = vmatprep.mubr.f32.mxu0 %v400
      %1805 = vmatmul.mubr.f32.gmra.mxu0 %v399
      %v1806 = vpop.f32.mrf.mxu0
      %v1807 = vadd.f32 %v1102, %v1806
      %v1808 = vpop.f32.mrf.mxu0
      %1809 = vmatprep.mubr.f32.mxu0 %v404
      %1810 = vmatmul.mubr.f32.gmra.mxu0 %v403
      %v1811 = vpop.f32.mrf.mxu0
      %v1812 = vadd.f32 %v1107, %v1811
      %v1813 = vpop.f32.mrf.mxu0
      %1814 = vmatprep.mubr.f32.mxu0 %v408
      %1815 = vmatmul.mubr.f32.gmra.mxu0 %v407
      %v1816 = vpop.f32.mrf.mxu0
      %v1817 = vadd.f32 %v1112, %v1816
      %v1818 = vpop.f32.mrf.mxu0
      %1819 = vmatprep.mubr.f32.mxu0 %v412
      %1820 = vmatmul.mubr.f32.gmra.mxu0 %v411
      %v1821 = vpop.f32.mrf.mxu0
      %v1822 = vadd.f32 %v1117, %v1821
      %v1823 = vpop.f32.mrf.mxu0
      %1824 = vmatprep.mubr.f32.mxu0 %v416
      %1825 = vmatmul.mubr.f32.gmra.mxu0 %v415
      %v1826 = vpop.f32.mrf.mxu0
      %v1827 = vadd.f32 %v1122, %v1826
      %v1828 = vpop.f32.mrf.mxu0
      %1829 = vmatprep.mubr.f32.mxu0 %v420
      %1830 = vmatmul.mubr.f32.gmra.mxu0 %v419
      %v1831 = vpop.f32.mrf.mxu0
      %v1832 = vadd.f32 %v1127, %v1831
      %v1833 = vpop.f32.mrf.mxu0
      %1834 = vmatprep.mubr.f32.mxu0 %v424
      %1835 = vmatmul.mubr.f32.gmra.mxu0 %v423
      %v1836 = vpop.f32.mrf.mxu0
      %v1837 = vadd.f32 %v1132, %v1836
      %v1838 = vpop.f32.mrf.mxu0
      %1839 = vmatprep.mubr.f32.mxu0 %v428
      %1840 = vmatmul.mubr.f32.gmra.mxu0 %v427
      %v1841 = vpop.f32.mrf.mxu0
      %v1842 = vadd.f32 %v1137, %v1841
      %v1843 = vpop.f32.mrf.mxu0
      %1844 = vmatprep.mubr.f32.mxu0 %v432
      %1845 = vmatmul.mubr.f32.gmra.mxu0 %v431
      %v1846 = vpop.f32.mrf.mxu0
      %v1847 = vadd.f32 %v1142, %v1846
      %v1848 = vpop.f32.mrf.mxu0
      %1849 = vmatprep.mubr.f32.mxu0 %v436
      %1850 = vmatmul.mubr.f32.gmra.mxu0 %v435
      %v1851 = vpop.f32.mrf.mxu0
      %v1852 = vadd.f32 %v1147, %v1851
      %v1853 = vpop.f32.mrf.mxu0
      %1854 = vmatprep.mubr.f32.mxu0 %v440
      %1855 = vmatmul.mubr.f32.gmra.mxu0 %v439
      %v1856 = vpop.f32.mrf.mxu0
      %v1857 = vadd.f32 %v1152, %v1856
      %v1858 = vpop.f32.mrf.mxu0
      %1859 = vmatprep.mubr.f32.mxu0 %v444
      %1860 = vmatmul.mubr.f32.gmra.mxu0 %v443
      %v1861 = vpop.f32.mrf.mxu0
      %v1862 = vadd.f32 %v1157, %v1861
      %v1863 = vpop.f32.mrf.mxu0
      %1864 = vmatprep.mubr.f32.mxu0 %v448
      %1865 = vmatmul.mubr.f32.gmra.mxu0 %v447
      %v1866 = vpop.f32.mrf.mxu0
      %v1867 = vadd.f32 %v1162, %v1866
      %v1868 = vpop.f32.mrf.mxu0
      %1869 = vmatprep.mubr.f32.mxu0 %v452
      %1870 = vmatmul.mubr.f32.gmra.mxu0 %v451
      %v1871 = vpop.f32.mrf.mxu0
      %v1872 = vadd.f32 %v1167, %v1871
      %v1873 = vpop.f32.mrf.mxu0
      %1874 = vmatprep.mubr.f32.mxu0 %v456
      %1875 = vmatmul.mubr.f32.gmra.mxu0 %v455
      %v1876 = vpop.f32.mrf.mxu0
      %v1877 = vadd.f32 %v1172, %v1876
      %v1878 = vpop.f32.mrf.mxu0
      %1879 = vmatprep.mubr.f32.mxu0 %v460
      %1880 = vmatmul.mubr.f32.gmra.mxu0 %v459
      %v1881 = vpop.f32.mrf.mxu0
      %v1882 = vadd.f32 %v1177, %v1881
      %v1883 = vpop.f32.mrf.mxu0
      %1884 = vmatprep.mubr.f32.mxu0 %v464
      %1885 = vmatmul.mubr.f32.gmra.mxu0 %v463
      %v1886 = vpop.f32.mrf.mxu0
      %v1887 = vadd.f32 %v1182, %v1886
      %v1888 = vpop.f32.mrf.mxu0
      %1889 = vmatprep.mubr.f32.mxu0 %v468
      %1890 = vmatmul.mubr.f32.gmra.mxu0 %v467
      %v1891 = vpop.f32.mrf.mxu0
      %v1892 = vadd.f32 %v1187, %v1891
      %v1893 = vpop.f32.mrf.mxu0
      %1894 = vmatprep.mubr.f32.mxu0 %v472
      %1895 = vmatmul.mubr.f32.gmra.mxu0 %v471
      %v1896 = vpop.f32.mrf.mxu0
      %v1897 = vadd.f32 %v1192, %v1896
      %v1898 = vpop.f32.mrf.mxu0
      %1899 = vmatprep.mubr.f32.mxu0 %v476
      %1900 = vmatmul.mubr.f32.gmra.mxu0 %v475
      %v1901 = vpop.f32.mrf.mxu0
      %v1902 = vadd.f32 %v1197, %v1901
      %v1903 = vpop.f32.mrf.mxu0
      %1904 = vmatprep.mubr.f32.mxu0 %v480
      %1905 = vmatmul.mubr.f32.gmra.mxu0 %v479
      %v1906 = vpop.f32.mrf.mxu0
      %v1907 = vadd.f32 %v1202, %v1906
      %v1908 = vpop.f32.mrf.mxu0
      %1909 = vmatprep.mubr.f32.mxu0 %v484
      %1910 = vmatmul.mubr.f32.gmra.mxu0 %v483
      %v1911 = vpop.f32.mrf.mxu0
      %v1912 = vadd.f32 %v1207, %v1911
      %v1913 = vpop.f32.mrf.mxu0
      %1914 = vmatprep.mubr.f32.mxu0 %v488
      %1915 = vmatmul.mubr.f32.gmra.mxu0 %v487
      %v1916 = vpop.f32.mrf.mxu0
      %v1917 = vadd.f32 %v1212, %v1916
      %v1918 = vpop.f32.mrf.mxu0
      %1919 = vmatprep.mubr.f32.mxu0 %v492
      %1920 = vmatmul.mubr.f32.gmra.mxu0 %v491
      %v1921 = vpop.f32.mrf.mxu0
      %v1922 = vadd.f32 %v1217, %v1921
      %v1923 = vpop.f32.mrf.mxu0
      %1924 = vmatprep.mubr.f32.mxu0 %v496
      %1925 = vmatmul.mubr.f32.gmra.mxu0 %v495
      %v1926 = vpop.f32.mrf.mxu0
      %v1927 = vadd.f32 %v1222, %v1926
      %v1928 = vpop.f32.mrf.mxu0
      %1929 = vmatprep.mubr.f32.mxu0 %v500
      %1930 = vmatmul.mubr.f32.gmra.mxu0 %v499
      %v1931 = vpop.f32.mrf.mxu0
      %v1932 = vadd.f32 %v1227, %v1931
      %v1933 = vpop.f32.mrf.mxu0
      %1934 = vmatprep.mubr.f32.mxu0 %v504
      %1935 = vmatmul.mubr.f32.gmra.mxu0 %v503
      %v1936 = vpop.f32.mrf.mxu0
      %v1937 = vadd.f32 %v1232, %v1936
      %v1938 = vpop.f32.mrf.mxu0
      %1939 = vmatprep.mubr.f32.mxu0 %v508
      %1940 = vmatmul.mubr.f32.gmra.mxu0 %v507
      %v1941 = vpop.f32.mrf.mxu0
      %v1942 = vadd.f32 %v1237, %v1941
      %v1943 = vpop.f32.mrf.mxu0
      %1944 = vmatprep.mubr.f32.mxu0 %v512
      %1945 = vmatmul.mubr.f32.gmra.mxu0 %v511
      %v1946 = vpop.f32.mrf.mxu0
      %v1947 = vadd.f32 %v1242, %v1946
      %v1948 = vpop.f32.mrf.mxu0
      %1949 = vmatprep.mubr.f32.mxu0 %v516
      %1950 = vmatmul.mubr.f32.gmra.mxu0 %v515
      %v1951 = vpop.f32.mrf.mxu0
      %v1952 = vadd.f32 %v1247, %v1951
      %v1953 = vpop.f32.mrf.mxu0
      %1954 = vmatprep.mubr.f32.mxu0 %v520
      %1955 = vmatmul.mubr.f32.gmra.mxu0 %v519
      %v1956 = vpop.f32.mrf.mxu0
      %v1957 = vadd.f32 %v1252, %v1956
      %v1958 = vpop.f32.mrf.mxu0
      %1959 = vmatprep.mubr.f32.mxu0 %v524
      %1960 = vmatmul.mubr.f32.gmra.mxu0 %v523
      %v1961 = vpop.f32.mrf.mxu0
      %v1962 = vadd.f32 %v1257, %v1961
      %v1963 = vpop.f32.mrf.mxu0
      %1964 = vmatprep.mubr.f32.mxu0 %v528
      %1965 = vmatmul.mubr.f32.gmra.mxu0 %v527
      %v1966 = vpop.f32.mrf.mxu0
      %v1967 = vadd.f32 %v1262, %v1966
      %v1968 = vpop.f32.mrf.mxu0
      %1969 = vmatprep.mubr.f32.mxu0 %v532
      %1970 = vmatmul.mubr.f32.gmra.mxu0 %v531
      %v1971 = vpop.f32.mrf.mxu0
      %v1972 = vadd.f32 %v1267, %v1971
      %v1973 = vpop.f32.mrf.mxu0
      %1974 = vmatprep.mubr.f32.mxu0 %v536
      %1975 = vmatmul.mubr.f32.gmra.mxu0 %v535
      %v1976 = vpop.f32.mrf.mxu0
      %v1977 = vadd.f32 %v1272, %v1976
      %v1978 = vpop.f32.mrf.mxu0
      %1979 = vmatprep.mubr.f32.mxu0 %v540
      %1980 = vmatmul.mubr.f32.gmra.mxu0 %v539
      %v1981 = vpop.f32.mrf.mxu0
      %v1982 = vadd.f32 %v1277, %v1981
      %v1983 = vpop.f32.mrf.mxu0
      %1984 = vmatprep.mubr.f32.mxu0 %v544
      %1985 = vmatmul.mubr.f32.gmra.mxu0 %v543
      %v1986 = vpop.f32.mrf.mxu0
      %v1987 = vadd.f32 %v1282, %v1986
      %v1988 = vpop.f32.mrf.mxu0
      %1989 = vmatprep.mubr.f32.mxu0 %v548
      %1990 = vmatmul.mubr.f32.gmra.mxu0 %v547
      %v1991 = vpop.f32.mrf.mxu0
      %v1992 = vadd.f32 %v1287, %v1991
      %v1993 = vpop.f32.mrf.mxu0
      %1994 = vmatprep.mubr.f32.mxu0 %v552
      %1995 = vmatmul.mubr.f32.gmra.mxu0 %v551
      %v1996 = vpop.f32.mrf.mxu0
      %v1997 = vadd.f32 %v1292, %v1996
      %v1998 = vpop.f32.mrf.mxu0
      %1999 = vmatprep.mubr.f32.mxu0 %v556
      %2000 = vmatmul.mubr.f32.gmra.mxu0 %v555
      %v2001 = vpop.f32.mrf.mxu0
      %v2002 = vadd.f32 %v1297, %v2001
      %v2003 = vpop.f32.mrf.mxu0
      %2004 = vmatprep.mubr.f32.mxu0 %v560
      %2005 = vmatmul.mubr.f32.gmra.mxu0 %v559
      %v2006 = vpop.f32.mrf.mxu0
      %v2007 = vadd.f32 %v1302, %v2006
      %v2008 = vpop.f32.mrf.mxu0
      %2009 = vmatprep.mubr.f32.mxu0 %v564
      %2010 = vmatmul.mubr.f32.gmra.mxu0 %v563
      %v2011 = vpop.f32.mrf.mxu0
      %v2012 = vadd.f32 %v1307, %v2011
      %v2013 = vpop.f32.mrf.mxu0
      %2014 = vmatprep.mubr.f32.mxu0 %v568
      %2015 = vmatmul.mubr.f32.gmra.mxu0 %v567
      %v2016 = vpop.f32.mrf.mxu0
      %v2017 = vadd.f32 %v1312, %v2016
      %v2018 = vpop.f32.mrf.mxu0
      %2019 = vmatprep.mubr.f32.mxu0 %v572
      %2020 = vmatmul.mubr.f32.gmra.mxu0 %v571
      %v2021 = vpop.f32.mrf.mxu0
      %v2022 = vadd.f32 %v1317, %v2021
      %v2023 = vpop.f32.mrf.mxu0
      %2024 = vmatprep.mubr.f32.mxu0 %v576
      %2025 = vmatmul.mubr.f32.gmra.mxu0 %v575
      %v2026 = vpop.f32.mrf.mxu0
      %v2027 = vadd.f32 %v1322, %v2026
      %v2028 = vpop.f32.mrf.mxu0
      %2029 = vmatprep.mubr.f32.mxu0 %v580
      %2030 = vmatmul.mubr.f32.gmra.mxu0 %v579
      %v2031 = vpop.f32.mrf.mxu0
      %v2032 = vadd.f32 %v1327, %v2031
      %v2033 = vpop.f32.mrf.mxu0
      %2034 = vmatprep.mubr.f32.mxu0 %v584
      %2035 = vmatmul.mubr.f32.gmra.mxu0 %v583
      %v2036 = vpop.f32.mrf.mxu0
      %v2037 = vadd.f32 %v1332, %v2036
      %v2038 = vpop.f32.mrf.mxu0
      %2039 = vmatprep.mubr.f32.mxu0 %v588
      %2040 = vmatmul.mubr.f32.gmra.mxu0 %v587
      %v2041 = vpop.f32.mrf.mxu0
      %v2042 = vadd.f32 %v1337, %v2041
      %v2043 = vpop.f32.mrf.mxu0
      %2044 = vmatprep.mubr.f32.mxu0 %v592
      %2045 = vmatmul.mubr.f32.gmra.mxu0 %v591
      %v2046 = vpop.f32.mrf.mxu0
      %v2047 = vadd.f32 %v1342, %v2046
      %v2048 = vpop.f32.mrf.mxu0
      %2049 = vmatprep.mubr.f32.mxu0 %v596
      %2050 = vmatmul.mubr.f32.gmra.mxu0 %v595
      %v2051 = vpop.f32.mrf.mxu0
      %v2052 = vadd.f32 %v1347, %v2051
      %v2053 = vpop.f32.mrf.mxu0
      %2054 = vmatprep.mubr.f32.mxu0 %v600
      %2055 = vmatmul.mubr.f32.gmra.mxu0 %v599
      %v2056 = vpop.f32.mrf.mxu0
      %v2057 = vadd.f32 %v1352, %v2056
      %v2058 = vpop.f32.mrf.mxu0
      %2059 = vmatprep.mubr.f32.mxu0 %v604
      %2060 = vmatmul.mubr.f32.gmra.mxu0 %v603
      %v2061 = vpop.f32.mrf.mxu0
      %v2062 = vadd.f32 %v1357, %v2061
      %v2063 = vpop.f32.mrf.mxu0
      %2064 = vmatprep.mubr.f32.mxu0 %v608
      %2065 = vmatmul.mubr.f32.gmra.mxu0 %v607
      %v2066 = vpop.f32.mrf.mxu0
      %v2067 = vadd.f32 %v1362, %v2066
      %v2068 = vpop.f32.mrf.mxu0
      %2069 = vmatprep.mubr.f32.mxu0 %v612
      %2070 = vmatmul.mubr.f32.gmra.mxu0 %v611
      %v2071 = vpop.f32.mrf.mxu0
      %v2072 = vadd.f32 %v1367, %v2071
      %v2073 = vpop.f32.mrf.mxu0
      %2074 = vmatprep.mubr.f32.mxu0 %v616
      %2075 = vmatmul.mubr.f32.gmra.mxu0 %v615
      %v2076 = vpop.f32.mrf.mxu0
      %v2077 = vadd.f32 %v1372, %v2076
      %v2078 = vpop.f32.mrf.mxu0
      %2079 = vmatprep.mubr.f32.mxu0 %v620
      %2080 = vmatmul.mubr.f32.gmra.mxu0 %v619
      %v2081 = vpop.f32.mrf.mxu0
      %v2082 = vadd.f32 %v1377, %v2081
      %v2083 = vpop.f32.mrf.mxu0
      %2084 = vmatprep.mubr.f32.mxu0 %v624
      %2085 = vmatmul.mubr.f32.gmra.mxu0 %v623
      %v2086 = vpop.f32.mrf.mxu0
      %v2087 = vadd.f32 %v1382, %v2086
      %v2088 = vpop.f32.mrf.mxu0
      %2089 = vmatprep.mubr.f32.mxu0 %v628
      %2090 = vmatmul.mubr.f32.gmra.mxu0 %v627
      %v2091 = vpop.f32.mrf.mxu0
      %v2092 = vadd.f32 %v1387, %v2091
      %v2093 = vpop.f32.mrf.mxu0
      %2094 = vmatprep.mubr.f32.mxu0 %v632
      %2095 = vmatmul.mubr.f32.gmra.mxu0 %v631
      %v2096 = vpop.f32.mrf.mxu0
      %v2097 = vadd.f32 %v1392, %v2096
      %v2098 = vpop.f32.mrf.mxu0
      %2099 = vmatprep.mubr.f32.mxu0 %v636
      %2100 = vmatmul.mubr.f32.gmra.mxu0 %v635
      %v2101 = vpop.f32.mrf.mxu0
      %v2102 = vadd.f32 %v1397, %v2101
      %v2103 = vpop.f32.mrf.mxu0
      %2104 = vmatprep.mubr.f32.mxu0 %v640
      %2105 = vmatmul.mubr.f32.gmra.mxu0 %v639
      %v2106 = vpop.f32.mrf.mxu0
      %v2107 = vadd.f32 %v1402, %v2106
      %v2108 = vpop.f32.mrf.mxu0
      %2109 = vmatprep.mubr.f32.mxu0 %v644
      %2110 = vmatmul.mubr.f32.gmra.mxu0 %v643
      %v2111 = vpop.f32.mrf.mxu0
      %v2112 = vadd.f32 %v1407, %v2111
      %v2113 = vpop.f32.mrf.mxu0
      %2114 = vmatprep.mubr.f32.mxu0 %v648
      %2115 = vmatmul.mubr.f32.gmra.mxu0 %v647
      %v2116 = vpop.f32.mrf.mxu0
      %v2117 = vadd.f32 %v1412, %v2116
      %v2118 = vpop.f32.mrf.mxu0
      %2119 = vmatprep.mubr.f32.mxu0 %v652
      %2120 = vmatmul.mubr.f32.gmra.mxu0 %v651
      %v2121 = vpop.f32.mrf.mxu0
      %v2122 = vadd.f32 %v1417, %v2121
      %v2123 = vpop.f32.mrf.mxu0
      %2124 = vmatprep.mubr.f32.mxu0 %v656
      %2125 = vmatmul.mubr.f32.gmra.mxu0 %v655
      %v2126 = vpop.f32.mrf.mxu0
      %v2127 = vadd.f32 %v1422, %v2126
      %v2128 = vpop.f32.mrf.mxu0
      %2129 = vmatprep.mubr.f32.mxu0 %v660
      %2130 = vmatmul.mubr.f32.gmra.mxu0 %v659
      %v2131 = vpop.f32.mrf.mxu0
      %v2132 = vadd.f32 %v1427, %v2131
      %v2133 = vpop.f32.mrf.mxu0
      %2134 = vmatprep.mubr.f32.mxu0 %v664
      %2135 = vmatmul.mubr.f32.gmra.mxu0 %v663
      %v2136 = vpop.f32.mrf.mxu0
      %v2137 = vadd.f32 %v1432, %v2136
      %v2138 = vpop.f32.mrf.mxu0
      %2139 = vmatprep.mubr.f32.mxu0 %v668
      %2140 = vmatmul.mubr.f32.gmra.mxu0 %v667
      %v2141 = vpop.f32.mrf.mxu0
      %v2142 = vadd.f32 %v1437, %v2141
      %v2143 = vpop.f32.mrf.mxu0
      %2144 = vmatprep.mubr.f32.mxu0 %v672
      %2145 = vmatmul.mubr.f32.gmra.mxu0 %v671
      %v2146 = vpop.f32.mrf.mxu0
      %v2147 = vadd.f32 %v1442, %v2146
      %v2148 = vpop.f32.mrf.mxu0
      %2149 = vmatprep.mubr.f32.mxu0 %v676
      %2150 = vmatmul.mubr.f32.gmra.mxu0 %v675
      %v2151 = vpop.f32.mrf.mxu0
      %v2152 = vadd.f32 %v1447, %v2151
      %v2153 = vpop.f32.mrf.mxu0
      %2154 = vmatprep.mubr.f32.mxu0 %v680
      %2155 = vmatmul.mubr.f32.gmra.mxu0 %v679
      %v2156 = vpop.f32.mrf.mxu0
      %v2157 = vadd.f32 %v1452, %v2156
      %v2158 = vpop.f32.mrf.mxu0
      %2159 = vmatprep.mubr.f32.mxu0 %v684
      %2160 = vmatmul.mubr.f32.gmra.mxu0 %v683
      %v2161 = vpop.f32.mrf.mxu0
      %v2162 = vadd.f32 %v1457, %v2161
      %v2163 = vpop.f32.mrf.mxu0
      %2164 = vmatprep.mubr.f32.mxu0 %v688
      %2165 = vmatmul.mubr.f32.gmra.mxu0 %v687
      %v2166 = vpop.f32.mrf.mxu0
      %v2167 = vadd.f32 %v1462, %v2166
      %v2168 = vpop.f32.mrf.mxu0
      %2169 = vdwg.mxu0
      %vm2170 = vcmask 23552
      %2171 = vst.msk [vmem:[%s175] sm:$0xff] %vm2170, %v1532
      %2172 = vst.msk [vmem:[%s175 + $0x8] sm:$0xff] %vm2170, %v1537
      %2173 = vst.msk [vmem:[%s175 + $0x10] sm:$0xff] %vm2170, %v1542
      %2174 = vst.msk [vmem:[%s175 + $0x18] sm:$0xff] %vm2170, %v1547
      %2175 = vst.msk [vmem:[%s175 + $0x20] sm:$0xff] %vm2170, %v1552
      %2176 = vst.msk [vmem:[%s175 + $0x28] sm:$0xff] %vm2170, %v1557
      %2177 = vst.msk [vmem:[%s175 + $0x30] sm:$0xff] %vm2170, %v1562
      %2178 = vst.msk [vmem:[%s175 + $0x38] sm:$0xff] %vm2170, %v1567
      %2179 = vst.msk [vmem:[%s175 + $0x40] sm:$0xff] %vm2170, %v1572
      %2180 = vst.msk [vmem:[%s175 + $0x48] sm:$0xff] %vm2170, %v1577
      %2181 = vst.msk [vmem:[%s175 + $0x50] sm:$0xff] %vm2170, %v1582
      %2182 = vst.msk [vmem:[%s175 + $0x58] sm:$0xff] %vm2170, %v1587
      %2183 = vst.msk [vmem:[%s175 + $0x60] sm:$0xff] %vm2170, %v1592
      %2184 = vst.msk [vmem:[%s175 + $0x68] sm:$0xff] %vm2170, %v1597
      %2185 = vst.msk [vmem:[%s175 + $0x70] sm:$0xff] %vm2170, %v1602
      %2186 = vst.msk [vmem:[%s175 + $0x78] sm:$0xff] %vm2170, %v1607
      %2187 = vst.msk [vmem:[%s175 + $0x80] sm:$0xff] %vm2170, %v1612
      %2188 = vst.msk [vmem:[%s175 + $0x88] sm:$0xff] %vm2170, %v1617
      %2189 = vst.msk [vmem:[%s175 + $0x90] sm:$0xff] %vm2170, %v1622
      %2190 = vst.msk [vmem:[%s175 + $0x98] sm:$0xff] %vm2170, %v1627
      %2191 = vst.msk [vmem:[%s175 + $0xa0] sm:$0xff] %vm2170, %v1632
      %2192 = vst.msk [vmem:[%s175 + $0xa8] sm:$0xff] %vm2170, %v1637
      %2193 = vst.msk [vmem:[%s175 + $0xb0] sm:$0xff] %vm2170, %v1642
      %2194 = vst.msk [vmem:[%s175 + $0xb8] sm:$0xff] %vm2170, %v1647
      %2195 = vst.msk [vmem:[%s175 + $0xc0] sm:$0xff] %vm2170, %v1652
      %2196 = vst.msk [vmem:[%s175 + $0xc8] sm:$0xff] %vm2170, %v1657
      %2197 = vst.msk [vmem:[%s175 + $0xd0] sm:$0xff] %vm2170, %v1662
      %2198 = vst.msk [vmem:[%s175 + $0xd8] sm:$0xff] %vm2170, %v1667
      %2199 = vst.msk [vmem:[%s175 + $0xe0] sm:$0xff] %vm2170, %v1672
      %2200 = vst.msk [vmem:[%s175 + $0xe8] sm:$0xff] %vm2170, %v1677
      %2201 = vst.msk [vmem:[%s175 + $0xf0] sm:$0xff] %vm2170, %v1682
      %2202 = vst.msk [vmem:[%s175 + $0xf8] sm:$0xff] %vm2170, %v1687
      %2203 = vst.msk [vmem:[%s175 + $0x100] sm:$0xff] %vm2170, %v1692
      %2204 = vst.msk [vmem:[%s175 + $0x108] sm:$0xff] %vm2170, %v1697
      %2205 = vst.msk [vmem:[%s175 + $0x110] sm:$0xff] %vm2170, %v1702
      %2206 = vst.msk [vmem:[%s175 + $0x118] sm:$0xff] %vm2170, %v1707
      %2207 = vst.msk [vmem:[%s175 + $0x120] sm:$0xff] %vm2170, %v1712
      %2208 = vst.msk [vmem:[%s175 + $0x128] sm:$0xff] %vm2170, %v1717
      %2209 = vst.msk [vmem:[%s175 + $0x130] sm:$0xff] %vm2170, %v1722
      %2210 = vst.msk [vmem:[%s175 + $0x138] sm:$0xff] %vm2170, %v1727
      %2211 = vst.msk [vmem:[%s175 + $0x140] sm:$0xff] %vm2170, %v1732
      %2212 = vst.msk [vmem:[%s175 + $0x148] sm:$0xff] %vm2170, %v1737
      %2213 = vst.msk [vmem:[%s175 + $0x150] sm:$0xff] %vm2170, %v1742
      %2214 = vst.msk [vmem:[%s175 + $0x158] sm:$0xff] %vm2170, %v1747
      %2215 = vst.msk [vmem:[%s175 + $0x160] sm:$0xff] %vm2170, %v1752
      %2216 = vst.msk [vmem:[%s175 + $0x168] sm:$0xff] %vm2170, %v1757
      %2217 = vst.msk [vmem:[%s175 + $0x170] sm:$0xff] %vm2170, %v1762
      %2218 = vst.msk [vmem:[%s175 + $0x178] sm:$0xff] %vm2170, %v1767
      %2219 = vst.msk [vmem:[%s175 + $0x180] sm:$0xff] %vm2170, %v1772
      %2220 = vst.msk [vmem:[%s175 + $0x188] sm:$0xff] %vm2170, %v1777
      %2221 = vst.msk [vmem:[%s175 + $0x190] sm:$0xff] %vm2170, %v1782
      %2222 = vst.msk [vmem:[%s175 + $0x198] sm:$0xff] %vm2170, %v1787
      %2223 = vst.msk [vmem:[%s175 + $0x1a0] sm:$0xff] %vm2170, %v1792
      %2224 = vst.msk [vmem:[%s175 + $0x1a8] sm:$0xff] %vm2170, %v1797
      %2225 = vst.msk [vmem:[%s175 + $0x1b0] sm:$0xff] %vm2170, %v1802
      %2226 = vst.msk [vmem:[%s175 + $0x1b8] sm:$0xff] %vm2170, %v1807
      %2227 = vst.msk [vmem:[%s175 + $0x1c0] sm:$0xff] %vm2170, %v1812
      %2228 = vst.msk [vmem:[%s175 + $0x1c8] sm:$0xff] %vm2170, %v1817
      %2229 = vst.msk [vmem:[%s175 + $0x1d0] sm:$0xff] %vm2170, %v1822
      %2230 = vst.msk [vmem:[%s175 + $0x1d8] sm:$0xff] %vm2170, %v1827
      %2231 = vst.msk [vmem:[%s175 + $0x1e0] sm:$0xff] %vm2170, %v1832
      %2232 = vst.msk [vmem:[%s175 + $0x1e8] sm:$0xff] %vm2170, %v1837
      %2233 = vst.msk [vmem:[%s175 + $0x1f0] sm:$0xff] %vm2170, %v1842
      %2234 = vst.msk [vmem:[%s175 + $0x1f8] sm:$0xff] %vm2170, %v1847
      %2235 = vst.msk [vmem:[%s175 + $0x200] sm:$0xff] %vm2170, %v1852
      %2236 = vst.msk [vmem:[%s175 + $0x208] sm:$0xff] %vm2170, %v1857
      %2237 = vst.msk [vmem:[%s175 + $0x210] sm:$0xff] %vm2170, %v1862
      %2238 = vst.msk [vmem:[%s175 + $0x218] sm:$0xff] %vm2170, %v1867
      %2239 = vst.msk [vmem:[%s175 + $0x220] sm:$0xff] %vm2170, %v1872
      %2240 = vst.msk [vmem:[%s175 + $0x228] sm:$0xff] %vm2170, %v1877
      %2241 = vst.msk [vmem:[%s175 + $0x230] sm:$0xff] %vm2170, %v1882
      %2242 = vst.msk [vmem:[%s175 + $0x238] sm:$0xff] %vm2170, %v1887
      %2243 = vst.msk [vmem:[%s175 + $0x240] sm:$0xff] %vm2170, %v1892
      %2244 = vst.msk [vmem:[%s175 + $0x248] sm:$0xff] %vm2170, %v1897
      %2245 = vst.msk [vmem:[%s175 + $0x250] sm:$0xff] %vm2170, %v1902
      %2246 = vst.msk [vmem:[%s175 + $0x258] sm:$0xff] %vm2170, %v1907
      %2247 = vst.msk [vmem:[%s175 + $0x260] sm:$0xff] %vm2170, %v1912
      %2248 = vst.msk [vmem:[%s175 + $0x268] sm:$0xff] %vm2170, %v1917
      %2249 = vst.msk [vmem:[%s175 + $0x270] sm:$0xff] %vm2170, %v1922
      %2250 = vst.msk [vmem:[%s175 + $0x278] sm:$0xff] %vm2170, %v1927
      %2251 = vst.msk [vmem:[%s175 + $0x280] sm:$0xff] %vm2170, %v1932
      %2252 = vst.msk [vmem:[%s175 + $0x288] sm:$0xff] %vm2170, %v1937
      %2253 = vst.msk [vmem:[%s175 + $0x290] sm:$0xff] %vm2170, %v1942
      %2254 = vst.msk [vmem:[%s175 + $0x298] sm:$0xff] %vm2170, %v1947
      %2255 = vst.msk [vmem:[%s175 + $0x2a0] sm:$0xff] %vm2170, %v1952
      %2256 = vst.msk [vmem:[%s175 + $0x2a8] sm:$0xff] %vm2170, %v1957
      %2257 = vst.msk [vmem:[%s175 + $0x2b0] sm:$0xff] %vm2170, %v1962
      %2258 = vst.msk [vmem:[%s175 + $0x2b8] sm:$0xff] %vm2170, %v1967
      %2259 = vst.msk [vmem:[%s175 + $0x2c0] sm:$0xff] %vm2170, %v1972
      %2260 = vst.msk [vmem:[%s175 + $0x2c8] sm:$0xff] %vm2170, %v1977
      %2261 = vst.msk [vmem:[%s175 + $0x2d0] sm:$0xff] %vm2170, %v1982
      %2262 = vst.msk [vmem:[%s175 + $0x2d8] sm:$0xff] %vm2170, %v1987
      %2263 = vst.msk [vmem:[%s175 + $0x2e0] sm:$0xff] %vm2170, %v1992
      %2264 = vst.msk [vmem:[%s175 + $0x2e8] sm:$0xff] %vm2170, %v1997
      %2265 = vst.msk [vmem:[%s175 + $0x2f0] sm:$0xff] %vm2170, %v2002
      %2266 = vst.msk [vmem:[%s175 + $0x2f8] sm:$0xff] %vm2170, %v2007
      %2267 = vst.msk [vmem:[%s175 + $0x300] sm:$0xff] %vm2170, %v2012
      %2268 = vst.msk [vmem:[%s175 + $0x308] sm:$0xff] %vm2170, %v2017
      %2269 = vst.msk [vmem:[%s175 + $0x310] sm:$0xff] %vm2170, %v2022
      %2270 = vst.msk [vmem:[%s175 + $0x318] sm:$0xff] %vm2170, %v2027
      %2271 = vst.msk [vmem:[%s175 + $0x320] sm:$0xff] %vm2170, %v2032
      %2272 = vst.msk [vmem:[%s175 + $0x328] sm:$0xff] %vm2170, %v2037
      %2273 = vst.msk [vmem:[%s175 + $0x330] sm:$0xff] %vm2170, %v2042
      %2274 = vst.msk [vmem:[%s175 + $0x338] sm:$0xff] %vm2170, %v2047
      %2275 = vst.msk [vmem:[%s175 + $0x340] sm:$0xff] %vm2170, %v2052
      %2276 = vst.msk [vmem:[%s175 + $0x348] sm:$0xff] %vm2170, %v2057
      %2277 = vst.msk [vmem:[%s175 + $0x350] sm:$0xff] %vm2170, %v2062
      %2278 = vst.msk [vmem:[%s175 + $0x358] sm:$0xff] %vm2170, %v2067
      %2279 = vst.msk [vmem:[%s175 + $0x360] sm:$0xff] %vm2170, %v2072
      %2280 = vst.msk [vmem:[%s175 + $0x368] sm:$0xff] %vm2170, %v2077
      %2281 = vst.msk [vmem:[%s175 + $0x370] sm:$0xff] %vm2170, %v2082
      %2282 = vst.msk [vmem:[%s175 + $0x378] sm:$0xff] %vm2170, %v2087
      %2283 = vst.msk [vmem:[%s175 + $0x380] sm:$0xff] %vm2170, %v2092
      %2284 = vst.msk [vmem:[%s175 + $0x388] sm:$0xff] %vm2170, %v2097
      %2285 = vst.msk [vmem:[%s175 + $0x390] sm:$0xff] %vm2170, %v2102
      %2286 = vst.msk [vmem:[%s175 + $0x398] sm:$0xff] %vm2170, %v2107
      %2287 = vst.msk [vmem:[%s175 + $0x3a0] sm:$0xff] %vm2170, %v2112
      %2288 = vst.msk [vmem:[%s175 + $0x3a8] sm:$0xff] %vm2170, %v2117
      %2289 = vst.msk [vmem:[%s175 + $0x3b0] sm:$0xff] %vm2170, %v2122
      %2290 = vst.msk [vmem:[%s175 + $0x3b8] sm:$0xff] %vm2170, %v2127
      %2291 = vst.msk [vmem:[%s175 + $0x3c0] sm:$0xff] %vm2170, %v2132
      %2292 = vst.msk [vmem:[%s175 + $0x3c8] sm:$0xff] %vm2170, %v2137
      %2293 = vst.msk [vmem:[%s175 + $0x3d0] sm:$0xff] %vm2170, %v2142
      %2294 = vst.msk [vmem:[%s175 + $0x3d8] sm:$0xff] %vm2170, %v2147
      %2295 = vst.msk [vmem:[%s175 + $0x3e0] sm:$0xff] %vm2170, %v2152
      %2296 = vst.msk [vmem:[%s175 + $0x3e8] sm:$0xff] %vm2170, %v2157
      %2297 = vst.msk [vmem:[%s175 + $0x3f0] sm:$0xff] %vm2170, %v2162
      %2298 = vst.msk [vmem:[%s175 + $0x3f8] sm:$0xff] %vm2170, %v2167
      %s2299 = smul.u32 128, %s14
      %p2300 = scmp.lt.s32.totalorder %s2299, 1023
      %s2301 = scalar_select %p2300, %s2299, 1023
      %s2302 = smul.addr %s2301, 8
      %s2303 = scalar_lea.vmem %s3, %s2302
      // Predicated region
      $region33: #{_lambda_.17} parent=31 // pred_check
        %p2304 = pneg %p100
      $region34: #{_lambda_.17} parent=31 // pred_check_branch
        %2306 = sbr.rel (%p2304) target = $region36
      $region35: #{_lambda_.17} parent=31 // pred_region
        %s2307 = smul.u32 128, %s14
      $region36: #{_lambda_.17} parent=31 // pred_fallthru
        _
    $region32: #{_lambda_.17} parent=5 // pred_fallthru
      _
    %p2308 = scmp.le.s32.totalorder 2, %s9
    // Predicated region
    $region37: #{_lambda_.17} parent=5 // pred_check
      %p2309 = pneg %p2308
    $region38: #{_lambda_.17} parent=5 // pred_check_branch
      %2311 = sbr.rel (%p2309) target = $region40
    $region39: #{_lambda_.17} parent=5 // pred_region
      %s2312 = ssub.s32 %s9, 2
      // Predicated region
      $region41: #{_lambda_.17} parent=39 // pred_check
        %p2313 = pneg %p106
      $region42: #{_lambda_.17} parent=39 // pred_check_branch
        %2315 = sbr.rel (%p2313) target = $region44
      $region43: #{_lambda_.17} parent=39 // pred_region
        %s2316 = smul.u32 128, %s15
        %p2317 = scmp.lt.s32.totalorder %s2316, 1023
        %s2318 = scalar_select %p2317, %s2316, 1023
        %s2319 = smul.addr %s2318, 8
        %s2320 = scalar_lea.vmem %s3, %s2319
      $region44: #{_lambda_.17} parent=39 // pred_fallthru
        _
    $region40: #{_lambda_.17} parent=5 // pred_fallthru
      _
  $region6: #{_lambda_.17} parent=0 // loop_footer
    %s13 = sadd.s32 1, %s9
  $region7: #{_lambda_.17} parent=0 // loop_footer_branch
    %8 = sbr.rel target = $region3
  $region8: #{_lambda_.17} parent=0 // loop_exit
    _

</llo_original>
